<compile_context>
chip_gen: v6e
topology: v6e:2x2x1
jax: 0.10.0
libtpu: 0.0.40
codegen_flags: <defaults>
</compile_context>

<pallas_src>
import functools

import numpy as np
import jax
import jax.numpy as jnp
from jax.experimental import pallas as pl
from jax.experimental.pallas import tpu as pltpu

_HI = jax.lax.Precision.HIGHEST  # keep f32 accuracy through the MXU


def _ceil_div(a, b):
    return -(-a // b)


# ---------------------------------------------------------------------------
# Weight packing (wrapper side, tiny, constant-folded under jit)
# ---------------------------------------------------------------------------

def _banded_conv_mats(w_oihw, w_in):
    """Pack a KHxKW conv as KH matrices M_i of shape (w_in*Cin, w_out*Cout).

    With activations in a (H, W*Cin) layout the conv becomes
        out = sum_i  act[i : i + h_out, :] @ M_i
    where M_i[(q+j)*Cin + c, q*Cout + o] = W[o, c, i, j].
    """
    cout, cin, kh, kw = w_oihw.shape
    w_out = w_in - kw + 1
    mats = []
    for i in range(kh):
        m = jnp.zeros((w_in * cin, w_out * cout), jnp.float32)
        for j in range(kw):
            blk = w_oihw[:, :, i, j].T.astype(jnp.float32)      # (cin, cout)
            for q in range(w_out):
                m = m.at[(q + j) * cin:(q + j + 1) * cin,
                         q * cout:(q + 1) * cout].set(blk)
        mats.append(m)
    return jnp.stack(mats)                                       # (kh, ., .)


def _row_bcast(v, w_out):
    """Per-channel vector -> (1, w_out*C) row matching the (H, W*C) layout."""
    return jnp.tile(v.astype(jnp.float32), w_out)[None, :]


def _pool_row_select(h_in):
    """(2, ceil(h/2), h) 0/1 matrices picking even/odd rows (ceil mode)."""
    h_out = _ceil_div(h_in, 2)
    p = np.zeros((2, h_out, h_in), np.float32)
    for a in range(2):
        for r in range(h_out):
            p[a, r, min(2 * r + a, h_in - 1)] = 1.0
    return jnp.asarray(p)


def _pool_col_select(w_in, c):
    """(2, w_in*c, ceil(w/2)*c) 0/1 matrices picking even/odd width groups."""
    w_out = _ceil_div(w_in, 2)
    s = np.zeros((2, w_in * c, w_out * c), np.float32)
    eye = np.eye(c, dtype=np.float32)
    for b in range(2):
        for q in range(w_out):
            src = min(2 * q + b, w_in - 1)
            s[b, src * c:(src + 1) * c, q * c:(q + 1) * c] = eye
    return jnp.asarray(s)


def _merged_head(w41, b41, w42, b42, w_out):
    """Merge the two 1x1 heads into one (w_out*32, w_out*6) matrix.

    First w_out*2 columns produce the class-logit differences (y_c - y_{1-c})
    so the 2-class softmax is just a sigmoid in-kernel; the remaining w_out*4
    columns are the bbox regression.
    """
    cin, na, nb = 32, 2, 4
    wa = w41.reshape(na, cin).T.astype(jnp.float32)   # (32, 2)
    wb = w42.reshape(nb, cin).T.astype(jnp.float32)   # (32, 4)
    ba = b41.astype(jnp.float32)
    bb = b42.astype(jnp.float32)
    wdiff = wa - wa[:, ::-1]
    bdiff = ba - ba[::-1]
    m = jnp.zeros((w_out * cin, w_out * (na + nb)), jnp.float32)
    bias = jnp.zeros((w_out * (na + nb),), jnp.float32)
    for q in range(w_out):
        m = m.at[q * cin:(q + 1) * cin, q * na:(q + 1) * na].set(wdiff)
        m = m.at[q * cin:(q + 1) * cin,
                 w_out * na + q * nb:w_out * na + (q + 1) * nb].set(wb)
        bias = bias.at[q * na:(q + 1) * na].set(bdiff)
        bias = bias.at[w_out * na + q * nb:w_out * na + (q + 1) * nb].set(bb)
    return m, bias[None, :]


# ---------------------------------------------------------------------------
# Fused Pallas kernel (one grid step == one image)
# ---------------------------------------------------------------------------

def _pnet_fused_kernel(x_ref, m1_ref, b1_ref, a1_ref, pr_ref, pc_ref,
                       m2_ref, b2_ref, a2_ref, m3_ref, b3_ref, a3_ref,
                       mh_ref, bh_ref,
                       a_ref, b_ref,
                       c1_ref, p1_ref, c2_ref):
    def dot(a, b):
        return jnp.dot(a, b, precision=_HI, preferred_element_type=jnp.float32)

    def conv3x3_prelu(in_ref, m_ref, bias_ref, alpha_ref, h_out, lead=None):
        def rows(i):
            if lead is None:
                return in_ref[pl.ds(i, h_out), :]
            return in_ref[lead, pl.ds(i, h_out), :]
        acc = dot(rows(0), m_ref[0])
        acc = acc + dot(rows(1), m_ref[1])
        acc = acc + dot(rows(2), m_ref[2])
        acc = acc + bias_ref[...]
        return jnp.where(acc > 0.0, acc, alpha_ref[...] * acc)

    # conv1 + PReLU : (H, W*3) -> (H-2, (W-2)*10), kept in VMEM scratch
    c1_ref[...] = conv3x3_prelu(x_ref, m1_ref, b1_ref, a1_ref,
                                x_ref.shape[1] - 2, lead=0)

    # 2x2 ceil-mode max-pool fused in-kernel (selection matmuls + maxima)
    c1 = c1_ref[...]
    rmax = jnp.maximum(dot(pr_ref[0], c1), dot(pr_ref[1], c1))
    p1_ref[...] = jnp.maximum(dot(rmax, pc_ref[0]), dot(rmax, pc_ref[1]))

    # conv2 + PReLU
    c2_ref[...] = conv3x3_prelu(p1_ref, m2_ref, b2_ref, a2_ref,
                                p1_ref.shape[0] - 2)

    # conv3 + PReLU (value; feeds the merged heads directly)
    c3 = conv3x3_prelu(c2_ref, m3_ref, b3_ref, a3_ref, c2_ref.shape[0] - 2)

    # merged 1x1 heads: one GEMM, then sigmoid == 2-class softmax on the
    # first n_a lanes, pass-through bbox regression on the rest.
    head = dot(c3, mh_ref[...]) + bh_ref[...]
    n_a = a_ref.shape[-1]
    logits = head[:, 0:n_a]
    a_ref[0] = 1.0 / (1.0 + jnp.exp(-logits))
    b_ref[0] = head[:, n_a:]


# ---------------------------------------------------------------------------
# Forward pass wrapper
# ---------------------------------------------------------------------------

def pnet_forward(x_nchw, params):
    n, cin, h, w = x_nchw.shape
    assert cin == 3, "PNet expects 3 input channels"

    c1o = params["conv1_w"].shape[0]   # 10
    c2o = params["conv2_w"].shape[0]   # 16
    c3o = params["conv3_w"].shape[0]   # 32

    # layer geometry
    h1, w1 = h - 2, w - 2
    hp, wp = _ceil_div(h1, 2), _ceil_div(w1, 2)
    h2, w2 = hp - 2, wp - 2
    h3, w3 = h2 - 2, w2 - 2

    # NCHW -> (N, H, W*C) layout
    x = jnp.transpose(x_nchw, (0, 2, 3, 1)).reshape(n, h, w * cin)
    x = x.astype(jnp.float32)

    # weight packing (constant-folded under jit)
    m1 = _banded_conv_mats(params["conv1_w"], w)
    b1 = _row_bcast(params["conv1_b"], w1)
    a1 = _row_bcast(params["prelu1"], w1)
    pr = _pool_row_select(h1)
    pc = _pool_col_select(w1, c1o)
    m2 = _banded_conv_mats(params["conv2_w"], wp)
    b2 = _row_bcast(params["conv2_b"], w2)
    a2 = _row_bcast(params["prelu2"], w2)
    m3 = _banded_conv_mats(params["conv3_w"], w2)
    b3 = _row_bcast(params["conv3_b"], w3)
    a3 = _row_bcast(params["prelu3"], w3)
    mh, bh = _merged_head(params["conv4_1_w"], params["conv4_1_b"],
                          params["conv4_2_w"], params["conv4_2_b"], w3)

    def full(arr):
        nd = arr.ndim
        return pl.BlockSpec(arr.shape, lambda i, nd=nd: (0,) * nd)

    weights = (m1, b1, a1, pr, pc, m2, b2, a2, m3, b3, a3, mh, bh)

    grid_spec = pltpu.PrefetchScalarGridSpec(
        num_scalar_prefetch=0,
        grid=(n,),
        in_specs=[pl.BlockSpec((1, h, w * cin), lambda i: (i, 0, 0))]
                 + [full(a) for a in weights],
        out_specs=[pl.BlockSpec((1, h3, w3 * 2), lambda i: (i, 0, 0)),
                   pl.BlockSpec((1, h3, w3 * 4), lambda i: (i, 0, 0))],
        scratch_shapes=[pltpu.VMEM((h1, w1 * c1o), jnp.float32),   # conv1 out
                        pltpu.VMEM((hp, wp * c1o), jnp.float32),   # pooled
                        pltpu.VMEM((h2, w2 * c2o), jnp.float32)],  # conv2 out
    )

    a_flat, b_flat = pl.pallas_call(
        _pnet_fused_kernel,
        grid_spec=grid_spec,
        out_shape=(jax.ShapeDtypeStruct((n, h3, w3 * 2), jnp.float32),
                   jax.ShapeDtypeStruct((n, h3, w3 * 4), jnp.float32)),
        compiler_params=pltpu.CompilerParams(
            dimension_semantics=("parallel",)),
    )(x, *weights)

    # (N, H3, W3*C) layout -> NCHW, matching the PyTorch return convention
    a_nchw = jnp.transpose(a_flat.reshape(n, h3, w3, 2), (0, 3, 1, 2))
    b_nchw = jnp.transpose(b_flat.reshape(n, h3, w3, 4), (0, 3, 1, 2))
    # TODO(synk): PyTorch's .cpu() is a host transfer; handled by JAX outside the kernel.
    return b_nchw, a_nchw


# ---------------------------------------------------------------------------
# Pure-XLA reference (only for the in-script correctness check)
# ---------------------------------------------------------------------------

def _reference_forward(x_nchw, params):
    def conv(x, wgt, b):
        y = jax.lax.conv_general_dilated(
            x, wgt, window_strides=(1, 1), padding="VALID",
            dimension_numbers=("NCHW", "OIHW", "NCHW"), precision=_HI)
        return y + b[None, :, None, None]

    def prelu(x, a):
        return jnp.where(x > 0, x, a[None, :, None, None] * x)

    x = prelu(conv(x_nchw, params["conv1_w"], params["conv1_b"]), params["prelu1"])
    _, _, hh, ww = x.shape
    x = jnp.pad(x, ((0, 0), (0, 0), (0, (-hh) % 2), (0, (-ww) % 2)),
                constant_values=-jnp.inf)
    x = jax.lax.reduce_window(x, -jnp.inf, jax.lax.max,
                              (1, 1, 2, 2), (1, 1, 2, 2), "VALID")
    x = prelu(conv(x, params["conv2_w"], params["conv2_b"]), params["prelu2"])
    x = prelu(conv(x, params["conv3_w"], params["conv3_b"]), params["prelu3"])
    a = jax.nn.softmax(conv(x, params["conv4_1_w"], params["conv4_1_b"]), axis=1)
    b = conv(x, params["conv4_2_w"], params["conv4_2_b"])
    return b, a


# ---------------------------------------------------------------------------
# Parameters (deterministic synthetic init — no checkpoint loading)
# ---------------------------------------------------------------------------

def _init_conv(key, cout, cin, k):
    k1, k2 = jax.random.split(key)
    fan_in = cin * k * k
    wgt = jax.random.normal(k1, (cout, cin, k, k), jnp.float32) / jnp.sqrt(
        jnp.float32(fan_in))
    b = 0.1 * jax.random.normal(k2, (cout,), jnp.float32)
    return wgt, b


def init_pnet_params(key):
    keys = jax.random.split(key, 5)
    p = {}
    p["conv1_w"], p["conv1_b"] = _init_conv(keys[0], 10, 3, 3)
    p["prelu1"] = jnp.full((10,), 0.25, jnp.float32)   # PyTorch PReLU default
    p["conv2_w"], p["conv2_b"] = _init_conv(keys[1], 16, 10, 3)
    p["prelu2"] = jnp.full((16,), 0.25, jnp.float32)
    p["conv3_w"], p["conv3_b"] = _init_conv(keys[2], 32, 16, 3)
    p["prelu3"] = jnp.full((32,), 0.25, jnp.float32)
    p["conv4_1_w"], p["conv4_1_b"] = _init_conv(keys[3], 2, 32, 1)
    p["conv4_2_w"], p["conv4_2_b"] = _init_conv(keys[4], 4, 32, 1)
    return p


# ---------------------------------------------------------------------------
# Main
# ---------------------------------------------------------------------------

if __name__ == "__main__":
    key = jax.random.PRNGKey(0)
    k_x, k_p = jax.random.split(key)

    # 16x16 RGB: conv1 -> 14, pool -> 7, conv2 -> 5, conv3 -> 3, heads on 3x3.
    x = jax.random.normal(k_x, (2, 3, 16, 16), jnp.float32)   # NCHW like PyTorch
    params = init_pnet_params(k_p)

    fwd = jax.jit(functools.partial(pnet_forward, params=params))
    b_out, a_out = fwd(x)
    jax.block_until_ready((b_out, a_out))

    assert b_out.shape == (2, 4, 3, 3), b_out.shape
    assert a_out.shape == (2, 2, 3, 3), a_out.shape
    # softmax over the channel dim sums to 1
    assert bool(jnp.allclose(jnp.sum(a_out, axis=1), 1.0, atol=1e-5))

    # cross-check the fused kernel against a pure-XLA reference
    ref_fwd = jax.jit(functools.partial(_reference_forward, params=params))
    b_ref, a_ref = ref_fwd(x)
    jax.block_until_ready((b_ref, a_ref))
    np.testing.assert_allclose(np.asarray(b_out), np.asarray(b_ref),
                               rtol=1e-3, atol=1e-4)
    np.testing.assert_allclose(np.asarray(a_out), np.asarray(a_ref),
                               rtol=1e-3, atol=1e-4)

    print("KERNEL_OK")
</pallas_src>

<mosaic_0001>
module attributes {stable_mosaic.version = 11 : i64} {
  func.func @_pnet_fused_kernel(%arg0: i32, %arg1: memref<1x16x48xf32, #tpu.memory_space<vmem>>, %arg2: memref<3x48x140xf32, #tpu.memory_space<vmem>>, %arg3: memref<1x140xf32, #tpu.memory_space<vmem>>, %arg4: memref<1x140xf32, #tpu.memory_space<vmem>>, %arg5: memref<2x7x14xf32, #tpu.memory_space<vmem>>, %arg6: memref<2x140x70xf32, #tpu.memory_space<vmem>>, %arg7: memref<3x70x80xf32, #tpu.memory_space<vmem>>, %arg8: memref<1x80xf32, #tpu.memory_space<vmem>>, %arg9: memref<1x80xf32, #tpu.memory_space<vmem>>, %arg10: memref<3x80x96xf32, #tpu.memory_space<vmem>>, %arg11: memref<1x96xf32, #tpu.memory_space<vmem>>, %arg12: memref<1x96xf32, #tpu.memory_space<vmem>>, %arg13: memref<96x18xf32, #tpu.memory_space<vmem>>, %arg14: memref<1x18xf32, #tpu.memory_space<vmem>>, %arg15: memref<1x3x6xf32, #tpu.memory_space<vmem>>, %arg16: memref<1x3x12xf32, #tpu.memory_space<vmem>>, %arg17: memref<14x140xf32, #tpu.memory_space<vmem>>, %arg18: memref<7x70xf32, #tpu.memory_space<vmem>>, %arg19: memref<5x80xf32, #tpu.memory_space<vmem>>) attributes {dimension_semantics = [#tpu.dimension_semantics<parallel>], iteration_bounds = array<i64: 2>, scalar_prefetch = 0 : i64, scratch_operands = 3 : i64, tpu.core_type = #tpu.core_type<tc>, window_params = [{transform_indices = @transform_0, window_bounds = array<i64: 1, 16, 48>}, {pipeline_mode = #tpu.pipeline_mode<synchronous>, transform_indices = @transform_1, window_bounds = array<i64: 3, 48, 140>}, {pipeline_mode = #tpu.pipeline_mode<synchronous>, transform_indices = @transform_2, window_bounds = array<i64: 1, 140>}, {pipeline_mode = #tpu.pipeline_mode<synchronous>, transform_indices = @transform_3, window_bounds = array<i64: 1, 140>}, {pipeline_mode = #tpu.pipeline_mode<synchronous>, transform_indices = @transform_4, window_bounds = array<i64: 2, 7, 14>}, {pipeline_mode = #tpu.pipeline_mode<synchronous>, transform_indices = @transform_5, window_bounds = array<i64: 2, 140, 70>}, {pipeline_mode = #tpu.pipeline_mode<synchronous>, transform_indices = @transform_6, window_bounds = array<i64: 3, 70, 80>}, {pipeline_mode = #tpu.pipeline_mode<synchronous>, transform_indices = @transform_7, window_bounds = array<i64: 1, 80>}, {pipeline_mode = #tpu.pipeline_mode<synchronous>, transform_indices = @transform_8, window_bounds = array<i64: 1, 80>}, {pipeline_mode = #tpu.pipeline_mode<synchronous>, transform_indices = @transform_9, window_bounds = array<i64: 3, 80, 96>}, {pipeline_mode = #tpu.pipeline_mode<synchronous>, transform_indices = @transform_10, window_bounds = array<i64: 1, 96>}, {pipeline_mode = #tpu.pipeline_mode<synchronous>, transform_indices = @transform_11, window_bounds = array<i64: 1, 96>}, {pipeline_mode = #tpu.pipeline_mode<synchronous>, transform_indices = @transform_12, window_bounds = array<i64: 96, 18>}, {pipeline_mode = #tpu.pipeline_mode<synchronous>, transform_indices = @transform_13, window_bounds = array<i64: 1, 18>}, {transform_indices = @transform_14, window_bounds = array<i64: 1, 3, 6>}, {transform_indices = @transform_15, window_bounds = array<i64: 1, 3, 12>}]} {
    %c0 = arith.constant 0 : index
    %c0_0 = arith.constant 0 : index
    %c0_1 = arith.constant 0 : index
    %0 = vector.load %arg1[%c0, %c0_0, %c0_1] : memref<1x16x48xf32, #tpu.memory_space<vmem>>, vector<1x14x48xf32>
    %1 = vector.shape_cast %0 : vector<1x14x48xf32> to vector<14x48xf32>
    %c0_2 = arith.constant 0 : index
    %c0_3 = arith.constant 0 : index
    %c0_4 = arith.constant 0 : index
    %2 = vector.load %arg2[%c0_2, %c0_3, %c0_4] : memref<3x48x140xf32, #tpu.memory_space<vmem>>, vector<1x48x140xf32>
    %3 = vector.shape_cast %2 : vector<1x48x140xf32> to vector<48x140xf32>
    %cst = arith.constant dense<0.000000e+00> : vector<14x140xf32>
    %4 = tpu.matmul %1, %3, %cst {dimension_numbers = #tpu.dot_dimension_numbers<[1], [0], [0], [1], [0, 0, 1, 1], [], []>, precision = #tpu.contract_precision<fp32>} : vector<14x48xf32>, vector<48x140xf32>, vector<14x140xf32> -> vector<14x140xf32>
    %c0_5 = arith.constant 0 : index
    %c1 = arith.constant 1 : index
    %c0_6 = arith.constant 0 : index
    %5 = vector.load %arg1[%c0_5, %c1, %c0_6] : memref<1x16x48xf32, #tpu.memory_space<vmem>>, vector<1x14x48xf32>
    %6 = vector.shape_cast %5 : vector<1x14x48xf32> to vector<14x48xf32>
    %c1_7 = arith.constant 1 : index
    %c0_8 = arith.constant 0 : index
    %c0_9 = arith.constant 0 : index
    %7 = vector.load %arg2[%c1_7, %c0_8, %c0_9] : memref<3x48x140xf32, #tpu.memory_space<vmem>>, vector<1x48x140xf32>
    %8 = vector.shape_cast %7 : vector<1x48x140xf32> to vector<48x140xf32>
    %cst_10 = arith.constant dense<0.000000e+00> : vector<14x140xf32>
    %9 = tpu.matmul %6, %8, %cst_10 {dimension_numbers = #tpu.dot_dimension_numbers<[1], [0], [0], [1], [0, 0, 1, 1], [], []>, precision = #tpu.contract_precision<fp32>} : vector<14x48xf32>, vector<48x140xf32>, vector<14x140xf32> -> vector<14x140xf32>
    %10 = arith.addf %4, %9 : vector<14x140xf32>
    %c0_11 = arith.constant 0 : index
    %c2 = arith.constant 2 : index
    %c0_12 = arith.constant 0 : index
    %11 = vector.load %arg1[%c0_11, %c2, %c0_12] : memref<1x16x48xf32, #tpu.memory_space<vmem>>, vector<1x14x48xf32>
    %12 = vector.shape_cast %11 : vector<1x14x48xf32> to vector<14x48xf32>
    %c2_13 = arith.constant 2 : index
    %c0_14 = arith.constant 0 : index
    %c0_15 = arith.constant 0 : index
    %13 = vector.load %arg2[%c2_13, %c0_14, %c0_15] : memref<3x48x140xf32, #tpu.memory_space<vmem>>, vector<1x48x140xf32>
    %14 = vector.shape_cast %13 : vector<1x48x140xf32> to vector<48x140xf32>
    %cst_16 = arith.constant dense<0.000000e+00> : vector<14x140xf32>
    %15 = tpu.matmul %12, %14, %cst_16 {dimension_numbers = #tpu.dot_dimension_numbers<[1], [0], [0], [1], [0, 0, 1, 1], [], []>, precision = #tpu.contract_precision<fp32>} : vector<14x48xf32>, vector<48x140xf32>, vector<14x140xf32> -> vector<14x140xf32>
    %16 = arith.addf %10, %15 : vector<14x140xf32>
    %c0_17 = arith.constant 0 : index
    %c0_18 = arith.constant 0 : index
    %17 = vector.load %arg3[%c0_17, %c0_18] : memref<1x140xf32, #tpu.memory_space<vmem>>, vector<1x140xf32>
    %18 = vector.broadcast %17 : vector<1x140xf32> to vector<14x140xf32>
    %19 = arith.addf %16, %18 : vector<14x140xf32>
    %cst_19 = arith.constant 0.000000e+00 : f32
    %20 = vector.broadcast %cst_19 : f32 to vector<14x140xf32>
    %21 = arith.cmpf ogt, %19, %20 : vector<14x140xf32>
    %c0_20 = arith.constant 0 : index
    %c0_21 = arith.constant 0 : index
    %22 = vector.load %arg4[%c0_20, %c0_21] : memref<1x140xf32, #tpu.memory_space<vmem>>, vector<1x140xf32>
    %23 = vector.broadcast %22 : vector<1x140xf32> to vector<14x140xf32>
    %24 = arith.mulf %23, %19 : vector<14x140xf32>
    %25 = arith.select %21, %19, %24 : vector<14x140xi1>, vector<14x140xf32>
    %c0_22 = arith.constant 0 : index
    %c0_23 = arith.constant 0 : index
    %26 = vector.load %arg17[%c0_22, %c0_23] : memref<14x140xf32, #tpu.memory_space<vmem>>, vector<14x140xf32>
    tpu.vector_store %arg17[%c0_22, %c0_23], %25 {strides = array<i32>} : memref<14x140xf32, #tpu.memory_space<vmem>>, vector<14x140xf32>,
    %c0_24 = arith.constant 0 : index
    %c0_25 = arith.constant 0 : index
    %27 = vector.load %arg17[%c0_24, %c0_25] : memref<14x140xf32, #tpu.memory_space<vmem>>, vector<14x140xf32>
    %c0_26 = arith.constant 0 : index
    %c0_27 = arith.constant 0 : index
    %c0_28 = arith.constant 0 : index
    %28 = vector.load %arg5[%c0_26, %c0_27, %c0_28] : memref<2x7x14xf32, #tpu.memory_space<vmem>>, vector<1x7x14xf32>
    %29 = vector.shape_cast %28 : vector<1x7x14xf32> to vector<7x14xf32>
    %cst_29 = arith.constant dense<0.000000e+00> : vector<7x140xf32>
    %30 = tpu.matmul %29, %27, %cst_29 {dimension_numbers = #tpu.dot_dimension_numbers<[1], [0], [0], [1], [0, 0, 1, 1], [], []>, precision = #tpu.contract_precision<fp32>} : vector<7x14xf32>, vector<14x140xf32>, vector<7x140xf32> -> vector<7x140xf32>
    %c1_30 = arith.constant 1 : index
    %c0_31 = arith.constant 0 : index
    %c0_32 = arith.constant 0 : index
    %31 = vector.load %arg5[%c1_30, %c0_31, %c0_32] : memref<2x7x14xf32, #tpu.memory_space<vmem>>, vector<1x7x14xf32>
    %32 = vector.shape_cast %31 : vector<1x7x14xf32> to vector<7x14xf32>
    %cst_33 = arith.constant dense<0.000000e+00> : vector<7x140xf32>
    %33 = tpu.matmul %32, %27, %cst_33 {dimension_numbers = #tpu.dot_dimension_numbers<[1], [0], [0], [1], [0, 0, 1, 1], [], []>, precision = #tpu.contract_precision<fp32>} : vector<7x14xf32>, vector<14x140xf32>, vector<7x140xf32> -> vector<7x140xf32>
    %34 = arith.maximumf %30, %33 : vector<7x140xf32>
    %c0_34 = arith.constant 0 : index
    %c0_35 = arith.constant 0 : index
    %c0_36 = arith.constant 0 : index
    %35 = vector.load %arg6[%c0_34, %c0_35, %c0_36] : memref<2x140x70xf32, #tpu.memory_space<vmem>>, vector<1x140x70xf32>
    %36 = vector.shape_cast %35 : vector<1x140x70xf32> to vector<140x70xf32>
    %cst_37 = arith.constant dense<0.000000e+00> : vector<7x70xf32>
    %37 = tpu.matmul %34, %36, %cst_37 {dimension_numbers = #tpu.dot_dimension_numbers<[1], [0], [0], [1], [0, 0, 1, 1], [], []>, precision = #tpu.contract_precision<fp32>} : vector<7x140xf32>, vector<140x70xf32>, vector<7x70xf32> -> vector<7x70xf32>
    %c1_38 = arith.constant 1 : index
    %c0_39 = arith.constant 0 : index
    %c0_40 = arith.constant 0 : index
    %38 = vector.load %arg6[%c1_38, %c0_39, %c0_40] : memref<2x140x70xf32, #tpu.memory_space<vmem>>, vector<1x140x70xf32>
    %39 = vector.shape_cast %38 : vector<1x140x70xf32> to vector<140x70xf32>
    %cst_41 = arith.constant dense<0.000000e+00> : vector<7x70xf32>
    %40 = tpu.matmul %34, %39, %cst_41 {dimension_numbers = #tpu.dot_dimension_numbers<[1], [0], [0], [1], [0, 0, 1, 1], [], []>, precision = #tpu.contract_precision<fp32>} : vector<7x140xf32>, vector<140x70xf32>, vector<7x70xf32> -> vector<7x70xf32>
    %41 = arith.maximumf %37, %40 : vector<7x70xf32>
    %c0_42 = arith.constant 0 : index
    %c0_43 = arith.constant 0 : index
    %42 = vector.load %arg18[%c0_42, %c0_43] : memref<7x70xf32, #tpu.memory_space<vmem>>, vector<7x70xf32>
    tpu.vector_store %arg18[%c0_42, %c0_43], %41 {strides = array<i32>} : memref<7x70xf32, #tpu.memory_space<vmem>>, vector<7x70xf32>,
    %c0_44 = arith.constant 0 : index
    %c0_45 = arith.constant 0 : index
    %43 = vector.load %arg18[%c0_44, %c0_45] : memref<7x70xf32, #tpu.memory_space<vmem>>, vector<5x70xf32>
    %c0_46 = arith.constant 0 : index
    %c0_47 = arith.constant 0 : index
    %c0_48 = arith.constant 0 : index
    %44 = vector.load %arg7[%c0_46, %c0_47, %c0_48] : memref<3x70x80xf32, #tpu.memory_space<vmem>>, vector<1x70x80xf32>
    %45 = vector.shape_cast %44 : vector<1x70x80xf32> to vector<70x80xf32>
    %cst_49 = arith.constant dense<0.000000e+00> : vector<5x80xf32>
    %46 = tpu.matmul %43, %45, %cst_49 {dimension_numbers = #tpu.dot_dimension_numbers<[1], [0], [0], [1], [0, 0, 1, 1], [], []>, precision = #tpu.contract_precision<fp32>} : vector<5x70xf32>, vector<70x80xf32>, vector<5x80xf32> -> vector<5x80xf32>
    %c1_50 = arith.constant 1 : index
    %c0_51 = arith.constant 0 : index
    %47 = vector.load %arg18[%c1_50, %c0_51] : memref<7x70xf32, #tpu.memory_space<vmem>>, vector<5x70xf32>
    %c1_52 = arith.constant 1 : index
    %c0_53 = arith.constant 0 : index
    %c0_54 = arith.constant 0 : index
    %48 = vector.load %arg7[%c1_52, %c0_53, %c0_54] : memref<3x70x80xf32, #tpu.memory_space<vmem>>, vector<1x70x80xf32>
    %49 = vector.shape_cast %48 : vector<1x70x80xf32> to vector<70x80xf32>
    %cst_55 = arith.constant dense<0.000000e+00> : vector<5x80xf32>
    %50 = tpu.matmul %47, %49, %cst_55 {dimension_numbers = #tpu.dot_dimension_numbers<[1], [0], [0], [1], [0, 0, 1, 1], [], []>, precision = #tpu.contract_precision<fp32>} : vector<5x70xf32>, vector<70x80xf32>, vector<5x80xf32> -> vector<5x80xf32>
    %51 = arith.addf %46, %50 : vector<5x80xf32>
    %c2_56 = arith.constant 2 : index
    %c0_57 = arith.constant 0 : index
    %52 = vector.load %arg18[%c2_56, %c0_57] : memref<7x70xf32, #tpu.memory_space<vmem>>, vector<5x70xf32>
    %c2_58 = arith.constant 2 : index
    %c0_59 = arith.constant 0 : index
    %c0_60 = arith.constant 0 : index
    %53 = vector.load %arg7[%c2_58, %c0_59, %c0_60] : memref<3x70x80xf32, #tpu.memory_space<vmem>>, vector<1x70x80xf32>
    %54 = vector.shape_cast %53 : vector<1x70x80xf32> to vector<70x80xf32>
    %cst_61 = arith.constant dense<0.000000e+00> : vector<5x80xf32>
    %55 = tpu.matmul %52, %54, %cst_61 {dimension_numbers = #tpu.dot_dimension_numbers<[1], [0], [0], [1], [0, 0, 1, 1], [], []>, precision = #tpu.contract_precision<fp32>} : vector<5x70xf32>, vector<70x80xf32>, vector<5x80xf32> -> vector<5x80xf32>
    %56 = arith.addf %51, %55 : vector<5x80xf32>
    %c0_62 = arith.constant 0 : index
    %c0_63 = arith.constant 0 : index
    %57 = vector.load %arg8[%c0_62, %c0_63] : memref<1x80xf32, #tpu.memory_space<vmem>>, vector<1x80xf32>
    %58 = vector.broadcast %57 : vector<1x80xf32> to vector<5x80xf32>
    %59 = arith.addf %56, %58 : vector<5x80xf32>
    %cst_64 = arith.constant 0.000000e+00 : f32
    %60 = vector.broadcast %cst_64 : f32 to vector<5x80xf32>
    %61 = arith.cmpf ogt, %59, %60 : vector<5x80xf32>
    %c0_65 = arith.constant 0 : index
    %c0_66 = arith.constant 0 : index
    %62 = vector.load %arg9[%c0_65, %c0_66] : memref<1x80xf32, #tpu.memory_space<vmem>>, vector<1x80xf32>
    %63 = vector.broadcast %62 : vector<1x80xf32> to vector<5x80xf32>
    %64 = arith.mulf %63, %59 : vector<5x80xf32>
    %65 = arith.select %61, %59, %64 : vector<5x80xi1>, vector<5x80xf32>
    %c0_67 = arith.constant 0 : index
    %c0_68 = arith.constant 0 : index
    %66 = vector.load %arg19[%c0_67, %c0_68] : memref<5x80xf32, #tpu.memory_space<vmem>>, vector<5x80xf32>
    tpu.vector_store %arg19[%c0_67, %c0_68], %65 {strides = array<i32>} : memref<5x80xf32, #tpu.memory_space<vmem>>, vector<5x80xf32>,
    %c0_69 = arith.constant 0 : index
    %c0_70 = arith.constant 0 : index
    %67 = vector.load %arg19[%c0_69, %c0_70] : memref<5x80xf32, #tpu.memory_space<vmem>>, vector<3x80xf32>
    %c0_71 = arith.constant 0 : index
    %c0_72 = arith.constant 0 : index
    %c0_73 = arith.constant 0 : index
    %68 = vector.load %arg10[%c0_71, %c0_72, %c0_73] : memref<3x80x96xf32, #tpu.memory_space<vmem>>, vector<1x80x96xf32>
    %69 = vector.shape_cast %68 : vector<1x80x96xf32> to vector<80x96xf32>
    %cst_74 = arith.constant dense<0.000000e+00> : vector<3x96xf32>
    %70 = tpu.matmul %67, %69, %cst_74 {dimension_numbers = #tpu.dot_dimension_numbers<[1], [0], [0], [1], [0, 0, 1, 1], [], []>, precision = #tpu.contract_precision<fp32>} : vector<3x80xf32>, vector<80x96xf32>, vector<3x96xf32> -> vector<3x96xf32>
    %c1_75 = arith.constant 1 : index
    %c0_76 = arith.constant 0 : index
    %71 = vector.load %arg19[%c1_75, %c0_76] : memref<5x80xf32, #tpu.memory_space<vmem>>, vector<3x80xf32>
    %c1_77 = arith.constant 1 : index
    %c0_78 = arith.constant 0 : index
    %c0_79 = arith.constant 0 : index
    %72 = vector.load %arg10[%c1_77, %c0_78, %c0_79] : memref<3x80x96xf32, #tpu.memory_space<vmem>>, vector<1x80x96xf32>
    %73 = vector.shape_cast %72 : vector<1x80x96xf32> to vector<80x96xf32>
    %cst_80 = arith.constant dense<0.000000e+00> : vector<3x96xf32>
    %74 = tpu.matmul %71, %73, %cst_80 {dimension_numbers = #tpu.dot_dimension_numbers<[1], [0], [0], [1], [0, 0, 1, 1], [], []>, precision = #tpu.contract_precision<fp32>} : vector<3x80xf32>, vector<80x96xf32>, vector<3x96xf32> -> vector<3x96xf32>
    %75 = arith.addf %70, %74 : vector<3x96xf32>
    %c2_81 = arith.constant 2 : index
    %c0_82 = arith.constant 0 : index
    %76 = vector.load %arg19[%c2_81, %c0_82] : memref<5x80xf32, #tpu.memory_space<vmem>>, vector<3x80xf32>
    %c2_83 = arith.constant 2 : index
    %c0_84 = arith.constant 0 : index
    %c0_85 = arith.constant 0 : index
    %77 = vector.load %arg10[%c2_83, %c0_84, %c0_85] : memref<3x80x96xf32, #tpu.memory_space<vmem>>, vector<1x80x96xf32>
    %78 = vector.shape_cast %77 : vector<1x80x96xf32> to vector<80x96xf32>
    %cst_86 = arith.constant dense<0.000000e+00> : vector<3x96xf32>
    %79 = tpu.matmul %76, %78, %cst_86 {dimension_numbers = #tpu.dot_dimension_numbers<[1], [0], [0], [1], [0, 0, 1, 1], [], []>, precision = #tpu.contract_precision<fp32>} : vector<3x80xf32>, vector<80x96xf32>, vector<3x96xf32> -> vector<3x96xf32>
    %80 = arith.addf %75, %79 : vector<3x96xf32>
    %c0_87 = arith.constant 0 : index
    %c0_88 = arith.constant 0 : index
    %81 = vector.load %arg11[%c0_87, %c0_88] : memref<1x96xf32, #tpu.memory_space<vmem>>, vector<1x96xf32>
    %82 = vector.broadcast %81 : vector<1x96xf32> to vector<3x96xf32>
    %83 = arith.addf %80, %82 : vector<3x96xf32>
    %cst_89 = arith.constant 0.000000e+00 : f32
    %84 = vector.broadcast %cst_89 : f32 to vector<3x96xf32>
    %85 = arith.cmpf ogt, %83, %84 : vector<3x96xf32>
    %c0_90 = arith.constant 0 : index
    %c0_91 = arith.constant 0 : index
    %86 = vector.load %arg12[%c0_90, %c0_91] : memref<1x96xf32, #tpu.memory_space<vmem>>, vector<1x96xf32>
    %87 = vector.broadcast %86 : vector<1x96xf32> to vector<3x96xf32>
    %88 = arith.mulf %87, %83 : vector<3x96xf32>
    %89 = arith.select %85, %83, %88 : vector<3x96xi1>, vector<3x96xf32>
    %c0_92 = arith.constant 0 : index
    %c0_93 = arith.constant 0 : index
    %90 = vector.load %arg13[%c0_92, %c0_93] : memref<96x18xf32, #tpu.memory_space<vmem>>, vector<96x18xf32>
    %cst_94 = arith.constant dense<0.000000e+00> : vector<3x18xf32>
    %91 = tpu.matmul %89, %90, %cst_94 {dimension_numbers = #tpu.dot_dimension_numbers<[1], [0], [0], [1], [0, 0, 1, 1], [], []>, precision = #tpu.contract_precision<fp32>} : vector<3x96xf32>, vector<96x18xf32>, vector<3x18xf32> -> vector<3x18xf32>
    %c0_95 = arith.constant 0 : index
    %c0_96 = arith.constant 0 : index
    %92 = vector.load %arg14[%c0_95, %c0_96] : memref<1x18xf32, #tpu.memory_space<vmem>>, vector<1x18xf32>
    %93 = vector.broadcast %92 : vector<1x18xf32> to vector<3x18xf32>
    %94 = arith.addf %91, %93 : vector<3x18xf32>
    %95 = vector.extract_strided_slice %94 {offsets = [0, 0], sizes = [3, 6], strides = [1, 1]} : vector<3x18xf32> to vector<3x6xf32>
    %cst_97 = arith.constant 0.000000e+00 : f32
    %96 = vector.broadcast %cst_97 : f32 to vector<3x6xf32>
    %97 = arith.subf %96, %95 : vector<3x6xf32>
    %98 = math.exp %97 : vector<3x6xf32>
    %cst_98 = arith.constant 1.000000e+00 : f32
    %99 = vector.broadcast %cst_98 : f32 to vector<3x6xf32>
    %100 = arith.addf %99, %98 : vector<3x6xf32>
    %cst_99 = arith.constant 1.000000e+00 : f32
    %101 = vector.broadcast %cst_99 : f32 to vector<3x6xf32>
    %102 = arith.divf %101, %100 : vector<3x6xf32>
    %c0_100 = arith.constant 0 : index
    %c0_101 = arith.constant 0 : index
    %c0_102 = arith.constant 0 : index
    %103 = vector.load %arg15[%c0_100, %c0_101, %c0_102] : memref<1x3x6xf32, #tpu.memory_space<vmem>>, vector<1x3x6xf32>
    %104 = vector.shape_cast %103 : vector<1x3x6xf32> to vector<3x6xf32>
    %105 = vector.shape_cast %102 : vector<3x6xf32> to vector<1x3x6xf32>
    tpu.vector_store %arg15[%c0_100, %c0_101, %c0_102], %105 {strides = array<i32>} : memref<1x3x6xf32, #tpu.memory_space<vmem>>, vector<1x3x6xf32>,
    %106 = vector.extract_strided_slice %94 {offsets = [0, 6], sizes = [3, 12], strides = [1, 1]} : vector<3x18xf32> to vector<3x12xf32>
    %c0_103 = arith.constant 0 : index
    %c0_104 = arith.constant 0 : index
    %c0_105 = arith.constant 0 : index
    %107 = vector.load %arg16[%c0_103, %c0_104, %c0_105] : memref<1x3x12xf32, #tpu.memory_space<vmem>>, vector<1x3x12xf32>
    %108 = vector.shape_cast %107 : vector<1x3x12xf32> to vector<3x12xf32>
    %109 = vector.shape_cast %106 : vector<3x12xf32> to vector<1x3x12xf32>
    tpu.vector_store %arg16[%c0_103, %c0_104, %c0_105], %109 {strides = array<i32>} : memref<1x3x12xf32, #tpu.memory_space<vmem>>, vector<1x3x12xf32>,
    return
  }
  func.func @transform_0(%arg0: i32) -> (i32, i32, i32) {
    %c0_i32 = arith.constant 0 : i32
    %c0_i32_0 = arith.constant 0 : i32
    %c0_i32_1 = arith.constant 0 : i32
    return %arg0, %c0_i32, %c0_i32_0 : i32, i32, i32
  }
  func.func @transform_1(%arg0: i32) -> (i32, i32, i32) {
    %c0_i32 = arith.constant 0 : i32
    %c0_i32_0 = arith.constant 0 : i32
    %c0_i32_1 = arith.constant 0 : i32
    %c0_i32_2 = arith.constant 0 : i32
    return %c0_i32, %c0_i32_0, %c0_i32_1 : i32, i32, i32
  }
  func.func @transform_2(%arg0: i32) -> (i32, i32) {
    %c0_i32 = arith.constant 0 : i32
    %c0_i32_0 = arith.constant 0 : i32
    %c0_i32_1 = arith.constant 0 : i32
    return %c0_i32, %c0_i32_0 : i32, i32
  }
  func.func @transform_3(%arg0: i32) -> (i32, i32) {
    %c0_i32 = arith.constant 0 : i32
    %c0_i32_0 = arith.constant 0 : i32
    %c0_i32_1 = arith.constant 0 : i32
    return %c0_i32, %c0_i32_0 : i32, i32
  }
  func.func @transform_4(%arg0: i32) -> (i32, i32, i32) {
    %c0_i32 = arith.constant 0 : i32
    %c0_i32_0 = arith.constant 0 : i32
    %c0_i32_1 = arith.constant 0 : i32
    %c0_i32_2 = arith.constant 0 : i32
    return %c0_i32, %c0_i32_0, %c0_i32_1 : i32, i32, i32
  }
  func.func @transform_5(%arg0: i32) -> (i32, i32, i32) {
    %c0_i32 = arith.constant 0 : i32
    %c0_i32_0 = arith.constant 0 : i32
    %c0_i32_1 = arith.constant 0 : i32
    %c0_i32_2 = arith.constant 0 : i32
    return %c0_i32, %c0_i32_0, %c0_i32_1 : i32, i32, i32
  }
  func.func @transform_6(%arg0: i32) -> (i32, i32, i32) {
    %c0_i32 = arith.constant 0 : i32
    %c0_i32_0 = arith.constant 0 : i32
    %c0_i32_1 = arith.constant 0 : i32
    %c0_i32_2 = arith.constant 0 : i32
    return %c0_i32, %c0_i32_0, %c0_i32_1 : i32, i32, i32
  }
  func.func @transform_7(%arg0: i32) -> (i32, i32) {
    %c0_i32 = arith.constant 0 : i32
    %c0_i32_0 = arith.constant 0 : i32
    %c0_i32_1 = arith.constant 0 : i32
    return %c0_i32, %c0_i32_0 : i32, i32
  }
  func.func @transform_8(%arg0: i32) -> (i32, i32) {
    %c0_i32 = arith.constant 0 : i32
    %c0_i32_0 = arith.constant 0 : i32
    %c0_i32_1 = arith.constant 0 : i32
    return %c0_i32, %c0_i32_0 : i32, i32
  }
  func.func @transform_9(%arg0: i32) -> (i32, i32, i32) {
    %c0_i32 = arith.constant 0 : i32
    %c0_i32_0 = arith.constant 0 : i32
    %c0_i32_1 = arith.constant 0 : i32
    %c0_i32_2 = arith.constant 0 : i32
    return %c0_i32, %c0_i32_0, %c0_i32_1 : i32, i32, i32
  }
  func.func @transform_10(%arg0: i32) -> (i32, i32) {
    %c0_i32 = arith.constant 0 : i32
    %c0_i32_0 = arith.constant 0 : i32
    %c0_i32_1 = arith.constant 0 : i32
    return %c0_i32, %c0_i32_0 : i32, i32
  }
  func.func @transform_11(%arg0: i32) -> (i32, i32) {
    %c0_i32 = arith.constant 0 : i32
    %c0_i32_0 = arith.constant 0 : i32
    %c0_i32_1 = arith.constant 0 : i32
    return %c0_i32, %c0_i32_0 : i32, i32
  }
  func.func @transform_12(%arg0: i32) -> (i32, i32) {
    %c0_i32 = arith.constant 0 : i32
    %c0_i32_0 = arith.constant 0 : i32
    %c0_i32_1 = arith.constant 0 : i32
    return %c0_i32, %c0_i32_0 : i32, i32
  }
  func.func @transform_13(%arg0: i32) -> (i32, i32) {
    %c0_i32 = arith.constant 0 : i32
    %c0_i32_0 = arith.constant 0 : i32
    %c0_i32_1 = arith.constant 0 : i32
    return %c0_i32, %c0_i32_0 : i32, i32
  }
  func.func @transform_14(%arg0: i32) -> (i32, i32, i32) {
    %c0_i32 = arith.constant 0 : i32
    %c0_i32_0 = arith.constant 0 : i32
    %c0_i32_1 = arith.constant 0 : i32
    return %arg0, %c0_i32, %c0_i32_0 : i32, i32, i32
  }
  func.func @transform_15(%arg0: i32) -> (i32, i32, i32) {
    %c0_i32 = arith.constant 0 : i32
    %c0_i32_0 = arith.constant 0 : i32
    %c0_i32_1 = arith.constant 0 : i32
    return %arg0, %c0_i32, %c0_i32_0 : i32, i32, i32
  }
}

</mosaic_0001>

<llo_original>
// kernel: tile.20
$region0: #{tile.20}
  #allocation0 [shape = 's32[1]{0}', space=sflag, size = 0x4, scoped, tag = 'scoped memory for tile.20']
  %s0 = inlined_call_operand.vmem [shape: f32[10], index: 0, kind: input, shape index: {}]
  %s1 = inlined_call_operand.vmem [shape: f32[14,10], index: 1, kind: output, shape index: {}]
  // Predicated region
  $region2: #{tile.20} parent=0 // pred_check
    _
  $region3: #{tile.20} parent=0 // pred_check_branch
    %3 = sbr.rel (0) target = $region5
  $region4: #{tile.20} parent=0 // pred_region
    _
  $region5: #{tile.20} parent=0 // pred_fallthru
    _
  %v4 = vld [vmem:[%s0] ss:$0 sm:$0xff]
  %5 = vst [vmem:[%s1] sm:$0xff] %v4
  %s6 = scalar_lea.vmem %s1, 8
  %7 = vst [vmem:[%s6] sm:$0xff] %v4

// kernel: tile.21
$region0: #{tile.21}
  %s0 = inlined_call_operand.vmem [shape: f32[14,10], index: 0, kind: input, shape index: {}]
  %s1 = inlined_call_operand.vmem [shape: f32[1,140], index: 1, kind: output, shape index: {}]
  $region1: #{tile.21} parent=0
    #allocation0 [shape = 'u8[8192]{0}', space=vmem, size = 0x2000, scoped, tag = 'scoped mem for output reshape']
    %v2 = vld [vmem:[%s0] sm:$0x1]
    %vm3 = vcmask 80896
    %4 = vst.msk [vmem:[#allocation0] sm:$0x1] %vm3, %v2
    %s5 = scalar_lea.vmem %s0, 12
    %v6 = vld [vmem:[%s5] sm:$0x1]
    %s7 = scalar_lea.vmem %s0, 12
    %v8 = vld [vmem:[%s7] sm:$0x1]
    %vm9 = vcmask 64512
    %v10 = vsel %vm9, %v8, %v6
    %11 = vrot.lane.b32.xlu0 %v10, 120
    %v12 = vpop.permute.xlu0 %11
    %vm13 = vcmask 15360
    %s14 = scalar_lea.vmem [#allocation0], 8
    %15 = vst.msk [vmem:[%s14] sm:$0x1] %vm13, %v12
    %vm16 = vcmask 1048512
    %17 = vst.msk [vmem:[#allocation0] sm:$0x1] %vm16, %v12
    %s18 = scalar_lea.vmem %s0, 11
    %v19 = vld [vmem:[%s18] sm:$0x1]
    %20 = vrot.lane.b32.xlu0 %v19, 110
    %v21 = vpop.permute.xlu0 %20
    %vm22 = vcmask 982896
    %23 = vst.msk [vmem:[#allocation0] sm:$0x1] %vm22, %v21
    %s24 = scalar_lea.vmem %s0, 10
    %v25 = vld [vmem:[%s24] sm:$0x1]
    %26 = vrot.lane.b32.xlu0 %v25, 100
    %v27 = vpop.permute.xlu0 %26
    %vm28 = vcmask 900896
    %29 = vst.msk [vmem:[#allocation0] sm:$0x1] %vm28, %v27
    %s30 = scalar_lea.vmem %s0, 9
    %v31 = vld [vmem:[%s30] sm:$0x1]
    %32 = vrot.lane.b32.xlu0 %v31, 90
    %v33 = vpop.permute.xlu0 %32
    %vm34 = vcmask 818896
    %35 = vst.msk [vmem:[#allocation0] sm:$0x1] %vm34, %v33
    %s36 = scalar_lea.vmem %s0, 8
    %v37 = vld [vmem:[%s36] sm:$0x1]
    %38 = vrot.lane.b32.xlu0 %v37, 80
    %v39 = vpop.permute.xlu0 %38
    %vm40 = vcmask 736896
    %41 = vst.msk [vmem:[#allocation0] sm:$0x1] %vm40, %v39
    %s42 = scalar_lea.vmem %s0, 7
    %v43 = vld [vmem:[%s42] sm:$0x1]
    %44 = vrot.lane.b32.xlu0 %v43, 70
    %v45 = vpop.permute.xlu0 %44
    %vm46 = vcmask 654896
    %47 = vst.msk [vmem:[#allocation0] sm:$0x1] %vm46, %v45
    %s48 = scalar_lea.vmem %s0, 6
    %v49 = vld [vmem:[%s48] sm:$0x1]
    %50 = vrot.lane.b32.xlu0 %v49, 60
    %v51 = vpop.permute.xlu0 %50
    %vm52 = vcmask 572896
    %53 = vst.msk [vmem:[#allocation0] sm:$0x1] %vm52, %v51
    %s54 = scalar_lea.vmem %s0, 5
    %v55 = vld [vmem:[%s54] sm:$0x1]
    %56 = vrot.lane.b32.xlu0 %v55, 50
    %v57 = vpop.permute.xlu0 %56
    %vm58 = vcmask 490896
    %59 = vst.msk [vmem:[#allocation0] sm:$0x1] %vm58, %v57
    %s60 = scalar_lea.vmem %s0, 4
    %v61 = vld [vmem:[%s60] sm:$0x1]
    %62 = vrot.lane.b32.xlu0 %v61, 40
    %v63 = vpop.permute.xlu0 %62
    %vm64 = vcmask 408896
    %65 = vst.msk [vmem:[#allocation0] sm:$0x1] %vm64, %v63
    %s66 = scalar_lea.vmem %s0, 3
    %v67 = vld [vmem:[%s66] sm:$0x1]
    %68 = vrot.lane.b32.xlu0 %v67, 30
    %v69 = vpop.permute.xlu0 %68
    %vm70 = vcmask 326896
    %71 = vst.msk [vmem:[#allocation0] sm:$0x1] %vm70, %v69
    %s72 = scalar_lea.vmem %s0, 2
    %v73 = vld [vmem:[%s72] sm:$0x1]
    %74 = vrot.lane.b32.xlu0 %v73, 20
    %v75 = vpop.permute.xlu0 %74
    %vm76 = vcmask 244896
    %77 = vst.msk [vmem:[#allocation0] sm:$0x1] %vm76, %v75
    %s78 = scalar_lea.vmem %s0, 1
    %v79 = vld [vmem:[%s78] sm:$0x1]
    %80 = vrot.lane.b32.xlu0 %v79, 10
    %v81 = vpop.permute.xlu0 %80
    %vm82 = vcmask 162896
    %83 = vst.msk [vmem:[#allocation0] sm:$0x1] %vm82, %v81
    %s84 = scalar_lea.vmem %s0, 13
    %v85 = vld [vmem:[%s84] sm:$0x1]
    %86 = vrot.lane.b32.xlu0 %v85, 2
    %v87 = vpop.permute.xlu0 %86
    %vm88 = vcmask 97296
    %s89 = scalar_lea.vmem [#allocation0], 8
    %90 = vst.msk [vmem:[%s89] sm:$0x1] %vm88, %v87
    %s92 = sshll.u32 1, 1
    %s93 = ssub.s32 %s92, 1
    %v95 = vld [vmem:[#allocation0] sm:%s93]
    %s96 = sshll.u32 1, 1
    %s97 = ssub.s32 %s96, 1
    %98 = vst [vmem:[%s1] sm:%s97] %v95
    %s99 = scalar_lea.vmem [#allocation0], 8
    %v100 = vld [vmem:[%s99] sm:%s93]
    %s101 = sshll.u32 1, 1
    %s102 = ssub.s32 %s101, 1
    %s103 = scalar_lea.vmem %s1, 1
    %104 = vst [vmem:[%s103] sm:%s102] %v100

// kernel: tile.24
$region0: #{tile.24}
  #allocation0 [shape = 's32[1]{0}', space=sflag, size = 0x4, scoped, tag = 'scoped memory for tile.24']
  %s0 = inlined_call_operand.vmem [shape: f32[16], index: 0, kind: input, shape index: {}]
  %s1 = inlined_call_operand.vmem [shape: f32[5,16], index: 1, kind: output, shape index: {}]
  // Predicated region
  $region2: #{tile.24} parent=0 // pred_check
    _
  $region3: #{tile.24} parent=0 // pred_check_branch
    %3 = sbr.rel (0) target = $region5
  $region4: #{tile.24} parent=0 // pred_region
    _
  $region5: #{tile.24} parent=0 // pred_fallthru
    _
  %v4 = vld [vmem:[%s0] ss:$0 sm:$0xff]
  %5 = vst [vmem:[%s1] sm:$0xff] %v4

// kernel: tile.25
$region0: #{tile.25}
  %s0 = inlined_call_operand.vmem [shape: f32[5,16], index: 0, kind: input, shape index: {}]
  %s1 = inlined_call_operand.vmem [shape: f32[1,80], index: 1, kind: output, shape index: {}]
  $region1: #{tile.25} parent=0
    #allocation0 [shape = 'u8[4096]{0}', space=vmem, size = 0x1000, scoped, tag = 'scoped mem for output reshape']
    %v2 = vld [vmem:[%s0] sm:$0x1]
    %vm3 = vcmask 130048
    %4 = vst.msk [vmem:[#allocation0] sm:$0x1] %vm3, %v2
    %s5 = scalar_lea.vmem %s0, 4
    %v6 = vld [vmem:[%s5] sm:$0x1]
    %7 = vrot.lane.b32.xlu0 %v6, 64
    %v8 = vpop.permute.xlu0 %7
    %vm9 = vcmask 654848
    %10 = vst.msk [vmem:[#allocation0] sm:$0x1] %vm9, %v8
    %s11 = scalar_lea.vmem %s0, 3
    %v12 = vld [vmem:[%s11] sm:$0x1]
    %13 = vrot.lane.b32.xlu0 %v12, 48
    %v14 = vpop.permute.xlu0 %13
    %vm15 = vcmask 523648
    %16 = vst.msk [vmem:[#allocation0] sm:$0x1] %vm15, %v14
    %s17 = scalar_lea.vmem %s0, 2
    %v18 = vld [vmem:[%s17] sm:$0x1]
    %19 = vrot.lane.b32.xlu0 %v18, 32
    %v20 = vpop.permute.xlu0 %19
    %vm21 = vcmask 392448
    %22 = vst.msk [vmem:[#allocation0] sm:$0x1] %vm21, %v20
    %s23 = scalar_lea.vmem %s0, 1
    %v24 = vld [vmem:[%s23] sm:$0x1]
    %25 = vrot.lane.b32.xlu0 %v24, 16
    %v26 = vpop.permute.xlu0 %25
    %vm27 = vcmask 261248
    %28 = vst.msk [vmem:[#allocation0] sm:$0x1] %vm27, %v26
    %s30 = sshll.u32 1, 1
    %s31 = ssub.s32 %s30, 1
    %v33 = vld [vmem:[#allocation0] sm:%s31]
    %s34 = sshll.u32 1, 1
    %s35 = ssub.s32 %s34, 1
    %36 = vst [vmem:[%s1] sm:%s35] %v33

// kernel: tile.28
$region0: #{tile.28}
  #allocation0 [shape = 's32[1]{0}', space=sflag, size = 0x4, scoped, tag = 'scoped memory for tile.28']
  %s0 = inlined_call_operand.vmem [shape: f32[32], index: 0, kind: input, shape index: {}]
  %s1 = inlined_call_operand.vmem [shape: f32[3,32], index: 1, kind: output, shape index: {}]
  // Predicated region
  $region2: #{tile.28} parent=0 // pred_check
    _
  $region3: #{tile.28} parent=0 // pred_check_branch
    %3 = sbr.rel (0) target = $region5
  $region4: #{tile.28} parent=0 // pred_region
    _
  $region5: #{tile.28} parent=0 // pred_fallthru
    _
  %v4 = vld [vmem:[%s0] ss:$0 sm:$0xff]
  %5 = vst [vmem:[%s1] sm:$0xf] %v4

// kernel: tile.29
$region0: #{tile.29}
  %s0 = inlined_call_operand.vmem [shape: f32[3,32], index: 0, kind: input, shape index: {}]
  %s1 = inlined_call_operand.vmem [shape: f32[1,96], index: 1, kind: output, shape index: {}]
  $region1: #{tile.29} parent=0
    #allocation0 [shape = 'u8[4096]{0}', space=vmem, size = 0x1000, scoped, tag = 'scoped mem for output reshape']
    #allocation1 [shape = 'u8[4096]{0}', space=vmem, size = 0x1000, scoped, tag = 'scoped mem for input reshape']
    %s3 = sshll.u32 1, 4
    %s4 = ssub.s32 %s3, 1
    %v5 = vld [vmem:[%s0] sm:%s4]
    %6 = vst [vmem:[#allocation1] sm:%s4] %v5
    %v7 = vld [vmem:[#allocation1] sm:$0x1]
    %vm8 = vcmask 261120
    %9 = vst.msk [vmem:[#allocation0] sm:$0x1] %vm8, %v7
    %s10 = scalar_lea.vmem [#allocation1], 2
    %v11 = vld [vmem:[%s10] sm:$0x1]
    %12 = vrot.lane.b32.xlu0 %v11, 64
    %v13 = vpop.permute.xlu0 %12
    %vm14 = vcmask 785920
    %15 = vst.msk [vmem:[#allocation0] sm:$0x1] %vm14, %v13
    %s16 = scalar_lea.vmem [#allocation1], 1
    %v17 = vld [vmem:[%s16] sm:$0x1]
    %18 = vrot.lane.b32.xlu0 %v17, 32
    %v19 = vpop.permute.xlu0 %18
    %vm20 = vcmask 523520
    %21 = vst.msk [vmem:[#allocation0] sm:$0x1] %vm20, %v19
    %s23 = sshll.u32 1, 1
    %s24 = ssub.s32 %s23, 1
    %v26 = vld [vmem:[#allocation0] sm:%s24]
    %s27 = sshll.u32 1, 1
    %s28 = ssub.s32 %s27, 1
    %29 = vst [vmem:[%s1] sm:%s28] %v26

// kernel: tile.17
$region0: #{tile.17}
  #allocation0 [shape = 's32[1]{0}', space=sflag, size = 0x4, scoped, tag = 'scoped memory for tile.17']
  %s0 = inlined_call_operand.<no memory space> [shape: f32[], index: 0, kind: input, shape index: {}]
  %s1 = inlined_call_operand.vmem [shape: f32[1,140], index: 1, kind: output, shape index: {}]
  %v2 = vstv %s0
  %3 = vst [vmem:[%s1] sm:$0x1] %v2
  %s4 = scalar_lea.vmem %s1, 1
  %5 = vst [vmem:[%s4] sm:$0x1] %v2

// kernel: tile.15
$region0: #{tile.15}
  #allocation0 [shape = 's32[1]{0}', space=sflag, size = 0x4, scoped, tag = 'scoped memory for tile.15']
  %s0 = inlined_call_operand.<no memory space> [shape: f32[], index: 0, kind: input, shape index: {}]
  %s1 = inlined_call_operand.vmem [shape: f32[1,96], index: 1, kind: output, shape index: {}]
  %v2 = vstv %s0
  %3 = vst [vmem:[%s1] sm:$0x1] %v2

// kernel: tile.16
$region0: #{tile.16}
  #allocation0 [shape = 's32[1]{0}', space=sflag, size = 0x4, scoped, tag = 'scoped memory for tile.16']
  %s0 = inlined_call_operand.<no memory space> [shape: f32[], index: 0, kind: input, shape index: {}]
  %s1 = inlined_call_operand.vmem [shape: f32[1,80], index: 1, kind: output, shape index: {}]
  %v2 = vstv %s0
  %3 = vst [vmem:[%s1] sm:$0x1] %v2

// kernel: pnet_forward.1
$region0: #{pnet_forward.1}
  #allocation0 [shape = 'u32[]', space=smem, size = 0x4, offset = 0x4, fixed_abs, tag = 'smem constant byte address 0x4 - core index']
  #allocation1 [shape = 'u32[144,128]{1,0:T(1,128)}', space=vmem, size = 0x12000, scoped, tag = 'internal scratch']
  #allocation2 [shape = 'f32[14,140]{1,0:T(8,128)}', space=vmem, size = 0x4000, scoped, tag = 'scratch operand']
  #allocation3 [shape = 'f32[7,70]{1,0:T(8,128)}', space=vmem, size = 0x1000, scoped, tag = 'scratch operand']
  #allocation4 [shape = 'f32[5,80]{1,0:T(8,128)}', space=vmem, size = 0x1000, scoped, tag = 'scratch operand']
  %s0 = inlined_call_operand.vmem [shape: f32[2,16,48], index: 0, kind: input, shape index: {}]
  %s1 = inlined_call_operand.vmem [shape: f32[3,48,140], index: 1, kind: input, shape index: {}]
  %s2 = inlined_call_operand.vmem [shape: f32[1,140], index: 2, kind: input, shape index: {}]
  %s3 = inlined_call_operand.vmem [shape: f32[1,140], index: 3, kind: input, shape index: {}]
  %s4 = inlined_call_operand.vmem [shape: f32[2,7,14], index: 4, kind: input, shape index: {}]
  %s5 = inlined_call_operand.vmem [shape: f32[2,140,70], index: 5, kind: input, shape index: {}]
  %s6 = inlined_call_operand.hbm [shape: f32[3,70,80], index: 6, kind: input, shape index: {}]
  %s7 = inlined_call_operand.vmem [shape: f32[1,80], index: 7, kind: input, shape index: {}]
  %s8 = inlined_call_operand.vmem [shape: f32[1,80], index: 8, kind: input, shape index: {}]
  %s9 = inlined_call_operand.vmem [shape: f32[3,80,96], index: 9, kind: input, shape index: {}]
  %s10 = inlined_call_operand.vmem [shape: f32[1,96], index: 10, kind: input, shape index: {}]
  %s11 = inlined_call_operand.vmem [shape: f32[1,96], index: 11, kind: input, shape index: {}]
  %s12 = inlined_call_operand.vmem [shape: f32[96,18], index: 12, kind: input, shape index: {}]
  %s13 = inlined_call_operand.vmem [shape: f32[1,18], index: 13, kind: input, shape index: {}]
  %s14 = inlined_call_operand.vmem [shape: f32[2,3,6], index: 14, kind: output, shape index: {0}]
  %s15 = inlined_call_operand.vmem [shape: f32[2,3,12], index: 15, kind: output, shape index: {1}]
  %16 = xla_tuple %s14, %s15
  %s17 = sld [smem:[#allocation0]]
  $region101: #{pnet_forward.1} parent=0
    _
  %s19 = ssub.s32 1, %s17
  %s20 = scalar_select 0, %s19, %s17
  $region1: #{pnet_forward.1} parent=0
    #allocation5 [shape = 'u8[110592]{0}', space=vmem, size = 0x1b000, scoped, tag = 'input window, operand 6, single buffered']
    #allocation6 [shape = 's32[2]{0}', space=sflag, size = 0x8, scoped, tag = 'scoped memory for pnet_forward.1']
    %21 = vsyncpa [#allocation6], 0
    loop: start=0, step=1, limit=4
    $region2: #{pnet_forward.1} parent=1 // loop_pre_header
      _
    $region3: #{pnet_forward.1} parent=1 // loop_header
      %s23 = sphi 0, %s27
      %p24 = scmp.ge.s32.totalorder %s23, 4
      %s33 = sphi 0, %s35
      %s36 = sphi 0, %s33
      %s37 = sphi 0, %s36
      %s53 = sphi 0, %s37
      %s57 = sphi 0, %s57
      %s59 = sphi 0, %s57
      %s60 = sphi 0, %s59
      %s74 = sphi 0, %s60
      %s78 = sphi 0, %s78
      %s80 = sphi 0, %s78
      %s81 = sphi 0, %s80
      %s95 = sphi 0, %s81
      %s99 = sphi 0, %s99
      %s101 = sphi 0, %s99
      %s102 = sphi 0, %s101
      %s116 = sphi 0, %s102
      %s120 = sphi 0, %s120
      %s122 = sphi 0, %s120
      %s123 = sphi 0, %s122
      %s137 = sphi 0, %s123
      %s141 = sphi 0, %s141
      %s143 = sphi 0, %s141
      %s144 = sphi 0, %s143
      %s158 = sphi 0, %s144
      %s162 = sphi 0, %s162
      %s164 = sphi 0, %s162
      %s165 = sphi 0, %s164
      %s179 = sphi 0, %s165
      %s183 = sphi 0, %s183
      %s185 = sphi 0, %s183
      %s186 = sphi 0, %s185
      %s200 = sphi 0, %s186
      %s204 = sphi 0, %s204
      %s206 = sphi 0, %s204
      %s207 = sphi 0, %s206
      %s221 = sphi 0, %s207
      %s225 = sphi 0, %s225
      %s227 = sphi 0, %s225
      %s228 = sphi 0, %s227
      %s242 = sphi 0, %s228
      %s246 = sphi 0, %s246
      %s248 = sphi 0, %s246
      %s249 = sphi 0, %s248
      %s263 = sphi 0, %s249
      %s267 = sphi 0, %s267
      %s269 = sphi 0, %s267
      %s270 = sphi 0, %s269
      %s284 = sphi 0, %s270
      %s288 = sphi 0, %s288
      %s290 = sphi 0, %s288
      %s291 = sphi 0, %s290
      %s305 = sphi 0, %s291
      %s309 = sphi 0, %s309
      %s311 = sphi 0, %s309
      %s312 = sphi 0, %s311
      %s326 = sphi 0, %s312
      %s332 = sphi 0, %s334
      %s335 = sphi 0, %s332
      %s336 = sphi 0, %s335
      %s352 = sphi 0, %s336
      %s358 = sphi 0, %s360
      %s361 = sphi 0, %s358
      %s362 = sphi 0, %s361
      %s378 = sphi 0, %s362
    $region4: #{pnet_forward.1} parent=1 // loop_header_branch
      %26 = sbr.rel (%p24) target = $region8
    $region5: #{pnet_forward.1} parent=1 // loop_body
      %s28 = ssub.s32 %s23, 1
      %s29 = ssub.s32 %s23, 2
      %s30 = sadd.s32 %s23, 1
      %s31 = ssub.s32 %s23, %s30
      %p32 = scmp.eq.s32.totalorder %s31, 0
      %s34 = sadd.s32 %s33, 1
      %s35 = scalar_select %p32, %s33, %s34
      %p38 = pneg %p32
      %p39 = scmp.eq.s32.totalorder %s23, 1
      %p40 = por %p38, %p39
      %p41 = scmp.ne.s32.totalorder %s33, %s36
      %p42 = scmp.eq.s32.totalorder %s23, 0
      %p43 = por %p41, %p42
      %p44 = scmp.ne.s32.totalorder %s33, %s36
      %p45 = scmp.eq.s32.totalorder %s28, 1
      %p46 = por %p44, %p45
      %p47 = scmp.ne.s32.totalorder %s36, %s37
      %p48 = scmp.eq.s32.totalorder %s28, 0
      %p49 = por %p47, %p48
      %p50 = scmp.ne.s32.totalorder %s36, %s37
      %p51 = scmp.eq.s32.totalorder %s29, 1
      %p52 = por %p50, %p51
      %p54 = scmp.ne.s32.totalorder %s37, %s53
      %p55 = scmp.eq.s32.totalorder %s29, 0
      %p56 = por %p54, %p55
      %s58 = sadd.s32 %s57, 1
      %p61 = scmp.eq.s32.totalorder %s23, 1
      %p62 = scmp.ne.s32.totalorder %s57, %s59
      %p63 = scmp.eq.s32.totalorder %s23, 0
      %p64 = por %p62, %p63
      %p65 = scmp.ne.s32.totalorder %s57, %s59
      %p66 = scmp.eq.s32.totalorder %s28, 1
      %p67 = por %p65, %p66
      %p68 = scmp.ne.s32.totalorder %s59, %s60
      %p69 = scmp.eq.s32.totalorder %s28, 0
      %p70 = por %p68, %p69
      %p71 = scmp.ne.s32.totalorder %s59, %s60
      %p72 = scmp.eq.s32.totalorder %s29, 1
      %p73 = por %p71, %p72
      %p75 = scmp.ne.s32.totalorder %s60, %s74
      %p76 = scmp.eq.s32.totalorder %s29, 0
      %p77 = por %p75, %p76
      %s79 = sadd.s32 %s78, 1
      %p82 = scmp.eq.s32.totalorder %s23, 1
      %p83 = scmp.ne.s32.totalorder %s78, %s80
      %p84 = scmp.eq.s32.totalorder %s23, 0
      %p85 = por %p83, %p84
      %p86 = scmp.ne.s32.totalorder %s78, %s80
      %p87 = scmp.eq.s32.totalorder %s28, 1
      %p88 = por %p86, %p87
      %p89 = scmp.ne.s32.totalorder %s80, %s81
      %p90 = scmp.eq.s32.totalorder %s28, 0
      %p91 = por %p89, %p90
      %p92 = scmp.ne.s32.totalorder %s80, %s81
      %p93 = scmp.eq.s32.totalorder %s29, 1
      %p94 = por %p92, %p93
      %p96 = scmp.ne.s32.totalorder %s81, %s95
      %p97 = scmp.eq.s32.totalorder %s29, 0
      %p98 = por %p96, %p97
      %s100 = sadd.s32 %s99, 1
      %p103 = scmp.eq.s32.totalorder %s23, 1
      %p104 = scmp.ne.s32.totalorder %s99, %s101
      %p105 = scmp.eq.s32.totalorder %s23, 0
      %p106 = por %p104, %p105
      %p107 = scmp.ne.s32.totalorder %s99, %s101
      %p108 = scmp.eq.s32.totalorder %s28, 1
      %p109 = por %p107, %p108
      %p110 = scmp.ne.s32.totalorder %s101, %s102
      %p111 = scmp.eq.s32.totalorder %s28, 0
      %p112 = por %p110, %p111
      %p113 = scmp.ne.s32.totalorder %s101, %s102
      %p114 = scmp.eq.s32.totalorder %s29, 1
      %p115 = por %p113, %p114
      %p117 = scmp.ne.s32.totalorder %s102, %s116
      %p118 = scmp.eq.s32.totalorder %s29, 0
      %p119 = por %p117, %p118
      %s121 = sadd.s32 %s120, 1
      %p124 = scmp.eq.s32.totalorder %s23, 1
      %p125 = scmp.ne.s32.totalorder %s120, %s122
      %p126 = scmp.eq.s32.totalorder %s23, 0
      %p127 = por %p125, %p126
      %p128 = scmp.ne.s32.totalorder %s120, %s122
      %p129 = scmp.eq.s32.totalorder %s28, 1
      %p130 = por %p128, %p129
      %p131 = scmp.ne.s32.totalorder %s122, %s123
      %p132 = scmp.eq.s32.totalorder %s28, 0
      %p133 = por %p131, %p132
      %p134 = scmp.ne.s32.totalorder %s122, %s123
      %p135 = scmp.eq.s32.totalorder %s29, 1
      %p136 = por %p134, %p135
      %p138 = scmp.ne.s32.totalorder %s123, %s137
      %p139 = scmp.eq.s32.totalorder %s29, 0
      %p140 = por %p138, %p139
      %s142 = sadd.s32 %s141, 1
      %p145 = scmp.eq.s32.totalorder %s23, 1
      %p146 = scmp.ne.s32.totalorder %s141, %s143
      %p147 = scmp.eq.s32.totalorder %s23, 0
      %p148 = por %p146, %p147
      %p149 = scmp.ne.s32.totalorder %s141, %s143
      %p150 = scmp.eq.s32.totalorder %s28, 1
      %p151 = por %p149, %p150
      %p152 = scmp.ne.s32.totalorder %s143, %s144
      %p153 = scmp.eq.s32.totalorder %s28, 0
      %p154 = por %p152, %p153
      %p155 = scmp.ne.s32.totalorder %s143, %s144
      %p156 = scmp.eq.s32.totalorder %s29, 1
      %p157 = por %p155, %p156
      %p159 = scmp.ne.s32.totalorder %s144, %s158
      %p160 = scmp.eq.s32.totalorder %s29, 0
      %p161 = por %p159, %p160
      %s163 = sadd.s32 %s162, 1
      %p166 = scmp.eq.s32.totalorder %s23, 1
      %p167 = scmp.ne.s32.totalorder %s162, %s164
      %p168 = scmp.eq.s32.totalorder %s23, 0
      %p169 = por %p167, %p168
      %p170 = scmp.ne.s32.totalorder %s162, %s164
      %p171 = scmp.eq.s32.totalorder %s28, 1
      %p172 = por %p170, %p171
      %p173 = scmp.ne.s32.totalorder %s164, %s165
      %p174 = scmp.eq.s32.totalorder %s28, 0
      %p175 = por %p173, %p174
      %p176 = scmp.ne.s32.totalorder %s164, %s165
      %p177 = scmp.eq.s32.totalorder %s29, 1
      %p178 = por %p176, %p177
      %p180 = scmp.ne.s32.totalorder %s165, %s179
      %p181 = scmp.eq.s32.totalorder %s29, 0
      %p182 = por %p180, %p181
      %s184 = sadd.s32 %s183, 1
      %p187 = scmp.eq.s32.totalorder %s23, 1
      %p188 = scmp.ne.s32.totalorder %s183, %s185
      %p189 = scmp.eq.s32.totalorder %s23, 0
      %p190 = por %p188, %p189
      %p191 = scmp.ne.s32.totalorder %s183, %s185
      %p192 = scmp.eq.s32.totalorder %s28, 1
      %p193 = por %p191, %p192
      %p194 = scmp.ne.s32.totalorder %s185, %s186
      %p195 = scmp.eq.s32.totalorder %s28, 0
      %p196 = por %p194, %p195
      %p197 = scmp.ne.s32.totalorder %s185, %s186
      %p198 = scmp.eq.s32.totalorder %s29, 1
      %p199 = por %p197, %p198
      %p201 = scmp.ne.s32.totalorder %s186, %s200
      %p202 = scmp.eq.s32.totalorder %s29, 0
      %p203 = por %p201, %p202
      %s205 = sadd.s32 %s204, 1
      %p208 = scmp.eq.s32.totalorder %s23, 1
      %p209 = scmp.ne.s32.totalorder %s204, %s206
      %p210 = scmp.eq.s32.totalorder %s23, 0
      %p211 = por %p209, %p210
      %p212 = scmp.ne.s32.totalorder %s204, %s206
      %p213 = scmp.eq.s32.totalorder %s28, 1
      %p214 = por %p212, %p213
      %p215 = scmp.ne.s32.totalorder %s206, %s207
      %p216 = scmp.eq.s32.totalorder %s28, 0
      %p217 = por %p215, %p216
      %p218 = scmp.ne.s32.totalorder %s206, %s207
      %p219 = scmp.eq.s32.totalorder %s29, 1
      %p220 = por %p218, %p219
      %p222 = scmp.ne.s32.totalorder %s207, %s221
      %p223 = scmp.eq.s32.totalorder %s29, 0
      %p224 = por %p222, %p223
      %s226 = sadd.s32 %s225, 1
      %p229 = scmp.eq.s32.totalorder %s23, 1
      %p230 = scmp.ne.s32.totalorder %s225, %s227
      %p231 = scmp.eq.s32.totalorder %s23, 0
      %p232 = por %p230, %p231
      %p233 = scmp.ne.s32.totalorder %s225, %s227
      %p234 = scmp.eq.s32.totalorder %s28, 1
      %p235 = por %p233, %p234
      %p236 = scmp.ne.s32.totalorder %s227, %s228
      %p237 = scmp.eq.s32.totalorder %s28, 0
      %p238 = por %p236, %p237
      %p239 = scmp.ne.s32.totalorder %s227, %s228
      %p240 = scmp.eq.s32.totalorder %s29, 1
      %p241 = por %p239, %p240
      %p243 = scmp.ne.s32.totalorder %s228, %s242
      %p244 = scmp.eq.s32.totalorder %s29, 0
      %p245 = por %p243, %p244
      %s247 = sadd.s32 %s246, 1
      %p250 = scmp.eq.s32.totalorder %s23, 1
      %p251 = scmp.ne.s32.totalorder %s246, %s248
      %p252 = scmp.eq.s32.totalorder %s23, 0
      %p253 = por %p251, %p252
      %p254 = scmp.ne.s32.totalorder %s246, %s248
      %p255 = scmp.eq.s32.totalorder %s28, 1
      %p256 = por %p254, %p255
      %p257 = scmp.ne.s32.totalorder %s248, %s249
      %p258 = scmp.eq.s32.totalorder %s28, 0
      %p259 = por %p257, %p258
      %p260 = scmp.ne.s32.totalorder %s248, %s249
      %p261 = scmp.eq.s32.totalorder %s29, 1
      %p262 = por %p260, %p261
      %p264 = scmp.ne.s32.totalorder %s249, %s263
      %p265 = scmp.eq.s32.totalorder %s29, 0
      %p266 = por %p264, %p265
      %s268 = sadd.s32 %s267, 1
      %p271 = scmp.eq.s32.totalorder %s23, 1
      %p272 = scmp.ne.s32.totalorder %s267, %s269
      %p273 = scmp.eq.s32.totalorder %s23, 0
      %p274 = por %p272, %p273
      %p275 = scmp.ne.s32.totalorder %s267, %s269
      %p276 = scmp.eq.s32.totalorder %s28, 1
      %p277 = por %p275, %p276
      %p278 = scmp.ne.s32.totalorder %s269, %s270
      %p279 = scmp.eq.s32.totalorder %s28, 0
      %p280 = por %p278, %p279
      %p281 = scmp.ne.s32.totalorder %s269, %s270
      %p282 = scmp.eq.s32.totalorder %s29, 1
      %p283 = por %p281, %p282
      %p285 = scmp.ne.s32.totalorder %s270, %s284
      %p286 = scmp.eq.s32.totalorder %s29, 0
      %p287 = por %p285, %p286
      %s289 = sadd.s32 %s288, 1
      %p292 = scmp.eq.s32.totalorder %s23, 1
      %p293 = scmp.ne.s32.totalorder %s288, %s290
      %p294 = scmp.eq.s32.totalorder %s23, 0
      %p295 = por %p293, %p294
      %p296 = scmp.ne.s32.totalorder %s288, %s290
      %p297 = scmp.eq.s32.totalorder %s28, 1
      %p298 = por %p296, %p297
      %p299 = scmp.ne.s32.totalorder %s290, %s291
      %p300 = scmp.eq.s32.totalorder %s28, 0
      %p301 = por %p299, %p300
      %p302 = scmp.ne.s32.totalorder %s290, %s291
      %p303 = scmp.eq.s32.totalorder %s29, 1
      %p304 = por %p302, %p303
      %p306 = scmp.ne.s32.totalorder %s291, %s305
      %p307 = scmp.eq.s32.totalorder %s29, 0
      %p308 = por %p306, %p307
      %s310 = sadd.s32 %s309, 1
      %p313 = scmp.eq.s32.totalorder %s23, 1
      %p314 = scmp.ne.s32.totalorder %s309, %s311
      %p315 = scmp.eq.s32.totalorder %s23, 0
      %p316 = por %p314, %p315
      %p317 = scmp.ne.s32.totalorder %s309, %s311
      %p318 = scmp.eq.s32.totalorder %s28, 1
      %p319 = por %p317, %p318
      %p320 = scmp.ne.s32.totalorder %s311, %s312
      %p321 = scmp.eq.s32.totalorder %s28, 0
      %p322 = por %p320, %p321
      %p323 = scmp.ne.s32.totalorder %s311, %s312
      %p324 = scmp.eq.s32.totalorder %s29, 1
      %p325 = por %p323, %p324
      %p327 = scmp.ne.s32.totalorder %s312, %s326
      %p328 = scmp.eq.s32.totalorder %s29, 0
      %p329 = por %p327, %p328
      %s330 = ssub.s32 %s23, %s30
      %p331 = scmp.eq.s32.totalorder %s330, 0
      %s333 = sadd.s32 %s332, 1
      %s334 = scalar_select %p331, %s332, %s333
      %p337 = pneg %p331
      %p338 = scmp.eq.s32.totalorder %s23, 1
      %p339 = por %p337, %p338
      %p340 = scmp.ne.s32.totalorder %s332, %s335
      %p341 = scmp.eq.s32.totalorder %s23, 0
      %p342 = por %p340, %p341
      %p343 = scmp.ne.s32.totalorder %s332, %s335
      %p344 = scmp.eq.s32.totalorder %s28, 1
      %p345 = por %p343, %p344
      %p346 = scmp.ne.s32.totalorder %s335, %s336
      %p347 = scmp.eq.s32.totalorder %s28, 0
      %p348 = por %p346, %p347
      %p349 = scmp.ne.s32.totalorder %s335, %s336
      %p350 = scmp.eq.s32.totalorder %s29, 1
      %p351 = por %p349, %p350
      %p353 = scmp.ne.s32.totalorder %s336, %s352
      %p354 = scmp.eq.s32.totalorder %s29, 0
      %p355 = por %p353, %p354
      %s356 = ssub.s32 %s23, %s30
      %p357 = scmp.eq.s32.totalorder %s356, 0
      %s359 = sadd.s32 %s358, 1
      %s360 = scalar_select %p357, %s358, %s359
      %p363 = pneg %p357
      %p364 = scmp.eq.s32.totalorder %s23, 1
      %p365 = por %p363, %p364
      %p366 = scmp.ne.s32.totalorder %s358, %s361
      %p367 = scmp.eq.s32.totalorder %s23, 0
      %p368 = por %p366, %p367
      %p369 = scmp.ne.s32.totalorder %s358, %s361
      %p370 = scmp.eq.s32.totalorder %s28, 1
      %p371 = por %p369, %p370
      %p372 = scmp.ne.s32.totalorder %s361, %s362
      %p373 = scmp.eq.s32.totalorder %s28, 0
      %p374 = por %p372, %p373
      %p375 = scmp.ne.s32.totalorder %s361, %s362
      %p376 = scmp.eq.s32.totalorder %s29, 1
      %p377 = por %p375, %p376
      %p379 = scmp.ne.s32.totalorder %s362, %s378
      %p380 = scmp.eq.s32.totalorder %s29, 0
      %p381 = por %p379, %p380
      %p382 = scmp.le.s32.totalorder 1, %s23
      %p383 = scmp.lt.s32.totalorder %s23, 3
      %p384 = pnand %p382, %p383
      %p385 = pneg %p384
      // Predicated region
      $region9: #{pnet_forward.1} parent=5 // pred_check
        _
      $region10: #{pnet_forward.1} parent=5 // pred_check_branch
        %387 = sbr.rel (%p384) target = $region12
      $region11: #{pnet_forward.1} parent=5 // pred_region
        %s388 = ssub.s32 %s23, 1
        // Predicated region
        $region13: #{pnet_forward.1} parent=11 // pred_check
          %p389 = pneg %p70
        $region14: #{pnet_forward.1} parent=11 // pred_check_branch
          %391 = sbr.rel (%p389) target = $region16
        $region15: #{pnet_forward.1} parent=11 // pred_region
          _
        $region16: #{pnet_forward.1} parent=11 // pred_fallthru
          _
        // Predicated region
        $region17: #{pnet_forward.1} parent=11 // pred_check
          %p392 = pneg %p91
        $region18: #{pnet_forward.1} parent=11 // pred_check_branch
          %394 = sbr.rel (%p392) target = $region20
        $region19: #{pnet_forward.1} parent=11 // pred_region
          _
        $region20: #{pnet_forward.1} parent=11 // pred_fallthru
          _
        // Predicated region
        $region21: #{pnet_forward.1} parent=11 // pred_check
          %p395 = pneg %p112
        $region22: #{pnet_forward.1} parent=11 // pred_check_branch
          %397 = sbr.rel (%p395) target = $region24
        $region23: #{pnet_forward.1} parent=11 // pred_region
          _
        $region24: #{pnet_forward.1} parent=11 // pred_fallthru
          _
        // Predicated region
        $region25: #{pnet_forward.1} parent=11 // pred_check
          %p398 = pneg %p133
        $region26: #{pnet_forward.1} parent=11 // pred_check_branch
          %400 = sbr.rel (%p398) target = $region28
        $region27: #{pnet_forward.1} parent=11 // pred_region
          _
        $region28: #{pnet_forward.1} parent=11 // pred_fallthru
          _
        // Predicated region
        $region29: #{pnet_forward.1} parent=11 // pred_check
          %p401 = pneg %p154
        $region30: #{pnet_forward.1} parent=11 // pred_check_branch
          %403 = sbr.rel (%p401) target = $region32
        $region31: #{pnet_forward.1} parent=11 // pred_region
          _
        $region32: #{pnet_forward.1} parent=11 // pred_fallthru
          _
        // Predicated region
        $region33: #{pnet_forward.1} parent=11 // pred_check
          %p404 = pneg %p175
        $region34: #{pnet_forward.1} parent=11 // pred_check_branch
          %406 = sbr.rel (%p404) target = $region36
        $region35: #{pnet_forward.1} parent=11 // pred_region
          %s408 = ssub.s32 3456, 3456
          %409 = vsyncadd [#allocation6], %s408
          %s410 = sshll.u32 [#allocation5], 4
          %s411 = int_to_ptr.vmem [resolvable:$true] %s410
          %416 = dma.hbm_to_vmem [thread:$0]  %s6, 3456, %s411, [#allocation6], 128, 128, 8
        $region36: #{pnet_forward.1} parent=11 // pred_fallthru
          _
        // Predicated region
        $region37: #{pnet_forward.1} parent=11 // pred_check
          %p417 = pneg %p196
        $region38: #{pnet_forward.1} parent=11 // pred_check_branch
          %419 = sbr.rel (%p417) target = $region40
        $region39: #{pnet_forward.1} parent=11 // pred_region
          _
        $region40: #{pnet_forward.1} parent=11 // pred_fallthru
          _
        // Predicated region
        $region41: #{pnet_forward.1} parent=11 // pred_check
          %p420 = pneg %p217
        $region42: #{pnet_forward.1} parent=11 // pred_check_branch
          %422 = sbr.rel (%p420) target = $region44
        $region43: #{pnet_forward.1} parent=11 // pred_region
          _
        $region44: #{pnet_forward.1} parent=11 // pred_fallthru
          _
        // Predicated region
        $region45: #{pnet_forward.1} parent=11 // pred_check
          %p423 = pneg %p238
        $region46: #{pnet_forward.1} parent=11 // pred_check_branch
          %425 = sbr.rel (%p423) target = $region48
        $region47: #{pnet_forward.1} parent=11 // pred_region
          _
        $region48: #{pnet_forward.1} parent=11 // pred_fallthru
          _
        // Predicated region
        $region49: #{pnet_forward.1} parent=11 // pred_check
          %p426 = pneg %p259
        $region50: #{pnet_forward.1} parent=11 // pred_check_branch
          %428 = sbr.rel (%p426) target = $region52
        $region51: #{pnet_forward.1} parent=11 // pred_region
          _
        $region52: #{pnet_forward.1} parent=11 // pred_fallthru
          _
        // Predicated region
        $region53: #{pnet_forward.1} parent=11 // pred_check
          %p429 = pneg %p280
        $region54: #{pnet_forward.1} parent=11 // pred_check_branch
          %431 = sbr.rel (%p429) target = $region56
        $region55: #{pnet_forward.1} parent=11 // pred_region
          _
        $region56: #{pnet_forward.1} parent=11 // pred_fallthru
          _
        // Predicated region
        $region57: #{pnet_forward.1} parent=11 // pred_check
          %p432 = pneg %p301
        $region58: #{pnet_forward.1} parent=11 // pred_check_branch
          %434 = sbr.rel (%p432) target = $region60
        $region59: #{pnet_forward.1} parent=11 // pred_region
          _
        $region60: #{pnet_forward.1} parent=11 // pred_fallthru
          _
        // Predicated region
        $region61: #{pnet_forward.1} parent=11 // pred_check
          %p435 = pneg %p322
        $region62: #{pnet_forward.1} parent=11 // pred_check_branch
          %437 = sbr.rel (%p435) target = $region64
        $region63: #{pnet_forward.1} parent=11 // pred_region
          _
        $region64: #{pnet_forward.1} parent=11 // pred_fallthru
          _
      $region12: #{pnet_forward.1} parent=5 // pred_fallthru
        _
      %p438 = scmp.lt.s32.totalorder %s23, 2
      // Predicated region
      $region65: #{pnet_forward.1} parent=5 // pred_check
        %p439 = pneg %p438
      $region66: #{pnet_forward.1} parent=5 // pred_check_branch
        %441 = sbr.rel (%p439) target = $region68
      $region67: #{pnet_forward.1} parent=5 // pred_region
        // Predicated region
        $region69: #{pnet_forward.1} parent=67 // pred_check
          %p442 = pneg %p43
        $region70: #{pnet_forward.1} parent=67 // pred_check_branch
          %444 = sbr.rel (%p442) target = $region72
        $region71: #{pnet_forward.1} parent=67 // pred_region
          %p445 = scmp.lt.s32.totalorder %s23, 1
          %s446 = scalar_select %p445, %s23, 1
          %s447 = smul.addr %s446, 2
          %s448 = smul.addr %s447, 8
          %s449 = scalar_lea.vmem %s0, %s448
        $region72: #{pnet_forward.1} parent=67 // pred_fallthru
          _
      $region68: #{pnet_forward.1} parent=5 // pred_fallthru
        _
      %p450 = scmp.le.s32.totalorder 1, %s23
      %p451 = scmp.lt.s32.totalorder %s23, 3
      %p452 = pnand %p450, %p451
      %p453 = pneg %p452
      // Predicated region
      $region73: #{pnet_forward.1} parent=5 // pred_check
        _
      $region74: #{pnet_forward.1} parent=5 // pred_check_branch
        %455 = sbr.rel (%p452) target = $region76
      $region75: #{pnet_forward.1} parent=5 // pred_region
        %s456 = ssub.s32 %s23, 1
        // Predicated region
        $region77: #{pnet_forward.1} parent=75 // pred_check
          %p457 = pneg %p175
        $region78: #{pnet_forward.1} parent=75 // pred_check_branch
          %459 = sbr.rel (%p457) target = $region80
        $region79: #{pnet_forward.1} parent=75 // pred_region
          %460 = dma.done [#allocation6], 3456
        $region80: #{pnet_forward.1} parent=75 // pred_fallthru
          _
        %p461 = scmp.lt.s32.totalorder %s28, 1
        %s462 = scalar_select %p461, %s28, 1
        %s463 = smul.addr %s462, 2
        %s464 = smul.addr %s463, 8
        %s465 = scalar_lea.vmem %s0, %s464
        %p466 = pneg %p49
        %p467 = pneg %p46
        %p468 = pneg %p70
        %p469 = pneg %p67
        %p470 = pneg %p91
        %p471 = pneg %p88
        %p472 = pneg %p112
        %p473 = pneg %p109
        %p474 = pneg %p133
        %p475 = pneg %p130
        %p476 = pneg %p154
        %p477 = pneg %p151
        %p478 = pneg %p175
        %p479 = pneg %p172
        %p480 = pneg %p196
        %p481 = pneg %p193
        %p482 = pneg %p217
        %p483 = pneg %p214
        %p484 = pneg %p238
        %p485 = pneg %p235
        %p486 = pneg %p259
        %p487 = pneg %p256
        %p488 = pneg %p280
        %p489 = pneg %p277
        %p490 = pneg %p301
        %p491 = pneg %p298
        %p492 = pneg %p322
        %p493 = pneg %p319
        %p494 = pneg %p348
        %p495 = pneg %p345
        %p496 = scmp.lt.s32.totalorder %s28, 1
        %s497 = scalar_select %p496, %s28, 1
        %s498 = smul.addr %s497, 4
        %s499 = scalar_lea.vmem %s14, %s498
        %p500 = pneg %p374
        %p501 = pneg %p371
        %p502 = scmp.lt.s32.totalorder %s28, 1
        %s503 = scalar_select %p502, %s28, 1
        %s504 = smul.addr %s503, 4
        %s505 = scalar_lea.vmem %s15, %s504
        %p506 = scmp.lt.s32.totalorder %s28, 1
        %s507 = scalar_select %p506, %s28, 1
        %s508 = smul.addr %s507, 2
        %s509 = smul.addr %s508, 8
        %s510 = scalar_lea.vmem %s0, %s509
        %p511 = scmp.lt.s32.totalorder %s28, 1
        %s512 = scalar_select %p511, %s28, 1
        %s513 = smul.addr %s512, 4
        %s514 = scalar_lea.vmem %s14, %s513
        %p515 = scmp.lt.s32.totalorder %s28, 1
        %s516 = scalar_select %p515, %s28, 1
        %s517 = smul.addr %s516, 4
        %s518 = scalar_lea.vmem %s15, %s517
        %v519 = vld [vmem:[%s510] sm:$0xff]
        %v520 = vld [vmem:[%s510 + $0x8] sm:$0x3f]
        %v521 = vld [vmem:[%s1] sm:$0xff]
        %v522 = vld [vmem:[%s1 + $0x8] sm:$0xff]
        %v523 = vld [vmem:[%s1 + $0x10] sm:$0xff]
        %v524 = vld [vmem:[%s1 + $0x18] sm:$0xff]
        %v525 = vld [vmem:[%s1 + $0x20] sm:$0xff]
        %v526 = vld [vmem:[%s1 + $0x28] sm:$0xff]
        %v527 = vld [vmem:[%s1 + $0x30] sm:$0xff]
        %v528 = vld [vmem:[%s1 + $0x38] sm:$0xff]
        %v529 = vld [vmem:[%s1 + $0x40] sm:$0xff]
        %v530 = vld [vmem:[%s1 + $0x48] sm:$0xff]
        %v531 = vld [vmem:[%s1 + $0x50] sm:$0xff]
        %v532 = vld [vmem:[%s1 + $0x58] sm:$0xff]
        %v533 = vld [vmem:[%s510 + $0x1] sm:$0xff]
        %v534 = vld [vmem:[%s510 + $0x9] sm:$0x3f]
        %s535 = scalar_lea.vmem %s1, 96
        %v536 = vld [vmem:[%s535] sm:$0xff]
        %v537 = vld [vmem:[%s535 + $0x8] sm:$0xff]
        %v538 = vld [vmem:[%s535 + $0x10] sm:$0xff]
        %v539 = vld [vmem:[%s535 + $0x18] sm:$0xff]
        %v540 = vld [vmem:[%s535 + $0x20] sm:$0xff]
        %v541 = vld [vmem:[%s535 + $0x28] sm:$0xff]
        %v542 = vld [vmem:[%s535 + $0x30] sm:$0xff]
        %v543 = vld [vmem:[%s535 + $0x38] sm:$0xff]
        %v544 = vld [vmem:[%s535 + $0x40] sm:$0xff]
        %v545 = vld [vmem:[%s535 + $0x48] sm:$0xff]
        %v546 = vld [vmem:[%s535 + $0x50] sm:$0xff]
        %v547 = vld [vmem:[%s535 + $0x58] sm:$0xff]
        %vm548 = vcmask 392192
        %v550 = vsel %vm548, %v533, 0
        %v553 = vsel %vm548, %v534, 0
        %555 = vmatprep.subr.mxu0 0.0
        %556 = vmatpush1.msra.mxu0 0.0
        %557 = vmatprep.subr.mxu0 0.0
        %558 = vmatpush1.msra.mxu0 0.0
        %559 = vmatprep.subr.mxu0 0.0
        %560 = vmatpush1.msra.mxu0 0.0
        %561 = vmatprep.subr.mxu0 0.0
        %562 = vmatpush1.msra.mxu0 0.0
        %563 = vmatprep.subr.mxu0 0.0
        %564 = vmatpush1.msra.mxu0 0.0
        %565 = vmatprep.subr.mxu0 0.0
        %566 = vmatpush1.msra.mxu0 0.0
        %567 = vmatprep.subr.mxu0 0.0
        %568 = vmatpush1.msra.mxu0 0.0
        %569 = vmatprep.subr.mxu0 0.0
        %570 = vmatpush1.msra.mxu0 0.0
        %571 = vmatprep.subr.mxu0 0.0
        %572 = vmatpush1.msra.mxu0 0.0
        %573 = vmatprep.subr.mxu0 0.0
        %574 = vmatpush1.msra.mxu0 0.0
        %v575 = vand.u32 %v547, 4294901760
        %576 = vmatprep.subr.mxu0 %v575
        %v577 = vand.u32 %v546, 4294901760
        %578 = vmatpush1.msra.mxu0 %v577
        %v579 = vand.u32 %v545, 4294901760
        %580 = vmatprep.subr.mxu0 %v579
        %v581 = vand.u32 %v544, 4294901760
        %582 = vmatpush1.msra.mxu0 %v581
        %v583 = vand.u32 %v543, 4294901760
        %584 = vmatprep.subr.mxu0 %v583
        %v585 = vand.u32 %v542, 4294901760
        %586 = vmatpush1.msra.mxu0 %v585
        %v587 = vand.u32 %v541, 4294901760
        %588 = vmatprep.subr.mxu0 %v587
        %v589 = vand.u32 %v540, 4294901760
        %590 = vmatpush1.msra.mxu0 %v589
        %v591 = vand.u32 %v539, 4294901760
        %592 = vmatprep.subr.mxu0 %v591
        %v593 = vand.u32 %v538, 4294901760
        %594 = vmatpush1.msra.mxu0 %v593
        %v595 = vand.u32 %v537, 4294901760
        %596 = vmatprep.subr.mxu0 %v595
        %v597 = vand.u32 %v536, 4294901760
        %598 = vmatpush1.msra.mxu0 %v597
        %599 = vmatprep.subr.mxu0 0.0
        %600 = vmatpush2.msra.mxu0 0.0
        %601 = vmatprep.subr.mxu0 0.0
        %602 = vmatpush2.msra.mxu0 0.0
        %603 = vmatprep.subr.mxu0 0.0
        %604 = vmatpush2.msra.mxu0 0.0
        %605 = vmatprep.subr.mxu0 0.0
        %606 = vmatpush2.msra.mxu0 0.0
        %607 = vmatprep.subr.mxu0 0.0
        %608 = vmatpush2.msra.mxu0 0.0
        %609 = vmatprep.subr.mxu0 0.0
        %610 = vmatpush2.msra.mxu0 0.0
        %611 = vmatprep.subr.mxu0 0.0
        %612 = vmatpush2.msra.mxu0 0.0
        %613 = vmatprep.subr.mxu0 0.0
        %614 = vmatpush2.msra.mxu0 0.0
        %615 = vmatprep.subr.mxu0 0.0
        %616 = vmatpush2.msra.mxu0 0.0
        %617 = vmatprep.subr.mxu0 0.0
        %618 = vmatpush2.msra.mxu0 0.0
        %619 = vmatprep.subr.mxu0 0.0
        %620 = vmatpush2.msra.mxu0 0.0
        %621 = vmatprep.subr.mxu0 0.0
        %622 = vmatpush2.msra.mxu0 0.0
        %623 = vmatprep.subr.mxu0 0.0
        %624 = vmatpush2.msra.mxu0 0.0
        %625 = vmatprep.subr.mxu0 0.0
        %626 = vmatpush2.msra.mxu0 0.0
        %627 = vmatprep.subr.mxu0 0.0
        %628 = vmatpush2.msra.mxu0 0.0
        %629 = vmatprep.subr.mxu0 0.0
        %630 = vmatpush2.msra.mxu0 0.0
        %631 = vmatprep.mubr.f32.mxu0 0.0
        %v632 = vand.u32 %v550, 4294901760
        %v633 = vsub.f32 %v550, %v632
        %v634 = vand.u32 %v633, 4294901760
        %v635 = vsub.f32 %v633, %v634
        %v636 = vand.u32 %v635, 4294901760
        %637 = vmatmul.mubr.f32.gmra.mxu0 %v636
        %v638 = vpop.f32.mrf.mxu0
        %v639 = vadd.f32 0.0, %v638
        %v640 = vpop.f32.mrf.mxu0
        %v641 = vadd.f32 0.0, %v640
        %642 = vmatprep.mubr.f32.mxu0 0.0
        %v643 = vand.u32 %v553, 4294901760
        %v644 = vsub.f32 %v553, %v643
        %v645 = vand.u32 %v644, 4294901760
        %v646 = vsub.f32 %v644, %v645
        %v647 = vand.u32 %v646, 4294901760
        %648 = vmatmul.mubr.f32.gmra.mxu0 %v647
        %v649 = vpop.f32.mrf.mxu0
        %v650 = vadd.f32 0.0, %v649
        %v651 = vpop.f32.mrf.mxu0
        %v652 = vadd.f32 0.0, %v651
        %653 = vdwg.mxu0
        %654 = vmatprep.subr.mxu0 0.0
        %655 = vmatpush1.msra.mxu0 0.0
        %656 = vmatprep.subr.mxu0 0.0
        %657 = vmatpush1.msra.mxu0 0.0
        %658 = vmatprep.subr.mxu0 0.0
        %659 = vmatpush1.msra.mxu0 0.0
        %660 = vmatprep.subr.mxu0 0.0
        %661 = vmatpush1.msra.mxu0 0.0
        %662 = vmatprep.subr.mxu0 0.0
        %663 = vmatpush1.msra.mxu0 0.0
        %664 = vmatprep.subr.mxu0 0.0
        %665 = vmatpush1.msra.mxu0 0.0
        %666 = vmatprep.subr.mxu0 0.0
        %667 = vmatpush1.msra.mxu0 0.0
        %668 = vmatprep.subr.mxu0 0.0
        %669 = vmatpush1.msra.mxu0 0.0
        %670 = vmatprep.subr.mxu0 0.0
        %671 = vmatpush1.msra.mxu0 0.0
        %672 = vmatprep.subr.mxu0 0.0
        %673 = vmatpush1.msra.mxu0 0.0
        %v674 = vand.u32 %v547, 4294901760
        %v675 = vsub.f32 %v547, %v674
        %v676 = vand.u32 %v675, 4294901760
        %v677 = vsub.f32 %v675, %v676
        %v678 = vand.u32 %v677, 4294901760
        %679 = vmatprep.subr.mxu0 %v678
        %v680 = vand.u32 %v546, 4294901760
        %v681 = vsub.f32 %v546, %v680
        %v682 = vand.u32 %v681, 4294901760
        %v683 = vsub.f32 %v681, %v682
        %v684 = vand.u32 %v683, 4294901760
        %685 = vmatpush1.msra.mxu0 %v684
        %v686 = vand.u32 %v545, 4294901760
        %v687 = vsub.f32 %v545, %v686
        %v688 = vand.u32 %v687, 4294901760
        %v689 = vsub.f32 %v687, %v688
        %v690 = vand.u32 %v689, 4294901760
        %691 = vmatprep.subr.mxu0 %v690
        %v692 = vand.u32 %v544, 4294901760
        %v693 = vsub.f32 %v544, %v692
        %v694 = vand.u32 %v693, 4294901760
        %v695 = vsub.f32 %v693, %v694
        %v696 = vand.u32 %v695, 4294901760
        %697 = vmatpush1.msra.mxu0 %v696
        %v698 = vand.u32 %v543, 4294901760
        %v699 = vsub.f32 %v543, %v698
        %v700 = vand.u32 %v699, 4294901760
        %v701 = vsub.f32 %v699, %v700
        %v702 = vand.u32 %v701, 4294901760
        %703 = vmatprep.subr.mxu0 %v702
        %v704 = vand.u32 %v542, 4294901760
        %v705 = vsub.f32 %v542, %v704
        %v706 = vand.u32 %v705, 4294901760
        %v707 = vsub.f32 %v705, %v706
        %v708 = vand.u32 %v707, 4294901760
        %709 = vmatpush1.msra.mxu0 %v708
        %v710 = vand.u32 %v541, 4294901760
        %v711 = vsub.f32 %v541, %v710
        %v712 = vand.u32 %v711, 4294901760
        %v713 = vsub.f32 %v711, %v712
        %v714 = vand.u32 %v713, 4294901760
        %715 = vmatprep.subr.mxu0 %v714
        %v716 = vand.u32 %v540, 4294901760
        %v717 = vsub.f32 %v540, %v716
        %v718 = vand.u32 %v717, 4294901760
        %v719 = vsub.f32 %v717, %v718
        %v720 = vand.u32 %v719, 4294901760
        %721 = vmatpush1.msra.mxu0 %v720
        %v722 = vand.u32 %v539, 4294901760
        %v723 = vsub.f32 %v539, %v722
        %v724 = vand.u32 %v723, 4294901760
        %v725 = vsub.f32 %v723, %v724
        %v726 = vand.u32 %v725, 4294901760
        %727 = vmatprep.subr.mxu0 %v726
        %v728 = vand.u32 %v538, 4294901760
        %v729 = vsub.f32 %v538, %v728
        %v730 = vand.u32 %v729, 4294901760
        %v731 = vsub.f32 %v729, %v730
        %v732 = vand.u32 %v731, 4294901760
        %733 = vmatpush1.msra.mxu0 %v732
        %v734 = vand.u32 %v537, 4294901760
        %v735 = vsub.f32 %v537, %v734
        %v736 = vand.u32 %v735, 4294901760
        %v737 = vsub.f32 %v735, %v736
        %v738 = vand.u32 %v737, 4294901760
        %739 = vmatprep.subr.mxu0 %v738
        %v740 = vand.u32 %v536, 4294901760
        %v741 = vsub.f32 %v536, %v740
        %v742 = vand.u32 %v741, 4294901760
        %v743 = vsub.f32 %v741, %v742
        %v744 = vand.u32 %v743, 4294901760
        %745 = vmatpush1.msra.mxu0 %v744
        %746 = vmatprep.subr.mxu0 0.0
        %747 = vmatpush2.msra.mxu0 0.0
        %748 = vmatprep.subr.mxu0 0.0
        %749 = vmatpush2.msra.mxu0 0.0
        %750 = vmatprep.subr.mxu0 0.0
        %751 = vmatpush2.msra.mxu0 0.0
        %752 = vmatprep.subr.mxu0 0.0
        %753 = vmatpush2.msra.mxu0 0.0
        %754 = vmatprep.subr.mxu0 0.0
        %755 = vmatpush2.msra.mxu0 0.0
        %756 = vmatprep.subr.mxu0 0.0
        %757 = vmatpush2.msra.mxu0 0.0
        %758 = vmatprep.subr.mxu0 0.0
        %759 = vmatpush2.msra.mxu0 0.0
        %760 = vmatprep.subr.mxu0 0.0
        %761 = vmatpush2.msra.mxu0 0.0
        %762 = vmatprep.subr.mxu0 0.0
        %763 = vmatpush2.msra.mxu0 0.0
        %764 = vmatprep.subr.mxu0 0.0
        %765 = vmatpush2.msra.mxu0 0.0
        %766 = vmatprep.subr.mxu0 0.0
        %767 = vmatpush2.msra.mxu0 0.0
        %768 = vmatprep.subr.mxu0 0.0
        %769 = vmatpush2.msra.mxu0 0.0
        %770 = vmatprep.subr.mxu0 0.0
        %771 = vmatpush2.msra.mxu0 0.0
        %772 = vmatprep.subr.mxu0 0.0
        %773 = vmatpush2.msra.mxu0 0.0
        %774 = vmatprep.subr.mxu0 0.0
        %775 = vmatpush2.msra.mxu0 0.0
        %776 = vmatprep.subr.mxu0 0.0
        %777 = vmatpush2.msra.mxu0 0.0
        %778 = vmatprep.mubr.f32.mxu0 0.0
        %v779 = vand.u32 %v550, 4294901760
        %780 = vmatmul.mubr.f32.gmra.mxu0 %v779
        %v781 = vpop.f32.mrf.mxu0
        %v782 = vadd.f32 %v639, %v781
        %v783 = vpop.f32.mrf.mxu0
        %v784 = vadd.f32 %v641, %v783
        %785 = vmatprep.mubr.f32.mxu0 0.0
        %v786 = vand.u32 %v553, 4294901760
        %787 = vmatmul.mubr.f32.gmra.mxu0 %v786
        %v788 = vpop.f32.mrf.mxu0
        %v789 = vadd.f32 %v650, %v788
        %v790 = vpop.f32.mrf.mxu0
        %v791 = vadd.f32 %v652, %v790
        %792 = vdwg.mxu0
        %793 = vmatprep.subr.mxu0 0.0
        %794 = vmatpush1.msra.mxu0 0.0
        %795 = vmatprep.subr.mxu0 0.0
        %796 = vmatpush1.msra.mxu0 0.0
        %797 = vmatprep.subr.mxu0 0.0
        %798 = vmatpush1.msra.mxu0 0.0
        %799 = vmatprep.subr.mxu0 0.0
        %800 = vmatpush1.msra.mxu0 0.0
        %801 = vmatprep.subr.mxu0 0.0
        %802 = vmatpush1.msra.mxu0 0.0
        %803 = vmatprep.subr.mxu0 0.0
        %804 = vmatpush1.msra.mxu0 0.0
        %805 = vmatprep.subr.mxu0 0.0
        %806 = vmatpush1.msra.mxu0 0.0
        %807 = vmatprep.subr.mxu0 0.0
        %808 = vmatpush1.msra.mxu0 0.0
        %809 = vmatprep.subr.mxu0 0.0
        %810 = vmatpush1.msra.mxu0 0.0
        %811 = vmatprep.subr.mxu0 0.0
        %812 = vmatpush1.msra.mxu0 0.0
        %v813 = vand.u32 %v547, 4294901760
        %v814 = vsub.f32 %v547, %v813
        %815 = vmatprep.subr.mxu0 %v814
        %v816 = vand.u32 %v546, 4294901760
        %v817 = vsub.f32 %v546, %v816
        %818 = vmatpush1.msra.mxu0 %v817
        %v819 = vand.u32 %v545, 4294901760
        %v820 = vsub.f32 %v545, %v819
        %821 = vmatprep.subr.mxu0 %v820
        %v822 = vand.u32 %v544, 4294901760
        %v823 = vsub.f32 %v544, %v822
        %824 = vmatpush1.msra.mxu0 %v823
        %v825 = vand.u32 %v543, 4294901760
        %v826 = vsub.f32 %v543, %v825
        %827 = vmatprep.subr.mxu0 %v826
        %v828 = vand.u32 %v542, 4294901760
        %v829 = vsub.f32 %v542, %v828
        %830 = vmatpush1.msra.mxu0 %v829
        %v831 = vand.u32 %v541, 4294901760
        %v832 = vsub.f32 %v541, %v831
        %833 = vmatprep.subr.mxu0 %v832
        %v834 = vand.u32 %v540, 4294901760
        %v835 = vsub.f32 %v540, %v834
        %836 = vmatpush1.msra.mxu0 %v835
        %v837 = vand.u32 %v539, 4294901760
        %v838 = vsub.f32 %v539, %v837
        %839 = vmatprep.subr.mxu0 %v838
        %v840 = vand.u32 %v538, 4294901760
        %v841 = vsub.f32 %v538, %v840
        %842 = vmatpush1.msra.mxu0 %v841
        %v843 = vand.u32 %v537, 4294901760
        %v844 = vsub.f32 %v537, %v843
        %845 = vmatprep.subr.mxu0 %v844
        %v846 = vand.u32 %v536, 4294901760
        %v847 = vsub.f32 %v536, %v846
        %848 = vmatpush1.msra.mxu0 %v847
        %849 = vmatprep.subr.mxu0 0.0
        %850 = vmatpush2.msra.mxu0 0.0
        %851 = vmatprep.subr.mxu0 0.0
        %852 = vmatpush2.msra.mxu0 0.0
        %853 = vmatprep.subr.mxu0 0.0
        %854 = vmatpush2.msra.mxu0 0.0
        %855 = vmatprep.subr.mxu0 0.0
        %856 = vmatpush2.msra.mxu0 0.0
        %857 = vmatprep.subr.mxu0 0.0
        %858 = vmatpush2.msra.mxu0 0.0
        %859 = vmatprep.subr.mxu0 0.0
        %860 = vmatpush2.msra.mxu0 0.0
        %861 = vmatprep.subr.mxu0 0.0
        %862 = vmatpush2.msra.mxu0 0.0
        %863 = vmatprep.subr.mxu0 0.0
        %864 = vmatpush2.msra.mxu0 0.0
        %865 = vmatprep.subr.mxu0 0.0
        %866 = vmatpush2.msra.mxu0 0.0
        %867 = vmatprep.subr.mxu0 0.0
        %868 = vmatpush2.msra.mxu0 0.0
        %869 = vmatprep.subr.mxu0 0.0
        %870 = vmatpush2.msra.mxu0 0.0
        %871 = vmatprep.subr.mxu0 0.0
        %872 = vmatpush2.msra.mxu0 0.0
        %873 = vmatprep.subr.mxu0 0.0
        %874 = vmatpush2.msra.mxu0 0.0
        %875 = vmatprep.subr.mxu0 0.0
        %876 = vmatpush2.msra.mxu0 0.0
        %877 = vmatprep.subr.mxu0 0.0
        %878 = vmatpush2.msra.mxu0 0.0
        %879 = vmatprep.subr.mxu0 0.0
        %880 = vmatpush2.msra.mxu0 0.0
        %881 = vmatprep.mubr.f32.mxu0 0.0
        %v882 = vand.u32 %v550, 4294901760
        %v883 = vsub.f32 %v550, %v882
        %884 = vmatmul.mubr.f32.gmra.mxu0 %v883
        %v885 = vpop.f32.mrf.mxu0
        %v886 = vadd.f32 %v782, %v885
        %v887 = vpop.f32.mrf.mxu0
        %v888 = vadd.f32 %v784, %v887
        %889 = vmatprep.mubr.f32.mxu0 0.0
        %v890 = vand.u32 %v553, 4294901760
        %v891 = vsub.f32 %v553, %v890
        %892 = vmatmul.mubr.f32.gmra.mxu0 %v891
        %v893 = vpop.f32.mrf.mxu0
        %v894 = vadd.f32 %v789, %v893
        %v895 = vpop.f32.mrf.mxu0
        %v896 = vadd.f32 %v791, %v895
        %897 = vdwg.mxu0
        %898 = vmatprep.subr.mxu0 0.0
        %899 = vmatpush1.msra.mxu0 0.0
        %900 = vmatprep.subr.mxu0 0.0
        %901 = vmatpush1.msra.mxu0 0.0
        %902 = vmatprep.subr.mxu0 0.0
        %903 = vmatpush1.msra.mxu0 0.0
        %904 = vmatprep.subr.mxu0 0.0
        %905 = vmatpush1.msra.mxu0 0.0
        %906 = vmatprep.subr.mxu0 0.0
        %907 = vmatpush1.msra.mxu0 0.0
        %908 = vmatprep.subr.mxu0 0.0
        %909 = vmatpush1.msra.mxu0 0.0
        %910 = vmatprep.subr.mxu0 0.0
        %911 = vmatpush1.msra.mxu0 0.0
        %912 = vmatprep.subr.mxu0 0.0
        %913 = vmatpush1.msra.mxu0 0.0
        %914 = vmatprep.subr.mxu0 0.0
        %915 = vmatpush1.msra.mxu0 0.0
        %916 = vmatprep.subr.mxu0 0.0
        %917 = vmatpush1.msra.mxu0 0.0
        %v918 = vand.u32 %v547, 4294901760
        %919 = vmatprep.subr.mxu0 %v918
        %v920 = vand.u32 %v546, 4294901760
        %921 = vmatpush1.msra.mxu0 %v920
        %v922 = vand.u32 %v545, 4294901760
        %923 = vmatprep.subr.mxu0 %v922
        %v924 = vand.u32 %v544, 4294901760
        %925 = vmatpush1.msra.mxu0 %v924
        %v926 = vand.u32 %v543, 4294901760
        %927 = vmatprep.subr.mxu0 %v926
        %v928 = vand.u32 %v542, 4294901760
        %929 = vmatpush1.msra.mxu0 %v928
        %v930 = vand.u32 %v541, 4294901760
        %931 = vmatprep.subr.mxu0 %v930
        %v932 = vand.u32 %v540, 4294901760
        %933 = vmatpush1.msra.mxu0 %v932
        %v934 = vand.u32 %v539, 4294901760
        %935 = vmatprep.subr.mxu0 %v934
        %v936 = vand.u32 %v538, 4294901760
        %937 = vmatpush1.msra.mxu0 %v936
        %v938 = vand.u32 %v537, 4294901760
        %939 = vmatprep.subr.mxu0 %v938
        %v940 = vand.u32 %v536, 4294901760
        %941 = vmatpush1.msra.mxu0 %v940
        %942 = vmatprep.subr.mxu0 0.0
        %943 = vmatpush2.msra.mxu0 0.0
        %944 = vmatprep.subr.mxu0 0.0
        %945 = vmatpush2.msra.mxu0 0.0
        %946 = vmatprep.subr.mxu0 0.0
        %947 = vmatpush2.msra.mxu0 0.0
        %948 = vmatprep.subr.mxu0 0.0
        %949 = vmatpush2.msra.mxu0 0.0
        %950 = vmatprep.subr.mxu0 0.0
        %951 = vmatpush2.msra.mxu0 0.0
        %952 = vmatprep.subr.mxu0 0.0
        %953 = vmatpush2.msra.mxu0 0.0
        %954 = vmatprep.subr.mxu0 0.0
        %955 = vmatpush2.msra.mxu0 0.0
        %956 = vmatprep.subr.mxu0 0.0
        %957 = vmatpush2.msra.mxu0 0.0
        %958 = vmatprep.subr.mxu0 0.0
        %959 = vmatpush2.msra.mxu0 0.0
        %960 = vmatprep.subr.mxu0 0.0
        %961 = vmatpush2.msra.mxu0 0.0
        %962 = vmatprep.subr.mxu0 0.0
        %963 = vmatpush2.msra.mxu0 0.0
        %964 = vmatprep.subr.mxu0 0.0
        %965 = vmatpush2.msra.mxu0 0.0
        %966 = vmatprep.subr.mxu0 0.0
        %967 = vmatpush2.msra.mxu0 0.0
        %968 = vmatprep.subr.mxu0 0.0
        %969 = vmatpush2.msra.mxu0 0.0
        %970 = vmatprep.subr.mxu0 0.0
        %971 = vmatpush2.msra.mxu0 0.0
        %972 = vmatprep.subr.mxu0 0.0
        %973 = vmatpush2.msra.mxu0 0.0
        %974 = vmatprep.mubr.f32.mxu0 0.0
        %v975 = vand.u32 %v550, 4294901760
        %v976 = vsub.f32 %v550, %v975
        %v977 = vand.u32 %v976, 4294901760
        %978 = vmatmul.mubr.f32.gmra.mxu0 %v977
        %v979 = vpop.f32.mrf.mxu0
        %v980 = vadd.f32 %v886, %v979
        %v981 = vpop.f32.mrf.mxu0
        %v982 = vadd.f32 %v888, %v981
        %983 = vmatprep.mubr.f32.mxu0 0.0
        %v984 = vand.u32 %v553, 4294901760
        %v985 = vsub.f32 %v553, %v984
        %v986 = vand.u32 %v985, 4294901760
        %987 = vmatmul.mubr.f32.gmra.mxu0 %v986
        %v988 = vpop.f32.mrf.mxu0
        %v989 = vadd.f32 %v894, %v988
        %v990 = vpop.f32.mrf.mxu0
        %v991 = vadd.f32 %v896, %v990
        %992 = vdwg.mxu0
        %993 = vmatprep.subr.mxu0 0.0
        %994 = vmatpush1.msra.mxu0 0.0
        %995 = vmatprep.subr.mxu0 0.0
        %996 = vmatpush1.msra.mxu0 0.0
        %997 = vmatprep.subr.mxu0 0.0
        %998 = vmatpush1.msra.mxu0 0.0
        %999 = vmatprep.subr.mxu0 0.0
        %1000 = vmatpush1.msra.mxu0 0.0
        %1001 = vmatprep.subr.mxu0 0.0
        %1002 = vmatpush1.msra.mxu0 0.0
        %1003 = vmatprep.subr.mxu0 0.0
        %1004 = vmatpush1.msra.mxu0 0.0
        %1005 = vmatprep.subr.mxu0 0.0
        %1006 = vmatpush1.msra.mxu0 0.0
        %1007 = vmatprep.subr.mxu0 0.0
        %1008 = vmatpush1.msra.mxu0 0.0
        %1009 = vmatprep.subr.mxu0 0.0
        %1010 = vmatpush1.msra.mxu0 0.0
        %1011 = vmatprep.subr.mxu0 0.0
        %1012 = vmatpush1.msra.mxu0 0.0
        %v1013 = vand.u32 %v547, 4294901760
        %v1014 = vsub.f32 %v547, %v1013
        %v1015 = vand.u32 %v1014, 4294901760
        %1016 = vmatprep.subr.mxu0 %v1015
        %v1017 = vand.u32 %v546, 4294901760
        %v1018 = vsub.f32 %v546, %v1017
        %v1019 = vand.u32 %v1018, 4294901760
        %1020 = vmatpush1.msra.mxu0 %v1019
        %v1021 = vand.u32 %v545, 4294901760
        %v1022 = vsub.f32 %v545, %v1021
        %v1023 = vand.u32 %v1022, 4294901760
        %1024 = vmatprep.subr.mxu0 %v1023
        %v1025 = vand.u32 %v544, 4294901760
        %v1026 = vsub.f32 %v544, %v1025
        %v1027 = vand.u32 %v1026, 4294901760
        %1028 = vmatpush1.msra.mxu0 %v1027
        %v1029 = vand.u32 %v543, 4294901760
        %v1030 = vsub.f32 %v543, %v1029
        %v1031 = vand.u32 %v1030, 4294901760
        %1032 = vmatprep.subr.mxu0 %v1031
        %v1033 = vand.u32 %v542, 4294901760
        %v1034 = vsub.f32 %v542, %v1033
        %v1035 = vand.u32 %v1034, 4294901760
        %1036 = vmatpush1.msra.mxu0 %v1035
        %v1037 = vand.u32 %v541, 4294901760
        %v1038 = vsub.f32 %v541, %v1037
        %v1039 = vand.u32 %v1038, 4294901760
        %1040 = vmatprep.subr.mxu0 %v1039
        %v1041 = vand.u32 %v540, 4294901760
        %v1042 = vsub.f32 %v540, %v1041
        %v1043 = vand.u32 %v1042, 4294901760
        %1044 = vmatpush1.msra.mxu0 %v1043
        %v1045 = vand.u32 %v539, 4294901760
        %v1046 = vsub.f32 %v539, %v1045
        %v1047 = vand.u32 %v1046, 4294901760
        %1048 = vmatprep.subr.mxu0 %v1047
        %v1049 = vand.u32 %v538, 4294901760
        %v1050 = vsub.f32 %v538, %v1049
        %v1051 = vand.u32 %v1050, 4294901760
        %1052 = vmatpush1.msra.mxu0 %v1051
        %v1053 = vand.u32 %v537, 4294901760
        %v1054 = vsub.f32 %v537, %v1053
        %v1055 = vand.u32 %v1054, 4294901760
        %1056 = vmatprep.subr.mxu0 %v1055
        %v1057 = vand.u32 %v536, 4294901760
        %v1058 = vsub.f32 %v536, %v1057
        %v1059 = vand.u32 %v1058, 4294901760
        %1060 = vmatpush1.msra.mxu0 %v1059
        %1061 = vmatprep.subr.mxu0 0.0
        %1062 = vmatpush2.msra.mxu0 0.0
        %1063 = vmatprep.subr.mxu0 0.0
        %1064 = vmatpush2.msra.mxu0 0.0
        %1065 = vmatprep.subr.mxu0 0.0
        %1066 = vmatpush2.msra.mxu0 0.0
        %1067 = vmatprep.subr.mxu0 0.0
        %1068 = vmatpush2.msra.mxu0 0.0
        %1069 = vmatprep.subr.mxu0 0.0
        %1070 = vmatpush2.msra.mxu0 0.0
        %1071 = vmatprep.subr.mxu0 0.0
        %1072 = vmatpush2.msra.mxu0 0.0
        %1073 = vmatprep.subr.mxu0 0.0
        %1074 = vmatpush2.msra.mxu0 0.0
        %1075 = vmatprep.subr.mxu0 0.0
        %1076 = vmatpush2.msra.mxu0 0.0
        %1077 = vmatprep.subr.mxu0 0.0
        %1078 = vmatpush2.msra.mxu0 0.0
        %1079 = vmatprep.subr.mxu0 0.0
        %1080 = vmatpush2.msra.mxu0 0.0
        %1081 = vmatprep.subr.mxu0 0.0
        %1082 = vmatpush2.msra.mxu0 0.0
        %1083 = vmatprep.subr.mxu0 0.0
        %1084 = vmatpush2.msra.mxu0 0.0
        %1085 = vmatprep.subr.mxu0 0.0
        %1086 = vmatpush2.msra.mxu0 0.0
        %1087 = vmatprep.subr.mxu0 0.0
        %1088 = vmatpush2.msra.mxu0 0.0
        %1089 = vmatprep.subr.mxu0 0.0
        %1090 = vmatpush2.msra.mxu0 0.0
        %1091 = vmatprep.subr.mxu0 0.0
        %1092 = vmatpush2.msra.mxu0 0.0
        %1093 = vmatprep.mubr.f32.mxu0 0.0
        %v1094 = vand.u32 %v550, 4294901760
        %1095 = vmatmul.mubr.f32.gmra.mxu0 %v1094
        %v1096 = vpop.f32.mrf.mxu0
        %v1097 = vadd.f32 %v980, %v1096
        %v1098 = vpop.f32.mrf.mxu0
        %v1099 = vadd.f32 %v982, %v1098
        %1100 = vmatprep.mubr.f32.mxu0 0.0
        %v1101 = vand.u32 %v553, 4294901760
        %1102 = vmatmul.mubr.f32.gmra.mxu0 %v1101
        %v1103 = vpop.f32.mrf.mxu0
        %v1104 = vadd.f32 %v989, %v1103
        %v1105 = vpop.f32.mrf.mxu0
        %v1106 = vadd.f32 %v991, %v1105
        %1107 = vdwg.mxu0
        %1108 = vmatprep.subr.mxu0 0.0
        %1109 = vmatpush1.msra.mxu0 0.0
        %1110 = vmatprep.subr.mxu0 0.0
        %1111 = vmatpush1.msra.mxu0 0.0
        %1112 = vmatprep.subr.mxu0 0.0
        %1113 = vmatpush1.msra.mxu0 0.0
        %1114 = vmatprep.subr.mxu0 0.0
        %1115 = vmatpush1.msra.mxu0 0.0
        %1116 = vmatprep.subr.mxu0 0.0
        %1117 = vmatpush1.msra.mxu0 0.0
        %1118 = vmatprep.subr.mxu0 0.0
        %1119 = vmatpush1.msra.mxu0 0.0
        %1120 = vmatprep.subr.mxu0 0.0
        %1121 = vmatpush1.msra.mxu0 0.0
        %1122 = vmatprep.subr.mxu0 0.0
        %1123 = vmatpush1.msra.mxu0 0.0
        %1124 = vmatprep.subr.mxu0 0.0
        %1125 = vmatpush1.msra.mxu0 0.0
        %1126 = vmatprep.subr.mxu0 0.0
        %1127 = vmatpush1.msra.mxu0 0.0
        %v1128 = vand.u32 %v547, 4294901760
        %1129 = vmatprep.subr.mxu0 %v1128
        %v1130 = vand.u32 %v546, 4294901760
        %1131 = vmatpush1.msra.mxu0 %v1130
        %v1132 = vand.u32 %v545, 4294901760
        %1133 = vmatprep.subr.mxu0 %v1132
        %v1134 = vand.u32 %v544, 4294901760
        %1135 = vmatpush1.msra.mxu0 %v1134
        %v1136 = vand.u32 %v543, 4294901760
        %1137 = vmatprep.subr.mxu0 %v1136
        %v1138 = vand.u32 %v542, 4294901760
        %1139 = vmatpush1.msra.mxu0 %v1138
        %v1140 = vand.u32 %v541, 4294901760
        %1141 = vmatprep.subr.mxu0 %v1140
        %v1142 = vand.u32 %v540, 4294901760
        %1143 = vmatpush1.msra.mxu0 %v1142
        %v1144 = vand.u32 %v539, 4294901760
        %1145 = vmatprep.subr.mxu0 %v1144
        %v1146 = vand.u32 %v538, 4294901760
        %1147 = vmatpush1.msra.mxu0 %v1146
        %v1148 = vand.u32 %v537, 4294901760
        %1149 = vmatprep.subr.mxu0 %v1148
        %v1150 = vand.u32 %v536, 4294901760
        %1151 = vmatpush1.msra.mxu0 %v1150
        %1152 = vmatprep.subr.mxu0 0.0
        %1153 = vmatpush2.msra.mxu0 0.0
        %1154 = vmatprep.subr.mxu0 0.0
        %1155 = vmatpush2.msra.mxu0 0.0
        %1156 = vmatprep.subr.mxu0 0.0
        %1157 = vmatpush2.msra.mxu0 0.0
        %1158 = vmatprep.subr.mxu0 0.0
        %1159 = vmatpush2.msra.mxu0 0.0
        %1160 = vmatprep.subr.mxu0 0.0
        %1161 = vmatpush2.msra.mxu0 0.0
        %1162 = vmatprep.subr.mxu0 0.0
        %1163 = vmatpush2.msra.mxu0 0.0
        %1164 = vmatprep.subr.mxu0 0.0
        %1165 = vmatpush2.msra.mxu0 0.0
        %1166 = vmatprep.subr.mxu0 0.0
        %1167 = vmatpush2.msra.mxu0 0.0
        %1168 = vmatprep.subr.mxu0 0.0
        %1169 = vmatpush2.msra.mxu0 0.0
        %1170 = vmatprep.subr.mxu0 0.0
        %1171 = vmatpush2.msra.mxu0 0.0
        %1172 = vmatprep.subr.mxu0 0.0
        %1173 = vmatpush2.msra.mxu0 0.0
        %1174 = vmatprep.subr.mxu0 0.0
        %1175 = vmatpush2.msra.mxu0 0.0
        %1176 = vmatprep.subr.mxu0 0.0
        %1177 = vmatpush2.msra.mxu0 0.0
        %1178 = vmatprep.subr.mxu0 0.0
        %1179 = vmatpush2.msra.mxu0 0.0
        %1180 = vmatprep.subr.mxu0 0.0
        %1181 = vmatpush2.msra.mxu0 0.0
        %1182 = vmatprep.subr.mxu0 0.0
        %1183 = vmatpush2.msra.mxu0 0.0
        %1184 = vmatprep.mubr.f32.mxu0 0.0
        %v1185 = vand.u32 %v550, 4294901760
        %1186 = vmatmul.mubr.f32.gmra.mxu0 %v1185
        %v1187 = vpop.f32.mrf.mxu0
        %v1188 = vadd.f32 %v1097, %v1187
        %v1189 = vpop.f32.mrf.mxu0
        %v1190 = vadd.f32 %v1099, %v1189
        %1191 = vmatprep.mubr.f32.mxu0 0.0
        %v1192 = vand.u32 %v553, 4294901760
        %1193 = vmatmul.mubr.f32.gmra.mxu0 %v1192
        %v1194 = vpop.f32.mrf.mxu0
        %v1195 = vadd.f32 %v1104, %v1194
        %v1196 = vpop.f32.mrf.mxu0
        %v1197 = vadd.f32 %v1106, %v1196
        %1198 = vdwg.mxu0
        %v1200 = vsel %vm548, %v519, 0
        %v1203 = vsel %vm548, %v520, 0
        %1205 = vmatprep.subr.mxu0 0.0
        %1206 = vmatpush1.msra.mxu0 0.0
        %1207 = vmatprep.subr.mxu0 0.0
        %1208 = vmatpush1.msra.mxu0 0.0
        %1209 = vmatprep.subr.mxu0 0.0
        %1210 = vmatpush1.msra.mxu0 0.0
        %1211 = vmatprep.subr.mxu0 0.0
        %1212 = vmatpush1.msra.mxu0 0.0
        %1213 = vmatprep.subr.mxu0 0.0
        %1214 = vmatpush1.msra.mxu0 0.0
        %1215 = vmatprep.subr.mxu0 0.0
        %1216 = vmatpush1.msra.mxu0 0.0
        %1217 = vmatprep.subr.mxu0 0.0
        %1218 = vmatpush1.msra.mxu0 0.0
        %1219 = vmatprep.subr.mxu0 0.0
        %1220 = vmatpush1.msra.mxu0 0.0
        %1221 = vmatprep.subr.mxu0 0.0
        %1222 = vmatpush1.msra.mxu0 0.0
        %1223 = vmatprep.subr.mxu0 0.0
        %1224 = vmatpush1.msra.mxu0 0.0
        %v1225 = vand.u32 %v532, 4294901760
        %1226 = vmatprep.subr.mxu0 %v1225
        %v1227 = vand.u32 %v531, 4294901760
        %1228 = vmatpush1.msra.mxu0 %v1227
        %v1229 = vand.u32 %v530, 4294901760
        %1230 = vmatprep.subr.mxu0 %v1229
        %v1231 = vand.u32 %v529, 4294901760
        %1232 = vmatpush1.msra.mxu0 %v1231
        %v1233 = vand.u32 %v528, 4294901760
        %1234 = vmatprep.subr.mxu0 %v1233
        %v1235 = vand.u32 %v527, 4294901760
        %1236 = vmatpush1.msra.mxu0 %v1235
        %v1237 = vand.u32 %v526, 4294901760
        %1238 = vmatprep.subr.mxu0 %v1237
        %v1239 = vand.u32 %v525, 4294901760
        %1240 = vmatpush1.msra.mxu0 %v1239
        %v1241 = vand.u32 %v524, 4294901760
        %1242 = vmatprep.subr.mxu0 %v1241
        %v1243 = vand.u32 %v523, 4294901760
        %1244 = vmatpush1.msra.mxu0 %v1243
        %v1245 = vand.u32 %v522, 4294901760
        %1246 = vmatprep.subr.mxu0 %v1245
        %v1247 = vand.u32 %v521, 4294901760
        %1248 = vmatpush1.msra.mxu0 %v1247
        %1249 = vmatprep.subr.mxu0 0.0
        %1250 = vmatpush2.msra.mxu0 0.0
        %1251 = vmatprep.subr.mxu0 0.0
        %1252 = vmatpush2.msra.mxu0 0.0
        %1253 = vmatprep.subr.mxu0 0.0
        %1254 = vmatpush2.msra.mxu0 0.0
        %1255 = vmatprep.subr.mxu0 0.0
        %1256 = vmatpush2.msra.mxu0 0.0
        %1257 = vmatprep.subr.mxu0 0.0
        %1258 = vmatpush2.msra.mxu0 0.0
        %1259 = vmatprep.subr.mxu0 0.0
        %1260 = vmatpush2.msra.mxu0 0.0
        %1261 = vmatprep.subr.mxu0 0.0
        %1262 = vmatpush2.msra.mxu0 0.0
        %1263 = vmatprep.subr.mxu0 0.0
        %1264 = vmatpush2.msra.mxu0 0.0
        %1265 = vmatprep.subr.mxu0 0.0
        %1266 = vmatpush2.msra.mxu0 0.0
        %1267 = vmatprep.subr.mxu0 0.0
        %1268 = vmatpush2.msra.mxu0 0.0
        %1269 = vmatprep.subr.mxu0 0.0
        %1270 = vmatpush2.msra.mxu0 0.0
        %1271 = vmatprep.subr.mxu0 0.0
        %1272 = vmatpush2.msra.mxu0 0.0
        %1273 = vmatprep.subr.mxu0 0.0
        %1274 = vmatpush2.msra.mxu0 0.0
        %1275 = vmatprep.subr.mxu0 0.0
        %1276 = vmatpush2.msra.mxu0 0.0
        %1277 = vmatprep.subr.mxu0 0.0
        %1278 = vmatpush2.msra.mxu0 0.0
        %1279 = vmatprep.subr.mxu0 0.0
        %1280 = vmatpush2.msra.mxu0 0.0
        %1281 = vmatprep.mubr.f32.mxu0 0.0
        %v1282 = vand.u32 %v1200, 4294901760
        %v1283 = vsub.f32 %v1200, %v1282
        %v1284 = vand.u32 %v1283, 4294901760
        %v1285 = vsub.f32 %v1283, %v1284
        %v1286 = vand.u32 %v1285, 4294901760
        %1287 = vmatmul.mubr.f32.gmra.mxu0 %v1286
        %v1288 = vpop.f32.mrf.mxu0
        %v1289 = vadd.f32 %v1188, %v1288
        %v1290 = vpop.f32.mrf.mxu0
        %v1291 = vadd.f32 %v1190, %v1290
        %1292 = vmatprep.mubr.f32.mxu0 0.0
        %v1293 = vand.u32 %v1203, 4294901760
        %v1294 = vsub.f32 %v1203, %v1293
        %v1295 = vand.u32 %v1294, 4294901760
        %v1296 = vsub.f32 %v1294, %v1295
        %v1297 = vand.u32 %v1296, 4294901760
        %1298 = vmatmul.mubr.f32.gmra.mxu0 %v1297
        %v1299 = vpop.f32.mrf.mxu0
        %v1300 = vadd.f32 %v1195, %v1299
        %v1301 = vpop.f32.mrf.mxu0
        %v1302 = vadd.f32 %v1197, %v1301
        %1303 = vdwg.mxu0
        %1304 = vmatprep.subr.mxu0 0.0
        %1305 = vmatpush1.msra.mxu0 0.0
        %1306 = vmatprep.subr.mxu0 0.0
        %1307 = vmatpush1.msra.mxu0 0.0
        %1308 = vmatprep.subr.mxu0 0.0
        %1309 = vmatpush1.msra.mxu0 0.0
        %1310 = vmatprep.subr.mxu0 0.0
        %1311 = vmatpush1.msra.mxu0 0.0
        %1312 = vmatprep.subr.mxu0 0.0
        %1313 = vmatpush1.msra.mxu0 0.0
        %1314 = vmatprep.subr.mxu0 0.0
        %1315 = vmatpush1.msra.mxu0 0.0
        %1316 = vmatprep.subr.mxu0 0.0
        %1317 = vmatpush1.msra.mxu0 0.0
        %1318 = vmatprep.subr.mxu0 0.0
        %1319 = vmatpush1.msra.mxu0 0.0
        %1320 = vmatprep.subr.mxu0 0.0
        %1321 = vmatpush1.msra.mxu0 0.0
        %1322 = vmatprep.subr.mxu0 0.0
        %1323 = vmatpush1.msra.mxu0 0.0
        %v1324 = vand.u32 %v532, 4294901760
        %v1325 = vsub.f32 %v532, %v1324
        %v1326 = vand.u32 %v1325, 4294901760
        %v1327 = vsub.f32 %v1325, %v1326
        %v1328 = vand.u32 %v1327, 4294901760
        %1329 = vmatprep.subr.mxu0 %v1328
        %v1330 = vand.u32 %v531, 4294901760
        %v1331 = vsub.f32 %v531, %v1330
        %v1332 = vand.u32 %v1331, 4294901760
        %v1333 = vsub.f32 %v1331, %v1332
        %v1334 = vand.u32 %v1333, 4294901760
        %1335 = vmatpush1.msra.mxu0 %v1334
        %v1336 = vand.u32 %v530, 4294901760
        %v1337 = vsub.f32 %v530, %v1336
        %v1338 = vand.u32 %v1337, 4294901760
        %v1339 = vsub.f32 %v1337, %v1338
        %v1340 = vand.u32 %v1339, 4294901760
        %1341 = vmatprep.subr.mxu0 %v1340
        %v1342 = vand.u32 %v529, 4294901760
        %v1343 = vsub.f32 %v529, %v1342
        %v1344 = vand.u32 %v1343, 4294901760
        %v1345 = vsub.f32 %v1343, %v1344
        %v1346 = vand.u32 %v1345, 4294901760
        %1347 = vmatpush1.msra.mxu0 %v1346
        %v1348 = vand.u32 %v528, 4294901760
        %v1349 = vsub.f32 %v528, %v1348
        %v1350 = vand.u32 %v1349, 4294901760
        %v1351 = vsub.f32 %v1349, %v1350
        %v1352 = vand.u32 %v1351, 4294901760
        %1353 = vmatprep.subr.mxu0 %v1352
        %v1354 = vand.u32 %v527, 4294901760
        %v1355 = vsub.f32 %v527, %v1354
        %v1356 = vand.u32 %v1355, 4294901760
        %v1357 = vsub.f32 %v1355, %v1356
        %v1358 = vand.u32 %v1357, 4294901760
        %1359 = vmatpush1.msra.mxu0 %v1358
        %v1360 = vand.u32 %v526, 4294901760
        %v1361 = vsub.f32 %v526, %v1360
        %v1362 = vand.u32 %v1361, 4294901760
        %v1363 = vsub.f32 %v1361, %v1362
        %v1364 = vand.u32 %v1363, 4294901760
        %1365 = vmatprep.subr.mxu0 %v1364
        %v1366 = vand.u32 %v525, 4294901760
        %v1367 = vsub.f32 %v525, %v1366
        %v1368 = vand.u32 %v1367, 4294901760
        %v1369 = vsub.f32 %v1367, %v1368
        %v1370 = vand.u32 %v1369, 4294901760
        %1371 = vmatpush1.msra.mxu0 %v1370
        %v1372 = vand.u32 %v524, 4294901760
        %v1373 = vsub.f32 %v524, %v1372
        %v1374 = vand.u32 %v1373, 4294901760
        %v1375 = vsub.f32 %v1373, %v1374
        %v1376 = vand.u32 %v1375, 4294901760
        %1377 = vmatprep.subr.mxu0 %v1376
        %v1378 = vand.u32 %v523, 4294901760
        %v1379 = vsub.f32 %v523, %v1378
        %v1380 = vand.u32 %v1379, 4294901760
        %v1381 = vsub.f32 %v1379, %v1380
        %v1382 = vand.u32 %v1381, 4294901760
        %1383 = vmatpush1.msra.mxu0 %v1382
        %v1384 = vand.u32 %v522, 4294901760
        %v1385 = vsub.f32 %v522, %v1384
        %v1386 = vand.u32 %v1385, 4294901760
        %v1387 = vsub.f32 %v1385, %v1386
        %v1388 = vand.u32 %v1387, 4294901760
        %1389 = vmatprep.subr.mxu0 %v1388
        %v1390 = vand.u32 %v521, 4294901760
        %v1391 = vsub.f32 %v521, %v1390
        %v1392 = vand.u32 %v1391, 4294901760
        %v1393 = vsub.f32 %v1391, %v1392
        %v1394 = vand.u32 %v1393, 4294901760
        %1395 = vmatpush1.msra.mxu0 %v1394
        %1396 = vmatprep.subr.mxu0 0.0
        %1397 = vmatpush2.msra.mxu0 0.0
        %1398 = vmatprep.subr.mxu0 0.0
        %1399 = vmatpush2.msra.mxu0 0.0
        %1400 = vmatprep.subr.mxu0 0.0
        %1401 = vmatpush2.msra.mxu0 0.0
        %1402 = vmatprep.subr.mxu0 0.0
        %1403 = vmatpush2.msra.mxu0 0.0
        %1404 = vmatprep.subr.mxu0 0.0
        %1405 = vmatpush2.msra.mxu0 0.0
        %1406 = vmatprep.subr.mxu0 0.0
        %1407 = vmatpush2.msra.mxu0 0.0
        %1408 = vmatprep.subr.mxu0 0.0
        %1409 = vmatpush2.msra.mxu0 0.0
        %1410 = vmatprep.subr.mxu0 0.0
        %1411 = vmatpush2.msra.mxu0 0.0
        %1412 = vmatprep.subr.mxu0 0.0
        %1413 = vmatpush2.msra.mxu0 0.0
        %1414 = vmatprep.subr.mxu0 0.0
        %1415 = vmatpush2.msra.mxu0 0.0
        %1416 = vmatprep.subr.mxu0 0.0
        %1417 = vmatpush2.msra.mxu0 0.0
        %1418 = vmatprep.subr.mxu0 0.0
        %1419 = vmatpush2.msra.mxu0 0.0
        %1420 = vmatprep.subr.mxu0 0.0
        %1421 = vmatpush2.msra.mxu0 0.0
        %1422 = vmatprep.subr.mxu0 0.0
        %1423 = vmatpush2.msra.mxu0 0.0
        %1424 = vmatprep.subr.mxu0 0.0
        %1425 = vmatpush2.msra.mxu0 0.0
        %1426 = vmatprep.subr.mxu0 0.0
        %1427 = vmatpush2.msra.mxu0 0.0
        %1428 = vmatprep.mubr.f32.mxu0 0.0
        %v1429 = vand.u32 %v1200, 4294901760
        %1430 = vmatmul.mubr.f32.gmra.mxu0 %v1429
        %v1431 = vpop.f32.mrf.mxu0
        %v1432 = vadd.f32 %v1289, %v1431
        %v1433 = vpop.f32.mrf.mxu0
        %v1434 = vadd.f32 %v1291, %v1433
        %1435 = vmatprep.mubr.f32.mxu0 0.0
        %v1436 = vand.u32 %v1203, 4294901760
        %1437 = vmatmul.mubr.f32.gmra.mxu0 %v1436
        %v1438 = vpop.f32.mrf.mxu0
        %v1439 = vadd.f32 %v1300, %v1438
        %v1440 = vpop.f32.mrf.mxu0
        %v1441 = vadd.f32 %v1302, %v1440
        %1442 = vdwg.mxu0
        %1443 = vmatprep.subr.mxu0 0.0
        %1444 = vmatpush1.msra.mxu0 0.0
        %1445 = vmatprep.subr.mxu0 0.0
        %1446 = vmatpush1.msra.mxu0 0.0
        %1447 = vmatprep.subr.mxu0 0.0
        %1448 = vmatpush1.msra.mxu0 0.0
        %1449 = vmatprep.subr.mxu0 0.0
        %1450 = vmatpush1.msra.mxu0 0.0
        %1451 = vmatprep.subr.mxu0 0.0
        %1452 = vmatpush1.msra.mxu0 0.0
        %1453 = vmatprep.subr.mxu0 0.0
        %1454 = vmatpush1.msra.mxu0 0.0
        %1455 = vmatprep.subr.mxu0 0.0
        %1456 = vmatpush1.msra.mxu0 0.0
        %1457 = vmatprep.subr.mxu0 0.0
        %1458 = vmatpush1.msra.mxu0 0.0
        %1459 = vmatprep.subr.mxu0 0.0
        %1460 = vmatpush1.msra.mxu0 0.0
        %1461 = vmatprep.subr.mxu0 0.0
        %1462 = vmatpush1.msra.mxu0 0.0
        %v1463 = vand.u32 %v532, 4294901760
        %v1464 = vsub.f32 %v532, %v1463
        %1465 = vmatprep.subr.mxu0 %v1464
        %v1466 = vand.u32 %v531, 4294901760
        %v1467 = vsub.f32 %v531, %v1466
        %1468 = vmatpush1.msra.mxu0 %v1467
        %v1469 = vand.u32 %v530, 4294901760
        %v1470 = vsub.f32 %v530, %v1469
        %1471 = vmatprep.subr.mxu0 %v1470
        %v1472 = vand.u32 %v529, 4294901760
        %v1473 = vsub.f32 %v529, %v1472
        %1474 = vmatpush1.msra.mxu0 %v1473
        %v1475 = vand.u32 %v528, 4294901760
        %v1476 = vsub.f32 %v528, %v1475
        %1477 = vmatprep.subr.mxu0 %v1476
        %v1478 = vand.u32 %v527, 4294901760
        %v1479 = vsub.f32 %v527, %v1478
        %1480 = vmatpush1.msra.mxu0 %v1479
        %v1481 = vand.u32 %v526, 4294901760
        %v1482 = vsub.f32 %v526, %v1481
        %1483 = vmatprep.subr.mxu0 %v1482
        %v1484 = vand.u32 %v525, 4294901760
        %v1485 = vsub.f32 %v525, %v1484
        %1486 = vmatpush1.msra.mxu0 %v1485
        %v1487 = vand.u32 %v524, 4294901760
        %v1488 = vsub.f32 %v524, %v1487
        %1489 = vmatprep.subr.mxu0 %v1488
        %v1490 = vand.u32 %v523, 4294901760
        %v1491 = vsub.f32 %v523, %v1490
        %1492 = vmatpush1.msra.mxu0 %v1491
        %v1493 = vand.u32 %v522, 4294901760
        %v1494 = vsub.f32 %v522, %v1493
        %1495 = vmatprep.subr.mxu0 %v1494
        %v1496 = vand.u32 %v521, 4294901760
        %v1497 = vsub.f32 %v521, %v1496
        %1498 = vmatpush1.msra.mxu0 %v1497
        %1499 = vmatprep.subr.mxu0 0.0
        %1500 = vmatpush2.msra.mxu0 0.0
        %1501 = vmatprep.subr.mxu0 0.0
        %1502 = vmatpush2.msra.mxu0 0.0
        %1503 = vmatprep.subr.mxu0 0.0
        %1504 = vmatpush2.msra.mxu0 0.0
        %1505 = vmatprep.subr.mxu0 0.0
        %1506 = vmatpush2.msra.mxu0 0.0
        %1507 = vmatprep.subr.mxu0 0.0
        %1508 = vmatpush2.msra.mxu0 0.0
        %1509 = vmatprep.subr.mxu0 0.0
        %1510 = vmatpush2.msra.mxu0 0.0
        %1511 = vmatprep.subr.mxu0 0.0
        %1512 = vmatpush2.msra.mxu0 0.0
        %1513 = vmatprep.subr.mxu0 0.0
        %1514 = vmatpush2.msra.mxu0 0.0
        %1515 = vmatprep.subr.mxu0 0.0
        %1516 = vmatpush2.msra.mxu0 0.0
        %1517 = vmatprep.subr.mxu0 0.0
        %1518 = vmatpush2.msra.mxu0 0.0
        %1519 = vmatprep.subr.mxu0 0.0
        %1520 = vmatpush2.msra.mxu0 0.0
        %1521 = vmatprep.subr.mxu0 0.0
        %1522 = vmatpush2.msra.mxu0 0.0
        %1523 = vmatprep.subr.mxu0 0.0
        %1524 = vmatpush2.msra.mxu0 0.0
        %1525 = vmatprep.subr.mxu0 0.0
        %1526 = vmatpush2.msra.mxu0 0.0
        %1527 = vmatprep.subr.mxu0 0.0
        %1528 = vmatpush2.msra.mxu0 0.0
        %1529 = vmatprep.subr.mxu0 0.0
        %1530 = vmatpush2.msra.mxu0 0.0
        %1531 = vmatprep.mubr.f32.mxu0 0.0
        %v1532 = vand.u32 %v1200, 4294901760
        %v1533 = vsub.f32 %v1200, %v1532
        %1534 = vmatmul.mubr.f32.gmra.mxu0 %v1533
        %v1535 = vpop.f32.mrf.mxu0
        %v1536 = vadd.f32 %v1432, %v1535
        %v1537 = vpop.f32.mrf.mxu0
        %v1538 = vadd.f32 %v1434, %v1537
        %1539 = vmatprep.mubr.f32.mxu0 0.0
        %v1540 = vand.u32 %v1203, 4294901760
        %v1541 = vsub.f32 %v1203, %v1540
        %1542 = vmatmul.mubr.f32.gmra.mxu0 %v1541
        %v1543 = vpop.f32.mrf.mxu0
        %v1544 = vadd.f32 %v1439, %v1543
        %v1545 = vpop.f32.mrf.mxu0
        %v1546 = vadd.f32 %v1441, %v1545
        %1547 = vdwg.mxu0
        %1548 = vmatprep.subr.mxu0 0.0
        %1549 = vmatpush1.msra.mxu0 0.0
        %1550 = vmatprep.subr.mxu0 0.0
        %1551 = vmatpush1.msra.mxu0 0.0
        %1552 = vmatprep.subr.mxu0 0.0
        %1553 = vmatpush1.msra.mxu0 0.0
        %1554 = vmatprep.subr.mxu0 0.0
        %1555 = vmatpush1.msra.mxu0 0.0
        %1556 = vmatprep.subr.mxu0 0.0
        %1557 = vmatpush1.msra.mxu0 0.0
        %1558 = vmatprep.subr.mxu0 0.0
        %1559 = vmatpush1.msra.mxu0 0.0
        %1560 = vmatprep.subr.mxu0 0.0
        %1561 = vmatpush1.msra.mxu0 0.0
        %1562 = vmatprep.subr.mxu0 0.0
        %1563 = vmatpush1.msra.mxu0 0.0
        %1564 = vmatprep.subr.mxu0 0.0
        %1565 = vmatpush1.msra.mxu0 0.0
        %1566 = vmatprep.subr.mxu0 0.0
        %1567 = vmatpush1.msra.mxu0 0.0
        %v1568 = vand.u32 %v532, 4294901760
        %1569 = vmatprep.subr.mxu0 %v1568
        %v1570 = vand.u32 %v531, 4294901760
        %1571 = vmatpush1.msra.mxu0 %v1570
        %v1572 = vand.u32 %v530, 4294901760
        %1573 = vmatprep.subr.mxu0 %v1572
        %v1574 = vand.u32 %v529, 4294901760
        %1575 = vmatpush1.msra.mxu0 %v1574
        %v1576 = vand.u32 %v528, 4294901760
        %1577 = vmatprep.subr.mxu0 %v1576
        %v1578 = vand.u32 %v527, 4294901760
        %1579 = vmatpush1.msra.mxu0 %v1578
        %v1580 = vand.u32 %v526, 4294901760
        %1581 = vmatprep.subr.mxu0 %v1580
        %v1582 = vand.u32 %v525, 4294901760
        %1583 = vmatpush1.msra.mxu0 %v1582
        %v1584 = vand.u32 %v524, 4294901760
        %1585 = vmatprep.subr.mxu0 %v1584
        %v1586 = vand.u32 %v523, 4294901760
        %1587 = vmatpush1.msra.mxu0 %v1586
        %v1588 = vand.u32 %v522, 4294901760
        %1589 = vmatprep.subr.mxu0 %v1588
        %v1590 = vand.u32 %v521, 4294901760
        %1591 = vmatpush1.msra.mxu0 %v1590
        %1592 = vmatprep.subr.mxu0 0.0
        %1593 = vmatpush2.msra.mxu0 0.0
        %1594 = vmatprep.subr.mxu0 0.0
        %1595 = vmatpush2.msra.mxu0 0.0
        %1596 = vmatprep.subr.mxu0 0.0
        %1597 = vmatpush2.msra.mxu0 0.0
        %1598 = vmatprep.subr.mxu0 0.0
        %1599 = vmatpush2.msra.mxu0 0.0
        %1600 = vmatprep.subr.mxu0 0.0
        %1601 = vmatpush2.msra.mxu0 0.0
        %1602 = vmatprep.subr.mxu0 0.0
        %1603 = vmatpush2.msra.mxu0 0.0
        %1604 = vmatprep.subr.mxu0 0.0
        %1605 = vmatpush2.msra.mxu0 0.0
        %1606 = vmatprep.subr.mxu0 0.0
        %1607 = vmatpush2.msra.mxu0 0.0
        %1608 = vmatprep.subr.mxu0 0.0
        %1609 = vmatpush2.msra.mxu0 0.0
        %1610 = vmatprep.subr.mxu0 0.0
        %1611 = vmatpush2.msra.mxu0 0.0
        %1612 = vmatprep.subr.mxu0 0.0
        %1613 = vmatpush2.msra.mxu0 0.0
        %1614 = vmatprep.subr.mxu0 0.0
        %1615 = vmatpush2.msra.mxu0 0.0
        %1616 = vmatprep.subr.mxu0 0.0
        %1617 = vmatpush2.msra.mxu0 0.0
        %1618 = vmatprep.subr.mxu0 0.0
        %1619 = vmatpush2.msra.mxu0 0.0
        %1620 = vmatprep.subr.mxu0 0.0
        %1621 = vmatpush2.msra.mxu0 0.0
        %1622 = vmatprep.subr.mxu0 0.0
        %1623 = vmatpush2.msra.mxu0 0.0
        %1624 = vmatprep.mubr.f32.mxu0 0.0
        %v1625 = vand.u32 %v1200, 4294901760
        %v1626 = vsub.f32 %v1200, %v1625
        %v1627 = vand.u32 %v1626, 4294901760
        %1628 = vmatmul.mubr.f32.gmra.mxu0 %v1627
        %v1629 = vpop.f32.mrf.mxu0
        %v1630 = vadd.f32 %v1536, %v1629
        %v1631 = vpop.f32.mrf.mxu0
        %v1632 = vadd.f32 %v1538, %v1631
        %1633 = vmatprep.mubr.f32.mxu0 0.0
        %v1634 = vand.u32 %v1203, 4294901760
        %v1635 = vsub.f32 %v1203, %v1634
        %v1636 = vand.u32 %v1635, 4294901760
        %1637 = vmatmul.mubr.f32.gmra.mxu0 %v1636
        %v1638 = vpop.f32.mrf.mxu0
        %v1639 = vadd.f32 %v1544, %v1638
        %v1640 = vpop.f32.mrf.mxu0
        %v1641 = vadd.f32 %v1546, %v1640
        %1642 = vdwg.mxu0
        %1643 = vmatprep.subr.mxu0 0.0
        %1644 = vmatpush1.msra.mxu0 0.0
        %1645 = vmatprep.subr.mxu0 0.0
        %1646 = vmatpush1.msra.mxu0 0.0
        %1647 = vmatprep.subr.mxu0 0.0
        %1648 = vmatpush1.msra.mxu0 0.0
        %1649 = vmatprep.subr.mxu0 0.0
        %1650 = vmatpush1.msra.mxu0 0.0
        %1651 = vmatprep.subr.mxu0 0.0
        %1652 = vmatpush1.msra.mxu0 0.0
        %1653 = vmatprep.subr.mxu0 0.0
        %1654 = vmatpush1.msra.mxu0 0.0
        %1655 = vmatprep.subr.mxu0 0.0
        %1656 = vmatpush1.msra.mxu0 0.0
        %1657 = vmatprep.subr.mxu0 0.0
        %1658 = vmatpush1.msra.mxu0 0.0
        %1659 = vmatprep.subr.mxu0 0.0
        %1660 = vmatpush1.msra.mxu0 0.0
        %1661 = vmatprep.subr.mxu0 0.0
        %1662 = vmatpush1.msra.mxu0 0.0
        %v1663 = vand.u32 %v532, 4294901760
        %v1664 = vsub.f32 %v532, %v1663
        %v1665 = vand.u32 %v1664, 4294901760
        %1666 = vmatprep.subr.mxu0 %v1665
        %v1667 = vand.u32 %v531, 4294901760
        %v1668 = vsub.f32 %v531, %v1667
        %v1669 = vand.u32 %v1668, 4294901760
        %1670 = vmatpush1.msra.mxu0 %v1669
        %v1671 = vand.u32 %v530, 4294901760
        %v1672 = vsub.f32 %v530, %v1671
        %v1673 = vand.u32 %v1672, 4294901760
        %1674 = vmatprep.subr.mxu0 %v1673
        %v1675 = vand.u32 %v529, 4294901760
        %v1676 = vsub.f32 %v529, %v1675
        %v1677 = vand.u32 %v1676, 4294901760
        %1678 = vmatpush1.msra.mxu0 %v1677
        %v1679 = vand.u32 %v528, 4294901760
        %v1680 = vsub.f32 %v528, %v1679
        %v1681 = vand.u32 %v1680, 4294901760
        %1682 = vmatprep.subr.mxu0 %v1681
        %v1683 = vand.u32 %v527, 4294901760
        %v1684 = vsub.f32 %v527, %v1683
        %v1685 = vand.u32 %v1684, 4294901760
        %1686 = vmatpush1.msra.mxu0 %v1685
        %v1687 = vand.u32 %v526, 4294901760
        %v1688 = vsub.f32 %v526, %v1687
        %v1689 = vand.u32 %v1688, 4294901760
        %1690 = vmatprep.subr.mxu0 %v1689
        %v1691 = vand.u32 %v525, 4294901760
        %v1692 = vsub.f32 %v525, %v1691
        %v1693 = vand.u32 %v1692, 4294901760
        %1694 = vmatpush1.msra.mxu0 %v1693
        %v1695 = vand.u32 %v524, 4294901760
        %v1696 = vsub.f32 %v524, %v1695
        %v1697 = vand.u32 %v1696, 4294901760
        %1698 = vmatprep.subr.mxu0 %v1697
        %v1699 = vand.u32 %v523, 4294901760
        %v1700 = vsub.f32 %v523, %v1699
        %v1701 = vand.u32 %v1700, 4294901760
        %1702 = vmatpush1.msra.mxu0 %v1701
        %v1703 = vand.u32 %v522, 4294901760
        %v1704 = vsub.f32 %v522, %v1703
        %v1705 = vand.u32 %v1704, 4294901760
        %1706 = vmatprep.subr.mxu0 %v1705
        %v1707 = vand.u32 %v521, 4294901760
        %v1708 = vsub.f32 %v521, %v1707
        %v1709 = vand.u32 %v1708, 4294901760
        %1710 = vmatpush1.msra.mxu0 %v1709
        %1711 = vmatprep.subr.mxu0 0.0
        %1712 = vmatpush2.msra.mxu0 0.0
        %1713 = vmatprep.subr.mxu0 0.0
        %1714 = vmatpush2.msra.mxu0 0.0
        %1715 = vmatprep.subr.mxu0 0.0
        %1716 = vmatpush2.msra.mxu0 0.0
        %1717 = vmatprep.subr.mxu0 0.0
        %1718 = vmatpush2.msra.mxu0 0.0
        %1719 = vmatprep.subr.mxu0 0.0
        %1720 = vmatpush2.msra.mxu0 0.0
        %1721 = vmatprep.subr.mxu0 0.0
        %1722 = vmatpush2.msra.mxu0 0.0
        %1723 = vmatprep.subr.mxu0 0.0
        %1724 = vmatpush2.msra.mxu0 0.0
        %1725 = vmatprep.subr.mxu0 0.0
        %1726 = vmatpush2.msra.mxu0 0.0
        %1727 = vmatprep.subr.mxu0 0.0
        %1728 = vmatpush2.msra.mxu0 0.0
        %1729 = vmatprep.subr.mxu0 0.0
        %1730 = vmatpush2.msra.mxu0 0.0
        %1731 = vmatprep.subr.mxu0 0.0
        %1732 = vmatpush2.msra.mxu0 0.0
        %1733 = vmatprep.subr.mxu0 0.0
        %1734 = vmatpush2.msra.mxu0 0.0
        %1735 = vmatprep.subr.mxu0 0.0
        %1736 = vmatpush2.msra.mxu0 0.0
        %1737 = vmatprep.subr.mxu0 0.0
        %1738 = vmatpush2.msra.mxu0 0.0
        %1739 = vmatprep.subr.mxu0 0.0
        %1740 = vmatpush2.msra.mxu0 0.0
        %1741 = vmatprep.subr.mxu0 0.0
        %1742 = vmatpush2.msra.mxu0 0.0
        %1743 = vmatprep.mubr.f32.mxu0 0.0
        %v1744 = vand.u32 %v1200, 4294901760
        %1745 = vmatmul.mubr.f32.gmra.mxu0 %v1744
        %v1746 = vpop.f32.mrf.mxu0
        %v1747 = vadd.f32 %v1630, %v1746
        %v1748 = vpop.f32.mrf.mxu0
        %v1749 = vadd.f32 %v1632, %v1748
        %1750 = vmatprep.mubr.f32.mxu0 0.0
        %v1751 = vand.u32 %v1203, 4294901760
        %1752 = vmatmul.mubr.f32.gmra.mxu0 %v1751
        %v1753 = vpop.f32.mrf.mxu0
        %v1754 = vadd.f32 %v1639, %v1753
        %v1755 = vpop.f32.mrf.mxu0
        %v1756 = vadd.f32 %v1641, %v1755
        %1757 = vdwg.mxu0
        %1758 = vmatprep.subr.mxu0 0.0
        %1759 = vmatpush1.msra.mxu0 0.0
        %1760 = vmatprep.subr.mxu0 0.0
        %1761 = vmatpush1.msra.mxu0 0.0
        %1762 = vmatprep.subr.mxu0 0.0
        %1763 = vmatpush1.msra.mxu0 0.0
        %1764 = vmatprep.subr.mxu0 0.0
        %1765 = vmatpush1.msra.mxu0 0.0
        %1766 = vmatprep.subr.mxu0 0.0
        %1767 = vmatpush1.msra.mxu0 0.0
        %1768 = vmatprep.subr.mxu0 0.0
        %1769 = vmatpush1.msra.mxu0 0.0
        %1770 = vmatprep.subr.mxu0 0.0
        %1771 = vmatpush1.msra.mxu0 0.0
        %1772 = vmatprep.subr.mxu0 0.0
        %1773 = vmatpush1.msra.mxu0 0.0
        %1774 = vmatprep.subr.mxu0 0.0
        %1775 = vmatpush1.msra.mxu0 0.0
        %1776 = vmatprep.subr.mxu0 0.0
        %1777 = vmatpush1.msra.mxu0 0.0
        %v1778 = vand.u32 %v532, 4294901760
        %1779 = vmatprep.subr.mxu0 %v1778
        %v1780 = vand.u32 %v531, 4294901760
        %1781 = vmatpush1.msra.mxu0 %v1780
        %v1782 = vand.u32 %v530, 4294901760
        %1783 = vmatprep.subr.mxu0 %v1782
        %v1784 = vand.u32 %v529, 4294901760
        %1785 = vmatpush1.msra.mxu0 %v1784
        %v1786 = vand.u32 %v528, 4294901760
        %1787 = vmatprep.subr.mxu0 %v1786
        %v1788 = vand.u32 %v527, 4294901760
        %1789 = vmatpush1.msra.mxu0 %v1788
        %v1790 = vand.u32 %v526, 4294901760
        %1791 = vmatprep.subr.mxu0 %v1790
        %v1792 = vand.u32 %v525, 4294901760
        %1793 = vmatpush1.msra.mxu0 %v1792
        %v1794 = vand.u32 %v524, 4294901760
        %1795 = vmatprep.subr.mxu0 %v1794
        %v1796 = vand.u32 %v523, 4294901760
        %1797 = vmatpush1.msra.mxu0 %v1796
        %v1798 = vand.u32 %v522, 4294901760
        %1799 = vmatprep.subr.mxu0 %v1798
        %v1800 = vand.u32 %v521, 4294901760
        %1801 = vmatpush1.msra.mxu0 %v1800
        %1802 = vmatprep.subr.mxu0 0.0
        %1803 = vmatpush2.msra.mxu0 0.0
        %1804 = vmatprep.subr.mxu0 0.0
        %1805 = vmatpush2.msra.mxu0 0.0
        %1806 = vmatprep.subr.mxu0 0.0
        %1807 = vmatpush2.msra.mxu0 0.0
        %1808 = vmatprep.subr.mxu0 0.0
        %1809 = vmatpush2.msra.mxu0 0.0
        %1810 = vmatprep.subr.mxu0 0.0
        %1811 = vmatpush2.msra.mxu0 0.0
        %1812 = vmatprep.subr.mxu0 0.0
        %1813 = vmatpush2.msra.mxu0 0.0
        %1814 = vmatprep.subr.mxu0 0.0
        %1815 = vmatpush2.msra.mxu0 0.0
        %1816 = vmatprep.subr.mxu0 0.0
        %1817 = vmatpush2.msra.mxu0 0.0
        %1818 = vmatprep.subr.mxu0 0.0
        %1819 = vmatpush2.msra.mxu0 0.0
        %1820 = vmatprep.subr.mxu0 0.0
        %1821 = vmatpush2.msra.mxu0 0.0
        %1822 = vmatprep.subr.mxu0 0.0
        %1823 = vmatpush2.msra.mxu0 0.0
        %1824 = vmatprep.subr.mxu0 0.0
        %1825 = vmatpush2.msra.mxu0 0.0
        %1826 = vmatprep.subr.mxu0 0.0
        %1827 = vmatpush2.msra.mxu0 0.0
        %1828 = vmatprep.subr.mxu0 0.0
        %1829 = vmatpush2.msra.mxu0 0.0
        %1830 = vmatprep.subr.mxu0 0.0
        %1831 = vmatpush2.msra.mxu0 0.0
        %1832 = vmatprep.subr.mxu0 0.0
        %1833 = vmatpush2.msra.mxu0 0.0
        %1834 = vmatprep.mubr.f32.mxu0 0.0
        %v1835 = vand.u32 %v1200, 4294901760
        %1836 = vmatmul.mubr.f32.gmra.mxu0 %v1835
        %v1837 = vpop.f32.mrf.mxu0
        %v1838 = vadd.f32 %v1747, %v1837
        %v1839 = vpop.f32.mrf.mxu0
        %v1840 = vadd.f32 %v1749, %v1839
        %1841 = vmatprep.mubr.f32.mxu0 0.0
        %v1842 = vand.u32 %v1203, 4294901760
        %1843 = vmatmul.mubr.f32.gmra.mxu0 %v1842
        %v1844 = vpop.f32.mrf.mxu0
        %v1845 = vadd.f32 %v1754, %v1844
        %v1846 = vpop.f32.mrf.mxu0
        %v1847 = vadd.f32 %v1756, %v1846
        %1848 = vdwg.mxu0
        %v1849 = vld [vmem:[%s510 + $0x2] sm:$0xff]
        %v1850 = vld [vmem:[%s510 + $0xa] sm:$0x3f]
        %s1851 = scalar_lea.vmem %s1, 192
        %v1852 = vld [vmem:[%s1851] sm:$0xff]
        %v1853 = vld [vmem:[%s1851 + $0x8] sm:$0xff]
        %v1854 = vld [vmem:[%s1851 + $0x10] sm:$0xff]
        %v1855 = vld [vmem:[%s1851 + $0x18] sm:$0xff]
        %v1856 = vld [vmem:[%s1851 + $0x20] sm:$0xff]
        %v1857 = vld [vmem:[%s1851 + $0x28] sm:$0xff]
        %v1858 = vld [vmem:[%s1851 + $0x30] sm:$0xff]
        %v1859 = vld [vmem:[%s1851 + $0x38] sm:$0xff]
        %v1860 = vld [vmem:[%s1851 + $0x40] sm:$0xff]
        %v1861 = vld [vmem:[%s1851 + $0x48] sm:$0xff]
        %v1862 = vld [vmem:[%s1851 + $0x50] sm:$0xff]
        %v1863 = vld [vmem:[%s1851 + $0x58] sm:$0xff]
        %v1865 = vsel %vm548, %v1849, 0
        %v1868 = vsel %vm548, %v1850, 0
        %1870 = vmatprep.subr.mxu0 0.0
        %1871 = vmatpush1.msra.mxu0 0.0
        %1872 = vmatprep.subr.mxu0 0.0
        %1873 = vmatpush1.msra.mxu0 0.0
        %1874 = vmatprep.subr.mxu0 0.0
        %1875 = vmatpush1.msra.mxu0 0.0
        %1876 = vmatprep.subr.mxu0 0.0
        %1877 = vmatpush1.msra.mxu0 0.0
        %1878 = vmatprep.subr.mxu0 0.0
        %1879 = vmatpush1.msra.mxu0 0.0
        %1880 = vmatprep.subr.mxu0 0.0
        %1881 = vmatpush1.msra.mxu0 0.0
        %1882 = vmatprep.subr.mxu0 0.0
        %1883 = vmatpush1.msra.mxu0 0.0
        %1884 = vmatprep.subr.mxu0 0.0
        %1885 = vmatpush1.msra.mxu0 0.0
        %1886 = vmatprep.subr.mxu0 0.0
        %1887 = vmatpush1.msra.mxu0 0.0
        %1888 = vmatprep.subr.mxu0 0.0
        %1889 = vmatpush1.msra.mxu0 0.0
        %v1890 = vand.u32 %v1863, 4294901760
        %1891 = vmatprep.subr.mxu0 %v1890
        %v1892 = vand.u32 %v1862, 4294901760
        %1893 = vmatpush1.msra.mxu0 %v1892
        %v1894 = vand.u32 %v1861, 4294901760
        %1895 = vmatprep.subr.mxu0 %v1894
        %v1896 = vand.u32 %v1860, 4294901760
        %1897 = vmatpush1.msra.mxu0 %v1896
        %v1898 = vand.u32 %v1859, 4294901760
        %1899 = vmatprep.subr.mxu0 %v1898
        %v1900 = vand.u32 %v1858, 4294901760
        %1901 = vmatpush1.msra.mxu0 %v1900
        %v1902 = vand.u32 %v1857, 4294901760
        %1903 = vmatprep.subr.mxu0 %v1902
        %v1904 = vand.u32 %v1856, 4294901760
        %1905 = vmatpush1.msra.mxu0 %v1904
        %v1906 = vand.u32 %v1855, 4294901760
        %1907 = vmatprep.subr.mxu0 %v1906
        %v1908 = vand.u32 %v1854, 4294901760
        %1909 = vmatpush1.msra.mxu0 %v1908
        %v1910 = vand.u32 %v1853, 4294901760
        %1911 = vmatprep.subr.mxu0 %v1910
        %v1912 = vand.u32 %v1852, 4294901760
        %1913 = vmatpush1.msra.mxu0 %v1912
        %1914 = vmatprep.subr.mxu0 0.0
        %1915 = vmatpush2.msra.mxu0 0.0
        %1916 = vmatprep.subr.mxu0 0.0
        %1917 = vmatpush2.msra.mxu0 0.0
        %1918 = vmatprep.subr.mxu0 0.0
        %1919 = vmatpush2.msra.mxu0 0.0
        %1920 = vmatprep.subr.mxu0 0.0
        %1921 = vmatpush2.msra.mxu0 0.0
        %1922 = vmatprep.subr.mxu0 0.0
        %1923 = vmatpush2.msra.mxu0 0.0
        %1924 = vmatprep.subr.mxu0 0.0
        %1925 = vmatpush2.msra.mxu0 0.0
        %1926 = vmatprep.subr.mxu0 0.0
        %1927 = vmatpush2.msra.mxu0 0.0
        %1928 = vmatprep.subr.mxu0 0.0
        %1929 = vmatpush2.msra.mxu0 0.0
        %1930 = vmatprep.subr.mxu0 0.0
        %1931 = vmatpush2.msra.mxu0 0.0
        %1932 = vmatprep.subr.mxu0 0.0
        %1933 = vmatpush2.msra.mxu0 0.0
        %1934 = vmatprep.subr.mxu0 0.0
        %1935 = vmatpush2.msra.mxu0 0.0
        %1936 = vmatprep.subr.mxu0 0.0
        %1937 = vmatpush2.msra.mxu0 0.0
        %1938 = vmatprep.subr.mxu0 0.0
        %1939 = vmatpush2.msra.mxu0 0.0
        %1940 = vmatprep.subr.mxu0 0.0
        %1941 = vmatpush2.msra.mxu0 0.0
        %1942 = vmatprep.subr.mxu0 0.0
        %1943 = vmatpush2.msra.mxu0 0.0
        %1944 = vmatprep.subr.mxu0 0.0
        %1945 = vmatpush2.msra.mxu0 0.0
        %1946 = vmatprep.mubr.f32.mxu0 0.0
        %v1947 = vand.u32 %v1865, 4294901760
        %v1948 = vsub.f32 %v1865, %v1947
        %v1949 = vand.u32 %v1948, 4294901760
        %v1950 = vsub.f32 %v1948, %v1949
        %v1951 = vand.u32 %v1950, 4294901760
        %1952 = vmatmul.mubr.f32.gmra.mxu0 %v1951
        %v1953 = vpop.f32.mrf.mxu0
        %v1954 = vadd.f32 0.0, %v1953
        %v1955 = vpop.f32.mrf.mxu0
        %v1956 = vadd.f32 0.0, %v1955
        %1957 = vmatprep.mubr.f32.mxu0 0.0
        %v1958 = vand.u32 %v1868, 4294901760
        %v1959 = vsub.f32 %v1868, %v1958
        %v1960 = vand.u32 %v1959, 4294901760
        %v1961 = vsub.f32 %v1959, %v1960
        %v1962 = vand.u32 %v1961, 4294901760
        %1963 = vmatmul.mubr.f32.gmra.mxu0 %v1962
        %v1964 = vpop.f32.mrf.mxu0
        %v1965 = vadd.f32 0.0, %v1964
        %v1966 = vpop.f32.mrf.mxu0
        %v1967 = vadd.f32 0.0, %v1966
        %1968 = vdwg.mxu0
        %1969 = vmatprep.subr.mxu0 0.0
        %1970 = vmatpush1.msra.mxu0 0.0
        %1971 = vmatprep.subr.mxu0 0.0
        %1972 = vmatpush1.msra.mxu0 0.0
        %1973 = vmatprep.subr.mxu0 0.0
        %1974 = vmatpush1.msra.mxu0 0.0
        %1975 = vmatprep.subr.mxu0 0.0
        %1976 = vmatpush1.msra.mxu0 0.0
        %1977 = vmatprep.subr.mxu0 0.0
        %1978 = vmatpush1.msra.mxu0 0.0
        %1979 = vmatprep.subr.mxu0 0.0
        %1980 = vmatpush1.msra.mxu0 0.0
        %1981 = vmatprep.subr.mxu0 0.0
        %1982 = vmatpush1.msra.mxu0 0.0
        %1983 = vmatprep.subr.mxu0 0.0
        %1984 = vmatpush1.msra.mxu0 0.0
        %1985 = vmatprep.subr.mxu0 0.0
        %1986 = vmatpush1.msra.mxu0 0.0
        %1987 = vmatprep.subr.mxu0 0.0
        %1988 = vmatpush1.msra.mxu0 0.0
        %v1989 = vand.u32 %v1863, 4294901760
        %v1990 = vsub.f32 %v1863, %v1989
        %v1991 = vand.u32 %v1990, 4294901760
        %v1992 = vsub.f32 %v1990, %v1991
        %v1993 = vand.u32 %v1992, 4294901760
        %1994 = vmatprep.subr.mxu0 %v1993
        %v1995 = vand.u32 %v1862, 4294901760
        %v1996 = vsub.f32 %v1862, %v1995
        %v1997 = vand.u32 %v1996, 4294901760
        %v1998 = vsub.f32 %v1996, %v1997
        %v1999 = vand.u32 %v1998, 4294901760
        %2000 = vmatpush1.msra.mxu0 %v1999
        %v2001 = vand.u32 %v1861, 4294901760
        %v2002 = vsub.f32 %v1861, %v2001
        %v2003 = vand.u32 %v2002, 4294901760
        %v2004 = vsub.f32 %v2002, %v2003
        %v2005 = vand.u32 %v2004, 4294901760
        %2006 = vmatprep.subr.mxu0 %v2005
        %v2007 = vand.u32 %v1860, 4294901760
        %v2008 = vsub.f32 %v1860, %v2007
        %v2009 = vand.u32 %v2008, 4294901760
        %v2010 = vsub.f32 %v2008, %v2009
        %v2011 = vand.u32 %v2010, 4294901760
        %2012 = vmatpush1.msra.mxu0 %v2011
        %v2013 = vand.u32 %v1859, 4294901760
        %v2014 = vsub.f32 %v1859, %v2013
        %v2015 = vand.u32 %v2014, 4294901760
        %v2016 = vsub.f32 %v2014, %v2015
        %v2017 = vand.u32 %v2016, 4294901760
        %2018 = vmatprep.subr.mxu0 %v2017
        %v2019 = vand.u32 %v1858, 4294901760
        %v2020 = vsub.f32 %v1858, %v2019
        %v2021 = vand.u32 %v2020, 4294901760
        %v2022 = vsub.f32 %v2020, %v2021
        %v2023 = vand.u32 %v2022, 4294901760
        %2024 = vmatpush1.msra.mxu0 %v2023
        %v2025 = vand.u32 %v1857, 4294901760
        %v2026 = vsub.f32 %v1857, %v2025
        %v2027 = vand.u32 %v2026, 4294901760
        %v2028 = vsub.f32 %v2026, %v2027
        %v2029 = vand.u32 %v2028, 4294901760
        %2030 = vmatprep.subr.mxu0 %v2029
        %v2031 = vand.u32 %v1856, 4294901760
        %v2032 = vsub.f32 %v1856, %v2031
        %v2033 = vand.u32 %v2032, 4294901760
        %v2034 = vsub.f32 %v2032, %v2033
        %v2035 = vand.u32 %v2034, 4294901760
        %2036 = vmatpush1.msra.mxu0 %v2035
        %v2037 = vand.u32 %v1855, 4294901760
        %v2038 = vsub.f32 %v1855, %v2037
        %v2039 = vand.u32 %v2038, 4294901760
        %v2040 = vsub.f32 %v2038, %v2039
        %v2041 = vand.u32 %v2040, 4294901760
        %2042 = vmatprep.subr.mxu0 %v2041
        %v2043 = vand.u32 %v1854, 4294901760
        %v2044 = vsub.f32 %v1854, %v2043
        %v2045 = vand.u32 %v2044, 4294901760
        %v2046 = vsub.f32 %v2044, %v2045
        %v2047 = vand.u32 %v2046, 4294901760
        %2048 = vmatpush1.msra.mxu0 %v2047
        %v2049 = vand.u32 %v1853, 4294901760
        %v2050 = vsub.f32 %v1853, %v2049
        %v2051 = vand.u32 %v2050, 4294901760
        %v2052 = vsub.f32 %v2050, %v2051
        %v2053 = vand.u32 %v2052, 4294901760
        %2054 = vmatprep.subr.mxu0 %v2053
        %v2055 = vand.u32 %v1852, 4294901760
        %v2056 = vsub.f32 %v1852, %v2055
        %v2057 = vand.u32 %v2056, 4294901760
        %v2058 = vsub.f32 %v2056, %v2057
        %v2059 = vand.u32 %v2058, 4294901760
        %2060 = vmatpush1.msra.mxu0 %v2059
        %2061 = vmatprep.subr.mxu0 0.0
        %2062 = vmatpush2.msra.mxu0 0.0
        %2063 = vmatprep.subr.mxu0 0.0
        %2064 = vmatpush2.msra.mxu0 0.0
        %2065 = vmatprep.subr.mxu0 0.0
        %2066 = vmatpush2.msra.mxu0 0.0
        %2067 = vmatprep.subr.mxu0 0.0
        %2068 = vmatpush2.msra.mxu0 0.0
        %2069 = vmatprep.subr.mxu0 0.0
        %2070 = vmatpush2.msra.mxu0 0.0
        %2071 = vmatprep.subr.mxu0 0.0
        %2072 = vmatpush2.msra.mxu0 0.0
        %2073 = vmatprep.subr.mxu0 0.0
        %2074 = vmatpush2.msra.mxu0 0.0
        %2075 = vmatprep.subr.mxu0 0.0
        %2076 = vmatpush2.msra.mxu0 0.0
        %2077 = vmatprep.subr.mxu0 0.0
        %2078 = vmatpush2.msra.mxu0 0.0
        %2079 = vmatprep.subr.mxu0 0.0
        %2080 = vmatpush2.msra.mxu0 0.0
        %2081 = vmatprep.subr.mxu0 0.0
        %2082 = vmatpush2.msra.mxu0 0.0
        %2083 = vmatprep.subr.mxu0 0.0
        %2084 = vmatpush2.msra.mxu0 0.0
        %2085 = vmatprep.subr.mxu0 0.0
        %2086 = vmatpush2.msra.mxu0 0.0
        %2087 = vmatprep.subr.mxu0 0.0
        %2088 = vmatpush2.msra.mxu0 0.0
        %2089 = vmatprep.subr.mxu0 0.0
        %2090 = vmatpush2.msra.mxu0 0.0
        %2091 = vmatprep.subr.mxu0 0.0
        %2092 = vmatpush2.msra.mxu0 0.0
        %2093 = vmatprep.mubr.f32.mxu0 0.0
        %v2094 = vand.u32 %v1865, 4294901760
        %2095 = vmatmul.mubr.f32.gmra.mxu0 %v2094
        %v2096 = vpop.f32.mrf.mxu0
        %v2097 = vadd.f32 %v1954, %v2096
        %v2098 = vpop.f32.mrf.mxu0
        %v2099 = vadd.f32 %v1956, %v2098
        %2100 = vmatprep.mubr.f32.mxu0 0.0
        %v2101 = vand.u32 %v1868, 4294901760
        %2102 = vmatmul.mubr.f32.gmra.mxu0 %v2101
        %v2103 = vpop.f32.mrf.mxu0
        %v2104 = vadd.f32 %v1965, %v2103
        %v2105 = vpop.f32.mrf.mxu0
        %v2106 = vadd.f32 %v1967, %v2105
        %2107 = vdwg.mxu0
        %2108 = vmatprep.subr.mxu0 0.0
        %2109 = vmatpush1.msra.mxu0 0.0
        %2110 = vmatprep.subr.mxu0 0.0
        %2111 = vmatpush1.msra.mxu0 0.0
        %2112 = vmatprep.subr.mxu0 0.0
        %2113 = vmatpush1.msra.mxu0 0.0
        %2114 = vmatprep.subr.mxu0 0.0
        %2115 = vmatpush1.msra.mxu0 0.0
        %2116 = vmatprep.subr.mxu0 0.0
        %2117 = vmatpush1.msra.mxu0 0.0
        %2118 = vmatprep.subr.mxu0 0.0
        %2119 = vmatpush1.msra.mxu0 0.0
        %2120 = vmatprep.subr.mxu0 0.0
        %2121 = vmatpush1.msra.mxu0 0.0
        %2122 = vmatprep.subr.mxu0 0.0
        %2123 = vmatpush1.msra.mxu0 0.0
        %2124 = vmatprep.subr.mxu0 0.0
        %2125 = vmatpush1.msra.mxu0 0.0
        %2126 = vmatprep.subr.mxu0 0.0
        %2127 = vmatpush1.msra.mxu0 0.0
        %v2128 = vand.u32 %v1863, 4294901760
        %v2129 = vsub.f32 %v1863, %v2128
        %2130 = vmatprep.subr.mxu0 %v2129
        %v2131 = vand.u32 %v1862, 4294901760
        %v2132 = vsub.f32 %v1862, %v2131
        %2133 = vmatpush1.msra.mxu0 %v2132
        %v2134 = vand.u32 %v1861, 4294901760
        %v2135 = vsub.f32 %v1861, %v2134
        %2136 = vmatprep.subr.mxu0 %v2135
        %v2137 = vand.u32 %v1860, 4294901760
        %v2138 = vsub.f32 %v1860, %v2137
        %2139 = vmatpush1.msra.mxu0 %v2138
        %v2140 = vand.u32 %v1859, 4294901760
        %v2141 = vsub.f32 %v1859, %v2140
        %2142 = vmatprep.subr.mxu0 %v2141
        %v2143 = vand.u32 %v1858, 4294901760
        %v2144 = vsub.f32 %v1858, %v2143
        %2145 = vmatpush1.msra.mxu0 %v2144
        %v2146 = vand.u32 %v1857, 4294901760
        %v2147 = vsub.f32 %v1857, %v2146
        %2148 = vmatprep.subr.mxu0 %v2147
        %v2149 = vand.u32 %v1856, 4294901760
        %v2150 = vsub.f32 %v1856, %v2149
        %2151 = vmatpush1.msra.mxu0 %v2150
        %v2152 = vand.u32 %v1855, 4294901760
        %v2153 = vsub.f32 %v1855, %v2152
        %2154 = vmatprep.subr.mxu0 %v2153
        %v2155 = vand.u32 %v1854, 4294901760
        %v2156 = vsub.f32 %v1854, %v2155
        %2157 = vmatpush1.msra.mxu0 %v2156
        %v2158 = vand.u32 %v1853, 4294901760
        %v2159 = vsub.f32 %v1853, %v2158
        %2160 = vmatprep.subr.mxu0 %v2159
        %v2161 = vand.u32 %v1852, 4294901760
        %v2162 = vsub.f32 %v1852, %v2161
        %2163 = vmatpush1.msra.mxu0 %v2162
        %2164 = vmatprep.subr.mxu0 0.0
        %2165 = vmatpush2.msra.mxu0 0.0
        %2166 = vmatprep.subr.mxu0 0.0
        %2167 = vmatpush2.msra.mxu0 0.0
        %2168 = vmatprep.subr.mxu0 0.0
        %2169 = vmatpush2.msra.mxu0 0.0
        %2170 = vmatprep.subr.mxu0 0.0
        %2171 = vmatpush2.msra.mxu0 0.0
        %2172 = vmatprep.subr.mxu0 0.0
        %2173 = vmatpush2.msra.mxu0 0.0
        %2174 = vmatprep.subr.mxu0 0.0
        %2175 = vmatpush2.msra.mxu0 0.0
        %2176 = vmatprep.subr.mxu0 0.0
        %2177 = vmatpush2.msra.mxu0 0.0
        %2178 = vmatprep.subr.mxu0 0.0
        %2179 = vmatpush2.msra.mxu0 0.0
        %2180 = vmatprep.subr.mxu0 0.0
        %2181 = vmatpush2.msra.mxu0 0.0
        %2182 = vmatprep.subr.mxu0 0.0
        %2183 = vmatpush2.msra.mxu0 0.0
        %2184 = vmatprep.subr.mxu0 0.0
        %2185 = vmatpush2.msra.mxu0 0.0
        %2186 = vmatprep.subr.mxu0 0.0
        %2187 = vmatpush2.msra.mxu0 0.0
        %2188 = vmatprep.subr.mxu0 0.0
        %2189 = vmatpush2.msra.mxu0 0.0
        %2190 = vmatprep.subr.mxu0 0.0
        %2191 = vmatpush2.msra.mxu0 0.0
        %2192 = vmatprep.subr.mxu0 0.0
        %2193 = vmatpush2.msra.mxu0 0.0
        %2194 = vmatprep.subr.mxu0 0.0
        %2195 = vmatpush2.msra.mxu0 0.0
        %2196 = vmatprep.mubr.f32.mxu0 0.0
        %v2197 = vand.u32 %v1865, 4294901760
        %v2198 = vsub.f32 %v1865, %v2197
        %2199 = vmatmul.mubr.f32.gmra.mxu0 %v2198
        %v2200 = vpop.f32.mrf.mxu0
        %v2201 = vadd.f32 %v2097, %v2200
        %v2202 = vpop.f32.mrf.mxu0
        %v2203 = vadd.f32 %v2099, %v2202
        %2204 = vmatprep.mubr.f32.mxu0 0.0
        %v2205 = vand.u32 %v1868, 4294901760
        %v2206 = vsub.f32 %v1868, %v2205
        %2207 = vmatmul.mubr.f32.gmra.mxu0 %v2206
        %v2208 = vpop.f32.mrf.mxu0
        %v2209 = vadd.f32 %v2104, %v2208
        %v2210 = vpop.f32.mrf.mxu0
        %v2211 = vadd.f32 %v2106, %v2210
        %2212 = vdwg.mxu0
        %2213 = vmatprep.subr.mxu0 0.0
        %2214 = vmatpush1.msra.mxu0 0.0
        %2215 = vmatprep.subr.mxu0 0.0
        %2216 = vmatpush1.msra.mxu0 0.0
        %2217 = vmatprep.subr.mxu0 0.0
        %2218 = vmatpush1.msra.mxu0 0.0
        %2219 = vmatprep.subr.mxu0 0.0
        %2220 = vmatpush1.msra.mxu0 0.0
        %2221 = vmatprep.subr.mxu0 0.0
        %2222 = vmatpush1.msra.mxu0 0.0
        %2223 = vmatprep.subr.mxu0 0.0
        %2224 = vmatpush1.msra.mxu0 0.0
        %2225 = vmatprep.subr.mxu0 0.0
        %2226 = vmatpush1.msra.mxu0 0.0
        %2227 = vmatprep.subr.mxu0 0.0
        %2228 = vmatpush1.msra.mxu0 0.0
        %2229 = vmatprep.subr.mxu0 0.0
        %2230 = vmatpush1.msra.mxu0 0.0
        %2231 = vmatprep.subr.mxu0 0.0
        %2232 = vmatpush1.msra.mxu0 0.0
        %v2233 = vand.u32 %v1863, 4294901760
        %2234 = vmatprep.subr.mxu0 %v2233
        %v2235 = vand.u32 %v1862, 4294901760
        %2236 = vmatpush1.msra.mxu0 %v2235
        %v2237 = vand.u32 %v1861, 4294901760
        %2238 = vmatprep.subr.mxu0 %v2237
        %v2239 = vand.u32 %v1860, 4294901760
        %2240 = vmatpush1.msra.mxu0 %v2239
        %v2241 = vand.u32 %v1859, 4294901760
        %2242 = vmatprep.subr.mxu0 %v2241
        %v2243 = vand.u32 %v1858, 4294901760
        %2244 = vmatpush1.msra.mxu0 %v2243
        %v2245 = vand.u32 %v1857, 4294901760
        %2246 = vmatprep.subr.mxu0 %v2245
        %v2247 = vand.u32 %v1856, 4294901760
        %2248 = vmatpush1.msra.mxu0 %v2247
        %v2249 = vand.u32 %v1855, 4294901760
        %2250 = vmatprep.subr.mxu0 %v2249
        %v2251 = vand.u32 %v1854, 4294901760
        %2252 = vmatpush1.msra.mxu0 %v2251
        %v2253 = vand.u32 %v1853, 4294901760
        %2254 = vmatprep.subr.mxu0 %v2253
        %v2255 = vand.u32 %v1852, 4294901760
        %2256 = vmatpush1.msra.mxu0 %v2255
        %2257 = vmatprep.subr.mxu0 0.0
        %2258 = vmatpush2.msra.mxu0 0.0
        %2259 = vmatprep.subr.mxu0 0.0
        %2260 = vmatpush2.msra.mxu0 0.0
        %2261 = vmatprep.subr.mxu0 0.0
        %2262 = vmatpush2.msra.mxu0 0.0
        %2263 = vmatprep.subr.mxu0 0.0
        %2264 = vmatpush2.msra.mxu0 0.0
        %2265 = vmatprep.subr.mxu0 0.0
        %2266 = vmatpush2.msra.mxu0 0.0
        %2267 = vmatprep.subr.mxu0 0.0
        %2268 = vmatpush2.msra.mxu0 0.0
        %2269 = vmatprep.subr.mxu0 0.0
        %2270 = vmatpush2.msra.mxu0 0.0
        %2271 = vmatprep.subr.mxu0 0.0
        %2272 = vmatpush2.msra.mxu0 0.0
        %2273 = vmatprep.subr.mxu0 0.0
        %2274 = vmatpush2.msra.mxu0 0.0
        %2275 = vmatprep.subr.mxu0 0.0
        %2276 = vmatpush2.msra.mxu0 0.0
        %2277 = vmatprep.subr.mxu0 0.0
        %2278 = vmatpush2.msra.mxu0 0.0
        %2279 = vmatprep.subr.mxu0 0.0
        %2280 = vmatpush2.msra.mxu0 0.0
        %2281 = vmatprep.subr.mxu0 0.0
        %2282 = vmatpush2.msra.mxu0 0.0
        %2283 = vmatprep.subr.mxu0 0.0
        %2284 = vmatpush2.msra.mxu0 0.0
        %2285 = vmatprep.subr.mxu0 0.0
        %2286 = vmatpush2.msra.mxu0 0.0
        %2287 = vmatprep.subr.mxu0 0.0
        %2288 = vmatpush2.msra.mxu0 0.0
        %2289 = vmatprep.mubr.f32.mxu0 0.0
        %v2290 = vand.u32 %v1865, 4294901760
        %v2291 = vsub.f32 %v1865, %v2290
        %v2292 = vand.u32 %v2291, 4294901760
        %2293 = vmatmul.mubr.f32.gmra.mxu0 %v2292
        %v2294 = vpop.f32.mrf.mxu0
        %v2295 = vadd.f32 %v2201, %v2294
        %v2296 = vpop.f32.mrf.mxu0
        %v2297 = vadd.f32 %v2203, %v2296
        %2298 = vmatprep.mubr.f32.mxu0 0.0
        %v2299 = vand.u32 %v1868, 4294901760
        %v2300 = vsub.f32 %v1868, %v2299
        %v2301 = vand.u32 %v2300, 4294901760
        %2302 = vmatmul.mubr.f32.gmra.mxu0 %v2301
        %v2303 = vpop.f32.mrf.mxu0
        %v2304 = vadd.f32 %v2209, %v2303
        %v2305 = vpop.f32.mrf.mxu0
        %v2306 = vadd.f32 %v2211, %v2305
        %2307 = vdwg.mxu0
        %2308 = vmatprep.subr.mxu0 0.0
        %2309 = vmatpush1.msra.mxu0 0.0
        %2310 = vmatprep.subr.mxu0 0.0
        %2311 = vmatpush1.msra.mxu0 0.0
        %2312 = vmatprep.subr.mxu0 0.0
        %2313 = vmatpush1.msra.mxu0 0.0
        %2314 = vmatprep.subr.mxu0 0.0
        %2315 = vmatpush1.msra.mxu0 0.0
        %2316 = vmatprep.subr.mxu0 0.0
        %2317 = vmatpush1.msra.mxu0 0.0
        %2318 = vmatprep.subr.mxu0 0.0
        %2319 = vmatpush1.msra.mxu0 0.0
        %2320 = vmatprep.subr.mxu0 0.0
        %2321 = vmatpush1.msra.mxu0 0.0
        %2322 = vmatprep.subr.mxu0 0.0
        %2323 = vmatpush1.msra.mxu0 0.0
        %2324 = vmatprep.subr.mxu0 0.0
        %2325 = vmatpush1.msra.mxu0 0.0
        %2326 = vmatprep.subr.mxu0 0.0
        %2327 = vmatpush1.msra.mxu0 0.0
        %v2328 = vand.u32 %v1863, 4294901760
        %v2329 = vsub.f32 %v1863, %v2328
        %v2330 = vand.u32 %v2329, 4294901760
        %2331 = vmatprep.subr.mxu0 %v2330
        %v2332 = vand.u32 %v1862, 4294901760
        %v2333 = vsub.f32 %v1862, %v2332
        %v2334 = vand.u32 %v2333, 4294901760
        %2335 = vmatpush1.msra.mxu0 %v2334
        %v2336 = vand.u32 %v1861, 4294901760
        %v2337 = vsub.f32 %v1861, %v2336
        %v2338 = vand.u32 %v2337, 4294901760
        %2339 = vmatprep.subr.mxu0 %v2338
        %v2340 = vand.u32 %v1860, 4294901760
        %v2341 = vsub.f32 %v1860, %v2340
        %v2342 = vand.u32 %v2341, 4294901760
        %2343 = vmatpush1.msra.mxu0 %v2342
        %v2344 = vand.u32 %v1859, 4294901760
        %v2345 = vsub.f32 %v1859, %v2344
        %v2346 = vand.u32 %v2345, 4294901760
        %2347 = vmatprep.subr.mxu0 %v2346
        %v2348 = vand.u32 %v1858, 4294901760
        %v2349 = vsub.f32 %v1858, %v2348
        %v2350 = vand.u32 %v2349, 4294901760
        %2351 = vmatpush1.msra.mxu0 %v2350
        %v2352 = vand.u32 %v1857, 4294901760
        %v2353 = vsub.f32 %v1857, %v2352
        %v2354 = vand.u32 %v2353, 4294901760
        %2355 = vmatprep.subr.mxu0 %v2354
        %v2356 = vand.u32 %v1856, 4294901760
        %v2357 = vsub.f32 %v1856, %v2356
        %v2358 = vand.u32 %v2357, 4294901760
        %2359 = vmatpush1.msra.mxu0 %v2358
        %v2360 = vand.u32 %v1855, 4294901760
        %v2361 = vsub.f32 %v1855, %v2360
        %v2362 = vand.u32 %v2361, 4294901760
        %2363 = vmatprep.subr.mxu0 %v2362
        %v2364 = vand.u32 %v1854, 4294901760
        %v2365 = vsub.f32 %v1854, %v2364
        %v2366 = vand.u32 %v2365, 4294901760
        %2367 = vmatpush1.msra.mxu0 %v2366
        %v2368 = vand.u32 %v1853, 4294901760
        %v2369 = vsub.f32 %v1853, %v2368
        %v2370 = vand.u32 %v2369, 4294901760
        %2371 = vmatprep.subr.mxu0 %v2370
        %v2372 = vand.u32 %v1852, 4294901760
        %v2373 = vsub.f32 %v1852, %v2372
        %v2374 = vand.u32 %v2373, 4294901760
        %2375 = vmatpush1.msra.mxu0 %v2374
        %2376 = vmatprep.subr.mxu0 0.0
        %2377 = vmatpush2.msra.mxu0 0.0
        %2378 = vmatprep.subr.mxu0 0.0
        %2379 = vmatpush2.msra.mxu0 0.0
        %2380 = vmatprep.subr.mxu0 0.0
        %2381 = vmatpush2.msra.mxu0 0.0
        %2382 = vmatprep.subr.mxu0 0.0
        %2383 = vmatpush2.msra.mxu0 0.0
        %2384 = vmatprep.subr.mxu0 0.0
        %2385 = vmatpush2.msra.mxu0 0.0
        %2386 = vmatprep.subr.mxu0 0.0
        %2387 = vmatpush2.msra.mxu0 0.0
        %2388 = vmatprep.subr.mxu0 0.0
        %2389 = vmatpush2.msra.mxu0 0.0
        %2390 = vmatprep.subr.mxu0 0.0
        %2391 = vmatpush2.msra.mxu0 0.0
        %2392 = vmatprep.subr.mxu0 0.0
        %2393 = vmatpush2.msra.mxu0 0.0
        %2394 = vmatprep.subr.mxu0 0.0
        %2395 = vmatpush2.msra.mxu0 0.0
        %2396 = vmatprep.subr.mxu0 0.0
        %2397 = vmatpush2.msra.mxu0 0.0
        %2398 = vmatprep.subr.mxu0 0.0
        %2399 = vmatpush2.msra.mxu0 0.0
        %2400 = vmatprep.subr.mxu0 0.0
        %2401 = vmatpush2.msra.mxu0 0.0
        %2402 = vmatprep.subr.mxu0 0.0
        %2403 = vmatpush2.msra.mxu0 0.0
        %2404 = vmatprep.subr.mxu0 0.0
        %2405 = vmatpush2.msra.mxu0 0.0
        %2406 = vmatprep.subr.mxu0 0.0
        %2407 = vmatpush2.msra.mxu0 0.0
        %2408 = vmatprep.mubr.f32.mxu0 0.0
        %v2409 = vand.u32 %v1865, 4294901760
        %2410 = vmatmul.mubr.f32.gmra.mxu0 %v2409
        %v2411 = vpop.f32.mrf.mxu0
        %v2412 = vadd.f32 %v2295, %v2411
        %v2413 = vpop.f32.mrf.mxu0
        %v2414 = vadd.f32 %v2297, %v2413
        %2415 = vmatprep.mubr.f32.mxu0 0.0
        %v2416 = vand.u32 %v1868, 4294901760
        %2417 = vmatmul.mubr.f32.gmra.mxu0 %v2416
        %v2418 = vpop.f32.mrf.mxu0
        %v2419 = vadd.f32 %v2304, %v2418
        %v2420 = vpop.f32.mrf.mxu0
        %v2421 = vadd.f32 %v2306, %v2420
        %2422 = vdwg.mxu0
        %2423 = vmatprep.subr.mxu0 0.0
        %2424 = vmatpush1.msra.mxu0 0.0
        %2425 = vmatprep.subr.mxu0 0.0
        %2426 = vmatpush1.msra.mxu0 0.0
        %2427 = vmatprep.subr.mxu0 0.0
        %2428 = vmatpush1.msra.mxu0 0.0
        %2429 = vmatprep.subr.mxu0 0.0
        %2430 = vmatpush1.msra.mxu0 0.0
        %2431 = vmatprep.subr.mxu0 0.0
        %2432 = vmatpush1.msra.mxu0 0.0
        %2433 = vmatprep.subr.mxu0 0.0
        %2434 = vmatpush1.msra.mxu0 0.0
        %2435 = vmatprep.subr.mxu0 0.0
        %2436 = vmatpush1.msra.mxu0 0.0
        %2437 = vmatprep.subr.mxu0 0.0
        %2438 = vmatpush1.msra.mxu0 0.0
        %2439 = vmatprep.subr.mxu0 0.0
        %2440 = vmatpush1.msra.mxu0 0.0
        %2441 = vmatprep.subr.mxu0 0.0
        %2442 = vmatpush1.msra.mxu0 0.0
        %v2443 = vand.u32 %v1863, 4294901760
        %2444 = vmatprep.subr.mxu0 %v2443
        %v2445 = vand.u32 %v1862, 4294901760
        %2446 = vmatpush1.msra.mxu0 %v2445
        %v2447 = vand.u32 %v1861, 4294901760
        %2448 = vmatprep.subr.mxu0 %v2447
        %v2449 = vand.u32 %v1860, 4294901760
        %2450 = vmatpush1.msra.mxu0 %v2449
        %v2451 = vand.u32 %v1859, 4294901760
        %2452 = vmatprep.subr.mxu0 %v2451
        %v2453 = vand.u32 %v1858, 4294901760
        %2454 = vmatpush1.msra.mxu0 %v2453
        %v2455 = vand.u32 %v1857, 4294901760
        %2456 = vmatprep.subr.mxu0 %v2455
        %v2457 = vand.u32 %v1856, 4294901760
        %2458 = vmatpush1.msra.mxu0 %v2457
        %v2459 = vand.u32 %v1855, 4294901760
        %2460 = vmatprep.subr.mxu0 %v2459
        %v2461 = vand.u32 %v1854, 4294901760
        %2462 = vmatpush1.msra.mxu0 %v2461
        %v2463 = vand.u32 %v1853, 4294901760
        %2464 = vmatprep.subr.mxu0 %v2463
        %v2465 = vand.u32 %v1852, 4294901760
        %2466 = vmatpush1.msra.mxu0 %v2465
        %2467 = vmatprep.subr.mxu0 0.0
        %2468 = vmatpush2.msra.mxu0 0.0
        %2469 = vmatprep.subr.mxu0 0.0
        %2470 = vmatpush2.msra.mxu0 0.0
        %2471 = vmatprep.subr.mxu0 0.0
        %2472 = vmatpush2.msra.mxu0 0.0
        %2473 = vmatprep.subr.mxu0 0.0
        %2474 = vmatpush2.msra.mxu0 0.0
        %2475 = vmatprep.subr.mxu0 0.0
        %2476 = vmatpush2.msra.mxu0 0.0
        %2477 = vmatprep.subr.mxu0 0.0
        %2478 = vmatpush2.msra.mxu0 0.0
        %2479 = vmatprep.subr.mxu0 0.0
        %2480 = vmatpush2.msra.mxu0 0.0
        %2481 = vmatprep.subr.mxu0 0.0
        %2482 = vmatpush2.msra.mxu0 0.0
        %2483 = vmatprep.subr.mxu0 0.0
        %2484 = vmatpush2.msra.mxu0 0.0
        %2485 = vmatprep.subr.mxu0 0.0
        %2486 = vmatpush2.msra.mxu0 0.0
        %2487 = vmatprep.subr.mxu0 0.0
        %2488 = vmatpush2.msra.mxu0 0.0
        %2489 = vmatprep.subr.mxu0 0.0
        %2490 = vmatpush2.msra.mxu0 0.0
        %2491 = vmatprep.subr.mxu0 0.0
        %2492 = vmatpush2.msra.mxu0 0.0
        %2493 = vmatprep.subr.mxu0 0.0
        %2494 = vmatpush2.msra.mxu0 0.0
        %2495 = vmatprep.subr.mxu0 0.0
        %2496 = vmatpush2.msra.mxu0 0.0
        %2497 = vmatprep.subr.mxu0 0.0
        %2498 = vmatpush2.msra.mxu0 0.0
        %2499 = vmatprep.mubr.f32.mxu0 0.0
        %v2500 = vand.u32 %v1865, 4294901760
        %2501 = vmatmul.mubr.f32.gmra.mxu0 %v2500
        %v2502 = vpop.f32.mrf.mxu0
        %v2503 = vadd.f32 %v2412, %v2502
        %v2504 = vpop.f32.mrf.mxu0
        %v2505 = vadd.f32 %v2414, %v2504
        %2506 = vmatprep.mubr.f32.mxu0 0.0
        %v2507 = vand.u32 %v1868, 4294901760
        %2508 = vmatmul.mubr.f32.gmra.mxu0 %v2507
        %v2509 = vpop.f32.mrf.mxu0
        %v2510 = vadd.f32 %v2419, %v2509
        %v2511 = vpop.f32.mrf.mxu0
        %v2512 = vadd.f32 %v2421, %v2511
        %2513 = vdwg.mxu0
        %v2514 = vadd.f32 %v1838, %v2503
        %v2515 = vadd.f32 %v1840, %v2505
        %v2516 = vadd.f32 %v1845, %v2510
        %v2517 = vadd.f32 %v1847, %v2512
        %v2518 = vld [vmem:[%s2] sm:$0x3]
        %v2520 = vlaneseq
        %v2521 = vshrl.u32 %v2520, 7
        %v2522 = vsub.s32 0, %v2521
        %v2523 = vrot.slane %v2518, %v2522
        %v2524 = vlaneseq
        %v2525 = vshrl.u32 %v2524, 7
        %v2526 = vsub.s32 1, %v2525
        %v2527 = vrot.slane %v2518, %v2526
        %v2530 = vadd.f32 %v2514, %v2523
        %v2531 = vadd.f32 %v2515, %v2527
        %v2532 = vadd.f32 %v2516, %v2523
        %v2533 = vadd.f32 %v2517, %v2527
        %vm2534 = vcmp.gt.f32.partialorder %v2530, 0.0
        %vm2535 = vcmp.gt.f32.partialorder %v2531, 0.0
        %vm2536 = vcmp.gt.f32.partialorder %v2532, 0.0
        %vm2537 = vcmp.gt.f32.partialorder %v2533, 0.0
        %v2538 = vld [vmem:[%s3] sm:$0x3]
        %v2540 = vlaneseq
        %v2541 = vshrl.u32 %v2540, 7
        %v2542 = vsub.s32 0, %v2541
        %v2543 = vrot.slane %v2538, %v2542
        %v2544 = vlaneseq
        %v2545 = vshrl.u32 %v2544, 7
        %v2546 = vsub.s32 1, %v2545
        %v2547 = vrot.slane %v2538, %v2546
        %v2550 = vmul.f32 %v2543, %v2530
        %v2551 = vmul.f32 %v2547, %v2531
        %v2552 = vmul.f32 %v2543, %v2532
        %v2553 = vmul.f32 %v2547, %v2533
        %v2554 = vsel %vm2534, %v2530, %v2550
        %v2555 = vsel %vm2535, %v2531, %v2551
        %v2556 = vsel %vm2536, %v2532, %v2552
        %v2557 = vsel %vm2537, %v2533, %v2553
        %2558 = vst [vmem:[#allocation2] sm:$0xff] %v2554
        %vm2559 = vcmask 97280
        %2560 = vst.msk [vmem:[#allocation2 + $0x8] sm:$0xff] %vm2559, %v2555
        %2561 = vst [vmem:[#allocation2 + $0x10] sm:$0x3f] %v2556
        %vm2562 = vcmask 95232
        %2563 = vst.msk [vmem:[#allocation2 + $0x18] sm:$0x3f] %vm2562, %v2557
        %v2564 = vld [vmem:[#allocation2] sm:$0xff]
        %v2565 = vld [vmem:[#allocation2 + $0x8] sm:$0xff]
        %v2566 = vld [vmem:[#allocation2 + $0x10] sm:$0x3f]
        %v2567 = vld [vmem:[#allocation2 + $0x18] sm:$0x3f]
        %v2568 = vld [vmem:[%s4] sm:$0x7f]
        %vm2569 = vcmask 113664
        %v2571 = vsel %vm2569, %v2568, 0
        %vm2573 = vcmask 1045504
        %v2575 = vsel %vm2573, %v2566, 0
        %v2578 = vsel %vm2573, %v2567, 0
        %2580 = vmatprep.subr.mxu0 0.0
        %2581 = vmatpush1.msra.mxu0 0.0
        %2582 = vmatprep.subr.mxu0 0.0
        %2583 = vmatpush1.msra.mxu0 0.0
        %2584 = vmatprep.subr.mxu0 0.0
        %2585 = vmatpush1.msra.mxu0 0.0
        %2586 = vmatprep.subr.mxu0 0.0
        %2587 = vmatpush1.msra.mxu0 0.0
        %2588 = vmatprep.subr.mxu0 0.0
        %2589 = vmatpush1.msra.mxu0 0.0
        %2590 = vmatprep.subr.mxu0 0.0
        %2591 = vmatpush1.msra.mxu0 0.0
        %2592 = vmatprep.subr.mxu0 0.0
        %2593 = vmatpush1.msra.mxu0 0.0
        %2594 = vmatprep.subr.mxu0 0.0
        %2595 = vmatpush1.msra.mxu0 0.0
        %2596 = vmatprep.subr.mxu0 0.0
        %2597 = vmatpush1.msra.mxu0 0.0
        %2598 = vmatprep.subr.mxu0 0.0
        %2599 = vmatpush1.msra.mxu0 0.0
        %2600 = vmatprep.subr.mxu0 0.0
        %2601 = vmatpush1.msra.mxu0 0.0
        %2602 = vmatprep.subr.mxu0 0.0
        %2603 = vmatpush1.msra.mxu0 0.0
        %2604 = vmatprep.subr.mxu0 0.0
        %2605 = vmatpush1.msra.mxu0 0.0
        %2606 = vmatprep.subr.mxu0 0.0
        %2607 = vmatpush1.msra.mxu0 0.0
        %v2608 = vand.u32 %v2578, 4294901760
        %2609 = vmatprep.subr.mxu0 %v2608
        %v2610 = vand.u32 %v2575, 4294901760
        %2611 = vmatpush1.msra.mxu0 %v2610
        %v2612 = vand.u32 %v2565, 4294901760
        %2613 = vmatprep.subr.mxu0 %v2612
        %v2614 = vand.u32 %v2564, 4294901760
        %2615 = vmatpush1.msra.mxu0 %v2614
        %2616 = vmatprep.subr.mxu0 0.0
        %2617 = vmatpush2.msra.mxu0 0.0
        %2618 = vmatprep.subr.mxu0 0.0
        %2619 = vmatpush2.msra.mxu0 0.0
        %2620 = vmatprep.subr.mxu0 0.0
        %2621 = vmatpush2.msra.mxu0 0.0
        %2622 = vmatprep.subr.mxu0 0.0
        %2623 = vmatpush2.msra.mxu0 0.0
        %2624 = vmatprep.subr.mxu0 0.0
        %2625 = vmatpush2.msra.mxu0 0.0
        %2626 = vmatprep.subr.mxu0 0.0
        %2627 = vmatpush2.msra.mxu0 0.0
        %2628 = vmatprep.subr.mxu0 0.0
        %2629 = vmatpush2.msra.mxu0 0.0
        %2630 = vmatprep.subr.mxu0 0.0
        %2631 = vmatpush2.msra.mxu0 0.0
        %2632 = vmatprep.subr.mxu0 0.0
        %2633 = vmatpush2.msra.mxu0 0.0
        %2634 = vmatprep.subr.mxu0 0.0
        %2635 = vmatpush2.msra.mxu0 0.0
        %2636 = vmatprep.subr.mxu0 0.0
        %2637 = vmatpush2.msra.mxu0 0.0
        %2638 = vmatprep.subr.mxu0 0.0
        %2639 = vmatpush2.msra.mxu0 0.0
        %2640 = vmatprep.subr.mxu0 0.0
        %2641 = vmatpush2.msra.mxu0 0.0
        %2642 = vmatprep.subr.mxu0 0.0
        %2643 = vmatpush2.msra.mxu0 0.0
        %2644 = vmatprep.subr.mxu0 0.0
        %2645 = vmatpush2.msra.mxu0 0.0
        %2646 = vmatprep.subr.mxu0 0.0
        %2647 = vmatpush2.msra.mxu0 0.0
        %2648 = vmatprep.mubr.f32.mxu0 0.0
        %v2649 = vand.u32 %v2571, 4294901760
        %v2650 = vsub.f32 %v2571, %v2649
        %v2651 = vand.u32 %v2650, 4294901760
        %v2652 = vsub.f32 %v2650, %v2651
        %v2653 = vand.u32 %v2652, 4294901760
        %2654 = vmatmul.mubr.f32.gmra.mxu0 %v2653
        %v2655 = vpop.f32.mrf.mxu0
        %v2656 = vadd.f32 0.0, %v2655
        %v2657 = vpop.f32.mrf.mxu0
        %v2658 = vadd.f32 0.0, %v2657
        %2659 = vdwg.mxu0
        %2660 = vmatprep.subr.mxu0 0.0
        %2661 = vmatpush1.msra.mxu0 0.0
        %2662 = vmatprep.subr.mxu0 0.0
        %2663 = vmatpush1.msra.mxu0 0.0
        %2664 = vmatprep.subr.mxu0 0.0
        %2665 = vmatpush1.msra.mxu0 0.0
        %2666 = vmatprep.subr.mxu0 0.0
        %2667 = vmatpush1.msra.mxu0 0.0
        %2668 = vmatprep.subr.mxu0 0.0
        %2669 = vmatpush1.msra.mxu0 0.0
        %2670 = vmatprep.subr.mxu0 0.0
        %2671 = vmatpush1.msra.mxu0 0.0
        %2672 = vmatprep.subr.mxu0 0.0
        %2673 = vmatpush1.msra.mxu0 0.0
        %2674 = vmatprep.subr.mxu0 0.0
        %2675 = vmatpush1.msra.mxu0 0.0
        %2676 = vmatprep.subr.mxu0 0.0
        %2677 = vmatpush1.msra.mxu0 0.0
        %2678 = vmatprep.subr.mxu0 0.0
        %2679 = vmatpush1.msra.mxu0 0.0
        %2680 = vmatprep.subr.mxu0 0.0
        %2681 = vmatpush1.msra.mxu0 0.0
        %2682 = vmatprep.subr.mxu0 0.0
        %2683 = vmatpush1.msra.mxu0 0.0
        %2684 = vmatprep.subr.mxu0 0.0
        %2685 = vmatpush1.msra.mxu0 0.0
        %2686 = vmatprep.subr.mxu0 0.0
        %2687 = vmatpush1.msra.mxu0 0.0
        %v2688 = vand.u32 %v2578, 4294901760
        %v2689 = vsub.f32 %v2578, %v2688
        %v2690 = vand.u32 %v2689, 4294901760
        %v2691 = vsub.f32 %v2689, %v2690
        %v2692 = vand.u32 %v2691, 4294901760
        %2693 = vmatprep.subr.mxu0 %v2692
        %v2694 = vand.u32 %v2575, 4294901760
        %v2695 = vsub.f32 %v2575, %v2694
        %v2696 = vand.u32 %v2695, 4294901760
        %v2697 = vsub.f32 %v2695, %v2696
        %v2698 = vand.u32 %v2697, 4294901760
        %2699 = vmatpush1.msra.mxu0 %v2698
        %v2700 = vand.u32 %v2565, 4294901760
        %v2701 = vsub.f32 %v2565, %v2700
        %v2702 = vand.u32 %v2701, 4294901760
        %v2703 = vsub.f32 %v2701, %v2702
        %v2704 = vand.u32 %v2703, 4294901760
        %2705 = vmatprep.subr.mxu0 %v2704
        %v2706 = vand.u32 %v2564, 4294901760
        %v2707 = vsub.f32 %v2564, %v2706
        %v2708 = vand.u32 %v2707, 4294901760
        %v2709 = vsub.f32 %v2707, %v2708
        %v2710 = vand.u32 %v2709, 4294901760
        %2711 = vmatpush1.msra.mxu0 %v2710
        %2712 = vmatprep.subr.mxu0 0.0
        %2713 = vmatpush2.msra.mxu0 0.0
        %2714 = vmatprep.subr.mxu0 0.0
        %2715 = vmatpush2.msra.mxu0 0.0
        %2716 = vmatprep.subr.mxu0 0.0
        %2717 = vmatpush2.msra.mxu0 0.0
        %2718 = vmatprep.subr.mxu0 0.0
        %2719 = vmatpush2.msra.mxu0 0.0
        %2720 = vmatprep.subr.mxu0 0.0
        %2721 = vmatpush2.msra.mxu0 0.0
        %2722 = vmatprep.subr.mxu0 0.0
        %2723 = vmatpush2.msra.mxu0 0.0
        %2724 = vmatprep.subr.mxu0 0.0
        %2725 = vmatpush2.msra.mxu0 0.0
        %2726 = vmatprep.subr.mxu0 0.0
        %2727 = vmatpush2.msra.mxu0 0.0
        %2728 = vmatprep.subr.mxu0 0.0
        %2729 = vmatpush2.msra.mxu0 0.0
        %2730 = vmatprep.subr.mxu0 0.0
        %2731 = vmatpush2.msra.mxu0 0.0
        %2732 = vmatprep.subr.mxu0 0.0
        %2733 = vmatpush2.msra.mxu0 0.0
        %2734 = vmatprep.subr.mxu0 0.0
        %2735 = vmatpush2.msra.mxu0 0.0
        %2736 = vmatprep.subr.mxu0 0.0
        %2737 = vmatpush2.msra.mxu0 0.0
        %2738 = vmatprep.subr.mxu0 0.0
        %2739 = vmatpush2.msra.mxu0 0.0
        %2740 = vmatprep.subr.mxu0 0.0
        %2741 = vmatpush2.msra.mxu0 0.0
        %2742 = vmatprep.subr.mxu0 0.0
        %2743 = vmatpush2.msra.mxu0 0.0
        %2744 = vmatprep.mubr.f32.mxu0 0.0
        %v2745 = vand.u32 %v2571, 4294901760
        %2746 = vmatmul.mubr.f32.gmra.mxu0 %v2745
        %v2747 = vpop.f32.mrf.mxu0
        %v2748 = vadd.f32 %v2656, %v2747
        %v2749 = vpop.f32.mrf.mxu0
        %v2750 = vadd.f32 %v2658, %v2749
        %2751 = vdwg.mxu0
        %2752 = vmatprep.subr.mxu0 0.0
        %2753 = vmatpush1.msra.mxu0 0.0
        %2754 = vmatprep.subr.mxu0 0.0
        %2755 = vmatpush1.msra.mxu0 0.0
        %2756 = vmatprep.subr.mxu0 0.0
        %2757 = vmatpush1.msra.mxu0 0.0
        %2758 = vmatprep.subr.mxu0 0.0
        %2759 = vmatpush1.msra.mxu0 0.0
        %2760 = vmatprep.subr.mxu0 0.0
        %2761 = vmatpush1.msra.mxu0 0.0
        %2762 = vmatprep.subr.mxu0 0.0
        %2763 = vmatpush1.msra.mxu0 0.0
        %2764 = vmatprep.subr.mxu0 0.0
        %2765 = vmatpush1.msra.mxu0 0.0
        %2766 = vmatprep.subr.mxu0 0.0
        %2767 = vmatpush1.msra.mxu0 0.0
        %2768 = vmatprep.subr.mxu0 0.0
        %2769 = vmatpush1.msra.mxu0 0.0
        %2770 = vmatprep.subr.mxu0 0.0
        %2771 = vmatpush1.msra.mxu0 0.0
        %2772 = vmatprep.subr.mxu0 0.0
        %2773 = vmatpush1.msra.mxu0 0.0
        %2774 = vmatprep.subr.mxu0 0.0
        %2775 = vmatpush1.msra.mxu0 0.0
        %2776 = vmatprep.subr.mxu0 0.0
        %2777 = vmatpush1.msra.mxu0 0.0
        %2778 = vmatprep.subr.mxu0 0.0
        %2779 = vmatpush1.msra.mxu0 0.0
        %v2780 = vand.u32 %v2578, 4294901760
        %v2781 = vsub.f32 %v2578, %v2780
        %2782 = vmatprep.subr.mxu0 %v2781
        %v2783 = vand.u32 %v2575, 4294901760
        %v2784 = vsub.f32 %v2575, %v2783
        %2785 = vmatpush1.msra.mxu0 %v2784
        %v2786 = vand.u32 %v2565, 4294901760
        %v2787 = vsub.f32 %v2565, %v2786
        %2788 = vmatprep.subr.mxu0 %v2787
        %v2789 = vand.u32 %v2564, 4294901760
        %v2790 = vsub.f32 %v2564, %v2789
        %2791 = vmatpush1.msra.mxu0 %v2790
        %2792 = vmatprep.subr.mxu0 0.0
        %2793 = vmatpush2.msra.mxu0 0.0
        %2794 = vmatprep.subr.mxu0 0.0
        %2795 = vmatpush2.msra.mxu0 0.0
        %2796 = vmatprep.subr.mxu0 0.0
        %2797 = vmatpush2.msra.mxu0 0.0
        %2798 = vmatprep.subr.mxu0 0.0
        %2799 = vmatpush2.msra.mxu0 0.0
        %2800 = vmatprep.subr.mxu0 0.0
        %2801 = vmatpush2.msra.mxu0 0.0
        %2802 = vmatprep.subr.mxu0 0.0
        %2803 = vmatpush2.msra.mxu0 0.0
        %2804 = vmatprep.subr.mxu0 0.0
        %2805 = vmatpush2.msra.mxu0 0.0
        %2806 = vmatprep.subr.mxu0 0.0
        %2807 = vmatpush2.msra.mxu0 0.0
        %2808 = vmatprep.subr.mxu0 0.0
        %2809 = vmatpush2.msra.mxu0 0.0
        %2810 = vmatprep.subr.mxu0 0.0
        %2811 = vmatpush2.msra.mxu0 0.0
        %2812 = vmatprep.subr.mxu0 0.0
        %2813 = vmatpush2.msra.mxu0 0.0
        %2814 = vmatprep.subr.mxu0 0.0
        %2815 = vmatpush2.msra.mxu0 0.0
        %2816 = vmatprep.subr.mxu0 0.0
        %2817 = vmatpush2.msra.mxu0 0.0
        %2818 = vmatprep.subr.mxu0 0.0
        %2819 = vmatpush2.msra.mxu0 0.0
        %2820 = vmatprep.subr.mxu0 0.0
        %2821 = vmatpush2.msra.mxu0 0.0
        %2822 = vmatprep.subr.mxu0 0.0
        %2823 = vmatpush2.msra.mxu0 0.0
        %2824 = vmatprep.mubr.f32.mxu0 0.0
        %v2825 = vand.u32 %v2571, 4294901760
        %v2826 = vsub.f32 %v2571, %v2825
        %2827 = vmatmul.mubr.f32.gmra.mxu0 %v2826
        %v2828 = vpop.f32.mrf.mxu0
        %v2829 = vadd.f32 %v2748, %v2828
        %v2830 = vpop.f32.mrf.mxu0
        %v2831 = vadd.f32 %v2750, %v2830
        %2832 = vdwg.mxu0
        %2833 = vmatprep.subr.mxu0 0.0
        %2834 = vmatpush1.msra.mxu0 0.0
        %2835 = vmatprep.subr.mxu0 0.0
        %2836 = vmatpush1.msra.mxu0 0.0
        %2837 = vmatprep.subr.mxu0 0.0
        %2838 = vmatpush1.msra.mxu0 0.0
        %2839 = vmatprep.subr.mxu0 0.0
        %2840 = vmatpush1.msra.mxu0 0.0
        %2841 = vmatprep.subr.mxu0 0.0
        %2842 = vmatpush1.msra.mxu0 0.0
        %2843 = vmatprep.subr.mxu0 0.0
        %2844 = vmatpush1.msra.mxu0 0.0
        %2845 = vmatprep.subr.mxu0 0.0
        %2846 = vmatpush1.msra.mxu0 0.0
        %2847 = vmatprep.subr.mxu0 0.0
        %2848 = vmatpush1.msra.mxu0 0.0
        %2849 = vmatprep.subr.mxu0 0.0
        %2850 = vmatpush1.msra.mxu0 0.0
        %2851 = vmatprep.subr.mxu0 0.0
        %2852 = vmatpush1.msra.mxu0 0.0
        %2853 = vmatprep.subr.mxu0 0.0
        %2854 = vmatpush1.msra.mxu0 0.0
        %2855 = vmatprep.subr.mxu0 0.0
        %2856 = vmatpush1.msra.mxu0 0.0
        %2857 = vmatprep.subr.mxu0 0.0
        %2858 = vmatpush1.msra.mxu0 0.0
        %2859 = vmatprep.subr.mxu0 0.0
        %2860 = vmatpush1.msra.mxu0 0.0
        %v2861 = vand.u32 %v2578, 4294901760
        %2862 = vmatprep.subr.mxu0 %v2861
        %v2863 = vand.u32 %v2575, 4294901760
        %2864 = vmatpush1.msra.mxu0 %v2863
        %v2865 = vand.u32 %v2565, 4294901760
        %2866 = vmatprep.subr.mxu0 %v2865
        %v2867 = vand.u32 %v2564, 4294901760
        %2868 = vmatpush1.msra.mxu0 %v2867
        %2869 = vmatprep.subr.mxu0 0.0
        %2870 = vmatpush2.msra.mxu0 0.0
        %2871 = vmatprep.subr.mxu0 0.0
        %2872 = vmatpush2.msra.mxu0 0.0
        %2873 = vmatprep.subr.mxu0 0.0
        %2874 = vmatpush2.msra.mxu0 0.0
        %2875 = vmatprep.subr.mxu0 0.0
        %2876 = vmatpush2.msra.mxu0 0.0
        %2877 = vmatprep.subr.mxu0 0.0
        %2878 = vmatpush2.msra.mxu0 0.0
        %2879 = vmatprep.subr.mxu0 0.0
        %2880 = vmatpush2.msra.mxu0 0.0
        %2881 = vmatprep.subr.mxu0 0.0
        %2882 = vmatpush2.msra.mxu0 0.0
        %2883 = vmatprep.subr.mxu0 0.0
        %2884 = vmatpush2.msra.mxu0 0.0
        %2885 = vmatprep.subr.mxu0 0.0
        %2886 = vmatpush2.msra.mxu0 0.0
        %2887 = vmatprep.subr.mxu0 0.0
        %2888 = vmatpush2.msra.mxu0 0.0
        %2889 = vmatprep.subr.mxu0 0.0
        %2890 = vmatpush2.msra.mxu0 0.0
        %2891 = vmatprep.subr.mxu0 0.0
        %2892 = vmatpush2.msra.mxu0 0.0
        %2893 = vmatprep.subr.mxu0 0.0
        %2894 = vmatpush2.msra.mxu0 0.0
        %2895 = vmatprep.subr.mxu0 0.0
        %2896 = vmatpush2.msra.mxu0 0.0
        %2897 = vmatprep.subr.mxu0 0.0
        %2898 = vmatpush2.msra.mxu0 0.0
        %2899 = vmatprep.subr.mxu0 0.0
        %2900 = vmatpush2.msra.mxu0 0.0
        %2901 = vmatprep.mubr.f32.mxu0 0.0
        %v2902 = vand.u32 %v2571, 4294901760
        %v2903 = vsub.f32 %v2571, %v2902
        %v2904 = vand.u32 %v2903, 4294901760
        %2905 = vmatmul.mubr.f32.gmra.mxu0 %v2904
        %v2906 = vpop.f32.mrf.mxu0
        %v2907 = vadd.f32 %v2829, %v2906
        %v2908 = vpop.f32.mrf.mxu0
        %v2909 = vadd.f32 %v2831, %v2908
        %2910 = vdwg.mxu0
        %2911 = vmatprep.subr.mxu0 0.0
        %2912 = vmatpush1.msra.mxu0 0.0
        %2913 = vmatprep.subr.mxu0 0.0
        %2914 = vmatpush1.msra.mxu0 0.0
        %2915 = vmatprep.subr.mxu0 0.0
        %2916 = vmatpush1.msra.mxu0 0.0
        %2917 = vmatprep.subr.mxu0 0.0
        %2918 = vmatpush1.msra.mxu0 0.0
        %2919 = vmatprep.subr.mxu0 0.0
        %2920 = vmatpush1.msra.mxu0 0.0
        %2921 = vmatprep.subr.mxu0 0.0
        %2922 = vmatpush1.msra.mxu0 0.0
        %2923 = vmatprep.subr.mxu0 0.0
        %2924 = vmatpush1.msra.mxu0 0.0
        %2925 = vmatprep.subr.mxu0 0.0
        %2926 = vmatpush1.msra.mxu0 0.0
        %2927 = vmatprep.subr.mxu0 0.0
        %2928 = vmatpush1.msra.mxu0 0.0
        %2929 = vmatprep.subr.mxu0 0.0
        %2930 = vmatpush1.msra.mxu0 0.0
        %2931 = vmatprep.subr.mxu0 0.0
        %2932 = vmatpush1.msra.mxu0 0.0
        %2933 = vmatprep.subr.mxu0 0.0
        %2934 = vmatpush1.msra.mxu0 0.0
        %2935 = vmatprep.subr.mxu0 0.0
        %2936 = vmatpush1.msra.mxu0 0.0
        %2937 = vmatprep.subr.mxu0 0.0
        %2938 = vmatpush1.msra.mxu0 0.0
        %v2939 = vand.u32 %v2578, 4294901760
        %v2940 = vsub.f32 %v2578, %v2939
        %v2941 = vand.u32 %v2940, 4294901760
        %2942 = vmatprep.subr.mxu0 %v2941
        %v2943 = vand.u32 %v2575, 4294901760
        %v2944 = vsub.f32 %v2575, %v2943
        %v2945 = vand.u32 %v2944, 4294901760
        %2946 = vmatpush1.msra.mxu0 %v2945
        %v2947 = vand.u32 %v2565, 4294901760
        %v2948 = vsub.f32 %v2565, %v2947
        %v2949 = vand.u32 %v2948, 4294901760
        %2950 = vmatprep.subr.mxu0 %v2949
        %v2951 = vand.u32 %v2564, 4294901760
        %v2952 = vsub.f32 %v2564, %v2951
        %v2953 = vand.u32 %v2952, 4294901760
        %2954 = vmatpush1.msra.mxu0 %v2953
        %2955 = vmatprep.subr.mxu0 0.0
        %2956 = vmatpush2.msra.mxu0 0.0
        %2957 = vmatprep.subr.mxu0 0.0
        %2958 = vmatpush2.msra.mxu0 0.0
        %2959 = vmatprep.subr.mxu0 0.0
        %2960 = vmatpush2.msra.mxu0 0.0
        %2961 = vmatprep.subr.mxu0 0.0
        %2962 = vmatpush2.msra.mxu0 0.0
        %2963 = vmatprep.subr.mxu0 0.0
        %2964 = vmatpush2.msra.mxu0 0.0
        %2965 = vmatprep.subr.mxu0 0.0
        %2966 = vmatpush2.msra.mxu0 0.0
        %2967 = vmatprep.subr.mxu0 0.0
        %2968 = vmatpush2.msra.mxu0 0.0
        %2969 = vmatprep.subr.mxu0 0.0
        %2970 = vmatpush2.msra.mxu0 0.0
        %2971 = vmatprep.subr.mxu0 0.0
        %2972 = vmatpush2.msra.mxu0 0.0
        %2973 = vmatprep.subr.mxu0 0.0
        %2974 = vmatpush2.msra.mxu0 0.0
        %2975 = vmatprep.subr.mxu0 0.0
        %2976 = vmatpush2.msra.mxu0 0.0
        %2977 = vmatprep.subr.mxu0 0.0
        %2978 = vmatpush2.msra.mxu0 0.0
        %2979 = vmatprep.subr.mxu0 0.0
        %2980 = vmatpush2.msra.mxu0 0.0
        %2981 = vmatprep.subr.mxu0 0.0
        %2982 = vmatpush2.msra.mxu0 0.0
        %2983 = vmatprep.subr.mxu0 0.0
        %2984 = vmatpush2.msra.mxu0 0.0
        %2985 = vmatprep.subr.mxu0 0.0
        %2986 = vmatpush2.msra.mxu0 0.0
        %2987 = vmatprep.mubr.f32.mxu0 0.0
        %v2988 = vand.u32 %v2571, 4294901760
        %2989 = vmatmul.mubr.f32.gmra.mxu0 %v2988
        %v2990 = vpop.f32.mrf.mxu0
        %v2991 = vadd.f32 %v2907, %v2990
        %v2992 = vpop.f32.mrf.mxu0
        %v2993 = vadd.f32 %v2909, %v2992
        %2994 = vdwg.mxu0
        %2995 = vmatprep.subr.mxu0 0.0
        %2996 = vmatpush1.msra.mxu0 0.0
        %2997 = vmatprep.subr.mxu0 0.0
        %2998 = vmatpush1.msra.mxu0 0.0
        %2999 = vmatprep.subr.mxu0 0.0
        %3000 = vmatpush1.msra.mxu0 0.0
        %3001 = vmatprep.subr.mxu0 0.0
        %3002 = vmatpush1.msra.mxu0 0.0
        %3003 = vmatprep.subr.mxu0 0.0
        %3004 = vmatpush1.msra.mxu0 0.0
        %3005 = vmatprep.subr.mxu0 0.0
        %3006 = vmatpush1.msra.mxu0 0.0
        %3007 = vmatprep.subr.mxu0 0.0
        %3008 = vmatpush1.msra.mxu0 0.0
        %3009 = vmatprep.subr.mxu0 0.0
        %3010 = vmatpush1.msra.mxu0 0.0
        %3011 = vmatprep.subr.mxu0 0.0
        %3012 = vmatpush1.msra.mxu0 0.0
        %3013 = vmatprep.subr.mxu0 0.0
        %3014 = vmatpush1.msra.mxu0 0.0
        %3015 = vmatprep.subr.mxu0 0.0
        %3016 = vmatpush1.msra.mxu0 0.0
        %3017 = vmatprep.subr.mxu0 0.0
        %3018 = vmatpush1.msra.mxu0 0.0
        %3019 = vmatprep.subr.mxu0 0.0
        %3020 = vmatpush1.msra.mxu0 0.0
        %3021 = vmatprep.subr.mxu0 0.0
        %3022 = vmatpush1.msra.mxu0 0.0
        %v3023 = vand.u32 %v2578, 4294901760
        %3024 = vmatprep.subr.mxu0 %v3023
        %v3025 = vand.u32 %v2575, 4294901760
        %3026 = vmatpush1.msra.mxu0 %v3025
        %v3027 = vand.u32 %v2565, 4294901760
        %3028 = vmatprep.subr.mxu0 %v3027
        %v3029 = vand.u32 %v2564, 4294901760
        %3030 = vmatpush1.msra.mxu0 %v3029
        %3031 = vmatprep.subr.mxu0 0.0
        %3032 = vmatpush2.msra.mxu0 0.0
        %3033 = vmatprep.subr.mxu0 0.0
        %3034 = vmatpush2.msra.mxu0 0.0
        %3035 = vmatprep.subr.mxu0 0.0
        %3036 = vmatpush2.msra.mxu0 0.0
        %3037 = vmatprep.subr.mxu0 0.0
        %3038 = vmatpush2.msra.mxu0 0.0
        %3039 = vmatprep.subr.mxu0 0.0
        %3040 = vmatpush2.msra.mxu0 0.0
        %3041 = vmatprep.subr.mxu0 0.0
        %3042 = vmatpush2.msra.mxu0 0.0
        %3043 = vmatprep.subr.mxu0 0.0
        %3044 = vmatpush2.msra.mxu0 0.0
        %3045 = vmatprep.subr.mxu0 0.0
        %3046 = vmatpush2.msra.mxu0 0.0
        %3047 = vmatprep.subr.mxu0 0.0
        %3048 = vmatpush2.msra.mxu0 0.0
        %3049 = vmatprep.subr.mxu0 0.0
        %3050 = vmatpush2.msra.mxu0 0.0
        %3051 = vmatprep.subr.mxu0 0.0
        %3052 = vmatpush2.msra.mxu0 0.0
        %3053 = vmatprep.subr.mxu0 0.0
        %3054 = vmatpush2.msra.mxu0 0.0
        %3055 = vmatprep.subr.mxu0 0.0
        %3056 = vmatpush2.msra.mxu0 0.0
        %3057 = vmatprep.subr.mxu0 0.0
        %3058 = vmatpush2.msra.mxu0 0.0
        %3059 = vmatprep.subr.mxu0 0.0
        %3060 = vmatpush2.msra.mxu0 0.0
        %3061 = vmatprep.subr.mxu0 0.0
        %3062 = vmatpush2.msra.mxu0 0.0
        %3063 = vmatprep.mubr.f32.mxu0 0.0
        %v3064 = vand.u32 %v2571, 4294901760
        %3065 = vmatmul.mubr.f32.gmra.mxu0 %v3064
        %v3066 = vpop.f32.mrf.mxu0
        %v3067 = vadd.f32 %v2991, %v3066
        %v3068 = vpop.f32.mrf.mxu0
        %v3069 = vadd.f32 %v2993, %v3068
        %3070 = vdwg.mxu0
        %s3071 = scalar_lea.vmem %s4, 8
        %v3072 = vld [vmem:[%s3071] sm:$0x7f]
        %v3074 = vsel %vm2569, %v3072, 0
        %3076 = vmatprep.subr.mxu0 0.0
        %3077 = vmatpush1.msra.mxu0 0.0
        %3078 = vmatprep.subr.mxu0 0.0
        %3079 = vmatpush1.msra.mxu0 0.0
        %3080 = vmatprep.subr.mxu0 0.0
        %3081 = vmatpush1.msra.mxu0 0.0
        %3082 = vmatprep.subr.mxu0 0.0
        %3083 = vmatpush1.msra.mxu0 0.0
        %3084 = vmatprep.subr.mxu0 0.0
        %3085 = vmatpush1.msra.mxu0 0.0
        %3086 = vmatprep.subr.mxu0 0.0
        %3087 = vmatpush1.msra.mxu0 0.0
        %3088 = vmatprep.subr.mxu0 0.0
        %3089 = vmatpush1.msra.mxu0 0.0
        %3090 = vmatprep.subr.mxu0 0.0
        %3091 = vmatpush1.msra.mxu0 0.0
        %3092 = vmatprep.subr.mxu0 0.0
        %3093 = vmatpush1.msra.mxu0 0.0
        %3094 = vmatprep.subr.mxu0 0.0
        %3095 = vmatpush1.msra.mxu0 0.0
        %3096 = vmatprep.subr.mxu0 0.0
        %3097 = vmatpush1.msra.mxu0 0.0
        %3098 = vmatprep.subr.mxu0 0.0
        %3099 = vmatpush1.msra.mxu0 0.0
        %3100 = vmatprep.subr.mxu0 0.0
        %3101 = vmatpush1.msra.mxu0 0.0
        %3102 = vmatprep.subr.mxu0 0.0
        %3103 = vmatpush1.msra.mxu0 0.0
        %v3104 = vand.u32 %v2578, 4294901760
        %3105 = vmatprep.subr.mxu0 %v3104
        %v3106 = vand.u32 %v2575, 4294901760
        %3107 = vmatpush1.msra.mxu0 %v3106
        %v3108 = vand.u32 %v2565, 4294901760
        %3109 = vmatprep.subr.mxu0 %v3108
        %v3110 = vand.u32 %v2564, 4294901760
        %3111 = vmatpush1.msra.mxu0 %v3110
        %3112 = vmatprep.subr.mxu0 0.0
        %3113 = vmatpush2.msra.mxu0 0.0
        %3114 = vmatprep.subr.mxu0 0.0
        %3115 = vmatpush2.msra.mxu0 0.0
        %3116 = vmatprep.subr.mxu0 0.0
        %3117 = vmatpush2.msra.mxu0 0.0
        %3118 = vmatprep.subr.mxu0 0.0
        %3119 = vmatpush2.msra.mxu0 0.0
        %3120 = vmatprep.subr.mxu0 0.0
        %3121 = vmatpush2.msra.mxu0 0.0
        %3122 = vmatprep.subr.mxu0 0.0
        %3123 = vmatpush2.msra.mxu0 0.0
        %3124 = vmatprep.subr.mxu0 0.0
        %3125 = vmatpush2.msra.mxu0 0.0
        %3126 = vmatprep.subr.mxu0 0.0
        %3127 = vmatpush2.msra.mxu0 0.0
        %3128 = vmatprep.subr.mxu0 0.0
        %3129 = vmatpush2.msra.mxu0 0.0
        %3130 = vmatprep.subr.mxu0 0.0
        %3131 = vmatpush2.msra.mxu0 0.0
        %3132 = vmatprep.subr.mxu0 0.0
        %3133 = vmatpush2.msra.mxu0 0.0
        %3134 = vmatprep.subr.mxu0 0.0
        %3135 = vmatpush2.msra.mxu0 0.0
        %3136 = vmatprep.subr.mxu0 0.0
        %3137 = vmatpush2.msra.mxu0 0.0
        %3138 = vmatprep.subr.mxu0 0.0
        %3139 = vmatpush2.msra.mxu0 0.0
        %3140 = vmatprep.subr.mxu0 0.0
        %3141 = vmatpush2.msra.mxu0 0.0
        %3142 = vmatprep.subr.mxu0 0.0
        %3143 = vmatpush2.msra.mxu0 0.0
        %3144 = vmatprep.mubr.f32.mxu0 0.0
        %v3145 = vand.u32 %v3074, 4294901760
        %v3146 = vsub.f32 %v3074, %v3145
        %v3147 = vand.u32 %v3146, 4294901760
        %v3148 = vsub.f32 %v3146, %v3147
        %v3149 = vand.u32 %v3148, 4294901760
        %3150 = vmatmul.mubr.f32.gmra.mxu0 %v3149
        %v3151 = vpop.f32.mrf.mxu0
        %v3152 = vadd.f32 0.0, %v3151
        %v3153 = vpop.f32.mrf.mxu0
        %v3154 = vadd.f32 0.0, %v3153
        %3155 = vdwg.mxu0
        %3156 = vmatprep.subr.mxu0 0.0
        %3157 = vmatpush1.msra.mxu0 0.0
        %3158 = vmatprep.subr.mxu0 0.0
        %3159 = vmatpush1.msra.mxu0 0.0
        %3160 = vmatprep.subr.mxu0 0.0
        %3161 = vmatpush1.msra.mxu0 0.0
        %3162 = vmatprep.subr.mxu0 0.0
        %3163 = vmatpush1.msra.mxu0 0.0
        %3164 = vmatprep.subr.mxu0 0.0
        %3165 = vmatpush1.msra.mxu0 0.0
        %3166 = vmatprep.subr.mxu0 0.0
        %3167 = vmatpush1.msra.mxu0 0.0
        %3168 = vmatprep.subr.mxu0 0.0
        %3169 = vmatpush1.msra.mxu0 0.0
        %3170 = vmatprep.subr.mxu0 0.0
        %3171 = vmatpush1.msra.mxu0 0.0
        %3172 = vmatprep.subr.mxu0 0.0
        %3173 = vmatpush1.msra.mxu0 0.0
        %3174 = vmatprep.subr.mxu0 0.0
        %3175 = vmatpush1.msra.mxu0 0.0
        %3176 = vmatprep.subr.mxu0 0.0
        %3177 = vmatpush1.msra.mxu0 0.0
        %3178 = vmatprep.subr.mxu0 0.0
        %3179 = vmatpush1.msra.mxu0 0.0
        %3180 = vmatprep.subr.mxu0 0.0
        %3181 = vmatpush1.msra.mxu0 0.0
        %3182 = vmatprep.subr.mxu0 0.0
        %3183 = vmatpush1.msra.mxu0 0.0
        %v3184 = vand.u32 %v2578, 4294901760
        %v3185 = vsub.f32 %v2578, %v3184
        %v3186 = vand.u32 %v3185, 4294901760
        %v3187 = vsub.f32 %v3185, %v3186
        %v3188 = vand.u32 %v3187, 4294901760
        %3189 = vmatprep.subr.mxu0 %v3188
        %v3190 = vand.u32 %v2575, 4294901760
        %v3191 = vsub.f32 %v2575, %v3190
        %v3192 = vand.u32 %v3191, 4294901760
        %v3193 = vsub.f32 %v3191, %v3192
        %v3194 = vand.u32 %v3193, 4294901760
        %3195 = vmatpush1.msra.mxu0 %v3194
        %v3196 = vand.u32 %v2565, 4294901760
        %v3197 = vsub.f32 %v2565, %v3196
        %v3198 = vand.u32 %v3197, 4294901760
        %v3199 = vsub.f32 %v3197, %v3198
        %v3200 = vand.u32 %v3199, 4294901760
        %3201 = vmatprep.subr.mxu0 %v3200
        %v3202 = vand.u32 %v2564, 4294901760
        %v3203 = vsub.f32 %v2564, %v3202
        %v3204 = vand.u32 %v3203, 4294901760
        %v3205 = vsub.f32 %v3203, %v3204
        %v3206 = vand.u32 %v3205, 4294901760
        %3207 = vmatpush1.msra.mxu0 %v3206
        %3208 = vmatprep.subr.mxu0 0.0
        %3209 = vmatpush2.msra.mxu0 0.0
        %3210 = vmatprep.subr.mxu0 0.0
        %3211 = vmatpush2.msra.mxu0 0.0
        %3212 = vmatprep.subr.mxu0 0.0
        %3213 = vmatpush2.msra.mxu0 0.0
        %3214 = vmatprep.subr.mxu0 0.0
        %3215 = vmatpush2.msra.mxu0 0.0
        %3216 = vmatprep.subr.mxu0 0.0
        %3217 = vmatpush2.msra.mxu0 0.0
        %3218 = vmatprep.subr.mxu0 0.0
        %3219 = vmatpush2.msra.mxu0 0.0
        %3220 = vmatprep.subr.mxu0 0.0
        %3221 = vmatpush2.msra.mxu0 0.0
        %3222 = vmatprep.subr.mxu0 0.0
        %3223 = vmatpush2.msra.mxu0 0.0
        %3224 = vmatprep.subr.mxu0 0.0
        %3225 = vmatpush2.msra.mxu0 0.0
        %3226 = vmatprep.subr.mxu0 0.0
        %3227 = vmatpush2.msra.mxu0 0.0
        %3228 = vmatprep.subr.mxu0 0.0
        %3229 = vmatpush2.msra.mxu0 0.0
        %3230 = vmatprep.subr.mxu0 0.0
        %3231 = vmatpush2.msra.mxu0 0.0
        %3232 = vmatprep.subr.mxu0 0.0
        %3233 = vmatpush2.msra.mxu0 0.0
        %3234 = vmatprep.subr.mxu0 0.0
        %3235 = vmatpush2.msra.mxu0 0.0
        %3236 = vmatprep.subr.mxu0 0.0
        %3237 = vmatpush2.msra.mxu0 0.0
        %3238 = vmatprep.subr.mxu0 0.0
        %3239 = vmatpush2.msra.mxu0 0.0
        %3240 = vmatprep.mubr.f32.mxu0 0.0
        %v3241 = vand.u32 %v3074, 4294901760
        %3242 = vmatmul.mubr.f32.gmra.mxu0 %v3241
        %v3243 = vpop.f32.mrf.mxu0
        %v3244 = vadd.f32 %v3152, %v3243
        %v3245 = vpop.f32.mrf.mxu0
        %v3246 = vadd.f32 %v3154, %v3245
        %3247 = vdwg.mxu0
        %3248 = vmatprep.subr.mxu0 0.0
        %3249 = vmatpush1.msra.mxu0 0.0
        %3250 = vmatprep.subr.mxu0 0.0
        %3251 = vmatpush1.msra.mxu0 0.0
        %3252 = vmatprep.subr.mxu0 0.0
        %3253 = vmatpush1.msra.mxu0 0.0
        %3254 = vmatprep.subr.mxu0 0.0
        %3255 = vmatpush1.msra.mxu0 0.0
        %3256 = vmatprep.subr.mxu0 0.0
        %3257 = vmatpush1.msra.mxu0 0.0
        %3258 = vmatprep.subr.mxu0 0.0
        %3259 = vmatpush1.msra.mxu0 0.0
        %3260 = vmatprep.subr.mxu0 0.0
        %3261 = vmatpush1.msra.mxu0 0.0
        %3262 = vmatprep.subr.mxu0 0.0
        %3263 = vmatpush1.msra.mxu0 0.0
        %3264 = vmatprep.subr.mxu0 0.0
        %3265 = vmatpush1.msra.mxu0 0.0
        %3266 = vmatprep.subr.mxu0 0.0
        %3267 = vmatpush1.msra.mxu0 0.0
        %3268 = vmatprep.subr.mxu0 0.0
        %3269 = vmatpush1.msra.mxu0 0.0
        %3270 = vmatprep.subr.mxu0 0.0
        %3271 = vmatpush1.msra.mxu0 0.0
        %3272 = vmatprep.subr.mxu0 0.0
        %3273 = vmatpush1.msra.mxu0 0.0
        %3274 = vmatprep.subr.mxu0 0.0
        %3275 = vmatpush1.msra.mxu0 0.0
        %v3276 = vand.u32 %v2578, 4294901760
        %v3277 = vsub.f32 %v2578, %v3276
        %3278 = vmatprep.subr.mxu0 %v3277
        %v3279 = vand.u32 %v2575, 4294901760
        %v3280 = vsub.f32 %v2575, %v3279
        %3281 = vmatpush1.msra.mxu0 %v3280
        %v3282 = vand.u32 %v2565, 4294901760
        %v3283 = vsub.f32 %v2565, %v3282
        %3284 = vmatprep.subr.mxu0 %v3283
        %v3285 = vand.u32 %v2564, 4294901760
        %v3286 = vsub.f32 %v2564, %v3285
        %3287 = vmatpush1.msra.mxu0 %v3286
        %3288 = vmatprep.subr.mxu0 0.0
        %3289 = vmatpush2.msra.mxu0 0.0
        %3290 = vmatprep.subr.mxu0 0.0
        %3291 = vmatpush2.msra.mxu0 0.0
        %3292 = vmatprep.subr.mxu0 0.0
        %3293 = vmatpush2.msra.mxu0 0.0
        %3294 = vmatprep.subr.mxu0 0.0
        %3295 = vmatpush2.msra.mxu0 0.0
        %3296 = vmatprep.subr.mxu0 0.0
        %3297 = vmatpush2.msra.mxu0 0.0
        %3298 = vmatprep.subr.mxu0 0.0
        %3299 = vmatpush2.msra.mxu0 0.0
        %3300 = vmatprep.subr.mxu0 0.0
        %3301 = vmatpush2.msra.mxu0 0.0
        %3302 = vmatprep.subr.mxu0 0.0
        %3303 = vmatpush2.msra.mxu0 0.0
        %3304 = vmatprep.subr.mxu0 0.0
        %3305 = vmatpush2.msra.mxu0 0.0
        %3306 = vmatprep.subr.mxu0 0.0
        %3307 = vmatpush2.msra.mxu0 0.0
        %3308 = vmatprep.subr.mxu0 0.0
        %3309 = vmatpush2.msra.mxu0 0.0
        %3310 = vmatprep.subr.mxu0 0.0
        %3311 = vmatpush2.msra.mxu0 0.0
        %3312 = vmatprep.subr.mxu0 0.0
        %3313 = vmatpush2.msra.mxu0 0.0
        %3314 = vmatprep.subr.mxu0 0.0
        %3315 = vmatpush2.msra.mxu0 0.0
        %3316 = vmatprep.subr.mxu0 0.0
        %3317 = vmatpush2.msra.mxu0 0.0
        %3318 = vmatprep.subr.mxu0 0.0
        %3319 = vmatpush2.msra.mxu0 0.0
        %3320 = vmatprep.mubr.f32.mxu0 0.0
        %v3321 = vand.u32 %v3074, 4294901760
        %v3322 = vsub.f32 %v3074, %v3321
        %3323 = vmatmul.mubr.f32.gmra.mxu0 %v3322
        %v3324 = vpop.f32.mrf.mxu0
        %v3325 = vadd.f32 %v3244, %v3324
        %v3326 = vpop.f32.mrf.mxu0
        %v3327 = vadd.f32 %v3246, %v3326
        %3328 = vdwg.mxu0
        %3329 = vmatprep.subr.mxu0 0.0
        %3330 = vmatpush1.msra.mxu0 0.0
        %3331 = vmatprep.subr.mxu0 0.0
        %3332 = vmatpush1.msra.mxu0 0.0
        %3333 = vmatprep.subr.mxu0 0.0
        %3334 = vmatpush1.msra.mxu0 0.0
        %3335 = vmatprep.subr.mxu0 0.0
        %3336 = vmatpush1.msra.mxu0 0.0
        %3337 = vmatprep.subr.mxu0 0.0
        %3338 = vmatpush1.msra.mxu0 0.0
        %3339 = vmatprep.subr.mxu0 0.0
        %3340 = vmatpush1.msra.mxu0 0.0
        %3341 = vmatprep.subr.mxu0 0.0
        %3342 = vmatpush1.msra.mxu0 0.0
        %3343 = vmatprep.subr.mxu0 0.0
        %3344 = vmatpush1.msra.mxu0 0.0
        %3345 = vmatprep.subr.mxu0 0.0
        %3346 = vmatpush1.msra.mxu0 0.0
        %3347 = vmatprep.subr.mxu0 0.0
        %3348 = vmatpush1.msra.mxu0 0.0
        %3349 = vmatprep.subr.mxu0 0.0
        %3350 = vmatpush1.msra.mxu0 0.0
        %3351 = vmatprep.subr.mxu0 0.0
        %3352 = vmatpush1.msra.mxu0 0.0
        %3353 = vmatprep.subr.mxu0 0.0
        %3354 = vmatpush1.msra.mxu0 0.0
        %3355 = vmatprep.subr.mxu0 0.0
        %3356 = vmatpush1.msra.mxu0 0.0
        %v3357 = vand.u32 %v2578, 4294901760
        %3358 = vmatprep.subr.mxu0 %v3357
        %v3359 = vand.u32 %v2575, 4294901760
        %3360 = vmatpush1.msra.mxu0 %v3359
        %v3361 = vand.u32 %v2565, 4294901760
        %3362 = vmatprep.subr.mxu0 %v3361
        %v3363 = vand.u32 %v2564, 4294901760
        %3364 = vmatpush1.msra.mxu0 %v3363
        %3365 = vmatprep.subr.mxu0 0.0
        %3366 = vmatpush2.msra.mxu0 0.0
        %3367 = vmatprep.subr.mxu0 0.0
        %3368 = vmatpush2.msra.mxu0 0.0
        %3369 = vmatprep.subr.mxu0 0.0
        %3370 = vmatpush2.msra.mxu0 0.0
        %3371 = vmatprep.subr.mxu0 0.0
        %3372 = vmatpush2.msra.mxu0 0.0
        %3373 = vmatprep.subr.mxu0 0.0
        %3374 = vmatpush2.msra.mxu0 0.0
        %3375 = vmatprep.subr.mxu0 0.0
        %3376 = vmatpush2.msra.mxu0 0.0
        %3377 = vmatprep.subr.mxu0 0.0
        %3378 = vmatpush2.msra.mxu0 0.0
        %3379 = vmatprep.subr.mxu0 0.0
        %3380 = vmatpush2.msra.mxu0 0.0
        %3381 = vmatprep.subr.mxu0 0.0
        %3382 = vmatpush2.msra.mxu0 0.0
        %3383 = vmatprep.subr.mxu0 0.0
        %3384 = vmatpush2.msra.mxu0 0.0
        %3385 = vmatprep.subr.mxu0 0.0
        %3386 = vmatpush2.msra.mxu0 0.0
        %3387 = vmatprep.subr.mxu0 0.0
        %3388 = vmatpush2.msra.mxu0 0.0
        %3389 = vmatprep.subr.mxu0 0.0
        %3390 = vmatpush2.msra.mxu0 0.0
        %3391 = vmatprep.subr.mxu0 0.0
        %3392 = vmatpush2.msra.mxu0 0.0
        %3393 = vmatprep.subr.mxu0 0.0
        %3394 = vmatpush2.msra.mxu0 0.0
        %3395 = vmatprep.subr.mxu0 0.0
        %3396 = vmatpush2.msra.mxu0 0.0
        %3397 = vmatprep.mubr.f32.mxu0 0.0
        %v3398 = vand.u32 %v3074, 4294901760
        %v3399 = vsub.f32 %v3074, %v3398
        %v3400 = vand.u32 %v3399, 4294901760
        %3401 = vmatmul.mubr.f32.gmra.mxu0 %v3400
        %v3402 = vpop.f32.mrf.mxu0
        %v3403 = vadd.f32 %v3325, %v3402
        %v3404 = vpop.f32.mrf.mxu0
        %v3405 = vadd.f32 %v3327, %v3404
        %3406 = vdwg.mxu0
        %3407 = vmatprep.subr.mxu0 0.0
        %3408 = vmatpush1.msra.mxu0 0.0
        %3409 = vmatprep.subr.mxu0 0.0
        %3410 = vmatpush1.msra.mxu0 0.0
        %3411 = vmatprep.subr.mxu0 0.0
        %3412 = vmatpush1.msra.mxu0 0.0
        %3413 = vmatprep.subr.mxu0 0.0
        %3414 = vmatpush1.msra.mxu0 0.0
        %3415 = vmatprep.subr.mxu0 0.0
        %3416 = vmatpush1.msra.mxu0 0.0
        %3417 = vmatprep.subr.mxu0 0.0
        %3418 = vmatpush1.msra.mxu0 0.0
        %3419 = vmatprep.subr.mxu0 0.0
        %3420 = vmatpush1.msra.mxu0 0.0
        %3421 = vmatprep.subr.mxu0 0.0
        %3422 = vmatpush1.msra.mxu0 0.0
        %3423 = vmatprep.subr.mxu0 0.0
        %3424 = vmatpush1.msra.mxu0 0.0
        %3425 = vmatprep.subr.mxu0 0.0
        %3426 = vmatpush1.msra.mxu0 0.0
        %3427 = vmatprep.subr.mxu0 0.0
        %3428 = vmatpush1.msra.mxu0 0.0
        %3429 = vmatprep.subr.mxu0 0.0
        %3430 = vmatpush1.msra.mxu0 0.0
        %3431 = vmatprep.subr.mxu0 0.0
        %3432 = vmatpush1.msra.mxu0 0.0
        %3433 = vmatprep.subr.mxu0 0.0
        %3434 = vmatpush1.msra.mxu0 0.0
        %v3435 = vand.u32 %v2578, 4294901760
        %v3436 = vsub.f32 %v2578, %v3435
        %v3437 = vand.u32 %v3436, 4294901760
        %3438 = vmatprep.subr.mxu0 %v3437
        %v3439 = vand.u32 %v2575, 4294901760
        %v3440 = vsub.f32 %v2575, %v3439
        %v3441 = vand.u32 %v3440, 4294901760
        %3442 = vmatpush1.msra.mxu0 %v3441
        %v3443 = vand.u32 %v2565, 4294901760
        %v3444 = vsub.f32 %v2565, %v3443
        %v3445 = vand.u32 %v3444, 4294901760
        %3446 = vmatprep.subr.mxu0 %v3445
        %v3447 = vand.u32 %v2564, 4294901760
        %v3448 = vsub.f32 %v2564, %v3447
        %v3449 = vand.u32 %v3448, 4294901760
        %3450 = vmatpush1.msra.mxu0 %v3449
        %3451 = vmatprep.subr.mxu0 0.0
        %3452 = vmatpush2.msra.mxu0 0.0
        %3453 = vmatprep.subr.mxu0 0.0
        %3454 = vmatpush2.msra.mxu0 0.0
        %3455 = vmatprep.subr.mxu0 0.0
        %3456 = vmatpush2.msra.mxu0 0.0
        %3457 = vmatprep.subr.mxu0 0.0
        %3458 = vmatpush2.msra.mxu0 0.0
        %3459 = vmatprep.subr.mxu0 0.0
        %3460 = vmatpush2.msra.mxu0 0.0
        %3461 = vmatprep.subr.mxu0 0.0
        %3462 = vmatpush2.msra.mxu0 0.0
        %3463 = vmatprep.subr.mxu0 0.0
        %3464 = vmatpush2.msra.mxu0 0.0
        %3465 = vmatprep.subr.mxu0 0.0
        %3466 = vmatpush2.msra.mxu0 0.0
        %3467 = vmatprep.subr.mxu0 0.0
        %3468 = vmatpush2.msra.mxu0 0.0
        %3469 = vmatprep.subr.mxu0 0.0
        %3470 = vmatpush2.msra.mxu0 0.0
        %3471 = vmatprep.subr.mxu0 0.0
        %3472 = vmatpush2.msra.mxu0 0.0
        %3473 = vmatprep.subr.mxu0 0.0
        %3474 = vmatpush2.msra.mxu0 0.0
        %3475 = vmatprep.subr.mxu0 0.0
        %3476 = vmatpush2.msra.mxu0 0.0
        %3477 = vmatprep.subr.mxu0 0.0
        %3478 = vmatpush2.msra.mxu0 0.0
        %3479 = vmatprep.subr.mxu0 0.0
        %3480 = vmatpush2.msra.mxu0 0.0
        %3481 = vmatprep.subr.mxu0 0.0
        %3482 = vmatpush2.msra.mxu0 0.0
        %3483 = vmatprep.mubr.f32.mxu0 0.0
        %v3484 = vand.u32 %v3074, 4294901760
        %3485 = vmatmul.mubr.f32.gmra.mxu0 %v3484
        %v3486 = vpop.f32.mrf.mxu0
        %v3487 = vadd.f32 %v3403, %v3486
        %v3488 = vpop.f32.mrf.mxu0
        %v3489 = vadd.f32 %v3405, %v3488
        %3490 = vdwg.mxu0
        %3491 = vmatprep.subr.mxu0 0.0
        %3492 = vmatpush1.msra.mxu0 0.0
        %3493 = vmatprep.subr.mxu0 0.0
        %3494 = vmatpush1.msra.mxu0 0.0
        %3495 = vmatprep.subr.mxu0 0.0
        %3496 = vmatpush1.msra.mxu0 0.0
        %3497 = vmatprep.subr.mxu0 0.0
        %3498 = vmatpush1.msra.mxu0 0.0
        %3499 = vmatprep.subr.mxu0 0.0
        %3500 = vmatpush1.msra.mxu0 0.0
        %3501 = vmatprep.subr.mxu0 0.0
        %3502 = vmatpush1.msra.mxu0 0.0
        %3503 = vmatprep.subr.mxu0 0.0
        %3504 = vmatpush1.msra.mxu0 0.0
        %3505 = vmatprep.subr.mxu0 0.0
        %3506 = vmatpush1.msra.mxu0 0.0
        %3507 = vmatprep.subr.mxu0 0.0
        %3508 = vmatpush1.msra.mxu0 0.0
        %3509 = vmatprep.subr.mxu0 0.0
        %3510 = vmatpush1.msra.mxu0 0.0
        %3511 = vmatprep.subr.mxu0 0.0
        %3512 = vmatpush1.msra.mxu0 0.0
        %3513 = vmatprep.subr.mxu0 0.0
        %3514 = vmatpush1.msra.mxu0 0.0
        %3515 = vmatprep.subr.mxu0 0.0
        %3516 = vmatpush1.msra.mxu0 0.0
        %3517 = vmatprep.subr.mxu0 0.0
        %3518 = vmatpush1.msra.mxu0 0.0
        %v3519 = vand.u32 %v2578, 4294901760
        %3520 = vmatprep.subr.mxu0 %v3519
        %v3521 = vand.u32 %v2575, 4294901760
        %3522 = vmatpush1.msra.mxu0 %v3521
        %v3523 = vand.u32 %v2565, 4294901760
        %3524 = vmatprep.subr.mxu0 %v3523
        %v3525 = vand.u32 %v2564, 4294901760
        %3526 = vmatpush1.msra.mxu0 %v3525
        %3527 = vmatprep.subr.mxu0 0.0
        %3528 = vmatpush2.msra.mxu0 0.0
        %3529 = vmatprep.subr.mxu0 0.0
        %3530 = vmatpush2.msra.mxu0 0.0
        %3531 = vmatprep.subr.mxu0 0.0
        %3532 = vmatpush2.msra.mxu0 0.0
        %3533 = vmatprep.subr.mxu0 0.0
        %3534 = vmatpush2.msra.mxu0 0.0
        %3535 = vmatprep.subr.mxu0 0.0
        %3536 = vmatpush2.msra.mxu0 0.0
        %3537 = vmatprep.subr.mxu0 0.0
        %3538 = vmatpush2.msra.mxu0 0.0
        %3539 = vmatprep.subr.mxu0 0.0
        %3540 = vmatpush2.msra.mxu0 0.0
        %3541 = vmatprep.subr.mxu0 0.0
        %3542 = vmatpush2.msra.mxu0 0.0
        %3543 = vmatprep.subr.mxu0 0.0
        %3544 = vmatpush2.msra.mxu0 0.0
        %3545 = vmatprep.subr.mxu0 0.0
        %3546 = vmatpush2.msra.mxu0 0.0
        %3547 = vmatprep.subr.mxu0 0.0
        %3548 = vmatpush2.msra.mxu0 0.0
        %3549 = vmatprep.subr.mxu0 0.0
        %3550 = vmatpush2.msra.mxu0 0.0
        %3551 = vmatprep.subr.mxu0 0.0
        %3552 = vmatpush2.msra.mxu0 0.0
        %3553 = vmatprep.subr.mxu0 0.0
        %3554 = vmatpush2.msra.mxu0 0.0
        %3555 = vmatprep.subr.mxu0 0.0
        %3556 = vmatpush2.msra.mxu0 0.0
        %3557 = vmatprep.subr.mxu0 0.0
        %3558 = vmatpush2.msra.mxu0 0.0
        %3559 = vmatprep.mubr.f32.mxu0 0.0
        %v3560 = vand.u32 %v3074, 4294901760
        %3561 = vmatmul.mubr.f32.gmra.mxu0 %v3560
        %v3562 = vpop.f32.mrf.mxu0
        %v3563 = vadd.f32 %v3487, %v3562
        %v3564 = vpop.f32.mrf.mxu0
        %v3565 = vadd.f32 %v3489, %v3564
        %3566 = vdwg.mxu0
        %v3567 = vmax.f32 %v3067, %v3563
        %v3568 = vmax.f32 %v3069, %v3565
        %v3569 = vld [vmem:[%s5] sm:$0xff]
        %v3570 = vld [vmem:[%s5 + $0x8] sm:$0xff]
        %v3571 = vld [vmem:[%s5 + $0x10] sm:$0xff]
        %v3572 = vld [vmem:[%s5 + $0x18] sm:$0xff]
        %v3573 = vld [vmem:[%s5 + $0x20] sm:$0xff]
        %v3574 = vld [vmem:[%s5 + $0x28] sm:$0xff]
        %v3575 = vld [vmem:[%s5 + $0x30] sm:$0xff]
        %v3576 = vld [vmem:[%s5 + $0x38] sm:$0xff]
        %v3577 = vld [vmem:[%s5 + $0x40] sm:$0xff]
        %v3578 = vld [vmem:[%s5 + $0x48] sm:$0xff]
        %v3579 = vld [vmem:[%s5 + $0x50] sm:$0xff]
        %v3580 = vld [vmem:[%s5 + $0x58] sm:$0xff]
        %v3581 = vld [vmem:[%s5 + $0x60] sm:$0xff]
        %v3582 = vld [vmem:[%s5 + $0x68] sm:$0xff]
        %v3583 = vld [vmem:[%s5 + $0x70] sm:$0xff]
        %v3584 = vld [vmem:[%s5 + $0x78] sm:$0xff]
        %v3585 = vld [vmem:[%s5 + $0x80] sm:$0xff]
        %v3586 = vld [vmem:[%s5 + $0x88] sm:$0xf]
        %v3588 = vsel %vm2559, %v3568, 0
        %vm3590 = vcmask 1043456
        %v3592 = vsel %vm3590, %v3586, 0
        %3594 = vmatprep.subr.mxu0 0.0
        %v3595 = vand.u32 %v3584, 4294901760
        %3596 = vmatpush1.msra.mxu0 %v3595
        %3597 = vmatprep.subr.mxu0 0.0
        %v3598 = vand.u32 %v3583, 4294901760
        %3599 = vmatpush1.msra.mxu0 %v3598
        %3600 = vmatprep.subr.mxu0 0.0
        %v3601 = vand.u32 %v3582, 4294901760
        %3602 = vmatpush1.msra.mxu0 %v3601
        %3603 = vmatprep.subr.mxu0 0.0
        %v3604 = vand.u32 %v3581, 4294901760
        %3605 = vmatpush1.msra.mxu0 %v3604
        %3606 = vmatprep.subr.mxu0 0.0
        %v3607 = vand.u32 %v3580, 4294901760
        %3608 = vmatpush1.msra.mxu0 %v3607
        %3609 = vmatprep.subr.mxu0 0.0
        %v3610 = vand.u32 %v3579, 4294901760
        %3611 = vmatpush1.msra.mxu0 %v3610
        %3612 = vmatprep.subr.mxu0 0.0
        %v3613 = vand.u32 %v3578, 4294901760
        %3614 = vmatpush1.msra.mxu0 %v3613
        %3615 = vmatprep.subr.mxu0 0.0
        %v3616 = vand.u32 %v3577, 4294901760
        %3617 = vmatpush1.msra.mxu0 %v3616
        %3618 = vmatprep.subr.mxu0 0.0
        %v3619 = vand.u32 %v3576, 4294901760
        %3620 = vmatpush1.msra.mxu0 %v3619
        %3621 = vmatprep.subr.mxu0 0.0
        %v3622 = vand.u32 %v3575, 4294901760
        %3623 = vmatpush1.msra.mxu0 %v3622
        %3624 = vmatprep.subr.mxu0 0.0
        %v3625 = vand.u32 %v3574, 4294901760
        %3626 = vmatpush1.msra.mxu0 %v3625
        %3627 = vmatprep.subr.mxu0 0.0
        %v3628 = vand.u32 %v3573, 4294901760
        %3629 = vmatpush1.msra.mxu0 %v3628
        %3630 = vmatprep.subr.mxu0 0.0
        %v3631 = vand.u32 %v3572, 4294901760
        %3632 = vmatpush1.msra.mxu0 %v3631
        %3633 = vmatprep.subr.mxu0 0.0
        %v3634 = vand.u32 %v3571, 4294901760
        %3635 = vmatpush1.msra.mxu0 %v3634
        %3636 = vmatprep.subr.mxu0 0.0
        %v3637 = vand.u32 %v3570, 4294901760
        %3638 = vmatpush1.msra.mxu0 %v3637
        %3639 = vmatprep.subr.mxu0 0.0
        %v3640 = vand.u32 %v3569, 4294901760
        %3641 = vmatpush1.msra.mxu0 %v3640
        %3642 = vmatprep.subr.mxu0 0.0
        %3643 = vmatpush2.msra.mxu0 0.0
        %3644 = vmatprep.subr.mxu0 0.0
        %3645 = vmatpush2.msra.mxu0 0.0
        %3646 = vmatprep.subr.mxu0 0.0
        %3647 = vmatpush2.msra.mxu0 0.0
        %3648 = vmatprep.subr.mxu0 0.0
        %3649 = vmatpush2.msra.mxu0 0.0
        %3650 = vmatprep.subr.mxu0 0.0
        %3651 = vmatpush2.msra.mxu0 0.0
        %3652 = vmatprep.subr.mxu0 0.0
        %3653 = vmatpush2.msra.mxu0 0.0
        %3654 = vmatprep.subr.mxu0 0.0
        %3655 = vmatpush2.msra.mxu0 0.0
        %3656 = vmatprep.subr.mxu0 0.0
        %3657 = vmatpush2.msra.mxu0 0.0
        %3658 = vmatprep.subr.mxu0 0.0
        %3659 = vmatpush2.msra.mxu0 0.0
        %3660 = vmatprep.subr.mxu0 0.0
        %3661 = vmatpush2.msra.mxu0 0.0
        %3662 = vmatprep.subr.mxu0 0.0
        %3663 = vmatpush2.msra.mxu0 0.0
        %3664 = vmatprep.subr.mxu0 0.0
        %3665 = vmatpush2.msra.mxu0 0.0
        %3666 = vmatprep.subr.mxu0 0.0
        %3667 = vmatpush2.msra.mxu0 0.0
        %3668 = vmatprep.subr.mxu0 0.0
        %3669 = vmatpush2.msra.mxu0 0.0
        %3670 = vmatprep.subr.mxu0 0.0
        %v3671 = vand.u32 %v3592, 4294901760
        %3672 = vmatpush2.msra.mxu0 %v3671
        %3673 = vmatprep.subr.mxu0 0.0
        %v3674 = vand.u32 %v3585, 4294901760
        %3675 = vmatpush2.msra.mxu0 %v3674
        %v3676 = vand.u32 %v3588, 4294901760
        %v3677 = vsub.f32 %v3588, %v3676
        %v3678 = vand.u32 %v3677, 4294901760
        %v3679 = vsub.f32 %v3677, %v3678
        %v3680 = vand.u32 %v3679, 4294901760
        %3681 = vmatprep.mubr.f32.mxu0 %v3680
        %v3682 = vand.u32 %v3567, 4294901760
        %v3683 = vsub.f32 %v3567, %v3682
        %v3684 = vand.u32 %v3683, 4294901760
        %v3685 = vsub.f32 %v3683, %v3684
        %v3686 = vand.u32 %v3685, 4294901760
        %3687 = vmatmul.mubr.f32.gmra.mxu0 %v3686
        %v3688 = vpop.f32.mrf.mxu0
        %v3689 = vadd.f32 0.0, %v3688
        %v3690 = vpop.f32.mrf.mxu0
        %3691 = vdwg.mxu0
        %3692 = vmatprep.subr.mxu0 0.0
        %v3693 = vand.u32 %v3584, 4294901760
        %v3694 = vsub.f32 %v3584, %v3693
        %v3695 = vand.u32 %v3694, 4294901760
        %v3696 = vsub.f32 %v3694, %v3695
        %v3697 = vand.u32 %v3696, 4294901760
        %3698 = vmatpush1.msra.mxu0 %v3697
        %3699 = vmatprep.subr.mxu0 0.0
        %v3700 = vand.u32 %v3583, 4294901760
        %v3701 = vsub.f32 %v3583, %v3700
        %v3702 = vand.u32 %v3701, 4294901760
        %v3703 = vsub.f32 %v3701, %v3702
        %v3704 = vand.u32 %v3703, 4294901760
        %3705 = vmatpush1.msra.mxu0 %v3704
        %3706 = vmatprep.subr.mxu0 0.0
        %v3707 = vand.u32 %v3582, 4294901760
        %v3708 = vsub.f32 %v3582, %v3707
        %v3709 = vand.u32 %v3708, 4294901760
        %v3710 = vsub.f32 %v3708, %v3709
        %v3711 = vand.u32 %v3710, 4294901760
        %3712 = vmatpush1.msra.mxu0 %v3711
        %3713 = vmatprep.subr.mxu0 0.0
        %v3714 = vand.u32 %v3581, 4294901760
        %v3715 = vsub.f32 %v3581, %v3714
        %v3716 = vand.u32 %v3715, 4294901760
        %v3717 = vsub.f32 %v3715, %v3716
        %v3718 = vand.u32 %v3717, 4294901760
        %3719 = vmatpush1.msra.mxu0 %v3718
        %3720 = vmatprep.subr.mxu0 0.0
        %v3721 = vand.u32 %v3580, 4294901760
        %v3722 = vsub.f32 %v3580, %v3721
        %v3723 = vand.u32 %v3722, 4294901760
        %v3724 = vsub.f32 %v3722, %v3723
        %v3725 = vand.u32 %v3724, 4294901760
        %3726 = vmatpush1.msra.mxu0 %v3725
        %3727 = vmatprep.subr.mxu0 0.0
        %v3728 = vand.u32 %v3579, 4294901760
        %v3729 = vsub.f32 %v3579, %v3728
        %v3730 = vand.u32 %v3729, 4294901760
        %v3731 = vsub.f32 %v3729, %v3730
        %v3732 = vand.u32 %v3731, 4294901760
        %3733 = vmatpush1.msra.mxu0 %v3732
        %3734 = vmatprep.subr.mxu0 0.0
        %v3735 = vand.u32 %v3578, 4294901760
        %v3736 = vsub.f32 %v3578, %v3735
        %v3737 = vand.u32 %v3736, 4294901760
        %v3738 = vsub.f32 %v3736, %v3737
        %v3739 = vand.u32 %v3738, 4294901760
        %3740 = vmatpush1.msra.mxu0 %v3739
        %3741 = vmatprep.subr.mxu0 0.0
        %v3742 = vand.u32 %v3577, 4294901760
        %v3743 = vsub.f32 %v3577, %v3742
        %v3744 = vand.u32 %v3743, 4294901760
        %v3745 = vsub.f32 %v3743, %v3744
        %v3746 = vand.u32 %v3745, 4294901760
        %3747 = vmatpush1.msra.mxu0 %v3746
        %3748 = vmatprep.subr.mxu0 0.0
        %v3749 = vand.u32 %v3576, 4294901760
        %v3750 = vsub.f32 %v3576, %v3749
        %v3751 = vand.u32 %v3750, 4294901760
        %v3752 = vsub.f32 %v3750, %v3751
        %v3753 = vand.u32 %v3752, 4294901760
        %3754 = vmatpush1.msra.mxu0 %v3753
        %3755 = vmatprep.subr.mxu0 0.0
        %v3756 = vand.u32 %v3575, 4294901760
        %v3757 = vsub.f32 %v3575, %v3756
        %v3758 = vand.u32 %v3757, 4294901760
        %v3759 = vsub.f32 %v3757, %v3758
        %v3760 = vand.u32 %v3759, 4294901760
        %3761 = vmatpush1.msra.mxu0 %v3760
        %3762 = vmatprep.subr.mxu0 0.0
        %v3763 = vand.u32 %v3574, 4294901760
        %v3764 = vsub.f32 %v3574, %v3763
        %v3765 = vand.u32 %v3764, 4294901760
        %v3766 = vsub.f32 %v3764, %v3765
        %v3767 = vand.u32 %v3766, 4294901760
        %3768 = vmatpush1.msra.mxu0 %v3767
        %3769 = vmatprep.subr.mxu0 0.0
        %v3770 = vand.u32 %v3573, 4294901760
        %v3771 = vsub.f32 %v3573, %v3770
        %v3772 = vand.u32 %v3771, 4294901760
        %v3773 = vsub.f32 %v3771, %v3772
        %v3774 = vand.u32 %v3773, 4294901760
        %3775 = vmatpush1.msra.mxu0 %v3774
        %3776 = vmatprep.subr.mxu0 0.0
        %v3777 = vand.u32 %v3572, 4294901760
        %v3778 = vsub.f32 %v3572, %v3777
        %v3779 = vand.u32 %v3778, 4294901760
        %v3780 = vsub.f32 %v3778, %v3779
        %v3781 = vand.u32 %v3780, 4294901760
        %3782 = vmatpush1.msra.mxu0 %v3781
        %3783 = vmatprep.subr.mxu0 0.0
        %v3784 = vand.u32 %v3571, 4294901760
        %v3785 = vsub.f32 %v3571, %v3784
        %v3786 = vand.u32 %v3785, 4294901760
        %v3787 = vsub.f32 %v3785, %v3786
        %v3788 = vand.u32 %v3787, 4294901760
        %3789 = vmatpush1.msra.mxu0 %v3788
        %3790 = vmatprep.subr.mxu0 0.0
        %v3791 = vand.u32 %v3570, 4294901760
        %v3792 = vsub.f32 %v3570, %v3791
        %v3793 = vand.u32 %v3792, 4294901760
        %v3794 = vsub.f32 %v3792, %v3793
        %v3795 = vand.u32 %v3794, 4294901760
        %3796 = vmatpush1.msra.mxu0 %v3795
        %3797 = vmatprep.subr.mxu0 0.0
        %v3798 = vand.u32 %v3569, 4294901760
        %v3799 = vsub.f32 %v3569, %v3798
        %v3800 = vand.u32 %v3799, 4294901760
        %v3801 = vsub.f32 %v3799, %v3800
        %v3802 = vand.u32 %v3801, 4294901760
        %3803 = vmatpush1.msra.mxu0 %v3802
        %3804 = vmatprep.subr.mxu0 0.0
        %3805 = vmatpush2.msra.mxu0 0.0
        %3806 = vmatprep.subr.mxu0 0.0
        %3807 = vmatpush2.msra.mxu0 0.0
        %3808 = vmatprep.subr.mxu0 0.0
        %3809 = vmatpush2.msra.mxu0 0.0
        %3810 = vmatprep.subr.mxu0 0.0
        %3811 = vmatpush2.msra.mxu0 0.0
        %3812 = vmatprep.subr.mxu0 0.0
        %3813 = vmatpush2.msra.mxu0 0.0
        %3814 = vmatprep.subr.mxu0 0.0
        %3815 = vmatpush2.msra.mxu0 0.0
        %3816 = vmatprep.subr.mxu0 0.0
        %3817 = vmatpush2.msra.mxu0 0.0
        %3818 = vmatprep.subr.mxu0 0.0
        %3819 = vmatpush2.msra.mxu0 0.0
        %3820 = vmatprep.subr.mxu0 0.0
        %3821 = vmatpush2.msra.mxu0 0.0
        %3822 = vmatprep.subr.mxu0 0.0
        %3823 = vmatpush2.msra.mxu0 0.0
        %3824 = vmatprep.subr.mxu0 0.0
        %3825 = vmatpush2.msra.mxu0 0.0
        %3826 = vmatprep.subr.mxu0 0.0
        %3827 = vmatpush2.msra.mxu0 0.0
        %3828 = vmatprep.subr.mxu0 0.0
        %3829 = vmatpush2.msra.mxu0 0.0
        %3830 = vmatprep.subr.mxu0 0.0
        %3831 = vmatpush2.msra.mxu0 0.0
        %3832 = vmatprep.subr.mxu0 0.0
        %v3833 = vand.u32 %v3592, 4294901760
        %v3834 = vsub.f32 %v3592, %v3833
        %v3835 = vand.u32 %v3834, 4294901760
        %v3836 = vsub.f32 %v3834, %v3835
        %v3837 = vand.u32 %v3836, 4294901760
        %3838 = vmatpush2.msra.mxu0 %v3837
        %3839 = vmatprep.subr.mxu0 0.0
        %v3840 = vand.u32 %v3585, 4294901760
        %v3841 = vsub.f32 %v3585, %v3840
        %v3842 = vand.u32 %v3841, 4294901760
        %v3843 = vsub.f32 %v3841, %v3842
        %v3844 = vand.u32 %v3843, 4294901760
        %3845 = vmatpush2.msra.mxu0 %v3844
        %v3846 = vand.u32 %v3588, 4294901760
        %3847 = vmatprep.mubr.f32.mxu0 %v3846
        %v3848 = vand.u32 %v3567, 4294901760
        %3849 = vmatmul.mubr.f32.gmra.mxu0 %v3848
        %v3850 = vpop.f32.mrf.mxu0
        %v3851 = vadd.f32 %v3689, %v3850
        %v3852 = vpop.f32.mrf.mxu0
        %3853 = vdwg.mxu0
        %3854 = vmatprep.subr.mxu0 0.0
        %v3855 = vand.u32 %v3584, 4294901760
        %v3856 = vsub.f32 %v3584, %v3855
        %3857 = vmatpush1.msra.mxu0 %v3856
        %3858 = vmatprep.subr.mxu0 0.0
        %v3859 = vand.u32 %v3583, 4294901760
        %v3860 = vsub.f32 %v3583, %v3859
        %3861 = vmatpush1.msra.mxu0 %v3860
        %3862 = vmatprep.subr.mxu0 0.0
        %v3863 = vand.u32 %v3582, 4294901760
        %v3864 = vsub.f32 %v3582, %v3863
        %3865 = vmatpush1.msra.mxu0 %v3864
        %3866 = vmatprep.subr.mxu0 0.0
        %v3867 = vand.u32 %v3581, 4294901760
        %v3868 = vsub.f32 %v3581, %v3867
        %3869 = vmatpush1.msra.mxu0 %v3868
        %3870 = vmatprep.subr.mxu0 0.0
        %v3871 = vand.u32 %v3580, 4294901760
        %v3872 = vsub.f32 %v3580, %v3871
        %3873 = vmatpush1.msra.mxu0 %v3872
        %3874 = vmatprep.subr.mxu0 0.0
        %v3875 = vand.u32 %v3579, 4294901760
        %v3876 = vsub.f32 %v3579, %v3875
        %3877 = vmatpush1.msra.mxu0 %v3876
        %3878 = vmatprep.subr.mxu0 0.0
        %v3879 = vand.u32 %v3578, 4294901760
        %v3880 = vsub.f32 %v3578, %v3879
        %3881 = vmatpush1.msra.mxu0 %v3880
        %3882 = vmatprep.subr.mxu0 0.0
        %v3883 = vand.u32 %v3577, 4294901760
        %v3884 = vsub.f32 %v3577, %v3883
        %3885 = vmatpush1.msra.mxu0 %v3884
        %3886 = vmatprep.subr.mxu0 0.0
        %v3887 = vand.u32 %v3576, 4294901760
        %v3888 = vsub.f32 %v3576, %v3887
        %3889 = vmatpush1.msra.mxu0 %v3888
        %3890 = vmatprep.subr.mxu0 0.0
        %v3891 = vand.u32 %v3575, 4294901760
        %v3892 = vsub.f32 %v3575, %v3891
        %3893 = vmatpush1.msra.mxu0 %v3892
        %3894 = vmatprep.subr.mxu0 0.0
        %v3895 = vand.u32 %v3574, 4294901760
        %v3896 = vsub.f32 %v3574, %v3895
        %3897 = vmatpush1.msra.mxu0 %v3896
        %3898 = vmatprep.subr.mxu0 0.0
        %v3899 = vand.u32 %v3573, 4294901760
        %v3900 = vsub.f32 %v3573, %v3899
        %3901 = vmatpush1.msra.mxu0 %v3900
        %3902 = vmatprep.subr.mxu0 0.0
        %v3903 = vand.u32 %v3572, 4294901760
        %v3904 = vsub.f32 %v3572, %v3903
        %3905 = vmatpush1.msra.mxu0 %v3904
        %3906 = vmatprep.subr.mxu0 0.0
        %v3907 = vand.u32 %v3571, 4294901760
        %v3908 = vsub.f32 %v3571, %v3907
        %3909 = vmatpush1.msra.mxu0 %v3908
        %3910 = vmatprep.subr.mxu0 0.0
        %v3911 = vand.u32 %v3570, 4294901760
        %v3912 = vsub.f32 %v3570, %v3911
        %3913 = vmatpush1.msra.mxu0 %v3912
        %3914 = vmatprep.subr.mxu0 0.0
        %v3915 = vand.u32 %v3569, 4294901760
        %v3916 = vsub.f32 %v3569, %v3915
        %3917 = vmatpush1.msra.mxu0 %v3916
        %3918 = vmatprep.subr.mxu0 0.0
        %3919 = vmatpush2.msra.mxu0 0.0
        %3920 = vmatprep.subr.mxu0 0.0
        %3921 = vmatpush2.msra.mxu0 0.0
        %3922 = vmatprep.subr.mxu0 0.0
        %3923 = vmatpush2.msra.mxu0 0.0
        %3924 = vmatprep.subr.mxu0 0.0
        %3925 = vmatpush2.msra.mxu0 0.0
        %3926 = vmatprep.subr.mxu0 0.0
        %3927 = vmatpush2.msra.mxu0 0.0
        %3928 = vmatprep.subr.mxu0 0.0
        %3929 = vmatpush2.msra.mxu0 0.0
        %3930 = vmatprep.subr.mxu0 0.0
        %3931 = vmatpush2.msra.mxu0 0.0
        %3932 = vmatprep.subr.mxu0 0.0
        %3933 = vmatpush2.msra.mxu0 0.0
        %3934 = vmatprep.subr.mxu0 0.0
        %3935 = vmatpush2.msra.mxu0 0.0
        %3936 = vmatprep.subr.mxu0 0.0
        %3937 = vmatpush2.msra.mxu0 0.0
        %3938 = vmatprep.subr.mxu0 0.0
        %3939 = vmatpush2.msra.mxu0 0.0
        %3940 = vmatprep.subr.mxu0 0.0
        %3941 = vmatpush2.msra.mxu0 0.0
        %3942 = vmatprep.subr.mxu0 0.0
        %3943 = vmatpush2.msra.mxu0 0.0
        %3944 = vmatprep.subr.mxu0 0.0
        %3945 = vmatpush2.msra.mxu0 0.0
        %3946 = vmatprep.subr.mxu0 0.0
        %v3947 = vand.u32 %v3592, 4294901760
        %v3948 = vsub.f32 %v3592, %v3947
        %3949 = vmatpush2.msra.mxu0 %v3948
        %3950 = vmatprep.subr.mxu0 0.0
        %v3951 = vand.u32 %v3585, 4294901760
        %v3952 = vsub.f32 %v3585, %v3951
        %3953 = vmatpush2.msra.mxu0 %v3952
        %v3954 = vand.u32 %v3588, 4294901760
        %v3955 = vsub.f32 %v3588, %v3954
        %3956 = vmatprep.mubr.f32.mxu0 %v3955
        %v3957 = vand.u32 %v3567, 4294901760
        %v3958 = vsub.f32 %v3567, %v3957
        %3959 = vmatmul.mubr.f32.gmra.mxu0 %v3958
        %v3960 = vpop.f32.mrf.mxu0
        %v3961 = vadd.f32 %v3851, %v3960
        %v3962 = vpop.f32.mrf.mxu0
        %3963 = vdwg.mxu0
        %3964 = vmatprep.subr.mxu0 0.0
        %v3965 = vand.u32 %v3584, 4294901760
        %3966 = vmatpush1.msra.mxu0 %v3965
        %3967 = vmatprep.subr.mxu0 0.0
        %v3968 = vand.u32 %v3583, 4294901760
        %3969 = vmatpush1.msra.mxu0 %v3968
        %3970 = vmatprep.subr.mxu0 0.0
        %v3971 = vand.u32 %v3582, 4294901760
        %3972 = vmatpush1.msra.mxu0 %v3971
        %3973 = vmatprep.subr.mxu0 0.0
        %v3974 = vand.u32 %v3581, 4294901760
        %3975 = vmatpush1.msra.mxu0 %v3974
        %3976 = vmatprep.subr.mxu0 0.0
        %v3977 = vand.u32 %v3580, 4294901760
        %3978 = vmatpush1.msra.mxu0 %v3977
        %3979 = vmatprep.subr.mxu0 0.0
        %v3980 = vand.u32 %v3579, 4294901760
        %3981 = vmatpush1.msra.mxu0 %v3980
        %3982 = vmatprep.subr.mxu0 0.0
        %v3983 = vand.u32 %v3578, 4294901760
        %3984 = vmatpush1.msra.mxu0 %v3983
        %3985 = vmatprep.subr.mxu0 0.0
        %v3986 = vand.u32 %v3577, 4294901760
        %3987 = vmatpush1.msra.mxu0 %v3986
        %3988 = vmatprep.subr.mxu0 0.0
        %v3989 = vand.u32 %v3576, 4294901760
        %3990 = vmatpush1.msra.mxu0 %v3989
        %3991 = vmatprep.subr.mxu0 0.0
        %v3992 = vand.u32 %v3575, 4294901760
        %3993 = vmatpush1.msra.mxu0 %v3992
        %3994 = vmatprep.subr.mxu0 0.0
        %v3995 = vand.u32 %v3574, 4294901760
        %3996 = vmatpush1.msra.mxu0 %v3995
        %3997 = vmatprep.subr.mxu0 0.0
        %v3998 = vand.u32 %v3573, 4294901760
        %3999 = vmatpush1.msra.mxu0 %v3998
        %4000 = vmatprep.subr.mxu0 0.0
        %v4001 = vand.u32 %v3572, 4294901760
        %4002 = vmatpush1.msra.mxu0 %v4001
        %4003 = vmatprep.subr.mxu0 0.0
        %v4004 = vand.u32 %v3571, 4294901760
        %4005 = vmatpush1.msra.mxu0 %v4004
        %4006 = vmatprep.subr.mxu0 0.0
        %v4007 = vand.u32 %v3570, 4294901760
        %4008 = vmatpush1.msra.mxu0 %v4007
        %4009 = vmatprep.subr.mxu0 0.0
        %v4010 = vand.u32 %v3569, 4294901760
        %4011 = vmatpush1.msra.mxu0 %v4010
        %4012 = vmatprep.subr.mxu0 0.0
        %4013 = vmatpush2.msra.mxu0 0.0
        %4014 = vmatprep.subr.mxu0 0.0
        %4015 = vmatpush2.msra.mxu0 0.0
        %4016 = vmatprep.subr.mxu0 0.0
        %4017 = vmatpush2.msra.mxu0 0.0
        %4018 = vmatprep.subr.mxu0 0.0
        %4019 = vmatpush2.msra.mxu0 0.0
        %4020 = vmatprep.subr.mxu0 0.0
        %4021 = vmatpush2.msra.mxu0 0.0
        %4022 = vmatprep.subr.mxu0 0.0
        %4023 = vmatpush2.msra.mxu0 0.0
        %4024 = vmatprep.subr.mxu0 0.0
        %4025 = vmatpush2.msra.mxu0 0.0
        %4026 = vmatprep.subr.mxu0 0.0
        %4027 = vmatpush2.msra.mxu0 0.0
        %4028 = vmatprep.subr.mxu0 0.0
        %4029 = vmatpush2.msra.mxu0 0.0
        %4030 = vmatprep.subr.mxu0 0.0
        %4031 = vmatpush2.msra.mxu0 0.0
        %4032 = vmatprep.subr.mxu0 0.0
        %4033 = vmatpush2.msra.mxu0 0.0
        %4034 = vmatprep.subr.mxu0 0.0
        %4035 = vmatpush2.msra.mxu0 0.0
        %4036 = vmatprep.subr.mxu0 0.0
        %4037 = vmatpush2.msra.mxu0 0.0
        %4038 = vmatprep.subr.mxu0 0.0
        %4039 = vmatpush2.msra.mxu0 0.0
        %4040 = vmatprep.subr.mxu0 0.0
        %v4041 = vand.u32 %v3592, 4294901760
        %4042 = vmatpush2.msra.mxu0 %v4041
        %4043 = vmatprep.subr.mxu0 0.0
        %v4044 = vand.u32 %v3585, 4294901760
        %4045 = vmatpush2.msra.mxu0 %v4044
        %v4046 = vand.u32 %v3588, 4294901760
        %v4047 = vsub.f32 %v3588, %v4046
        %v4048 = vand.u32 %v4047, 4294901760
        %4049 = vmatprep.mubr.f32.mxu0 %v4048
        %v4050 = vand.u32 %v3567, 4294901760
        %v4051 = vsub.f32 %v3567, %v4050
        %v4052 = vand.u32 %v4051, 4294901760
        %4053 = vmatmul.mubr.f32.gmra.mxu0 %v4052
        %v4054 = vpop.f32.mrf.mxu0
        %v4055 = vadd.f32 %v3961, %v4054
        %v4056 = vpop.f32.mrf.mxu0
        %4057 = vdwg.mxu0
        %4058 = vmatprep.subr.mxu0 0.0
        %v4059 = vand.u32 %v3584, 4294901760
        %v4060 = vsub.f32 %v3584, %v4059
        %v4061 = vand.u32 %v4060, 4294901760
        %4062 = vmatpush1.msra.mxu0 %v4061
        %4063 = vmatprep.subr.mxu0 0.0
        %v4064 = vand.u32 %v3583, 4294901760
        %v4065 = vsub.f32 %v3583, %v4064
        %v4066 = vand.u32 %v4065, 4294901760
        %4067 = vmatpush1.msra.mxu0 %v4066
        %4068 = vmatprep.subr.mxu0 0.0
        %v4069 = vand.u32 %v3582, 4294901760
        %v4070 = vsub.f32 %v3582, %v4069
        %v4071 = vand.u32 %v4070, 4294901760
        %4072 = vmatpush1.msra.mxu0 %v4071
        %4073 = vmatprep.subr.mxu0 0.0
        %v4074 = vand.u32 %v3581, 4294901760
        %v4075 = vsub.f32 %v3581, %v4074
        %v4076 = vand.u32 %v4075, 4294901760
        %4077 = vmatpush1.msra.mxu0 %v4076
        %4078 = vmatprep.subr.mxu0 0.0
        %v4079 = vand.u32 %v3580, 4294901760
        %v4080 = vsub.f32 %v3580, %v4079
        %v4081 = vand.u32 %v4080, 4294901760
        %4082 = vmatpush1.msra.mxu0 %v4081
        %4083 = vmatprep.subr.mxu0 0.0
        %v4084 = vand.u32 %v3579, 4294901760
        %v4085 = vsub.f32 %v3579, %v4084
        %v4086 = vand.u32 %v4085, 4294901760
        %4087 = vmatpush1.msra.mxu0 %v4086
        %4088 = vmatprep.subr.mxu0 0.0
        %v4089 = vand.u32 %v3578, 4294901760
        %v4090 = vsub.f32 %v3578, %v4089
        %v4091 = vand.u32 %v4090, 4294901760
        %4092 = vmatpush1.msra.mxu0 %v4091
        %4093 = vmatprep.subr.mxu0 0.0
        %v4094 = vand.u32 %v3577, 4294901760
        %v4095 = vsub.f32 %v3577, %v4094
        %v4096 = vand.u32 %v4095, 4294901760
        %4097 = vmatpush1.msra.mxu0 %v4096
        %4098 = vmatprep.subr.mxu0 0.0
        %v4099 = vand.u32 %v3576, 4294901760
        %v4100 = vsub.f32 %v3576, %v4099
        %v4101 = vand.u32 %v4100, 4294901760
        %4102 = vmatpush1.msra.mxu0 %v4101
        %4103 = vmatprep.subr.mxu0 0.0
        %v4104 = vand.u32 %v3575, 4294901760
        %v4105 = vsub.f32 %v3575, %v4104
        %v4106 = vand.u32 %v4105, 4294901760
        %4107 = vmatpush1.msra.mxu0 %v4106
        %4108 = vmatprep.subr.mxu0 0.0
        %v4109 = vand.u32 %v3574, 4294901760
        %v4110 = vsub.f32 %v3574, %v4109
        %v4111 = vand.u32 %v4110, 4294901760
        %4112 = vmatpush1.msra.mxu0 %v4111
        %4113 = vmatprep.subr.mxu0 0.0
        %v4114 = vand.u32 %v3573, 4294901760
        %v4115 = vsub.f32 %v3573, %v4114
        %v4116 = vand.u32 %v4115, 4294901760
        %4117 = vmatpush1.msra.mxu0 %v4116
        %4118 = vmatprep.subr.mxu0 0.0
        %v4119 = vand.u32 %v3572, 4294901760
        %v4120 = vsub.f32 %v3572, %v4119
        %v4121 = vand.u32 %v4120, 4294901760
        %4122 = vmatpush1.msra.mxu0 %v4121
        %4123 = vmatprep.subr.mxu0 0.0
        %v4124 = vand.u32 %v3571, 4294901760
        %v4125 = vsub.f32 %v3571, %v4124
        %v4126 = vand.u32 %v4125, 4294901760
        %4127 = vmatpush1.msra.mxu0 %v4126
        %4128 = vmatprep.subr.mxu0 0.0
        %v4129 = vand.u32 %v3570, 4294901760
        %v4130 = vsub.f32 %v3570, %v4129
        %v4131 = vand.u32 %v4130, 4294901760
        %4132 = vmatpush1.msra.mxu0 %v4131
        %4133 = vmatprep.subr.mxu0 0.0
        %v4134 = vand.u32 %v3569, 4294901760
        %v4135 = vsub.f32 %v3569, %v4134
        %v4136 = vand.u32 %v4135, 4294901760
        %4137 = vmatpush1.msra.mxu0 %v4136
        %4138 = vmatprep.subr.mxu0 0.0
        %4139 = vmatpush2.msra.mxu0 0.0
        %4140 = vmatprep.subr.mxu0 0.0
        %4141 = vmatpush2.msra.mxu0 0.0
        %4142 = vmatprep.subr.mxu0 0.0
        %4143 = vmatpush2.msra.mxu0 0.0
        %4144 = vmatprep.subr.mxu0 0.0
        %4145 = vmatpush2.msra.mxu0 0.0
        %4146 = vmatprep.subr.mxu0 0.0
        %4147 = vmatpush2.msra.mxu0 0.0
        %4148 = vmatprep.subr.mxu0 0.0
        %4149 = vmatpush2.msra.mxu0 0.0
        %4150 = vmatprep.subr.mxu0 0.0
        %4151 = vmatpush2.msra.mxu0 0.0
        %4152 = vmatprep.subr.mxu0 0.0
        %4153 = vmatpush2.msra.mxu0 0.0
        %4154 = vmatprep.subr.mxu0 0.0
        %4155 = vmatpush2.msra.mxu0 0.0
        %4156 = vmatprep.subr.mxu0 0.0
        %4157 = vmatpush2.msra.mxu0 0.0
        %4158 = vmatprep.subr.mxu0 0.0
        %4159 = vmatpush2.msra.mxu0 0.0
        %4160 = vmatprep.subr.mxu0 0.0
        %4161 = vmatpush2.msra.mxu0 0.0
        %4162 = vmatprep.subr.mxu0 0.0
        %4163 = vmatpush2.msra.mxu0 0.0
        %4164 = vmatprep.subr.mxu0 0.0
        %4165 = vmatpush2.msra.mxu0 0.0
        %4166 = vmatprep.subr.mxu0 0.0
        %v4167 = vand.u32 %v3592, 4294901760
        %v4168 = vsub.f32 %v3592, %v4167
        %v4169 = vand.u32 %v4168, 4294901760
        %4170 = vmatpush2.msra.mxu0 %v4169
        %4171 = vmatprep.subr.mxu0 0.0
        %v4172 = vand.u32 %v3585, 4294901760
        %v4173 = vsub.f32 %v3585, %v4172
        %v4174 = vand.u32 %v4173, 4294901760
        %4175 = vmatpush2.msra.mxu0 %v4174
        %v4176 = vand.u32 %v3588, 4294901760
        %4177 = vmatprep.mubr.f32.mxu0 %v4176
        %v4178 = vand.u32 %v3567, 4294901760
        %4179 = vmatmul.mubr.f32.gmra.mxu0 %v4178
        %v4180 = vpop.f32.mrf.mxu0
        %v4181 = vadd.f32 %v4055, %v4180
        %v4182 = vpop.f32.mrf.mxu0
        %4183 = vdwg.mxu0
        %4184 = vmatprep.subr.mxu0 0.0
        %v4185 = vand.u32 %v3584, 4294901760
        %4186 = vmatpush1.msra.mxu0 %v4185
        %4187 = vmatprep.subr.mxu0 0.0
        %v4188 = vand.u32 %v3583, 4294901760
        %4189 = vmatpush1.msra.mxu0 %v4188
        %4190 = vmatprep.subr.mxu0 0.0
        %v4191 = vand.u32 %v3582, 4294901760
        %4192 = vmatpush1.msra.mxu0 %v4191
        %4193 = vmatprep.subr.mxu0 0.0
        %v4194 = vand.u32 %v3581, 4294901760
        %4195 = vmatpush1.msra.mxu0 %v4194
        %4196 = vmatprep.subr.mxu0 0.0
        %v4197 = vand.u32 %v3580, 4294901760
        %4198 = vmatpush1.msra.mxu0 %v4197
        %4199 = vmatprep.subr.mxu0 0.0
        %v4200 = vand.u32 %v3579, 4294901760
        %4201 = vmatpush1.msra.mxu0 %v4200
        %4202 = vmatprep.subr.mxu0 0.0
        %v4203 = vand.u32 %v3578, 4294901760
        %4204 = vmatpush1.msra.mxu0 %v4203
        %4205 = vmatprep.subr.mxu0 0.0
        %v4206 = vand.u32 %v3577, 4294901760
        %4207 = vmatpush1.msra.mxu0 %v4206
        %4208 = vmatprep.subr.mxu0 0.0
        %v4209 = vand.u32 %v3576, 4294901760
        %4210 = vmatpush1.msra.mxu0 %v4209
        %4211 = vmatprep.subr.mxu0 0.0
        %v4212 = vand.u32 %v3575, 4294901760
        %4213 = vmatpush1.msra.mxu0 %v4212
        %4214 = vmatprep.subr.mxu0 0.0
        %v4215 = vand.u32 %v3574, 4294901760
        %4216 = vmatpush1.msra.mxu0 %v4215
        %4217 = vmatprep.subr.mxu0 0.0
        %v4218 = vand.u32 %v3573, 4294901760
        %4219 = vmatpush1.msra.mxu0 %v4218
        %4220 = vmatprep.subr.mxu0 0.0
        %v4221 = vand.u32 %v3572, 4294901760
        %4222 = vmatpush1.msra.mxu0 %v4221
        %4223 = vmatprep.subr.mxu0 0.0
        %v4224 = vand.u32 %v3571, 4294901760
        %4225 = vmatpush1.msra.mxu0 %v4224
        %4226 = vmatprep.subr.mxu0 0.0
        %v4227 = vand.u32 %v3570, 4294901760
        %4228 = vmatpush1.msra.mxu0 %v4227
        %4229 = vmatprep.subr.mxu0 0.0
        %v4230 = vand.u32 %v3569, 4294901760
        %4231 = vmatpush1.msra.mxu0 %v4230
        %4232 = vmatprep.subr.mxu0 0.0
        %4233 = vmatpush2.msra.mxu0 0.0
        %4234 = vmatprep.subr.mxu0 0.0
        %4235 = vmatpush2.msra.mxu0 0.0
        %4236 = vmatprep.subr.mxu0 0.0
        %4237 = vmatpush2.msra.mxu0 0.0
        %4238 = vmatprep.subr.mxu0 0.0
        %4239 = vmatpush2.msra.mxu0 0.0
        %4240 = vmatprep.subr.mxu0 0.0
        %4241 = vmatpush2.msra.mxu0 0.0
        %4242 = vmatprep.subr.mxu0 0.0
        %4243 = vmatpush2.msra.mxu0 0.0
        %4244 = vmatprep.subr.mxu0 0.0
        %4245 = vmatpush2.msra.mxu0 0.0
        %4246 = vmatprep.subr.mxu0 0.0
        %4247 = vmatpush2.msra.mxu0 0.0
        %4248 = vmatprep.subr.mxu0 0.0
        %4249 = vmatpush2.msra.mxu0 0.0
        %4250 = vmatprep.subr.mxu0 0.0
        %4251 = vmatpush2.msra.mxu0 0.0
        %4252 = vmatprep.subr.mxu0 0.0
        %4253 = vmatpush2.msra.mxu0 0.0
        %4254 = vmatprep.subr.mxu0 0.0
        %4255 = vmatpush2.msra.mxu0 0.0
        %4256 = vmatprep.subr.mxu0 0.0
        %4257 = vmatpush2.msra.mxu0 0.0
        %4258 = vmatprep.subr.mxu0 0.0
        %4259 = vmatpush2.msra.mxu0 0.0
        %4260 = vmatprep.subr.mxu0 0.0
        %v4261 = vand.u32 %v3592, 4294901760
        %4262 = vmatpush2.msra.mxu0 %v4261
        %4263 = vmatprep.subr.mxu0 0.0
        %v4264 = vand.u32 %v3585, 4294901760
        %4265 = vmatpush2.msra.mxu0 %v4264
        %v4266 = vand.u32 %v3588, 4294901760
        %4267 = vmatprep.mubr.f32.mxu0 %v4266
        %v4268 = vand.u32 %v3567, 4294901760
        %4269 = vmatmul.mubr.f32.gmra.mxu0 %v4268
        %v4270 = vpop.f32.mrf.mxu0
        %v4271 = vadd.f32 %v4181, %v4270
        %v4272 = vpop.f32.mrf.mxu0
        %4273 = vdwg.mxu0
        %s4274 = scalar_lea.vmem %s5, 144
        %v4275 = vld [vmem:[%s4274] sm:$0xff]
        %v4276 = vld [vmem:[%s4274 + $0x8] sm:$0xff]
        %v4277 = vld [vmem:[%s4274 + $0x10] sm:$0xff]
        %v4278 = vld [vmem:[%s4274 + $0x18] sm:$0xff]
        %v4279 = vld [vmem:[%s4274 + $0x20] sm:$0xff]
        %v4280 = vld [vmem:[%s4274 + $0x28] sm:$0xff]
        %v4281 = vld [vmem:[%s4274 + $0x30] sm:$0xff]
        %v4282 = vld [vmem:[%s4274 + $0x38] sm:$0xff]
        %v4283 = vld [vmem:[%s4274 + $0x40] sm:$0xff]
        %v4284 = vld [vmem:[%s4274 + $0x48] sm:$0xff]
        %v4285 = vld [vmem:[%s4274 + $0x50] sm:$0xff]
        %v4286 = vld [vmem:[%s4274 + $0x58] sm:$0xff]
        %v4287 = vld [vmem:[%s4274 + $0x60] sm:$0xff]
        %v4288 = vld [vmem:[%s4274 + $0x68] sm:$0xff]
        %v4289 = vld [vmem:[%s4274 + $0x70] sm:$0xff]
        %v4290 = vld [vmem:[%s4274 + $0x78] sm:$0xff]
        %v4291 = vld [vmem:[%s4274 + $0x80] sm:$0xff]
        %v4292 = vld [vmem:[%s4274 + $0x88] sm:$0xf]
        %v4294 = vsel %vm3590, %v4292, 0
        %4296 = vmatprep.subr.mxu0 0.0
        %v4297 = vand.u32 %v4290, 4294901760
        %4298 = vmatpush1.msra.mxu0 %v4297
        %4299 = vmatprep.subr.mxu0 0.0
        %v4300 = vand.u32 %v4289, 4294901760
        %4301 = vmatpush1.msra.mxu0 %v4300
        %4302 = vmatprep.subr.mxu0 0.0
        %v4303 = vand.u32 %v4288, 4294901760
        %4304 = vmatpush1.msra.mxu0 %v4303
        %4305 = vmatprep.subr.mxu0 0.0
        %v4306 = vand.u32 %v4287, 4294901760
        %4307 = vmatpush1.msra.mxu0 %v4306
        %4308 = vmatprep.subr.mxu0 0.0
        %v4309 = vand.u32 %v4286, 4294901760
        %4310 = vmatpush1.msra.mxu0 %v4309
        %4311 = vmatprep.subr.mxu0 0.0
        %v4312 = vand.u32 %v4285, 4294901760
        %4313 = vmatpush1.msra.mxu0 %v4312
        %4314 = vmatprep.subr.mxu0 0.0
        %v4315 = vand.u32 %v4284, 4294901760
        %4316 = vmatpush1.msra.mxu0 %v4315
        %4317 = vmatprep.subr.mxu0 0.0
        %v4318 = vand.u32 %v4283, 4294901760
        %4319 = vmatpush1.msra.mxu0 %v4318
        %4320 = vmatprep.subr.mxu0 0.0
        %v4321 = vand.u32 %v4282, 4294901760
        %4322 = vmatpush1.msra.mxu0 %v4321
        %4323 = vmatprep.subr.mxu0 0.0
        %v4324 = vand.u32 %v4281, 4294901760
        %4325 = vmatpush1.msra.mxu0 %v4324
        %4326 = vmatprep.subr.mxu0 0.0
        %v4327 = vand.u32 %v4280, 4294901760
        %4328 = vmatpush1.msra.mxu0 %v4327
        %4329 = vmatprep.subr.mxu0 0.0
        %v4330 = vand.u32 %v4279, 4294901760
        %4331 = vmatpush1.msra.mxu0 %v4330
        %4332 = vmatprep.subr.mxu0 0.0
        %v4333 = vand.u32 %v4278, 4294901760
        %4334 = vmatpush1.msra.mxu0 %v4333
        %4335 = vmatprep.subr.mxu0 0.0
        %v4336 = vand.u32 %v4277, 4294901760
        %4337 = vmatpush1.msra.mxu0 %v4336
        %4338 = vmatprep.subr.mxu0 0.0
        %v4339 = vand.u32 %v4276, 4294901760
        %4340 = vmatpush1.msra.mxu0 %v4339
        %4341 = vmatprep.subr.mxu0 0.0
        %v4342 = vand.u32 %v4275, 4294901760
        %4343 = vmatpush1.msra.mxu0 %v4342
        %4344 = vmatprep.subr.mxu0 0.0
        %4345 = vmatpush2.msra.mxu0 0.0
        %4346 = vmatprep.subr.mxu0 0.0
        %4347 = vmatpush2.msra.mxu0 0.0
        %4348 = vmatprep.subr.mxu0 0.0
        %4349 = vmatpush2.msra.mxu0 0.0
        %4350 = vmatprep.subr.mxu0 0.0
        %4351 = vmatpush2.msra.mxu0 0.0
        %4352 = vmatprep.subr.mxu0 0.0
        %4353 = vmatpush2.msra.mxu0 0.0
        %4354 = vmatprep.subr.mxu0 0.0
        %4355 = vmatpush2.msra.mxu0 0.0
        %4356 = vmatprep.subr.mxu0 0.0
        %4357 = vmatpush2.msra.mxu0 0.0
        %4358 = vmatprep.subr.mxu0 0.0
        %4359 = vmatpush2.msra.mxu0 0.0
        %4360 = vmatprep.subr.mxu0 0.0
        %4361 = vmatpush2.msra.mxu0 0.0
        %4362 = vmatprep.subr.mxu0 0.0
        %4363 = vmatpush2.msra.mxu0 0.0
        %4364 = vmatprep.subr.mxu0 0.0
        %4365 = vmatpush2.msra.mxu0 0.0
        %4366 = vmatprep.subr.mxu0 0.0
        %4367 = vmatpush2.msra.mxu0 0.0
        %4368 = vmatprep.subr.mxu0 0.0
        %4369 = vmatpush2.msra.mxu0 0.0
        %4370 = vmatprep.subr.mxu0 0.0
        %4371 = vmatpush2.msra.mxu0 0.0
        %4372 = vmatprep.subr.mxu0 0.0
        %v4373 = vand.u32 %v4294, 4294901760
        %4374 = vmatpush2.msra.mxu0 %v4373
        %4375 = vmatprep.subr.mxu0 0.0
        %v4376 = vand.u32 %v4291, 4294901760
        %4377 = vmatpush2.msra.mxu0 %v4376
        %v4378 = vand.u32 %v3588, 4294901760
        %v4379 = vsub.f32 %v3588, %v4378
        %v4380 = vand.u32 %v4379, 4294901760
        %v4381 = vsub.f32 %v4379, %v4380
        %v4382 = vand.u32 %v4381, 4294901760
        %4383 = vmatprep.mubr.f32.mxu0 %v4382
        %v4384 = vand.u32 %v3567, 4294901760
        %v4385 = vsub.f32 %v3567, %v4384
        %v4386 = vand.u32 %v4385, 4294901760
        %v4387 = vsub.f32 %v4385, %v4386
        %v4388 = vand.u32 %v4387, 4294901760
        %4389 = vmatmul.mubr.f32.gmra.mxu0 %v4388
        %v4390 = vpop.f32.mrf.mxu0
        %v4391 = vadd.f32 0.0, %v4390
        %v4392 = vpop.f32.mrf.mxu0
        %4393 = vdwg.mxu0
        %4394 = vmatprep.subr.mxu0 0.0
        %v4395 = vand.u32 %v4290, 4294901760
        %v4396 = vsub.f32 %v4290, %v4395
        %v4397 = vand.u32 %v4396, 4294901760
        %v4398 = vsub.f32 %v4396, %v4397
        %v4399 = vand.u32 %v4398, 4294901760
        %4400 = vmatpush1.msra.mxu0 %v4399
        %4401 = vmatprep.subr.mxu0 0.0
        %v4402 = vand.u32 %v4289, 4294901760
        %v4403 = vsub.f32 %v4289, %v4402
        %v4404 = vand.u32 %v4403, 4294901760
        %v4405 = vsub.f32 %v4403, %v4404
        %v4406 = vand.u32 %v4405, 4294901760
        %4407 = vmatpush1.msra.mxu0 %v4406
        %4408 = vmatprep.subr.mxu0 0.0
        %v4409 = vand.u32 %v4288, 4294901760
        %v4410 = vsub.f32 %v4288, %v4409
        %v4411 = vand.u32 %v4410, 4294901760
        %v4412 = vsub.f32 %v4410, %v4411
        %v4413 = vand.u32 %v4412, 4294901760
        %4414 = vmatpush1.msra.mxu0 %v4413
        %4415 = vmatprep.subr.mxu0 0.0
        %v4416 = vand.u32 %v4287, 4294901760
        %v4417 = vsub.f32 %v4287, %v4416
        %v4418 = vand.u32 %v4417, 4294901760
        %v4419 = vsub.f32 %v4417, %v4418
        %v4420 = vand.u32 %v4419, 4294901760
        %4421 = vmatpush1.msra.mxu0 %v4420
        %4422 = vmatprep.subr.mxu0 0.0
        %v4423 = vand.u32 %v4286, 4294901760
        %v4424 = vsub.f32 %v4286, %v4423
        %v4425 = vand.u32 %v4424, 4294901760
        %v4426 = vsub.f32 %v4424, %v4425
        %v4427 = vand.u32 %v4426, 4294901760
        %4428 = vmatpush1.msra.mxu0 %v4427
        %4429 = vmatprep.subr.mxu0 0.0
        %v4430 = vand.u32 %v4285, 4294901760
        %v4431 = vsub.f32 %v4285, %v4430
        %v4432 = vand.u32 %v4431, 4294901760
        %v4433 = vsub.f32 %v4431, %v4432
        %v4434 = vand.u32 %v4433, 4294901760
        %4435 = vmatpush1.msra.mxu0 %v4434
        %4436 = vmatprep.subr.mxu0 0.0
        %v4437 = vand.u32 %v4284, 4294901760
        %v4438 = vsub.f32 %v4284, %v4437
        %v4439 = vand.u32 %v4438, 4294901760
        %v4440 = vsub.f32 %v4438, %v4439
        %v4441 = vand.u32 %v4440, 4294901760
        %4442 = vmatpush1.msra.mxu0 %v4441
        %4443 = vmatprep.subr.mxu0 0.0
        %v4444 = vand.u32 %v4283, 4294901760
        %v4445 = vsub.f32 %v4283, %v4444
        %v4446 = vand.u32 %v4445, 4294901760
        %v4447 = vsub.f32 %v4445, %v4446
        %v4448 = vand.u32 %v4447, 4294901760
        %4449 = vmatpush1.msra.mxu0 %v4448
        %4450 = vmatprep.subr.mxu0 0.0
        %v4451 = vand.u32 %v4282, 4294901760
        %v4452 = vsub.f32 %v4282, %v4451
        %v4453 = vand.u32 %v4452, 4294901760
        %v4454 = vsub.f32 %v4452, %v4453
        %v4455 = vand.u32 %v4454, 4294901760
        %4456 = vmatpush1.msra.mxu0 %v4455
        %4457 = vmatprep.subr.mxu0 0.0
        %v4458 = vand.u32 %v4281, 4294901760
        %v4459 = vsub.f32 %v4281, %v4458
        %v4460 = vand.u32 %v4459, 4294901760
        %v4461 = vsub.f32 %v4459, %v4460
        %v4462 = vand.u32 %v4461, 4294901760
        %4463 = vmatpush1.msra.mxu0 %v4462
        %4464 = vmatprep.subr.mxu0 0.0
        %v4465 = vand.u32 %v4280, 4294901760
        %v4466 = vsub.f32 %v4280, %v4465
        %v4467 = vand.u32 %v4466, 4294901760
        %v4468 = vsub.f32 %v4466, %v4467
        %v4469 = vand.u32 %v4468, 4294901760
        %4470 = vmatpush1.msra.mxu0 %v4469
        %4471 = vmatprep.subr.mxu0 0.0
        %v4472 = vand.u32 %v4279, 4294901760
        %v4473 = vsub.f32 %v4279, %v4472
        %v4474 = vand.u32 %v4473, 4294901760
        %v4475 = vsub.f32 %v4473, %v4474
        %v4476 = vand.u32 %v4475, 4294901760
        %4477 = vmatpush1.msra.mxu0 %v4476
        %4478 = vmatprep.subr.mxu0 0.0
        %v4479 = vand.u32 %v4278, 4294901760
        %v4480 = vsub.f32 %v4278, %v4479
        %v4481 = vand.u32 %v4480, 4294901760
        %v4482 = vsub.f32 %v4480, %v4481
        %v4483 = vand.u32 %v4482, 4294901760
        %4484 = vmatpush1.msra.mxu0 %v4483
        %4485 = vmatprep.subr.mxu0 0.0
        %v4486 = vand.u32 %v4277, 4294901760
        %v4487 = vsub.f32 %v4277, %v4486
        %v4488 = vand.u32 %v4487, 4294901760
        %v4489 = vsub.f32 %v4487, %v4488
        %v4490 = vand.u32 %v4489, 4294901760
        %4491 = vmatpush1.msra.mxu0 %v4490
        %4492 = vmatprep.subr.mxu0 0.0
        %v4493 = vand.u32 %v4276, 4294901760
        %v4494 = vsub.f32 %v4276, %v4493
        %v4495 = vand.u32 %v4494, 4294901760
        %v4496 = vsub.f32 %v4494, %v4495
        %v4497 = vand.u32 %v4496, 4294901760
        %4498 = vmatpush1.msra.mxu0 %v4497
        %4499 = vmatprep.subr.mxu0 0.0
        %v4500 = vand.u32 %v4275, 4294901760
        %v4501 = vsub.f32 %v4275, %v4500
        %v4502 = vand.u32 %v4501, 4294901760
        %v4503 = vsub.f32 %v4501, %v4502
        %v4504 = vand.u32 %v4503, 4294901760
        %4505 = vmatpush1.msra.mxu0 %v4504
        %4506 = vmatprep.subr.mxu0 0.0
        %4507 = vmatpush2.msra.mxu0 0.0
        %4508 = vmatprep.subr.mxu0 0.0
        %4509 = vmatpush2.msra.mxu0 0.0
        %4510 = vmatprep.subr.mxu0 0.0
        %4511 = vmatpush2.msra.mxu0 0.0
        %4512 = vmatprep.subr.mxu0 0.0
        %4513 = vmatpush2.msra.mxu0 0.0
        %4514 = vmatprep.subr.mxu0 0.0
        %4515 = vmatpush2.msra.mxu0 0.0
        %4516 = vmatprep.subr.mxu0 0.0
        %4517 = vmatpush2.msra.mxu0 0.0
        %4518 = vmatprep.subr.mxu0 0.0
        %4519 = vmatpush2.msra.mxu0 0.0
        %4520 = vmatprep.subr.mxu0 0.0
        %4521 = vmatpush2.msra.mxu0 0.0
        %4522 = vmatprep.subr.mxu0 0.0
        %4523 = vmatpush2.msra.mxu0 0.0
        %4524 = vmatprep.subr.mxu0 0.0
        %4525 = vmatpush2.msra.mxu0 0.0
        %4526 = vmatprep.subr.mxu0 0.0
        %4527 = vmatpush2.msra.mxu0 0.0
        %4528 = vmatprep.subr.mxu0 0.0
        %4529 = vmatpush2.msra.mxu0 0.0
        %4530 = vmatprep.subr.mxu0 0.0
        %4531 = vmatpush2.msra.mxu0 0.0
        %4532 = vmatprep.subr.mxu0 0.0
        %4533 = vmatpush2.msra.mxu0 0.0
        %4534 = vmatprep.subr.mxu0 0.0
        %v4535 = vand.u32 %v4294, 4294901760
        %v4536 = vsub.f32 %v4294, %v4535
        %v4537 = vand.u32 %v4536, 4294901760
        %v4538 = vsub.f32 %v4536, %v4537
        %v4539 = vand.u32 %v4538, 4294901760
        %4540 = vmatpush2.msra.mxu0 %v4539
        %4541 = vmatprep.subr.mxu0 0.0
        %v4542 = vand.u32 %v4291, 4294901760
        %v4543 = vsub.f32 %v4291, %v4542
        %v4544 = vand.u32 %v4543, 4294901760
        %v4545 = vsub.f32 %v4543, %v4544
        %v4546 = vand.u32 %v4545, 4294901760
        %4547 = vmatpush2.msra.mxu0 %v4546
        %v4548 = vand.u32 %v3588, 4294901760
        %4549 = vmatprep.mubr.f32.mxu0 %v4548
        %v4550 = vand.u32 %v3567, 4294901760
        %4551 = vmatmul.mubr.f32.gmra.mxu0 %v4550
        %v4552 = vpop.f32.mrf.mxu0
        %v4553 = vadd.f32 %v4391, %v4552
        %v4554 = vpop.f32.mrf.mxu0
        %4555 = vdwg.mxu0
        %4556 = vmatprep.subr.mxu0 0.0
        %v4557 = vand.u32 %v4290, 4294901760
        %v4558 = vsub.f32 %v4290, %v4557
        %4559 = vmatpush1.msra.mxu0 %v4558
        %4560 = vmatprep.subr.mxu0 0.0
        %v4561 = vand.u32 %v4289, 4294901760
        %v4562 = vsub.f32 %v4289, %v4561
        %4563 = vmatpush1.msra.mxu0 %v4562
        %4564 = vmatprep.subr.mxu0 0.0
        %v4565 = vand.u32 %v4288, 4294901760
        %v4566 = vsub.f32 %v4288, %v4565
        %4567 = vmatpush1.msra.mxu0 %v4566
        %4568 = vmatprep.subr.mxu0 0.0
        %v4569 = vand.u32 %v4287, 4294901760
        %v4570 = vsub.f32 %v4287, %v4569
        %4571 = vmatpush1.msra.mxu0 %v4570
        %4572 = vmatprep.subr.mxu0 0.0
        %v4573 = vand.u32 %v4286, 4294901760
        %v4574 = vsub.f32 %v4286, %v4573
        %4575 = vmatpush1.msra.mxu0 %v4574
        %4576 = vmatprep.subr.mxu0 0.0
        %v4577 = vand.u32 %v4285, 4294901760
        %v4578 = vsub.f32 %v4285, %v4577
        %4579 = vmatpush1.msra.mxu0 %v4578
        %4580 = vmatprep.subr.mxu0 0.0
        %v4581 = vand.u32 %v4284, 4294901760
        %v4582 = vsub.f32 %v4284, %v4581
        %4583 = vmatpush1.msra.mxu0 %v4582
        %4584 = vmatprep.subr.mxu0 0.0
        %v4585 = vand.u32 %v4283, 4294901760
        %v4586 = vsub.f32 %v4283, %v4585
        %4587 = vmatpush1.msra.mxu0 %v4586
        %4588 = vmatprep.subr.mxu0 0.0
        %v4589 = vand.u32 %v4282, 4294901760
        %v4590 = vsub.f32 %v4282, %v4589
        %4591 = vmatpush1.msra.mxu0 %v4590
        %4592 = vmatprep.subr.mxu0 0.0
        %v4593 = vand.u32 %v4281, 4294901760
        %v4594 = vsub.f32 %v4281, %v4593
        %4595 = vmatpush1.msra.mxu0 %v4594
        %4596 = vmatprep.subr.mxu0 0.0
        %v4597 = vand.u32 %v4280, 4294901760
        %v4598 = vsub.f32 %v4280, %v4597
        %4599 = vmatpush1.msra.mxu0 %v4598
        %4600 = vmatprep.subr.mxu0 0.0
        %v4601 = vand.u32 %v4279, 4294901760
        %v4602 = vsub.f32 %v4279, %v4601
        %4603 = vmatpush1.msra.mxu0 %v4602
        %4604 = vmatprep.subr.mxu0 0.0
        %v4605 = vand.u32 %v4278, 4294901760
        %v4606 = vsub.f32 %v4278, %v4605
        %4607 = vmatpush1.msra.mxu0 %v4606
        %4608 = vmatprep.subr.mxu0 0.0
        %v4609 = vand.u32 %v4277, 4294901760
        %v4610 = vsub.f32 %v4277, %v4609
        %4611 = vmatpush1.msra.mxu0 %v4610
        %4612 = vmatprep.subr.mxu0 0.0
        %v4613 = vand.u32 %v4276, 4294901760
        %v4614 = vsub.f32 %v4276, %v4613
        %4615 = vmatpush1.msra.mxu0 %v4614
        %4616 = vmatprep.subr.mxu0 0.0
        %v4617 = vand.u32 %v4275, 4294901760
        %v4618 = vsub.f32 %v4275, %v4617
        %4619 = vmatpush1.msra.mxu0 %v4618
        %4620 = vmatprep.subr.mxu0 0.0
        %4621 = vmatpush2.msra.mxu0 0.0
        %4622 = vmatprep.subr.mxu0 0.0
        %4623 = vmatpush2.msra.mxu0 0.0
        %4624 = vmatprep.subr.mxu0 0.0
        %4625 = vmatpush2.msra.mxu0 0.0
        %4626 = vmatprep.subr.mxu0 0.0
        %4627 = vmatpush2.msra.mxu0 0.0
        %4628 = vmatprep.subr.mxu0 0.0
        %4629 = vmatpush2.msra.mxu0 0.0
        %4630 = vmatprep.subr.mxu0 0.0
        %4631 = vmatpush2.msra.mxu0 0.0
        %4632 = vmatprep.subr.mxu0 0.0
        %4633 = vmatpush2.msra.mxu0 0.0
        %4634 = vmatprep.subr.mxu0 0.0
        %4635 = vmatpush2.msra.mxu0 0.0
        %4636 = vmatprep.subr.mxu0 0.0
        %4637 = vmatpush2.msra.mxu0 0.0
        %4638 = vmatprep.subr.mxu0 0.0
        %4639 = vmatpush2.msra.mxu0 0.0
        %4640 = vmatprep.subr.mxu0 0.0
        %4641 = vmatpush2.msra.mxu0 0.0
        %4642 = vmatprep.subr.mxu0 0.0
        %4643 = vmatpush2.msra.mxu0 0.0
        %4644 = vmatprep.subr.mxu0 0.0
        %4645 = vmatpush2.msra.mxu0 0.0
        %4646 = vmatprep.subr.mxu0 0.0
        %4647 = vmatpush2.msra.mxu0 0.0
        %4648 = vmatprep.subr.mxu0 0.0
        %v4649 = vand.u32 %v4294, 4294901760
        %v4650 = vsub.f32 %v4294, %v4649
        %4651 = vmatpush2.msra.mxu0 %v4650
        %4652 = vmatprep.subr.mxu0 0.0
        %v4653 = vand.u32 %v4291, 4294901760
        %v4654 = vsub.f32 %v4291, %v4653
        %4655 = vmatpush2.msra.mxu0 %v4654
        %v4656 = vand.u32 %v3588, 4294901760
        %v4657 = vsub.f32 %v3588, %v4656
        %4658 = vmatprep.mubr.f32.mxu0 %v4657
        %v4659 = vand.u32 %v3567, 4294901760
        %v4660 = vsub.f32 %v3567, %v4659
        %4661 = vmatmul.mubr.f32.gmra.mxu0 %v4660
        %v4662 = vpop.f32.mrf.mxu0
        %v4663 = vadd.f32 %v4553, %v4662
        %v4664 = vpop.f32.mrf.mxu0
        %4665 = vdwg.mxu0
        %4666 = vmatprep.subr.mxu0 0.0
        %v4667 = vand.u32 %v4290, 4294901760
        %4668 = vmatpush1.msra.mxu0 %v4667
        %4669 = vmatprep.subr.mxu0 0.0
        %v4670 = vand.u32 %v4289, 4294901760
        %4671 = vmatpush1.msra.mxu0 %v4670
        %4672 = vmatprep.subr.mxu0 0.0
        %v4673 = vand.u32 %v4288, 4294901760
        %4674 = vmatpush1.msra.mxu0 %v4673
        %4675 = vmatprep.subr.mxu0 0.0
        %v4676 = vand.u32 %v4287, 4294901760
        %4677 = vmatpush1.msra.mxu0 %v4676
        %4678 = vmatprep.subr.mxu0 0.0
        %v4679 = vand.u32 %v4286, 4294901760
        %4680 = vmatpush1.msra.mxu0 %v4679
        %4681 = vmatprep.subr.mxu0 0.0
        %v4682 = vand.u32 %v4285, 4294901760
        %4683 = vmatpush1.msra.mxu0 %v4682
        %4684 = vmatprep.subr.mxu0 0.0
        %v4685 = vand.u32 %v4284, 4294901760
        %4686 = vmatpush1.msra.mxu0 %v4685
        %4687 = vmatprep.subr.mxu0 0.0
        %v4688 = vand.u32 %v4283, 4294901760
        %4689 = vmatpush1.msra.mxu0 %v4688
        %4690 = vmatprep.subr.mxu0 0.0
        %v4691 = vand.u32 %v4282, 4294901760
        %4692 = vmatpush1.msra.mxu0 %v4691
        %4693 = vmatprep.subr.mxu0 0.0
        %v4694 = vand.u32 %v4281, 4294901760
        %4695 = vmatpush1.msra.mxu0 %v4694
        %4696 = vmatprep.subr.mxu0 0.0
        %v4697 = vand.u32 %v4280, 4294901760
        %4698 = vmatpush1.msra.mxu0 %v4697
        %4699 = vmatprep.subr.mxu0 0.0
        %v4700 = vand.u32 %v4279, 4294901760
        %4701 = vmatpush1.msra.mxu0 %v4700
        %4702 = vmatprep.subr.mxu0 0.0
        %v4703 = vand.u32 %v4278, 4294901760
        %4704 = vmatpush1.msra.mxu0 %v4703
        %4705 = vmatprep.subr.mxu0 0.0
        %v4706 = vand.u32 %v4277, 4294901760
        %4707 = vmatpush1.msra.mxu0 %v4706
        %4708 = vmatprep.subr.mxu0 0.0
        %v4709 = vand.u32 %v4276, 4294901760
        %4710 = vmatpush1.msra.mxu0 %v4709
        %4711 = vmatprep.subr.mxu0 0.0
        %v4712 = vand.u32 %v4275, 4294901760
        %4713 = vmatpush1.msra.mxu0 %v4712
        %4714 = vmatprep.subr.mxu0 0.0
        %4715 = vmatpush2.msra.mxu0 0.0
        %4716 = vmatprep.subr.mxu0 0.0
        %4717 = vmatpush2.msra.mxu0 0.0
        %4718 = vmatprep.subr.mxu0 0.0
        %4719 = vmatpush2.msra.mxu0 0.0
        %4720 = vmatprep.subr.mxu0 0.0
        %4721 = vmatpush2.msra.mxu0 0.0
        %4722 = vmatprep.subr.mxu0 0.0
        %4723 = vmatpush2.msra.mxu0 0.0
        %4724 = vmatprep.subr.mxu0 0.0
        %4725 = vmatpush2.msra.mxu0 0.0
        %4726 = vmatprep.subr.mxu0 0.0
        %4727 = vmatpush2.msra.mxu0 0.0
        %4728 = vmatprep.subr.mxu0 0.0
        %4729 = vmatpush2.msra.mxu0 0.0
        %4730 = vmatprep.subr.mxu0 0.0
        %4731 = vmatpush2.msra.mxu0 0.0
        %4732 = vmatprep.subr.mxu0 0.0
        %4733 = vmatpush2.msra.mxu0 0.0
        %4734 = vmatprep.subr.mxu0 0.0
        %4735 = vmatpush2.msra.mxu0 0.0
        %4736 = vmatprep.subr.mxu0 0.0
        %4737 = vmatpush2.msra.mxu0 0.0
        %4738 = vmatprep.subr.mxu0 0.0
        %4739 = vmatpush2.msra.mxu0 0.0
        %4740 = vmatprep.subr.mxu0 0.0
        %4741 = vmatpush2.msra.mxu0 0.0
        %4742 = vmatprep.subr.mxu0 0.0
        %v4743 = vand.u32 %v4294, 4294901760
        %4744 = vmatpush2.msra.mxu0 %v4743
        %4745 = vmatprep.subr.mxu0 0.0
        %v4746 = vand.u32 %v4291, 4294901760
        %4747 = vmatpush2.msra.mxu0 %v4746
        %v4748 = vand.u32 %v3588, 4294901760
        %v4749 = vsub.f32 %v3588, %v4748
        %v4750 = vand.u32 %v4749, 4294901760
        %4751 = vmatprep.mubr.f32.mxu0 %v4750
        %v4752 = vand.u32 %v3567, 4294901760
        %v4753 = vsub.f32 %v3567, %v4752
        %v4754 = vand.u32 %v4753, 4294901760
        %4755 = vmatmul.mubr.f32.gmra.mxu0 %v4754
        %v4756 = vpop.f32.mrf.mxu0
        %v4757 = vadd.f32 %v4663, %v4756
        %v4758 = vpop.f32.mrf.mxu0
        %4759 = vdwg.mxu0
        %4760 = vmatprep.subr.mxu0 0.0
        %v4761 = vand.u32 %v4290, 4294901760
        %v4762 = vsub.f32 %v4290, %v4761
        %v4763 = vand.u32 %v4762, 4294901760
        %4764 = vmatpush1.msra.mxu0 %v4763
        %4765 = vmatprep.subr.mxu0 0.0
        %v4766 = vand.u32 %v4289, 4294901760
        %v4767 = vsub.f32 %v4289, %v4766
        %v4768 = vand.u32 %v4767, 4294901760
        %4769 = vmatpush1.msra.mxu0 %v4768
        %4770 = vmatprep.subr.mxu0 0.0
        %v4771 = vand.u32 %v4288, 4294901760
        %v4772 = vsub.f32 %v4288, %v4771
        %v4773 = vand.u32 %v4772, 4294901760
        %4774 = vmatpush1.msra.mxu0 %v4773
        %4775 = vmatprep.subr.mxu0 0.0
        %v4776 = vand.u32 %v4287, 4294901760
        %v4777 = vsub.f32 %v4287, %v4776
        %v4778 = vand.u32 %v4777, 4294901760
        %4779 = vmatpush1.msra.mxu0 %v4778
        %4780 = vmatprep.subr.mxu0 0.0
        %v4781 = vand.u32 %v4286, 4294901760
        %v4782 = vsub.f32 %v4286, %v4781
        %v4783 = vand.u32 %v4782, 4294901760
        %4784 = vmatpush1.msra.mxu0 %v4783
        %4785 = vmatprep.subr.mxu0 0.0
        %v4786 = vand.u32 %v4285, 4294901760
        %v4787 = vsub.f32 %v4285, %v4786
        %v4788 = vand.u32 %v4787, 4294901760
        %4789 = vmatpush1.msra.mxu0 %v4788
        %4790 = vmatprep.subr.mxu0 0.0
        %v4791 = vand.u32 %v4284, 4294901760
        %v4792 = vsub.f32 %v4284, %v4791
        %v4793 = vand.u32 %v4792, 4294901760
        %4794 = vmatpush1.msra.mxu0 %v4793
        %4795 = vmatprep.subr.mxu0 0.0
        %v4796 = vand.u32 %v4283, 4294901760
        %v4797 = vsub.f32 %v4283, %v4796
        %v4798 = vand.u32 %v4797, 4294901760
        %4799 = vmatpush1.msra.mxu0 %v4798
        %4800 = vmatprep.subr.mxu0 0.0
        %v4801 = vand.u32 %v4282, 4294901760
        %v4802 = vsub.f32 %v4282, %v4801
        %v4803 = vand.u32 %v4802, 4294901760
        %4804 = vmatpush1.msra.mxu0 %v4803
        %4805 = vmatprep.subr.mxu0 0.0
        %v4806 = vand.u32 %v4281, 4294901760
        %v4807 = vsub.f32 %v4281, %v4806
        %v4808 = vand.u32 %v4807, 4294901760
        %4809 = vmatpush1.msra.mxu0 %v4808
        %4810 = vmatprep.subr.mxu0 0.0
        %v4811 = vand.u32 %v4280, 4294901760
        %v4812 = vsub.f32 %v4280, %v4811
        %v4813 = vand.u32 %v4812, 4294901760
        %4814 = vmatpush1.msra.mxu0 %v4813
        %4815 = vmatprep.subr.mxu0 0.0
        %v4816 = vand.u32 %v4279, 4294901760
        %v4817 = vsub.f32 %v4279, %v4816
        %v4818 = vand.u32 %v4817, 4294901760
        %4819 = vmatpush1.msra.mxu0 %v4818
        %4820 = vmatprep.subr.mxu0 0.0
        %v4821 = vand.u32 %v4278, 4294901760
        %v4822 = vsub.f32 %v4278, %v4821
        %v4823 = vand.u32 %v4822, 4294901760
        %4824 = vmatpush1.msra.mxu0 %v4823
        %4825 = vmatprep.subr.mxu0 0.0
        %v4826 = vand.u32 %v4277, 4294901760
        %v4827 = vsub.f32 %v4277, %v4826
        %v4828 = vand.u32 %v4827, 4294901760
        %4829 = vmatpush1.msra.mxu0 %v4828
        %4830 = vmatprep.subr.mxu0 0.0
        %v4831 = vand.u32 %v4276, 4294901760
        %v4832 = vsub.f32 %v4276, %v4831
        %v4833 = vand.u32 %v4832, 4294901760
        %4834 = vmatpush1.msra.mxu0 %v4833
        %4835 = vmatprep.subr.mxu0 0.0
        %v4836 = vand.u32 %v4275, 4294901760
        %v4837 = vsub.f32 %v4275, %v4836
        %v4838 = vand.u32 %v4837, 4294901760
        %4839 = vmatpush1.msra.mxu0 %v4838
        %4840 = vmatprep.subr.mxu0 0.0
        %4841 = vmatpush2.msra.mxu0 0.0
        %4842 = vmatprep.subr.mxu0 0.0
        %4843 = vmatpush2.msra.mxu0 0.0
        %4844 = vmatprep.subr.mxu0 0.0
        %4845 = vmatpush2.msra.mxu0 0.0
        %4846 = vmatprep.subr.mxu0 0.0
        %4847 = vmatpush2.msra.mxu0 0.0
        %4848 = vmatprep.subr.mxu0 0.0
        %4849 = vmatpush2.msra.mxu0 0.0
        %4850 = vmatprep.subr.mxu0 0.0
        %4851 = vmatpush2.msra.mxu0 0.0
        %4852 = vmatprep.subr.mxu0 0.0
        %4853 = vmatpush2.msra.mxu0 0.0
        %4854 = vmatprep.subr.mxu0 0.0
        %4855 = vmatpush2.msra.mxu0 0.0
        %4856 = vmatprep.subr.mxu0 0.0
        %4857 = vmatpush2.msra.mxu0 0.0
        %4858 = vmatprep.subr.mxu0 0.0
        %4859 = vmatpush2.msra.mxu0 0.0
        %4860 = vmatprep.subr.mxu0 0.0
        %4861 = vmatpush2.msra.mxu0 0.0
        %4862 = vmatprep.subr.mxu0 0.0
        %4863 = vmatpush2.msra.mxu0 0.0
        %4864 = vmatprep.subr.mxu0 0.0
        %4865 = vmatpush2.msra.mxu0 0.0
        %4866 = vmatprep.subr.mxu0 0.0
        %4867 = vmatpush2.msra.mxu0 0.0
        %4868 = vmatprep.subr.mxu0 0.0
        %v4869 = vand.u32 %v4294, 4294901760
        %v4870 = vsub.f32 %v4294, %v4869
        %v4871 = vand.u32 %v4870, 4294901760
        %4872 = vmatpush2.msra.mxu0 %v4871
        %4873 = vmatprep.subr.mxu0 0.0
        %v4874 = vand.u32 %v4291, 4294901760
        %v4875 = vsub.f32 %v4291, %v4874
        %v4876 = vand.u32 %v4875, 4294901760
        %4877 = vmatpush2.msra.mxu0 %v4876
        %v4878 = vand.u32 %v3588, 4294901760
        %4879 = vmatprep.mubr.f32.mxu0 %v4878
        %v4880 = vand.u32 %v3567, 4294901760
        %4881 = vmatmul.mubr.f32.gmra.mxu0 %v4880
        %v4882 = vpop.f32.mrf.mxu0
        %v4883 = vadd.f32 %v4757, %v4882
        %v4884 = vpop.f32.mrf.mxu0
        %4885 = vdwg.mxu0
        %4886 = vmatprep.subr.mxu0 0.0
        %v4887 = vand.u32 %v4290, 4294901760
        %4888 = vmatpush1.msra.mxu0 %v4887
        %4889 = vmatprep.subr.mxu0 0.0
        %v4890 = vand.u32 %v4289, 4294901760
        %4891 = vmatpush1.msra.mxu0 %v4890
        %4892 = vmatprep.subr.mxu0 0.0
        %v4893 = vand.u32 %v4288, 4294901760
        %4894 = vmatpush1.msra.mxu0 %v4893
        %4895 = vmatprep.subr.mxu0 0.0
        %v4896 = vand.u32 %v4287, 4294901760
        %4897 = vmatpush1.msra.mxu0 %v4896
        %4898 = vmatprep.subr.mxu0 0.0
        %v4899 = vand.u32 %v4286, 4294901760
        %4900 = vmatpush1.msra.mxu0 %v4899
        %4901 = vmatprep.subr.mxu0 0.0
        %v4902 = vand.u32 %v4285, 4294901760
        %4903 = vmatpush1.msra.mxu0 %v4902
        %4904 = vmatprep.subr.mxu0 0.0
        %v4905 = vand.u32 %v4284, 4294901760
        %4906 = vmatpush1.msra.mxu0 %v4905
        %4907 = vmatprep.subr.mxu0 0.0
        %v4908 = vand.u32 %v4283, 4294901760
        %4909 = vmatpush1.msra.mxu0 %v4908
        %4910 = vmatprep.subr.mxu0 0.0
        %v4911 = vand.u32 %v4282, 4294901760
        %4912 = vmatpush1.msra.mxu0 %v4911
        %4913 = vmatprep.subr.mxu0 0.0
        %v4914 = vand.u32 %v4281, 4294901760
        %4915 = vmatpush1.msra.mxu0 %v4914
        %4916 = vmatprep.subr.mxu0 0.0
        %v4917 = vand.u32 %v4280, 4294901760
        %4918 = vmatpush1.msra.mxu0 %v4917
        %4919 = vmatprep.subr.mxu0 0.0
        %v4920 = vand.u32 %v4279, 4294901760
        %4921 = vmatpush1.msra.mxu0 %v4920
        %4922 = vmatprep.subr.mxu0 0.0
        %v4923 = vand.u32 %v4278, 4294901760
        %4924 = vmatpush1.msra.mxu0 %v4923
        %4925 = vmatprep.subr.mxu0 0.0
        %v4926 = vand.u32 %v4277, 4294901760
        %4927 = vmatpush1.msra.mxu0 %v4926
        %4928 = vmatprep.subr.mxu0 0.0
        %v4929 = vand.u32 %v4276, 4294901760
        %4930 = vmatpush1.msra.mxu0 %v4929
        %4931 = vmatprep.subr.mxu0 0.0
        %v4932 = vand.u32 %v4275, 4294901760
        %4933 = vmatpush1.msra.mxu0 %v4932
        %4934 = vmatprep.subr.mxu0 0.0
        %4935 = vmatpush2.msra.mxu0 0.0
        %4936 = vmatprep.subr.mxu0 0.0
        %4937 = vmatpush2.msra.mxu0 0.0
        %4938 = vmatprep.subr.mxu0 0.0
        %4939 = vmatpush2.msra.mxu0 0.0
        %4940 = vmatprep.subr.mxu0 0.0
        %4941 = vmatpush2.msra.mxu0 0.0
        %4942 = vmatprep.subr.mxu0 0.0
        %4943 = vmatpush2.msra.mxu0 0.0
        %4944 = vmatprep.subr.mxu0 0.0
        %4945 = vmatpush2.msra.mxu0 0.0
        %4946 = vmatprep.subr.mxu0 0.0
        %4947 = vmatpush2.msra.mxu0 0.0
        %4948 = vmatprep.subr.mxu0 0.0
        %4949 = vmatpush2.msra.mxu0 0.0
        %4950 = vmatprep.subr.mxu0 0.0
        %4951 = vmatpush2.msra.mxu0 0.0
        %4952 = vmatprep.subr.mxu0 0.0
        %4953 = vmatpush2.msra.mxu0 0.0
        %4954 = vmatprep.subr.mxu0 0.0
        %4955 = vmatpush2.msra.mxu0 0.0
        %4956 = vmatprep.subr.mxu0 0.0
        %4957 = vmatpush2.msra.mxu0 0.0
        %4958 = vmatprep.subr.mxu0 0.0
        %4959 = vmatpush2.msra.mxu0 0.0
        %4960 = vmatprep.subr.mxu0 0.0
        %4961 = vmatpush2.msra.mxu0 0.0
        %4962 = vmatprep.subr.mxu0 0.0
        %v4963 = vand.u32 %v4294, 4294901760
        %4964 = vmatpush2.msra.mxu0 %v4963
        %4965 = vmatprep.subr.mxu0 0.0
        %v4966 = vand.u32 %v4291, 4294901760
        %4967 = vmatpush2.msra.mxu0 %v4966
        %v4968 = vand.u32 %v3588, 4294901760
        %4969 = vmatprep.mubr.f32.mxu0 %v4968
        %v4970 = vand.u32 %v3567, 4294901760
        %4971 = vmatmul.mubr.f32.gmra.mxu0 %v4970
        %v4972 = vpop.f32.mrf.mxu0
        %v4973 = vadd.f32 %v4883, %v4972
        %v4974 = vpop.f32.mrf.mxu0
        %4975 = vdwg.mxu0
        %v4976 = vmax.f32 %v4271, %v4973
        %vm4977 = vcmask 571392
        %4978 = vst.msk [vmem:[#allocation3] sm:$0x7f] %vm4977, %v4976
        %v4979 = vld [vmem:[#allocation3] sm:$0x1f]
        %v4980 = vld [vmem:[#allocation5] sm:$0xff]
        %v4981 = vld [vmem:[#allocation5 + $0x8] sm:$0xff]
        %v4982 = vld [vmem:[#allocation5 + $0x10] sm:$0xff]
        %v4983 = vld [vmem:[#allocation5 + $0x18] sm:$0xff]
        %v4984 = vld [vmem:[#allocation5 + $0x20] sm:$0xff]
        %v4985 = vld [vmem:[#allocation5 + $0x28] sm:$0xff]
        %v4986 = vld [vmem:[#allocation5 + $0x30] sm:$0xff]
        %v4987 = vld [vmem:[#allocation5 + $0x38] sm:$0xff]
        %v4988 = vld [vmem:[#allocation5 + $0x40] sm:$0x3f]
        %v4989 = vld [vmem:[#allocation3 + $0x1] sm:$0x1f]
        %s4990 = scalar_lea.vmem [#allocation5], 72
        %v4991 = vld [vmem:[%s4990] sm:$0xff]
        %v4992 = vld [vmem:[%s4990 + $0x8] sm:$0xff]
        %v4993 = vld [vmem:[%s4990 + $0x10] sm:$0xff]
        %v4994 = vld [vmem:[%s4990 + $0x18] sm:$0xff]
        %v4995 = vld [vmem:[%s4990 + $0x20] sm:$0xff]
        %v4996 = vld [vmem:[%s4990 + $0x28] sm:$0xff]
        %v4997 = vld [vmem:[%s4990 + $0x30] sm:$0xff]
        %v4998 = vld [vmem:[%s4990 + $0x38] sm:$0xff]
        %v4999 = vld [vmem:[%s4990 + $0x40] sm:$0x3f]
        %vm5000 = vcmask 572416
        %v5002 = vsel %vm5000, %v4989, 0
        %v5005 = vsel %vm2573, %v4999, 0
        %5007 = vmatprep.subr.mxu0 0.0
        %5008 = vmatpush1.msra.mxu0 0.0
        %5009 = vmatprep.subr.mxu0 0.0
        %5010 = vmatpush1.msra.mxu0 0.0
        %5011 = vmatprep.subr.mxu0 0.0
        %5012 = vmatpush1.msra.mxu0 0.0
        %5013 = vmatprep.subr.mxu0 0.0
        %5014 = vmatpush1.msra.mxu0 0.0
        %5015 = vmatprep.subr.mxu0 0.0
        %5016 = vmatpush1.msra.mxu0 0.0
        %5017 = vmatprep.subr.mxu0 0.0
        %5018 = vmatpush1.msra.mxu0 0.0
        %5019 = vmatprep.subr.mxu0 0.0
        %5020 = vmatpush1.msra.mxu0 0.0
        %5021 = vmatprep.subr.mxu0 0.0
        %v5022 = vand.u32 %v5005, 4294901760
        %5023 = vmatpush1.msra.mxu0 %v5022
        %5024 = vmatprep.subr.mxu0 0.0
        %v5025 = vand.u32 %v4998, 4294901760
        %5026 = vmatpush1.msra.mxu0 %v5025
        %5027 = vmatprep.subr.mxu0 0.0
        %v5028 = vand.u32 %v4997, 4294901760
        %5029 = vmatpush1.msra.mxu0 %v5028
        %5030 = vmatprep.subr.mxu0 0.0
        %v5031 = vand.u32 %v4996, 4294901760
        %5032 = vmatpush1.msra.mxu0 %v5031
        %5033 = vmatprep.subr.mxu0 0.0
        %v5034 = vand.u32 %v4995, 4294901760
        %5035 = vmatpush1.msra.mxu0 %v5034
        %5036 = vmatprep.subr.mxu0 0.0
        %v5037 = vand.u32 %v4994, 4294901760
        %5038 = vmatpush1.msra.mxu0 %v5037
        %5039 = vmatprep.subr.mxu0 0.0
        %v5040 = vand.u32 %v4993, 4294901760
        %5041 = vmatpush1.msra.mxu0 %v5040
        %5042 = vmatprep.subr.mxu0 0.0
        %v5043 = vand.u32 %v4992, 4294901760
        %5044 = vmatpush1.msra.mxu0 %v5043
        %5045 = vmatprep.subr.mxu0 0.0
        %v5046 = vand.u32 %v4991, 4294901760
        %5047 = vmatpush1.msra.mxu0 %v5046
        %5048 = vmatprep.subr.mxu0 0.0
        %5049 = vmatpush2.msra.mxu0 0.0
        %5050 = vmatprep.subr.mxu0 0.0
        %5051 = vmatpush2.msra.mxu0 0.0
        %5052 = vmatprep.subr.mxu0 0.0
        %5053 = vmatpush2.msra.mxu0 0.0
        %5054 = vmatprep.subr.mxu0 0.0
        %5055 = vmatpush2.msra.mxu0 0.0
        %5056 = vmatprep.subr.mxu0 0.0
        %5057 = vmatpush2.msra.mxu0 0.0
        %5058 = vmatprep.subr.mxu0 0.0
        %5059 = vmatpush2.msra.mxu0 0.0
        %5060 = vmatprep.subr.mxu0 0.0
        %5061 = vmatpush2.msra.mxu0 0.0
        %5062 = vmatprep.subr.mxu0 0.0
        %5063 = vmatpush2.msra.mxu0 0.0
        %5064 = vmatprep.subr.mxu0 0.0
        %5065 = vmatpush2.msra.mxu0 0.0
        %5066 = vmatprep.subr.mxu0 0.0
        %5067 = vmatpush2.msra.mxu0 0.0
        %5068 = vmatprep.subr.mxu0 0.0
        %5069 = vmatpush2.msra.mxu0 0.0
        %5070 = vmatprep.subr.mxu0 0.0
        %5071 = vmatpush2.msra.mxu0 0.0
        %5072 = vmatprep.subr.mxu0 0.0
        %5073 = vmatpush2.msra.mxu0 0.0
        %5074 = vmatprep.subr.mxu0 0.0
        %5075 = vmatpush2.msra.mxu0 0.0
        %5076 = vmatprep.subr.mxu0 0.0
        %5077 = vmatpush2.msra.mxu0 0.0
        %5078 = vmatprep.subr.mxu0 0.0
        %5079 = vmatpush2.msra.mxu0 0.0
        %5080 = vmatprep.mubr.f32.mxu0 0.0
        %v5081 = vand.u32 %v5002, 4294901760
        %v5082 = vsub.f32 %v5002, %v5081
        %v5083 = vand.u32 %v5082, 4294901760
        %v5084 = vsub.f32 %v5082, %v5083
        %v5085 = vand.u32 %v5084, 4294901760
        %5086 = vmatmul.mubr.f32.gmra.mxu0 %v5085
        %v5087 = vpop.f32.mrf.mxu0
        %v5088 = vadd.f32 0.0, %v5087
        %v5089 = vpop.f32.mrf.mxu0
        %5090 = vdwg.mxu0
        %5091 = vmatprep.subr.mxu0 0.0
        %5092 = vmatpush1.msra.mxu0 0.0
        %5093 = vmatprep.subr.mxu0 0.0
        %5094 = vmatpush1.msra.mxu0 0.0
        %5095 = vmatprep.subr.mxu0 0.0
        %5096 = vmatpush1.msra.mxu0 0.0
        %5097 = vmatprep.subr.mxu0 0.0
        %5098 = vmatpush1.msra.mxu0 0.0
        %5099 = vmatprep.subr.mxu0 0.0
        %5100 = vmatpush1.msra.mxu0 0.0
        %5101 = vmatprep.subr.mxu0 0.0
        %5102 = vmatpush1.msra.mxu0 0.0
        %5103 = vmatprep.subr.mxu0 0.0
        %5104 = vmatpush1.msra.mxu0 0.0
        %5105 = vmatprep.subr.mxu0 0.0
        %v5106 = vand.u32 %v5005, 4294901760
        %v5107 = vsub.f32 %v5005, %v5106
        %v5108 = vand.u32 %v5107, 4294901760
        %v5109 = vsub.f32 %v5107, %v5108
        %v5110 = vand.u32 %v5109, 4294901760
        %5111 = vmatpush1.msra.mxu0 %v5110
        %5112 = vmatprep.subr.mxu0 0.0
        %v5113 = vand.u32 %v4998, 4294901760
        %v5114 = vsub.f32 %v4998, %v5113
        %v5115 = vand.u32 %v5114, 4294901760
        %v5116 = vsub.f32 %v5114, %v5115
        %v5117 = vand.u32 %v5116, 4294901760
        %5118 = vmatpush1.msra.mxu0 %v5117
        %5119 = vmatprep.subr.mxu0 0.0
        %v5120 = vand.u32 %v4997, 4294901760
        %v5121 = vsub.f32 %v4997, %v5120
        %v5122 = vand.u32 %v5121, 4294901760
        %v5123 = vsub.f32 %v5121, %v5122
        %v5124 = vand.u32 %v5123, 4294901760
        %5125 = vmatpush1.msra.mxu0 %v5124
        %5126 = vmatprep.subr.mxu0 0.0
        %v5127 = vand.u32 %v4996, 4294901760
        %v5128 = vsub.f32 %v4996, %v5127
        %v5129 = vand.u32 %v5128, 4294901760
        %v5130 = vsub.f32 %v5128, %v5129
        %v5131 = vand.u32 %v5130, 4294901760
        %5132 = vmatpush1.msra.mxu0 %v5131
        %5133 = vmatprep.subr.mxu0 0.0
        %v5134 = vand.u32 %v4995, 4294901760
        %v5135 = vsub.f32 %v4995, %v5134
        %v5136 = vand.u32 %v5135, 4294901760
        %v5137 = vsub.f32 %v5135, %v5136
        %v5138 = vand.u32 %v5137, 4294901760
        %5139 = vmatpush1.msra.mxu0 %v5138
        %5140 = vmatprep.subr.mxu0 0.0
        %v5141 = vand.u32 %v4994, 4294901760
        %v5142 = vsub.f32 %v4994, %v5141
        %v5143 = vand.u32 %v5142, 4294901760
        %v5144 = vsub.f32 %v5142, %v5143
        %v5145 = vand.u32 %v5144, 4294901760
        %5146 = vmatpush1.msra.mxu0 %v5145
        %5147 = vmatprep.subr.mxu0 0.0
        %v5148 = vand.u32 %v4993, 4294901760
        %v5149 = vsub.f32 %v4993, %v5148
        %v5150 = vand.u32 %v5149, 4294901760
        %v5151 = vsub.f32 %v5149, %v5150
        %v5152 = vand.u32 %v5151, 4294901760
        %5153 = vmatpush1.msra.mxu0 %v5152
        %5154 = vmatprep.subr.mxu0 0.0
        %v5155 = vand.u32 %v4992, 4294901760
        %v5156 = vsub.f32 %v4992, %v5155
        %v5157 = vand.u32 %v5156, 4294901760
        %v5158 = vsub.f32 %v5156, %v5157
        %v5159 = vand.u32 %v5158, 4294901760
        %5160 = vmatpush1.msra.mxu0 %v5159
        %5161 = vmatprep.subr.mxu0 0.0
        %v5162 = vand.u32 %v4991, 4294901760
        %v5163 = vsub.f32 %v4991, %v5162
        %v5164 = vand.u32 %v5163, 4294901760
        %v5165 = vsub.f32 %v5163, %v5164
        %v5166 = vand.u32 %v5165, 4294901760
        %5167 = vmatpush1.msra.mxu0 %v5166
        %5168 = vmatprep.subr.mxu0 0.0
        %5169 = vmatpush2.msra.mxu0 0.0
        %5170 = vmatprep.subr.mxu0 0.0
        %5171 = vmatpush2.msra.mxu0 0.0
        %5172 = vmatprep.subr.mxu0 0.0
        %5173 = vmatpush2.msra.mxu0 0.0
        %5174 = vmatprep.subr.mxu0 0.0
        %5175 = vmatpush2.msra.mxu0 0.0
        %5176 = vmatprep.subr.mxu0 0.0
        %5177 = vmatpush2.msra.mxu0 0.0
        %5178 = vmatprep.subr.mxu0 0.0
        %5179 = vmatpush2.msra.mxu0 0.0
        %5180 = vmatprep.subr.mxu0 0.0
        %5181 = vmatpush2.msra.mxu0 0.0
        %5182 = vmatprep.subr.mxu0 0.0
        %5183 = vmatpush2.msra.mxu0 0.0
        %5184 = vmatprep.subr.mxu0 0.0
        %5185 = vmatpush2.msra.mxu0 0.0
        %5186 = vmatprep.subr.mxu0 0.0
        %5187 = vmatpush2.msra.mxu0 0.0
        %5188 = vmatprep.subr.mxu0 0.0
        %5189 = vmatpush2.msra.mxu0 0.0
        %5190 = vmatprep.subr.mxu0 0.0
        %5191 = vmatpush2.msra.mxu0 0.0
        %5192 = vmatprep.subr.mxu0 0.0
        %5193 = vmatpush2.msra.mxu0 0.0
        %5194 = vmatprep.subr.mxu0 0.0
        %5195 = vmatpush2.msra.mxu0 0.0
        %5196 = vmatprep.subr.mxu0 0.0
        %5197 = vmatpush2.msra.mxu0 0.0
        %5198 = vmatprep.subr.mxu0 0.0
        %5199 = vmatpush2.msra.mxu0 0.0
        %5200 = vmatprep.mubr.f32.mxu0 0.0
        %v5201 = vand.u32 %v5002, 4294901760
        %5202 = vmatmul.mubr.f32.gmra.mxu0 %v5201
        %v5203 = vpop.f32.mrf.mxu0
        %v5204 = vadd.f32 %v5088, %v5203
        %v5205 = vpop.f32.mrf.mxu0
        %5206 = vdwg.mxu0
        %5207 = vmatprep.subr.mxu0 0.0
        %5208 = vmatpush1.msra.mxu0 0.0
        %5209 = vmatprep.subr.mxu0 0.0
        %5210 = vmatpush1.msra.mxu0 0.0
        %5211 = vmatprep.subr.mxu0 0.0
        %5212 = vmatpush1.msra.mxu0 0.0
        %5213 = vmatprep.subr.mxu0 0.0
        %5214 = vmatpush1.msra.mxu0 0.0
        %5215 = vmatprep.subr.mxu0 0.0
        %5216 = vmatpush1.msra.mxu0 0.0
        %5217 = vmatprep.subr.mxu0 0.0
        %5218 = vmatpush1.msra.mxu0 0.0
        %5219 = vmatprep.subr.mxu0 0.0
        %5220 = vmatpush1.msra.mxu0 0.0
        %5221 = vmatprep.subr.mxu0 0.0
        %v5222 = vand.u32 %v5005, 4294901760
        %v5223 = vsub.f32 %v5005, %v5222
        %5224 = vmatpush1.msra.mxu0 %v5223
        %5225 = vmatprep.subr.mxu0 0.0
        %v5226 = vand.u32 %v4998, 4294901760
        %v5227 = vsub.f32 %v4998, %v5226
        %5228 = vmatpush1.msra.mxu0 %v5227
        %5229 = vmatprep.subr.mxu0 0.0
        %v5230 = vand.u32 %v4997, 4294901760
        %v5231 = vsub.f32 %v4997, %v5230
        %5232 = vmatpush1.msra.mxu0 %v5231
        %5233 = vmatprep.subr.mxu0 0.0
        %v5234 = vand.u32 %v4996, 4294901760
        %v5235 = vsub.f32 %v4996, %v5234
        %5236 = vmatpush1.msra.mxu0 %v5235
        %5237 = vmatprep.subr.mxu0 0.0
        %v5238 = vand.u32 %v4995, 4294901760
        %v5239 = vsub.f32 %v4995, %v5238
        %5240 = vmatpush1.msra.mxu0 %v5239
        %5241 = vmatprep.subr.mxu0 0.0
        %v5242 = vand.u32 %v4994, 4294901760
        %v5243 = vsub.f32 %v4994, %v5242
        %5244 = vmatpush1.msra.mxu0 %v5243
        %5245 = vmatprep.subr.mxu0 0.0
        %v5246 = vand.u32 %v4993, 4294901760
        %v5247 = vsub.f32 %v4993, %v5246
        %5248 = vmatpush1.msra.mxu0 %v5247
        %5249 = vmatprep.subr.mxu0 0.0
        %v5250 = vand.u32 %v4992, 4294901760
        %v5251 = vsub.f32 %v4992, %v5250
        %5252 = vmatpush1.msra.mxu0 %v5251
        %5253 = vmatprep.subr.mxu0 0.0
        %v5254 = vand.u32 %v4991, 4294901760
        %v5255 = vsub.f32 %v4991, %v5254
        %5256 = vmatpush1.msra.mxu0 %v5255
        %5257 = vmatprep.subr.mxu0 0.0
        %5258 = vmatpush2.msra.mxu0 0.0
        %5259 = vmatprep.subr.mxu0 0.0
        %5260 = vmatpush2.msra.mxu0 0.0
        %5261 = vmatprep.subr.mxu0 0.0
        %5262 = vmatpush2.msra.mxu0 0.0
        %5263 = vmatprep.subr.mxu0 0.0
        %5264 = vmatpush2.msra.mxu0 0.0
        %5265 = vmatprep.subr.mxu0 0.0
        %5266 = vmatpush2.msra.mxu0 0.0
        %5267 = vmatprep.subr.mxu0 0.0
        %5268 = vmatpush2.msra.mxu0 0.0
        %5269 = vmatprep.subr.mxu0 0.0
        %5270 = vmatpush2.msra.mxu0 0.0
        %5271 = vmatprep.subr.mxu0 0.0
        %5272 = vmatpush2.msra.mxu0 0.0
        %5273 = vmatprep.subr.mxu0 0.0
        %5274 = vmatpush2.msra.mxu0 0.0
        %5275 = vmatprep.subr.mxu0 0.0
        %5276 = vmatpush2.msra.mxu0 0.0
        %5277 = vmatprep.subr.mxu0 0.0
        %5278 = vmatpush2.msra.mxu0 0.0
        %5279 = vmatprep.subr.mxu0 0.0
        %5280 = vmatpush2.msra.mxu0 0.0
        %5281 = vmatprep.subr.mxu0 0.0
        %5282 = vmatpush2.msra.mxu0 0.0
        %5283 = vmatprep.subr.mxu0 0.0
        %5284 = vmatpush2.msra.mxu0 0.0
        %5285 = vmatprep.subr.mxu0 0.0
        %5286 = vmatpush2.msra.mxu0 0.0
        %5287 = vmatprep.subr.mxu0 0.0
        %5288 = vmatpush2.msra.mxu0 0.0
        %5289 = vmatprep.mubr.f32.mxu0 0.0
        %v5290 = vand.u32 %v5002, 4294901760
        %v5291 = vsub.f32 %v5002, %v5290
        %5292 = vmatmul.mubr.f32.gmra.mxu0 %v5291
        %v5293 = vpop.f32.mrf.mxu0
        %v5294 = vadd.f32 %v5204, %v5293
        %v5295 = vpop.f32.mrf.mxu0
        %5296 = vdwg.mxu0
        %5297 = vmatprep.subr.mxu0 0.0
        %5298 = vmatpush1.msra.mxu0 0.0
        %5299 = vmatprep.subr.mxu0 0.0
        %5300 = vmatpush1.msra.mxu0 0.0
        %5301 = vmatprep.subr.mxu0 0.0
        %5302 = vmatpush1.msra.mxu0 0.0
        %5303 = vmatprep.subr.mxu0 0.0
        %5304 = vmatpush1.msra.mxu0 0.0
        %5305 = vmatprep.subr.mxu0 0.0
        %5306 = vmatpush1.msra.mxu0 0.0
        %5307 = vmatprep.subr.mxu0 0.0
        %5308 = vmatpush1.msra.mxu0 0.0
        %5309 = vmatprep.subr.mxu0 0.0
        %5310 = vmatpush1.msra.mxu0 0.0
        %5311 = vmatprep.subr.mxu0 0.0
        %v5312 = vand.u32 %v5005, 4294901760
        %5313 = vmatpush1.msra.mxu0 %v5312
        %5314 = vmatprep.subr.mxu0 0.0
        %v5315 = vand.u32 %v4998, 4294901760
        %5316 = vmatpush1.msra.mxu0 %v5315
        %5317 = vmatprep.subr.mxu0 0.0
        %v5318 = vand.u32 %v4997, 4294901760
        %5319 = vmatpush1.msra.mxu0 %v5318
        %5320 = vmatprep.subr.mxu0 0.0
        %v5321 = vand.u32 %v4996, 4294901760
        %5322 = vmatpush1.msra.mxu0 %v5321
        %5323 = vmatprep.subr.mxu0 0.0
        %v5324 = vand.u32 %v4995, 4294901760
        %5325 = vmatpush1.msra.mxu0 %v5324
        %5326 = vmatprep.subr.mxu0 0.0
        %v5327 = vand.u32 %v4994, 4294901760
        %5328 = vmatpush1.msra.mxu0 %v5327
        %5329 = vmatprep.subr.mxu0 0.0
        %v5330 = vand.u32 %v4993, 4294901760
        %5331 = vmatpush1.msra.mxu0 %v5330
        %5332 = vmatprep.subr.mxu0 0.0
        %v5333 = vand.u32 %v4992, 4294901760
        %5334 = vmatpush1.msra.mxu0 %v5333
        %5335 = vmatprep.subr.mxu0 0.0
        %v5336 = vand.u32 %v4991, 4294901760
        %5337 = vmatpush1.msra.mxu0 %v5336
        %5338 = vmatprep.subr.mxu0 0.0
        %5339 = vmatpush2.msra.mxu0 0.0
        %5340 = vmatprep.subr.mxu0 0.0
        %5341 = vmatpush2.msra.mxu0 0.0
        %5342 = vmatprep.subr.mxu0 0.0
        %5343 = vmatpush2.msra.mxu0 0.0
        %5344 = vmatprep.subr.mxu0 0.0
        %5345 = vmatpush2.msra.mxu0 0.0
        %5346 = vmatprep.subr.mxu0 0.0
        %5347 = vmatpush2.msra.mxu0 0.0
        %5348 = vmatprep.subr.mxu0 0.0
        %5349 = vmatpush2.msra.mxu0 0.0
        %5350 = vmatprep.subr.mxu0 0.0
        %5351 = vmatpush2.msra.mxu0 0.0
        %5352 = vmatprep.subr.mxu0 0.0
        %5353 = vmatpush2.msra.mxu0 0.0
        %5354 = vmatprep.subr.mxu0 0.0
        %5355 = vmatpush2.msra.mxu0 0.0
        %5356 = vmatprep.subr.mxu0 0.0
        %5357 = vmatpush2.msra.mxu0 0.0
        %5358 = vmatprep.subr.mxu0 0.0
        %5359 = vmatpush2.msra.mxu0 0.0
        %5360 = vmatprep.subr.mxu0 0.0
        %5361 = vmatpush2.msra.mxu0 0.0
        %5362 = vmatprep.subr.mxu0 0.0
        %5363 = vmatpush2.msra.mxu0 0.0
        %5364 = vmatprep.subr.mxu0 0.0
        %5365 = vmatpush2.msra.mxu0 0.0
        %5366 = vmatprep.subr.mxu0 0.0
        %5367 = vmatpush2.msra.mxu0 0.0
        %5368 = vmatprep.subr.mxu0 0.0
        %5369 = vmatpush2.msra.mxu0 0.0
        %5370 = vmatprep.mubr.f32.mxu0 0.0
        %v5371 = vand.u32 %v5002, 4294901760
        %v5372 = vsub.f32 %v5002, %v5371
        %v5373 = vand.u32 %v5372, 4294901760
        %5374 = vmatmul.mubr.f32.gmra.mxu0 %v5373
        %v5375 = vpop.f32.mrf.mxu0
        %v5376 = vadd.f32 %v5294, %v5375
        %v5377 = vpop.f32.mrf.mxu0
        %5378 = vdwg.mxu0
        %5379 = vmatprep.subr.mxu0 0.0
        %5380 = vmatpush1.msra.mxu0 0.0
        %5381 = vmatprep.subr.mxu0 0.0
        %5382 = vmatpush1.msra.mxu0 0.0
        %5383 = vmatprep.subr.mxu0 0.0
        %5384 = vmatpush1.msra.mxu0 0.0
        %5385 = vmatprep.subr.mxu0 0.0
        %5386 = vmatpush1.msra.mxu0 0.0
        %5387 = vmatprep.subr.mxu0 0.0
        %5388 = vmatpush1.msra.mxu0 0.0
        %5389 = vmatprep.subr.mxu0 0.0
        %5390 = vmatpush1.msra.mxu0 0.0
        %5391 = vmatprep.subr.mxu0 0.0
        %5392 = vmatpush1.msra.mxu0 0.0
        %5393 = vmatprep.subr.mxu0 0.0
        %v5394 = vand.u32 %v5005, 4294901760
        %v5395 = vsub.f32 %v5005, %v5394
        %v5396 = vand.u32 %v5395, 4294901760
        %5397 = vmatpush1.msra.mxu0 %v5396
        %5398 = vmatprep.subr.mxu0 0.0
        %v5399 = vand.u32 %v4998, 4294901760
        %v5400 = vsub.f32 %v4998, %v5399
        %v5401 = vand.u32 %v5400, 4294901760
        %5402 = vmatpush1.msra.mxu0 %v5401
        %5403 = vmatprep.subr.mxu0 0.0
        %v5404 = vand.u32 %v4997, 4294901760
        %v5405 = vsub.f32 %v4997, %v5404
        %v5406 = vand.u32 %v5405, 4294901760
        %5407 = vmatpush1.msra.mxu0 %v5406
        %5408 = vmatprep.subr.mxu0 0.0
        %v5409 = vand.u32 %v4996, 4294901760
        %v5410 = vsub.f32 %v4996, %v5409
        %v5411 = vand.u32 %v5410, 4294901760
        %5412 = vmatpush1.msra.mxu0 %v5411
        %5413 = vmatprep.subr.mxu0 0.0
        %v5414 = vand.u32 %v4995, 4294901760
        %v5415 = vsub.f32 %v4995, %v5414
        %v5416 = vand.u32 %v5415, 4294901760
        %5417 = vmatpush1.msra.mxu0 %v5416
        %5418 = vmatprep.subr.mxu0 0.0
        %v5419 = vand.u32 %v4994, 4294901760
        %v5420 = vsub.f32 %v4994, %v5419
        %v5421 = vand.u32 %v5420, 4294901760
        %5422 = vmatpush1.msra.mxu0 %v5421
        %5423 = vmatprep.subr.mxu0 0.0
        %v5424 = vand.u32 %v4993, 4294901760
        %v5425 = vsub.f32 %v4993, %v5424
        %v5426 = vand.u32 %v5425, 4294901760
        %5427 = vmatpush1.msra.mxu0 %v5426
        %5428 = vmatprep.subr.mxu0 0.0
        %v5429 = vand.u32 %v4992, 4294901760
        %v5430 = vsub.f32 %v4992, %v5429
        %v5431 = vand.u32 %v5430, 4294901760
        %5432 = vmatpush1.msra.mxu0 %v5431
        %5433 = vmatprep.subr.mxu0 0.0
        %v5434 = vand.u32 %v4991, 4294901760
        %v5435 = vsub.f32 %v4991, %v5434
        %v5436 = vand.u32 %v5435, 4294901760
        %5437 = vmatpush1.msra.mxu0 %v5436
        %5438 = vmatprep.subr.mxu0 0.0
        %5439 = vmatpush2.msra.mxu0 0.0
        %5440 = vmatprep.subr.mxu0 0.0
        %5441 = vmatpush2.msra.mxu0 0.0
        %5442 = vmatprep.subr.mxu0 0.0
        %5443 = vmatpush2.msra.mxu0 0.0
        %5444 = vmatprep.subr.mxu0 0.0
        %5445 = vmatpush2.msra.mxu0 0.0
        %5446 = vmatprep.subr.mxu0 0.0
        %5447 = vmatpush2.msra.mxu0 0.0
        %5448 = vmatprep.subr.mxu0 0.0
        %5449 = vmatpush2.msra.mxu0 0.0
        %5450 = vmatprep.subr.mxu0 0.0
        %5451 = vmatpush2.msra.mxu0 0.0
        %5452 = vmatprep.subr.mxu0 0.0
        %5453 = vmatpush2.msra.mxu0 0.0
        %5454 = vmatprep.subr.mxu0 0.0
        %5455 = vmatpush2.msra.mxu0 0.0
        %5456 = vmatprep.subr.mxu0 0.0
        %5457 = vmatpush2.msra.mxu0 0.0
        %5458 = vmatprep.subr.mxu0 0.0
        %5459 = vmatpush2.msra.mxu0 0.0
        %5460 = vmatprep.subr.mxu0 0.0
        %5461 = vmatpush2.msra.mxu0 0.0
        %5462 = vmatprep.subr.mxu0 0.0
        %5463 = vmatpush2.msra.mxu0 0.0
        %5464 = vmatprep.subr.mxu0 0.0
        %5465 = vmatpush2.msra.mxu0 0.0
        %5466 = vmatprep.subr.mxu0 0.0
        %5467 = vmatpush2.msra.mxu0 0.0
        %5468 = vmatprep.subr.mxu0 0.0
        %5469 = vmatpush2.msra.mxu0 0.0
        %5470 = vmatprep.mubr.f32.mxu0 0.0
        %v5471 = vand.u32 %v5002, 4294901760
        %5472 = vmatmul.mubr.f32.gmra.mxu0 %v5471
        %v5473 = vpop.f32.mrf.mxu0
        %v5474 = vadd.f32 %v5376, %v5473
        %v5475 = vpop.f32.mrf.mxu0
        %5476 = vdwg.mxu0
        %5477 = vmatprep.subr.mxu0 0.0
        %5478 = vmatpush1.msra.mxu0 0.0
        %5479 = vmatprep.subr.mxu0 0.0
        %5480 = vmatpush1.msra.mxu0 0.0
        %5481 = vmatprep.subr.mxu0 0.0
        %5482 = vmatpush1.msra.mxu0 0.0
        %5483 = vmatprep.subr.mxu0 0.0
        %5484 = vmatpush1.msra.mxu0 0.0
        %5485 = vmatprep.subr.mxu0 0.0
        %5486 = vmatpush1.msra.mxu0 0.0
        %5487 = vmatprep.subr.mxu0 0.0
        %5488 = vmatpush1.msra.mxu0 0.0
        %5489 = vmatprep.subr.mxu0 0.0
        %5490 = vmatpush1.msra.mxu0 0.0
        %5491 = vmatprep.subr.mxu0 0.0
        %v5492 = vand.u32 %v5005, 4294901760
        %5493 = vmatpush1.msra.mxu0 %v5492
        %5494 = vmatprep.subr.mxu0 0.0
        %v5495 = vand.u32 %v4998, 4294901760
        %5496 = vmatpush1.msra.mxu0 %v5495
        %5497 = vmatprep.subr.mxu0 0.0
        %v5498 = vand.u32 %v4997, 4294901760
        %5499 = vmatpush1.msra.mxu0 %v5498
        %5500 = vmatprep.subr.mxu0 0.0
        %v5501 = vand.u32 %v4996, 4294901760
        %5502 = vmatpush1.msra.mxu0 %v5501
        %5503 = vmatprep.subr.mxu0 0.0
        %v5504 = vand.u32 %v4995, 4294901760
        %5505 = vmatpush1.msra.mxu0 %v5504
        %5506 = vmatprep.subr.mxu0 0.0
        %v5507 = vand.u32 %v4994, 4294901760
        %5508 = vmatpush1.msra.mxu0 %v5507
        %5509 = vmatprep.subr.mxu0 0.0
        %v5510 = vand.u32 %v4993, 4294901760
        %5511 = vmatpush1.msra.mxu0 %v5510
        %5512 = vmatprep.subr.mxu0 0.0
        %v5513 = vand.u32 %v4992, 4294901760
        %5514 = vmatpush1.msra.mxu0 %v5513
        %5515 = vmatprep.subr.mxu0 0.0
        %v5516 = vand.u32 %v4991, 4294901760
        %5517 = vmatpush1.msra.mxu0 %v5516
        %5518 = vmatprep.subr.mxu0 0.0
        %5519 = vmatpush2.msra.mxu0 0.0
        %5520 = vmatprep.subr.mxu0 0.0
        %5521 = vmatpush2.msra.mxu0 0.0
        %5522 = vmatprep.subr.mxu0 0.0
        %5523 = vmatpush2.msra.mxu0 0.0
        %5524 = vmatprep.subr.mxu0 0.0
        %5525 = vmatpush2.msra.mxu0 0.0
        %5526 = vmatprep.subr.mxu0 0.0
        %5527 = vmatpush2.msra.mxu0 0.0
        %5528 = vmatprep.subr.mxu0 0.0
        %5529 = vmatpush2.msra.mxu0 0.0
        %5530 = vmatprep.subr.mxu0 0.0
        %5531 = vmatpush2.msra.mxu0 0.0
        %5532 = vmatprep.subr.mxu0 0.0
        %5533 = vmatpush2.msra.mxu0 0.0
        %5534 = vmatprep.subr.mxu0 0.0
        %5535 = vmatpush2.msra.mxu0 0.0
        %5536 = vmatprep.subr.mxu0 0.0
        %5537 = vmatpush2.msra.mxu0 0.0
        %5538 = vmatprep.subr.mxu0 0.0
        %5539 = vmatpush2.msra.mxu0 0.0
        %5540 = vmatprep.subr.mxu0 0.0
        %5541 = vmatpush2.msra.mxu0 0.0
        %5542 = vmatprep.subr.mxu0 0.0
        %5543 = vmatpush2.msra.mxu0 0.0
        %5544 = vmatprep.subr.mxu0 0.0
        %5545 = vmatpush2.msra.mxu0 0.0
        %5546 = vmatprep.subr.mxu0 0.0
        %5547 = vmatpush2.msra.mxu0 0.0
        %5548 = vmatprep.subr.mxu0 0.0
        %5549 = vmatpush2.msra.mxu0 0.0
        %5550 = vmatprep.mubr.f32.mxu0 0.0
        %v5551 = vand.u32 %v5002, 4294901760
        %5552 = vmatmul.mubr.f32.gmra.mxu0 %v5551
        %v5553 = vpop.f32.mrf.mxu0
        %v5554 = vadd.f32 %v5474, %v5553
        %v5555 = vpop.f32.mrf.mxu0
        %5556 = vdwg.mxu0
        %v5558 = vsel %vm5000, %v4979, 0
        %v5561 = vsel %vm2573, %v4988, 0
        %5563 = vmatprep.subr.mxu0 0.0
        %5564 = vmatpush1.msra.mxu0 0.0
        %5565 = vmatprep.subr.mxu0 0.0
        %5566 = vmatpush1.msra.mxu0 0.0
        %5567 = vmatprep.subr.mxu0 0.0
        %5568 = vmatpush1.msra.mxu0 0.0
        %5569 = vmatprep.subr.mxu0 0.0
        %5570 = vmatpush1.msra.mxu0 0.0
        %5571 = vmatprep.subr.mxu0 0.0
        %5572 = vmatpush1.msra.mxu0 0.0
        %5573 = vmatprep.subr.mxu0 0.0
        %5574 = vmatpush1.msra.mxu0 0.0
        %5575 = vmatprep.subr.mxu0 0.0
        %5576 = vmatpush1.msra.mxu0 0.0
        %5577 = vmatprep.subr.mxu0 0.0
        %v5578 = vand.u32 %v5561, 4294901760
        %5579 = vmatpush1.msra.mxu0 %v5578
        %5580 = vmatprep.subr.mxu0 0.0
        %v5581 = vand.u32 %v4987, 4294901760
        %5582 = vmatpush1.msra.mxu0 %v5581
        %5583 = vmatprep.subr.mxu0 0.0
        %v5584 = vand.u32 %v4986, 4294901760
        %5585 = vmatpush1.msra.mxu0 %v5584
        %5586 = vmatprep.subr.mxu0 0.0
        %v5587 = vand.u32 %v4985, 4294901760
        %5588 = vmatpush1.msra.mxu0 %v5587
        %5589 = vmatprep.subr.mxu0 0.0
        %v5590 = vand.u32 %v4984, 4294901760
        %5591 = vmatpush1.msra.mxu0 %v5590
        %5592 = vmatprep.subr.mxu0 0.0
        %v5593 = vand.u32 %v4983, 4294901760
        %5594 = vmatpush1.msra.mxu0 %v5593
        %5595 = vmatprep.subr.mxu0 0.0
        %v5596 = vand.u32 %v4982, 4294901760
        %5597 = vmatpush1.msra.mxu0 %v5596
        %5598 = vmatprep.subr.mxu0 0.0
        %v5599 = vand.u32 %v4981, 4294901760
        %5600 = vmatpush1.msra.mxu0 %v5599
        %5601 = vmatprep.subr.mxu0 0.0
        %v5602 = vand.u32 %v4980, 4294901760
        %5603 = vmatpush1.msra.mxu0 %v5602
        %5604 = vmatprep.subr.mxu0 0.0
        %5605 = vmatpush2.msra.mxu0 0.0
        %5606 = vmatprep.subr.mxu0 0.0
        %5607 = vmatpush2.msra.mxu0 0.0
        %5608 = vmatprep.subr.mxu0 0.0
        %5609 = vmatpush2.msra.mxu0 0.0
        %5610 = vmatprep.subr.mxu0 0.0
        %5611 = vmatpush2.msra.mxu0 0.0
        %5612 = vmatprep.subr.mxu0 0.0
        %5613 = vmatpush2.msra.mxu0 0.0
        %5614 = vmatprep.subr.mxu0 0.0
        %5615 = vmatpush2.msra.mxu0 0.0
        %5616 = vmatprep.subr.mxu0 0.0
        %5617 = vmatpush2.msra.mxu0 0.0
        %5618 = vmatprep.subr.mxu0 0.0
        %5619 = vmatpush2.msra.mxu0 0.0
        %5620 = vmatprep.subr.mxu0 0.0
        %5621 = vmatpush2.msra.mxu0 0.0
        %5622 = vmatprep.subr.mxu0 0.0
        %5623 = vmatpush2.msra.mxu0 0.0
        %5624 = vmatprep.subr.mxu0 0.0
        %5625 = vmatpush2.msra.mxu0 0.0
        %5626 = vmatprep.subr.mxu0 0.0
        %5627 = vmatpush2.msra.mxu0 0.0
        %5628 = vmatprep.subr.mxu0 0.0
        %5629 = vmatpush2.msra.mxu0 0.0
        %5630 = vmatprep.subr.mxu0 0.0
        %5631 = vmatpush2.msra.mxu0 0.0
        %5632 = vmatprep.subr.mxu0 0.0
        %5633 = vmatpush2.msra.mxu0 0.0
        %5634 = vmatprep.subr.mxu0 0.0
        %5635 = vmatpush2.msra.mxu0 0.0
        %5636 = vmatprep.mubr.f32.mxu0 0.0
        %v5637 = vand.u32 %v5558, 4294901760
        %v5638 = vsub.f32 %v5558, %v5637
        %v5639 = vand.u32 %v5638, 4294901760
        %v5640 = vsub.f32 %v5638, %v5639
        %v5641 = vand.u32 %v5640, 4294901760
        %5642 = vmatmul.mubr.f32.gmra.mxu0 %v5641
        %v5643 = vpop.f32.mrf.mxu0
        %v5644 = vadd.f32 %v5554, %v5643
        %v5645 = vpop.f32.mrf.mxu0
        %5646 = vdwg.mxu0
        %5647 = vmatprep.subr.mxu0 0.0
        %5648 = vmatpush1.msra.mxu0 0.0
        %5649 = vmatprep.subr.mxu0 0.0
        %5650 = vmatpush1.msra.mxu0 0.0
        %5651 = vmatprep.subr.mxu0 0.0
        %5652 = vmatpush1.msra.mxu0 0.0
        %5653 = vmatprep.subr.mxu0 0.0
        %5654 = vmatpush1.msra.mxu0 0.0
        %5655 = vmatprep.subr.mxu0 0.0
        %5656 = vmatpush1.msra.mxu0 0.0
        %5657 = vmatprep.subr.mxu0 0.0
        %5658 = vmatpush1.msra.mxu0 0.0
        %5659 = vmatprep.subr.mxu0 0.0
        %5660 = vmatpush1.msra.mxu0 0.0
        %5661 = vmatprep.subr.mxu0 0.0
        %v5662 = vand.u32 %v5561, 4294901760
        %v5663 = vsub.f32 %v5561, %v5662
        %v5664 = vand.u32 %v5663, 4294901760
        %v5665 = vsub.f32 %v5663, %v5664
        %v5666 = vand.u32 %v5665, 4294901760
        %5667 = vmatpush1.msra.mxu0 %v5666
        %5668 = vmatprep.subr.mxu0 0.0
        %v5669 = vand.u32 %v4987, 4294901760
        %v5670 = vsub.f32 %v4987, %v5669
        %v5671 = vand.u32 %v5670, 4294901760
        %v5672 = vsub.f32 %v5670, %v5671
        %v5673 = vand.u32 %v5672, 4294901760
        %5674 = vmatpush1.msra.mxu0 %v5673
        %5675 = vmatprep.subr.mxu0 0.0
        %v5676 = vand.u32 %v4986, 4294901760
        %v5677 = vsub.f32 %v4986, %v5676
        %v5678 = vand.u32 %v5677, 4294901760
        %v5679 = vsub.f32 %v5677, %v5678
        %v5680 = vand.u32 %v5679, 4294901760
        %5681 = vmatpush1.msra.mxu0 %v5680
        %5682 = vmatprep.subr.mxu0 0.0
        %v5683 = vand.u32 %v4985, 4294901760
        %v5684 = vsub.f32 %v4985, %v5683
        %v5685 = vand.u32 %v5684, 4294901760
        %v5686 = vsub.f32 %v5684, %v5685
        %v5687 = vand.u32 %v5686, 4294901760
        %5688 = vmatpush1.msra.mxu0 %v5687
        %5689 = vmatprep.subr.mxu0 0.0
        %v5690 = vand.u32 %v4984, 4294901760
        %v5691 = vsub.f32 %v4984, %v5690
        %v5692 = vand.u32 %v5691, 4294901760
        %v5693 = vsub.f32 %v5691, %v5692
        %v5694 = vand.u32 %v5693, 4294901760
        %5695 = vmatpush1.msra.mxu0 %v5694
        %5696 = vmatprep.subr.mxu0 0.0
        %v5697 = vand.u32 %v4983, 4294901760
        %v5698 = vsub.f32 %v4983, %v5697
        %v5699 = vand.u32 %v5698, 4294901760
        %v5700 = vsub.f32 %v5698, %v5699
        %v5701 = vand.u32 %v5700, 4294901760
        %5702 = vmatpush1.msra.mxu0 %v5701
        %5703 = vmatprep.subr.mxu0 0.0
        %v5704 = vand.u32 %v4982, 4294901760
        %v5705 = vsub.f32 %v4982, %v5704
        %v5706 = vand.u32 %v5705, 4294901760
        %v5707 = vsub.f32 %v5705, %v5706
        %v5708 = vand.u32 %v5707, 4294901760
        %5709 = vmatpush1.msra.mxu0 %v5708
        %5710 = vmatprep.subr.mxu0 0.0
        %v5711 = vand.u32 %v4981, 4294901760
        %v5712 = vsub.f32 %v4981, %v5711
        %v5713 = vand.u32 %v5712, 4294901760
        %v5714 = vsub.f32 %v5712, %v5713
        %v5715 = vand.u32 %v5714, 4294901760
        %5716 = vmatpush1.msra.mxu0 %v5715
        %5717 = vmatprep.subr.mxu0 0.0
        %v5718 = vand.u32 %v4980, 4294901760
        %v5719 = vsub.f32 %v4980, %v5718
        %v5720 = vand.u32 %v5719, 4294901760
        %v5721 = vsub.f32 %v5719, %v5720
        %v5722 = vand.u32 %v5721, 4294901760
        %5723 = vmatpush1.msra.mxu0 %v5722
        %5724 = vmatprep.subr.mxu0 0.0
        %5725 = vmatpush2.msra.mxu0 0.0
        %5726 = vmatprep.subr.mxu0 0.0
        %5727 = vmatpush2.msra.mxu0 0.0
        %5728 = vmatprep.subr.mxu0 0.0
        %5729 = vmatpush2.msra.mxu0 0.0
        %5730 = vmatprep.subr.mxu0 0.0
        %5731 = vmatpush2.msra.mxu0 0.0
        %5732 = vmatprep.subr.mxu0 0.0
        %5733 = vmatpush2.msra.mxu0 0.0
        %5734 = vmatprep.subr.mxu0 0.0
        %5735 = vmatpush2.msra.mxu0 0.0
        %5736 = vmatprep.subr.mxu0 0.0
        %5737 = vmatpush2.msra.mxu0 0.0
        %5738 = vmatprep.subr.mxu0 0.0
        %5739 = vmatpush2.msra.mxu0 0.0
        %5740 = vmatprep.subr.mxu0 0.0
        %5741 = vmatpush2.msra.mxu0 0.0
        %5742 = vmatprep.subr.mxu0 0.0
        %5743 = vmatpush2.msra.mxu0 0.0
        %5744 = vmatprep.subr.mxu0 0.0
        %5745 = vmatpush2.msra.mxu0 0.0
        %5746 = vmatprep.subr.mxu0 0.0
        %5747 = vmatpush2.msra.mxu0 0.0
        %5748 = vmatprep.subr.mxu0 0.0
        %5749 = vmatpush2.msra.mxu0 0.0
        %5750 = vmatprep.subr.mxu0 0.0
        %5751 = vmatpush2.msra.mxu0 0.0
        %5752 = vmatprep.subr.mxu0 0.0
        %5753 = vmatpush2.msra.mxu0 0.0
        %5754 = vmatprep.subr.mxu0 0.0
        %5755 = vmatpush2.msra.mxu0 0.0
        %5756 = vmatprep.mubr.f32.mxu0 0.0
        %v5757 = vand.u32 %v5558, 4294901760
        %5758 = vmatmul.mubr.f32.gmra.mxu0 %v5757
        %v5759 = vpop.f32.mrf.mxu0
        %v5760 = vadd.f32 %v5644, %v5759
        %v5761 = vpop.f32.mrf.mxu0
        %5762 = vdwg.mxu0
        %5763 = vmatprep.subr.mxu0 0.0
        %5764 = vmatpush1.msra.mxu0 0.0
        %5765 = vmatprep.subr.mxu0 0.0
        %5766 = vmatpush1.msra.mxu0 0.0
        %5767 = vmatprep.subr.mxu0 0.0
        %5768 = vmatpush1.msra.mxu0 0.0
        %5769 = vmatprep.subr.mxu0 0.0
        %5770 = vmatpush1.msra.mxu0 0.0
        %5771 = vmatprep.subr.mxu0 0.0
        %5772 = vmatpush1.msra.mxu0 0.0
        %5773 = vmatprep.subr.mxu0 0.0
        %5774 = vmatpush1.msra.mxu0 0.0
        %5775 = vmatprep.subr.mxu0 0.0
        %5776 = vmatpush1.msra.mxu0 0.0
        %5777 = vmatprep.subr.mxu0 0.0
        %v5778 = vand.u32 %v5561, 4294901760
        %v5779 = vsub.f32 %v5561, %v5778
        %5780 = vmatpush1.msra.mxu0 %v5779
        %5781 = vmatprep.subr.mxu0 0.0
        %v5782 = vand.u32 %v4987, 4294901760
        %v5783 = vsub.f32 %v4987, %v5782
        %5784 = vmatpush1.msra.mxu0 %v5783
        %5785 = vmatprep.subr.mxu0 0.0
        %v5786 = vand.u32 %v4986, 4294901760
        %v5787 = vsub.f32 %v4986, %v5786
        %5788 = vmatpush1.msra.mxu0 %v5787
        %5789 = vmatprep.subr.mxu0 0.0
        %v5790 = vand.u32 %v4985, 4294901760
        %v5791 = vsub.f32 %v4985, %v5790
        %5792 = vmatpush1.msra.mxu0 %v5791
        %5793 = vmatprep.subr.mxu0 0.0
        %v5794 = vand.u32 %v4984, 4294901760
        %v5795 = vsub.f32 %v4984, %v5794
        %5796 = vmatpush1.msra.mxu0 %v5795
        %5797 = vmatprep.subr.mxu0 0.0
        %v5798 = vand.u32 %v4983, 4294901760
        %v5799 = vsub.f32 %v4983, %v5798
        %5800 = vmatpush1.msra.mxu0 %v5799
        %5801 = vmatprep.subr.mxu0 0.0
        %v5802 = vand.u32 %v4982, 4294901760
        %v5803 = vsub.f32 %v4982, %v5802
        %5804 = vmatpush1.msra.mxu0 %v5803
        %5805 = vmatprep.subr.mxu0 0.0
        %v5806 = vand.u32 %v4981, 4294901760
        %v5807 = vsub.f32 %v4981, %v5806
        %5808 = vmatpush1.msra.mxu0 %v5807
        %5809 = vmatprep.subr.mxu0 0.0
        %v5810 = vand.u32 %v4980, 4294901760
        %v5811 = vsub.f32 %v4980, %v5810
        %5812 = vmatpush1.msra.mxu0 %v5811
        %5813 = vmatprep.subr.mxu0 0.0
        %5814 = vmatpush2.msra.mxu0 0.0
        %5815 = vmatprep.subr.mxu0 0.0
        %5816 = vmatpush2.msra.mxu0 0.0
        %5817 = vmatprep.subr.mxu0 0.0
        %5818 = vmatpush2.msra.mxu0 0.0
        %5819 = vmatprep.subr.mxu0 0.0
        %5820 = vmatpush2.msra.mxu0 0.0
        %5821 = vmatprep.subr.mxu0 0.0
        %5822 = vmatpush2.msra.mxu0 0.0
        %5823 = vmatprep.subr.mxu0 0.0
        %5824 = vmatpush2.msra.mxu0 0.0
        %5825 = vmatprep.subr.mxu0 0.0
        %5826 = vmatpush2.msra.mxu0 0.0
        %5827 = vmatprep.subr.mxu0 0.0
        %5828 = vmatpush2.msra.mxu0 0.0
        %5829 = vmatprep.subr.mxu0 0.0
        %5830 = vmatpush2.msra.mxu0 0.0
        %5831 = vmatprep.subr.mxu0 0.0
        %5832 = vmatpush2.msra.mxu0 0.0
        %5833 = vmatprep.subr.mxu0 0.0
        %5834 = vmatpush2.msra.mxu0 0.0
        %5835 = vmatprep.subr.mxu0 0.0
        %5836 = vmatpush2.msra.mxu0 0.0
        %5837 = vmatprep.subr.mxu0 0.0
        %5838 = vmatpush2.msra.mxu0 0.0
        %5839 = vmatprep.subr.mxu0 0.0
        %5840 = vmatpush2.msra.mxu0 0.0
        %5841 = vmatprep.subr.mxu0 0.0
        %5842 = vmatpush2.msra.mxu0 0.0
        %5843 = vmatprep.subr.mxu0 0.0
        %5844 = vmatpush2.msra.mxu0 0.0
        %5845 = vmatprep.mubr.f32.mxu0 0.0
        %v5846 = vand.u32 %v5558, 4294901760
        %v5847 = vsub.f32 %v5558, %v5846
        %5848 = vmatmul.mubr.f32.gmra.mxu0 %v5847
        %v5849 = vpop.f32.mrf.mxu0
        %v5850 = vadd.f32 %v5760, %v5849
        %v5851 = vpop.f32.mrf.mxu0
        %5852 = vdwg.mxu0
        %5853 = vmatprep.subr.mxu0 0.0
        %5854 = vmatpush1.msra.mxu0 0.0
        %5855 = vmatprep.subr.mxu0 0.0
        %5856 = vmatpush1.msra.mxu0 0.0
        %5857 = vmatprep.subr.mxu0 0.0
        %5858 = vmatpush1.msra.mxu0 0.0
        %5859 = vmatprep.subr.mxu0 0.0
        %5860 = vmatpush1.msra.mxu0 0.0
        %5861 = vmatprep.subr.mxu0 0.0
        %5862 = vmatpush1.msra.mxu0 0.0
        %5863 = vmatprep.subr.mxu0 0.0
        %5864 = vmatpush1.msra.mxu0 0.0
        %5865 = vmatprep.subr.mxu0 0.0
        %5866 = vmatpush1.msra.mxu0 0.0
        %5867 = vmatprep.subr.mxu0 0.0
        %v5868 = vand.u32 %v5561, 4294901760
        %5869 = vmatpush1.msra.mxu0 %v5868
        %5870 = vmatprep.subr.mxu0 0.0
        %v5871 = vand.u32 %v4987, 4294901760
        %5872 = vmatpush1.msra.mxu0 %v5871
        %5873 = vmatprep.subr.mxu0 0.0
        %v5874 = vand.u32 %v4986, 4294901760
        %5875 = vmatpush1.msra.mxu0 %v5874
        %5876 = vmatprep.subr.mxu0 0.0
        %v5877 = vand.u32 %v4985, 4294901760
        %5878 = vmatpush1.msra.mxu0 %v5877
        %5879 = vmatprep.subr.mxu0 0.0
        %v5880 = vand.u32 %v4984, 4294901760
        %5881 = vmatpush1.msra.mxu0 %v5880
        %5882 = vmatprep.subr.mxu0 0.0
        %v5883 = vand.u32 %v4983, 4294901760
        %5884 = vmatpush1.msra.mxu0 %v5883
        %5885 = vmatprep.subr.mxu0 0.0
        %v5886 = vand.u32 %v4982, 4294901760
        %5887 = vmatpush1.msra.mxu0 %v5886
        %5888 = vmatprep.subr.mxu0 0.0
        %v5889 = vand.u32 %v4981, 4294901760
        %5890 = vmatpush1.msra.mxu0 %v5889
        %5891 = vmatprep.subr.mxu0 0.0
        %v5892 = vand.u32 %v4980, 4294901760
        %5893 = vmatpush1.msra.mxu0 %v5892
        %5894 = vmatprep.subr.mxu0 0.0
        %5895 = vmatpush2.msra.mxu0 0.0
        %5896 = vmatprep.subr.mxu0 0.0
        %5897 = vmatpush2.msra.mxu0 0.0
        %5898 = vmatprep.subr.mxu0 0.0
        %5899 = vmatpush2.msra.mxu0 0.0
        %5900 = vmatprep.subr.mxu0 0.0
        %5901 = vmatpush2.msra.mxu0 0.0
        %5902 = vmatprep.subr.mxu0 0.0
        %5903 = vmatpush2.msra.mxu0 0.0
        %5904 = vmatprep.subr.mxu0 0.0
        %5905 = vmatpush2.msra.mxu0 0.0
        %5906 = vmatprep.subr.mxu0 0.0
        %5907 = vmatpush2.msra.mxu0 0.0
        %5908 = vmatprep.subr.mxu0 0.0
        %5909 = vmatpush2.msra.mxu0 0.0
        %5910 = vmatprep.subr.mxu0 0.0
        %5911 = vmatpush2.msra.mxu0 0.0
        %5912 = vmatprep.subr.mxu0 0.0
        %5913 = vmatpush2.msra.mxu0 0.0
        %5914 = vmatprep.subr.mxu0 0.0
        %5915 = vmatpush2.msra.mxu0 0.0
        %5916 = vmatprep.subr.mxu0 0.0
        %5917 = vmatpush2.msra.mxu0 0.0
        %5918 = vmatprep.subr.mxu0 0.0
        %5919 = vmatpush2.msra.mxu0 0.0
        %5920 = vmatprep.subr.mxu0 0.0
        %5921 = vmatpush2.msra.mxu0 0.0
        %5922 = vmatprep.subr.mxu0 0.0
        %5923 = vmatpush2.msra.mxu0 0.0
        %5924 = vmatprep.subr.mxu0 0.0
        %5925 = vmatpush2.msra.mxu0 0.0
        %5926 = vmatprep.mubr.f32.mxu0 0.0
        %v5927 = vand.u32 %v5558, 4294901760
        %v5928 = vsub.f32 %v5558, %v5927
        %v5929 = vand.u32 %v5928, 4294901760
        %5930 = vmatmul.mubr.f32.gmra.mxu0 %v5929
        %v5931 = vpop.f32.mrf.mxu0
        %v5932 = vadd.f32 %v5850, %v5931
        %v5933 = vpop.f32.mrf.mxu0
        %5934 = vdwg.mxu0
        %5935 = vmatprep.subr.mxu0 0.0
        %5936 = vmatpush1.msra.mxu0 0.0
        %5937 = vmatprep.subr.mxu0 0.0
        %5938 = vmatpush1.msra.mxu0 0.0
        %5939 = vmatprep.subr.mxu0 0.0
        %5940 = vmatpush1.msra.mxu0 0.0
        %5941 = vmatprep.subr.mxu0 0.0
        %5942 = vmatpush1.msra.mxu0 0.0
        %5943 = vmatprep.subr.mxu0 0.0
        %5944 = vmatpush1.msra.mxu0 0.0
        %5945 = vmatprep.subr.mxu0 0.0
        %5946 = vmatpush1.msra.mxu0 0.0
        %5947 = vmatprep.subr.mxu0 0.0
        %5948 = vmatpush1.msra.mxu0 0.0
        %5949 = vmatprep.subr.mxu0 0.0
        %v5950 = vand.u32 %v5561, 4294901760
        %v5951 = vsub.f32 %v5561, %v5950
        %v5952 = vand.u32 %v5951, 4294901760
        %5953 = vmatpush1.msra.mxu0 %v5952
        %5954 = vmatprep.subr.mxu0 0.0
        %v5955 = vand.u32 %v4987, 4294901760
        %v5956 = vsub.f32 %v4987, %v5955
        %v5957 = vand.u32 %v5956, 4294901760
        %5958 = vmatpush1.msra.mxu0 %v5957
        %5959 = vmatprep.subr.mxu0 0.0
        %v5960 = vand.u32 %v4986, 4294901760
        %v5961 = vsub.f32 %v4986, %v5960
        %v5962 = vand.u32 %v5961, 4294901760
        %5963 = vmatpush1.msra.mxu0 %v5962
        %5964 = vmatprep.subr.mxu0 0.0
        %v5965 = vand.u32 %v4985, 4294901760
        %v5966 = vsub.f32 %v4985, %v5965
        %v5967 = vand.u32 %v5966, 4294901760
        %5968 = vmatpush1.msra.mxu0 %v5967
        %5969 = vmatprep.subr.mxu0 0.0
        %v5970 = vand.u32 %v4984, 4294901760
        %v5971 = vsub.f32 %v4984, %v5970
        %v5972 = vand.u32 %v5971, 4294901760
        %5973 = vmatpush1.msra.mxu0 %v5972
        %5974 = vmatprep.subr.mxu0 0.0
        %v5975 = vand.u32 %v4983, 4294901760
        %v5976 = vsub.f32 %v4983, %v5975
        %v5977 = vand.u32 %v5976, 4294901760
        %5978 = vmatpush1.msra.mxu0 %v5977
        %5979 = vmatprep.subr.mxu0 0.0
        %v5980 = vand.u32 %v4982, 4294901760
        %v5981 = vsub.f32 %v4982, %v5980
        %v5982 = vand.u32 %v5981, 4294901760
        %5983 = vmatpush1.msra.mxu0 %v5982
        %5984 = vmatprep.subr.mxu0 0.0
        %v5985 = vand.u32 %v4981, 4294901760
        %v5986 = vsub.f32 %v4981, %v5985
        %v5987 = vand.u32 %v5986, 4294901760
        %5988 = vmatpush1.msra.mxu0 %v5987
        %5989 = vmatprep.subr.mxu0 0.0
        %v5990 = vand.u32 %v4980, 4294901760
        %v5991 = vsub.f32 %v4980, %v5990
        %v5992 = vand.u32 %v5991, 4294901760
        %5993 = vmatpush1.msra.mxu0 %v5992
        %5994 = vmatprep.subr.mxu0 0.0
        %5995 = vmatpush2.msra.mxu0 0.0
        %5996 = vmatprep.subr.mxu0 0.0
        %5997 = vmatpush2.msra.mxu0 0.0
        %5998 = vmatprep.subr.mxu0 0.0
        %5999 = vmatpush2.msra.mxu0 0.0
        %6000 = vmatprep.subr.mxu0 0.0
        %6001 = vmatpush2.msra.mxu0 0.0
        %6002 = vmatprep.subr.mxu0 0.0
        %6003 = vmatpush2.msra.mxu0 0.0
        %6004 = vmatprep.subr.mxu0 0.0
        %6005 = vmatpush2.msra.mxu0 0.0
        %6006 = vmatprep.subr.mxu0 0.0
        %6007 = vmatpush2.msra.mxu0 0.0
        %6008 = vmatprep.subr.mxu0 0.0
        %6009 = vmatpush2.msra.mxu0 0.0
        %6010 = vmatprep.subr.mxu0 0.0
        %6011 = vmatpush2.msra.mxu0 0.0
        %6012 = vmatprep.subr.mxu0 0.0
        %6013 = vmatpush2.msra.mxu0 0.0
        %6014 = vmatprep.subr.mxu0 0.0
        %6015 = vmatpush2.msra.mxu0 0.0
        %6016 = vmatprep.subr.mxu0 0.0
        %6017 = vmatpush2.msra.mxu0 0.0
        %6018 = vmatprep.subr.mxu0 0.0
        %6019 = vmatpush2.msra.mxu0 0.0
        %6020 = vmatprep.subr.mxu0 0.0
        %6021 = vmatpush2.msra.mxu0 0.0
        %6022 = vmatprep.subr.mxu0 0.0
        %6023 = vmatpush2.msra.mxu0 0.0
        %6024 = vmatprep.subr.mxu0 0.0
        %6025 = vmatpush2.msra.mxu0 0.0
        %6026 = vmatprep.mubr.f32.mxu0 0.0
        %v6027 = vand.u32 %v5558, 4294901760
        %6028 = vmatmul.mubr.f32.gmra.mxu0 %v6027
        %v6029 = vpop.f32.mrf.mxu0
        %v6030 = vadd.f32 %v5932, %v6029
        %v6031 = vpop.f32.mrf.mxu0
        %6032 = vdwg.mxu0
        %6033 = vmatprep.subr.mxu0 0.0
        %6034 = vmatpush1.msra.mxu0 0.0
        %6035 = vmatprep.subr.mxu0 0.0
        %6036 = vmatpush1.msra.mxu0 0.0
        %6037 = vmatprep.subr.mxu0 0.0
        %6038 = vmatpush1.msra.mxu0 0.0
        %6039 = vmatprep.subr.mxu0 0.0
        %6040 = vmatpush1.msra.mxu0 0.0
        %6041 = vmatprep.subr.mxu0 0.0
        %6042 = vmatpush1.msra.mxu0 0.0
        %6043 = vmatprep.subr.mxu0 0.0
        %6044 = vmatpush1.msra.mxu0 0.0
        %6045 = vmatprep.subr.mxu0 0.0
        %6046 = vmatpush1.msra.mxu0 0.0
        %6047 = vmatprep.subr.mxu0 0.0
        %v6048 = vand.u32 %v5561, 4294901760
        %6049 = vmatpush1.msra.mxu0 %v6048
        %6050 = vmatprep.subr.mxu0 0.0
        %v6051 = vand.u32 %v4987, 4294901760
        %6052 = vmatpush1.msra.mxu0 %v6051
        %6053 = vmatprep.subr.mxu0 0.0
        %v6054 = vand.u32 %v4986, 4294901760
        %6055 = vmatpush1.msra.mxu0 %v6054
        %6056 = vmatprep.subr.mxu0 0.0
        %v6057 = vand.u32 %v4985, 4294901760
        %6058 = vmatpush1.msra.mxu0 %v6057
        %6059 = vmatprep.subr.mxu0 0.0
        %v6060 = vand.u32 %v4984, 4294901760
        %6061 = vmatpush1.msra.mxu0 %v6060
        %6062 = vmatprep.subr.mxu0 0.0
        %v6063 = vand.u32 %v4983, 4294901760
        %6064 = vmatpush1.msra.mxu0 %v6063
        %6065 = vmatprep.subr.mxu0 0.0
        %v6066 = vand.u32 %v4982, 4294901760
        %6067 = vmatpush1.msra.mxu0 %v6066
        %6068 = vmatprep.subr.mxu0 0.0
        %v6069 = vand.u32 %v4981, 4294901760
        %6070 = vmatpush1.msra.mxu0 %v6069
        %6071 = vmatprep.subr.mxu0 0.0
        %v6072 = vand.u32 %v4980, 4294901760
        %6073 = vmatpush1.msra.mxu0 %v6072
        %6074 = vmatprep.subr.mxu0 0.0
        %6075 = vmatpush2.msra.mxu0 0.0
        %6076 = vmatprep.subr.mxu0 0.0
        %6077 = vmatpush2.msra.mxu0 0.0
        %6078 = vmatprep.subr.mxu0 0.0
        %6079 = vmatpush2.msra.mxu0 0.0
        %6080 = vmatprep.subr.mxu0 0.0
        %6081 = vmatpush2.msra.mxu0 0.0
        %6082 = vmatprep.subr.mxu0 0.0
        %6083 = vmatpush2.msra.mxu0 0.0
        %6084 = vmatprep.subr.mxu0 0.0
        %6085 = vmatpush2.msra.mxu0 0.0
        %6086 = vmatprep.subr.mxu0 0.0
        %6087 = vmatpush2.msra.mxu0 0.0
        %6088 = vmatprep.subr.mxu0 0.0
        %6089 = vmatpush2.msra.mxu0 0.0
        %6090 = vmatprep.subr.mxu0 0.0
        %6091 = vmatpush2.msra.mxu0 0.0
        %6092 = vmatprep.subr.mxu0 0.0
        %6093 = vmatpush2.msra.mxu0 0.0
        %6094 = vmatprep.subr.mxu0 0.0
        %6095 = vmatpush2.msra.mxu0 0.0
        %6096 = vmatprep.subr.mxu0 0.0
        %6097 = vmatpush2.msra.mxu0 0.0
        %6098 = vmatprep.subr.mxu0 0.0
        %6099 = vmatpush2.msra.mxu0 0.0
        %6100 = vmatprep.subr.mxu0 0.0
        %6101 = vmatpush2.msra.mxu0 0.0
        %6102 = vmatprep.subr.mxu0 0.0
        %6103 = vmatpush2.msra.mxu0 0.0
        %6104 = vmatprep.subr.mxu0 0.0
        %6105 = vmatpush2.msra.mxu0 0.0
        %6106 = vmatprep.mubr.f32.mxu0 0.0
        %v6107 = vand.u32 %v5558, 4294901760
        %6108 = vmatmul.mubr.f32.gmra.mxu0 %v6107
        %v6109 = vpop.f32.mrf.mxu0
        %v6110 = vadd.f32 %v6030, %v6109
        %v6111 = vpop.f32.mrf.mxu0
        %6112 = vdwg.mxu0
        %v6113 = vld [vmem:[#allocation3 + $0x2] sm:$0x1f]
        %s6114 = scalar_lea.vmem [#allocation5], 144
        %v6115 = vld [vmem:[%s6114] sm:$0xff]
        %v6116 = vld [vmem:[%s6114 + $0x8] sm:$0xff]
        %v6117 = vld [vmem:[%s6114 + $0x10] sm:$0xff]
        %v6118 = vld [vmem:[%s6114 + $0x18] sm:$0xff]
        %v6119 = vld [vmem:[%s6114 + $0x20] sm:$0xff]
        %v6120 = vld [vmem:[%s6114 + $0x28] sm:$0xff]
        %v6121 = vld [vmem:[%s6114 + $0x30] sm:$0xff]
        %v6122 = vld [vmem:[%s6114 + $0x38] sm:$0xff]
        %v6123 = vld [vmem:[%s6114 + $0x40] sm:$0x3f]
        %v6125 = vsel %vm5000, %v6113, 0
        %v6128 = vsel %vm2573, %v6123, 0
        %6130 = vmatprep.subr.mxu0 0.0
        %6131 = vmatpush1.msra.mxu0 0.0
        %6132 = vmatprep.subr.mxu0 0.0
        %6133 = vmatpush1.msra.mxu0 0.0
        %6134 = vmatprep.subr.mxu0 0.0
        %6135 = vmatpush1.msra.mxu0 0.0
        %6136 = vmatprep.subr.mxu0 0.0
        %6137 = vmatpush1.msra.mxu0 0.0
        %6138 = vmatprep.subr.mxu0 0.0
        %6139 = vmatpush1.msra.mxu0 0.0
        %6140 = vmatprep.subr.mxu0 0.0
        %6141 = vmatpush1.msra.mxu0 0.0
        %6142 = vmatprep.subr.mxu0 0.0
        %6143 = vmatpush1.msra.mxu0 0.0
        %6144 = vmatprep.subr.mxu0 0.0
        %v6145 = vand.u32 %v6128, 4294901760
        %6146 = vmatpush1.msra.mxu0 %v6145
        %6147 = vmatprep.subr.mxu0 0.0
        %v6148 = vand.u32 %v6122, 4294901760
        %6149 = vmatpush1.msra.mxu0 %v6148
        %6150 = vmatprep.subr.mxu0 0.0
        %v6151 = vand.u32 %v6121, 4294901760
        %6152 = vmatpush1.msra.mxu0 %v6151
        %6153 = vmatprep.subr.mxu0 0.0
        %v6154 = vand.u32 %v6120, 4294901760
        %6155 = vmatpush1.msra.mxu0 %v6154
        %6156 = vmatprep.subr.mxu0 0.0
        %v6157 = vand.u32 %v6119, 4294901760
        %6158 = vmatpush1.msra.mxu0 %v6157
        %6159 = vmatprep.subr.mxu0 0.0
        %v6160 = vand.u32 %v6118, 4294901760
        %6161 = vmatpush1.msra.mxu0 %v6160
        %6162 = vmatprep.subr.mxu0 0.0
        %v6163 = vand.u32 %v6117, 4294901760
        %6164 = vmatpush1.msra.mxu0 %v6163
        %6165 = vmatprep.subr.mxu0 0.0
        %v6166 = vand.u32 %v6116, 4294901760
        %6167 = vmatpush1.msra.mxu0 %v6166
        %6168 = vmatprep.subr.mxu0 0.0
        %v6169 = vand.u32 %v6115, 4294901760
        %6170 = vmatpush1.msra.mxu0 %v6169
        %6171 = vmatprep.subr.mxu0 0.0
        %6172 = vmatpush2.msra.mxu0 0.0
        %6173 = vmatprep.subr.mxu0 0.0
        %6174 = vmatpush2.msra.mxu0 0.0
        %6175 = vmatprep.subr.mxu0 0.0
        %6176 = vmatpush2.msra.mxu0 0.0
        %6177 = vmatprep.subr.mxu0 0.0
        %6178 = vmatpush2.msra.mxu0 0.0
        %6179 = vmatprep.subr.mxu0 0.0
        %6180 = vmatpush2.msra.mxu0 0.0
        %6181 = vmatprep.subr.mxu0 0.0
        %6182 = vmatpush2.msra.mxu0 0.0
        %6183 = vmatprep.subr.mxu0 0.0
        %6184 = vmatpush2.msra.mxu0 0.0
        %6185 = vmatprep.subr.mxu0 0.0
        %6186 = vmatpush2.msra.mxu0 0.0
        %6187 = vmatprep.subr.mxu0 0.0
        %6188 = vmatpush2.msra.mxu0 0.0
        %6189 = vmatprep.subr.mxu0 0.0
        %6190 = vmatpush2.msra.mxu0 0.0
        %6191 = vmatprep.subr.mxu0 0.0
        %6192 = vmatpush2.msra.mxu0 0.0
        %6193 = vmatprep.subr.mxu0 0.0
        %6194 = vmatpush2.msra.mxu0 0.0
        %6195 = vmatprep.subr.mxu0 0.0
        %6196 = vmatpush2.msra.mxu0 0.0
        %6197 = vmatprep.subr.mxu0 0.0
        %6198 = vmatpush2.msra.mxu0 0.0
        %6199 = vmatprep.subr.mxu0 0.0
        %6200 = vmatpush2.msra.mxu0 0.0
        %6201 = vmatprep.subr.mxu0 0.0
        %6202 = vmatpush2.msra.mxu0 0.0
        %6203 = vmatprep.mubr.f32.mxu0 0.0
        %v6204 = vand.u32 %v6125, 4294901760
        %v6205 = vsub.f32 %v6125, %v6204
        %v6206 = vand.u32 %v6205, 4294901760
        %v6207 = vsub.f32 %v6205, %v6206
        %v6208 = vand.u32 %v6207, 4294901760
        %6209 = vmatmul.mubr.f32.gmra.mxu0 %v6208
        %v6210 = vpop.f32.mrf.mxu0
        %v6211 = vadd.f32 0.0, %v6210
        %v6212 = vpop.f32.mrf.mxu0
        %6213 = vdwg.mxu0
        %6214 = vmatprep.subr.mxu0 0.0
        %6215 = vmatpush1.msra.mxu0 0.0
        %6216 = vmatprep.subr.mxu0 0.0
        %6217 = vmatpush1.msra.mxu0 0.0
        %6218 = vmatprep.subr.mxu0 0.0
        %6219 = vmatpush1.msra.mxu0 0.0
        %6220 = vmatprep.subr.mxu0 0.0
        %6221 = vmatpush1.msra.mxu0 0.0
        %6222 = vmatprep.subr.mxu0 0.0
        %6223 = vmatpush1.msra.mxu0 0.0
        %6224 = vmatprep.subr.mxu0 0.0
        %6225 = vmatpush1.msra.mxu0 0.0
        %6226 = vmatprep.subr.mxu0 0.0
        %6227 = vmatpush1.msra.mxu0 0.0
        %6228 = vmatprep.subr.mxu0 0.0
        %v6229 = vand.u32 %v6128, 4294901760
        %v6230 = vsub.f32 %v6128, %v6229
        %v6231 = vand.u32 %v6230, 4294901760
        %v6232 = vsub.f32 %v6230, %v6231
        %v6233 = vand.u32 %v6232, 4294901760
        %6234 = vmatpush1.msra.mxu0 %v6233
        %6235 = vmatprep.subr.mxu0 0.0
        %v6236 = vand.u32 %v6122, 4294901760
        %v6237 = vsub.f32 %v6122, %v6236
        %v6238 = vand.u32 %v6237, 4294901760
        %v6239 = vsub.f32 %v6237, %v6238
        %v6240 = vand.u32 %v6239, 4294901760
        %6241 = vmatpush1.msra.mxu0 %v6240
        %6242 = vmatprep.subr.mxu0 0.0
        %v6243 = vand.u32 %v6121, 4294901760
        %v6244 = vsub.f32 %v6121, %v6243
        %v6245 = vand.u32 %v6244, 4294901760
        %v6246 = vsub.f32 %v6244, %v6245
        %v6247 = vand.u32 %v6246, 4294901760
        %6248 = vmatpush1.msra.mxu0 %v6247
        %6249 = vmatprep.subr.mxu0 0.0
        %v6250 = vand.u32 %v6120, 4294901760
        %v6251 = vsub.f32 %v6120, %v6250
        %v6252 = vand.u32 %v6251, 4294901760
        %v6253 = vsub.f32 %v6251, %v6252
        %v6254 = vand.u32 %v6253, 4294901760
        %6255 = vmatpush1.msra.mxu0 %v6254
        %6256 = vmatprep.subr.mxu0 0.0
        %v6257 = vand.u32 %v6119, 4294901760
        %v6258 = vsub.f32 %v6119, %v6257
        %v6259 = vand.u32 %v6258, 4294901760
        %v6260 = vsub.f32 %v6258, %v6259
        %v6261 = vand.u32 %v6260, 4294901760
        %6262 = vmatpush1.msra.mxu0 %v6261
        %6263 = vmatprep.subr.mxu0 0.0
        %v6264 = vand.u32 %v6118, 4294901760
        %v6265 = vsub.f32 %v6118, %v6264
        %v6266 = vand.u32 %v6265, 4294901760
        %v6267 = vsub.f32 %v6265, %v6266
        %v6268 = vand.u32 %v6267, 4294901760
        %6269 = vmatpush1.msra.mxu0 %v6268
        %6270 = vmatprep.subr.mxu0 0.0
        %v6271 = vand.u32 %v6117, 4294901760
        %v6272 = vsub.f32 %v6117, %v6271
        %v6273 = vand.u32 %v6272, 4294901760
        %v6274 = vsub.f32 %v6272, %v6273
        %v6275 = vand.u32 %v6274, 4294901760
        %6276 = vmatpush1.msra.mxu0 %v6275
        %6277 = vmatprep.subr.mxu0 0.0
        %v6278 = vand.u32 %v6116, 4294901760
        %v6279 = vsub.f32 %v6116, %v6278
        %v6280 = vand.u32 %v6279, 4294901760
        %v6281 = vsub.f32 %v6279, %v6280
        %v6282 = vand.u32 %v6281, 4294901760
        %6283 = vmatpush1.msra.mxu0 %v6282
        %6284 = vmatprep.subr.mxu0 0.0
        %v6285 = vand.u32 %v6115, 4294901760
        %v6286 = vsub.f32 %v6115, %v6285
        %v6287 = vand.u32 %v6286, 4294901760
        %v6288 = vsub.f32 %v6286, %v6287
        %v6289 = vand.u32 %v6288, 4294901760
        %6290 = vmatpush1.msra.mxu0 %v6289
        %6291 = vmatprep.subr.mxu0 0.0
        %6292 = vmatpush2.msra.mxu0 0.0
        %6293 = vmatprep.subr.mxu0 0.0
        %6294 = vmatpush2.msra.mxu0 0.0
        %6295 = vmatprep.subr.mxu0 0.0
        %6296 = vmatpush2.msra.mxu0 0.0
        %6297 = vmatprep.subr.mxu0 0.0
        %6298 = vmatpush2.msra.mxu0 0.0
        %6299 = vmatprep.subr.mxu0 0.0
        %6300 = vmatpush2.msra.mxu0 0.0
        %6301 = vmatprep.subr.mxu0 0.0
        %6302 = vmatpush2.msra.mxu0 0.0
        %6303 = vmatprep.subr.mxu0 0.0
        %6304 = vmatpush2.msra.mxu0 0.0
        %6305 = vmatprep.subr.mxu0 0.0
        %6306 = vmatpush2.msra.mxu0 0.0
        %6307 = vmatprep.subr.mxu0 0.0
        %6308 = vmatpush2.msra.mxu0 0.0
        %6309 = vmatprep.subr.mxu0 0.0
        %6310 = vmatpush2.msra.mxu0 0.0
        %6311 = vmatprep.subr.mxu0 0.0
        %6312 = vmatpush2.msra.mxu0 0.0
        %6313 = vmatprep.subr.mxu0 0.0
        %6314 = vmatpush2.msra.mxu0 0.0
        %6315 = vmatprep.subr.mxu0 0.0
        %6316 = vmatpush2.msra.mxu0 0.0
        %6317 = vmatprep.subr.mxu0 0.0
        %6318 = vmatpush2.msra.mxu0 0.0
        %6319 = vmatprep.subr.mxu0 0.0
        %6320 = vmatpush2.msra.mxu0 0.0
        %6321 = vmatprep.subr.mxu0 0.0
        %6322 = vmatpush2.msra.mxu0 0.0
        %6323 = vmatprep.mubr.f32.mxu0 0.0
        %v6324 = vand.u32 %v6125, 4294901760
        %6325 = vmatmul.mubr.f32.gmra.mxu0 %v6324
        %v6326 = vpop.f32.mrf.mxu0
        %v6327 = vadd.f32 %v6211, %v6326
        %v6328 = vpop.f32.mrf.mxu0
        %6329 = vdwg.mxu0
        %6330 = vmatprep.subr.mxu0 0.0
        %6331 = vmatpush1.msra.mxu0 0.0
        %6332 = vmatprep.subr.mxu0 0.0
        %6333 = vmatpush1.msra.mxu0 0.0
        %6334 = vmatprep.subr.mxu0 0.0
        %6335 = vmatpush1.msra.mxu0 0.0
        %6336 = vmatprep.subr.mxu0 0.0
        %6337 = vmatpush1.msra.mxu0 0.0
        %6338 = vmatprep.subr.mxu0 0.0
        %6339 = vmatpush1.msra.mxu0 0.0
        %6340 = vmatprep.subr.mxu0 0.0
        %6341 = vmatpush1.msra.mxu0 0.0
        %6342 = vmatprep.subr.mxu0 0.0
        %6343 = vmatpush1.msra.mxu0 0.0
        %6344 = vmatprep.subr.mxu0 0.0
        %v6345 = vand.u32 %v6128, 4294901760
        %v6346 = vsub.f32 %v6128, %v6345
        %6347 = vmatpush1.msra.mxu0 %v6346
        %6348 = vmatprep.subr.mxu0 0.0
        %v6349 = vand.u32 %v6122, 4294901760
        %v6350 = vsub.f32 %v6122, %v6349
        %6351 = vmatpush1.msra.mxu0 %v6350
        %6352 = vmatprep.subr.mxu0 0.0
        %v6353 = vand.u32 %v6121, 4294901760
        %v6354 = vsub.f32 %v6121, %v6353
        %6355 = vmatpush1.msra.mxu0 %v6354
        %6356 = vmatprep.subr.mxu0 0.0
        %v6357 = vand.u32 %v6120, 4294901760
        %v6358 = vsub.f32 %v6120, %v6357
        %6359 = vmatpush1.msra.mxu0 %v6358
        %6360 = vmatprep.subr.mxu0 0.0
        %v6361 = vand.u32 %v6119, 4294901760
        %v6362 = vsub.f32 %v6119, %v6361
        %6363 = vmatpush1.msra.mxu0 %v6362
        %6364 = vmatprep.subr.mxu0 0.0
        %v6365 = vand.u32 %v6118, 4294901760
        %v6366 = vsub.f32 %v6118, %v6365
        %6367 = vmatpush1.msra.mxu0 %v6366
        %6368 = vmatprep.subr.mxu0 0.0
        %v6369 = vand.u32 %v6117, 4294901760
        %v6370 = vsub.f32 %v6117, %v6369
        %6371 = vmatpush1.msra.mxu0 %v6370
        %6372 = vmatprep.subr.mxu0 0.0
        %v6373 = vand.u32 %v6116, 4294901760
        %v6374 = vsub.f32 %v6116, %v6373
        %6375 = vmatpush1.msra.mxu0 %v6374
        %6376 = vmatprep.subr.mxu0 0.0
        %v6377 = vand.u32 %v6115, 4294901760
        %v6378 = vsub.f32 %v6115, %v6377
        %6379 = vmatpush1.msra.mxu0 %v6378
        %6380 = vmatprep.subr.mxu0 0.0
        %6381 = vmatpush2.msra.mxu0 0.0
        %6382 = vmatprep.subr.mxu0 0.0
        %6383 = vmatpush2.msra.mxu0 0.0
        %6384 = vmatprep.subr.mxu0 0.0
        %6385 = vmatpush2.msra.mxu0 0.0
        %6386 = vmatprep.subr.mxu0 0.0
        %6387 = vmatpush2.msra.mxu0 0.0
        %6388 = vmatprep.subr.mxu0 0.0
        %6389 = vmatpush2.msra.mxu0 0.0
        %6390 = vmatprep.subr.mxu0 0.0
        %6391 = vmatpush2.msra.mxu0 0.0
        %6392 = vmatprep.subr.mxu0 0.0
        %6393 = vmatpush2.msra.mxu0 0.0
        %6394 = vmatprep.subr.mxu0 0.0
        %6395 = vmatpush2.msra.mxu0 0.0
        %6396 = vmatprep.subr.mxu0 0.0
        %6397 = vmatpush2.msra.mxu0 0.0
        %6398 = vmatprep.subr.mxu0 0.0
        %6399 = vmatpush2.msra.mxu0 0.0
        %6400 = vmatprep.subr.mxu0 0.0
        %6401 = vmatpush2.msra.mxu0 0.0
        %6402 = vmatprep.subr.mxu0 0.0
        %6403 = vmatpush2.msra.mxu0 0.0
        %6404 = vmatprep.subr.mxu0 0.0
        %6405 = vmatpush2.msra.mxu0 0.0
        %6406 = vmatprep.subr.mxu0 0.0
        %6407 = vmatpush2.msra.mxu0 0.0
        %6408 = vmatprep.subr.mxu0 0.0
        %6409 = vmatpush2.msra.mxu0 0.0
        %6410 = vmatprep.subr.mxu0 0.0
        %6411 = vmatpush2.msra.mxu0 0.0
        %6412 = vmatprep.mubr.f32.mxu0 0.0
        %v6413 = vand.u32 %v6125, 4294901760
        %v6414 = vsub.f32 %v6125, %v6413
        %6415 = vmatmul.mubr.f32.gmra.mxu0 %v6414
        %v6416 = vpop.f32.mrf.mxu0
        %v6417 = vadd.f32 %v6327, %v6416
        %v6418 = vpop.f32.mrf.mxu0
        %6419 = vdwg.mxu0
        %6420 = vmatprep.subr.mxu0 0.0
        %6421 = vmatpush1.msra.mxu0 0.0
        %6422 = vmatprep.subr.mxu0 0.0
        %6423 = vmatpush1.msra.mxu0 0.0
        %6424 = vmatprep.subr.mxu0 0.0
        %6425 = vmatpush1.msra.mxu0 0.0
        %6426 = vmatprep.subr.mxu0 0.0
        %6427 = vmatpush1.msra.mxu0 0.0
        %6428 = vmatprep.subr.mxu0 0.0
        %6429 = vmatpush1.msra.mxu0 0.0
        %6430 = vmatprep.subr.mxu0 0.0
        %6431 = vmatpush1.msra.mxu0 0.0
        %6432 = vmatprep.subr.mxu0 0.0
        %6433 = vmatpush1.msra.mxu0 0.0
        %6434 = vmatprep.subr.mxu0 0.0
        %v6435 = vand.u32 %v6128, 4294901760
        %6436 = vmatpush1.msra.mxu0 %v6435
        %6437 = vmatprep.subr.mxu0 0.0
        %v6438 = vand.u32 %v6122, 4294901760
        %6439 = vmatpush1.msra.mxu0 %v6438
        %6440 = vmatprep.subr.mxu0 0.0
        %v6441 = vand.u32 %v6121, 4294901760
        %6442 = vmatpush1.msra.mxu0 %v6441
        %6443 = vmatprep.subr.mxu0 0.0
        %v6444 = vand.u32 %v6120, 4294901760
        %6445 = vmatpush1.msra.mxu0 %v6444
        %6446 = vmatprep.subr.mxu0 0.0
        %v6447 = vand.u32 %v6119, 4294901760
        %6448 = vmatpush1.msra.mxu0 %v6447
        %6449 = vmatprep.subr.mxu0 0.0
        %v6450 = vand.u32 %v6118, 4294901760
        %6451 = vmatpush1.msra.mxu0 %v6450
        %6452 = vmatprep.subr.mxu0 0.0
        %v6453 = vand.u32 %v6117, 4294901760
        %6454 = vmatpush1.msra.mxu0 %v6453
        %6455 = vmatprep.subr.mxu0 0.0
        %v6456 = vand.u32 %v6116, 4294901760
        %6457 = vmatpush1.msra.mxu0 %v6456
        %6458 = vmatprep.subr.mxu0 0.0
        %v6459 = vand.u32 %v6115, 4294901760
        %6460 = vmatpush1.msra.mxu0 %v6459
        %6461 = vmatprep.subr.mxu0 0.0
        %6462 = vmatpush2.msra.mxu0 0.0
        %6463 = vmatprep.subr.mxu0 0.0
        %6464 = vmatpush2.msra.mxu0 0.0
        %6465 = vmatprep.subr.mxu0 0.0
        %6466 = vmatpush2.msra.mxu0 0.0
        %6467 = vmatprep.subr.mxu0 0.0
        %6468 = vmatpush2.msra.mxu0 0.0
        %6469 = vmatprep.subr.mxu0 0.0
        %6470 = vmatpush2.msra.mxu0 0.0
        %6471 = vmatprep.subr.mxu0 0.0
        %6472 = vmatpush2.msra.mxu0 0.0
        %6473 = vmatprep.subr.mxu0 0.0
        %6474 = vmatpush2.msra.mxu0 0.0
        %6475 = vmatprep.subr.mxu0 0.0
        %6476 = vmatpush2.msra.mxu0 0.0
        %6477 = vmatprep.subr.mxu0 0.0
        %6478 = vmatpush2.msra.mxu0 0.0
        %6479 = vmatprep.subr.mxu0 0.0
        %6480 = vmatpush2.msra.mxu0 0.0
        %6481 = vmatprep.subr.mxu0 0.0
        %6482 = vmatpush2.msra.mxu0 0.0
        %6483 = vmatprep.subr.mxu0 0.0
        %6484 = vmatpush2.msra.mxu0 0.0
        %6485 = vmatprep.subr.mxu0 0.0
        %6486 = vmatpush2.msra.mxu0 0.0
        %6487 = vmatprep.subr.mxu0 0.0
        %6488 = vmatpush2.msra.mxu0 0.0
        %6489 = vmatprep.subr.mxu0 0.0
        %6490 = vmatpush2.msra.mxu0 0.0
        %6491 = vmatprep.subr.mxu0 0.0
        %6492 = vmatpush2.msra.mxu0 0.0
        %6493 = vmatprep.mubr.f32.mxu0 0.0
        %v6494 = vand.u32 %v6125, 4294901760
        %v6495 = vsub.f32 %v6125, %v6494
        %v6496 = vand.u32 %v6495, 4294901760
        %6497 = vmatmul.mubr.f32.gmra.mxu0 %v6496
        %v6498 = vpop.f32.mrf.mxu0
        %v6499 = vadd.f32 %v6417, %v6498
        %v6500 = vpop.f32.mrf.mxu0
        %6501 = vdwg.mxu0
        %6502 = vmatprep.subr.mxu0 0.0
        %6503 = vmatpush1.msra.mxu0 0.0
        %6504 = vmatprep.subr.mxu0 0.0
        %6505 = vmatpush1.msra.mxu0 0.0
        %6506 = vmatprep.subr.mxu0 0.0
        %6507 = vmatpush1.msra.mxu0 0.0
        %6508 = vmatprep.subr.mxu0 0.0
        %6509 = vmatpush1.msra.mxu0 0.0
        %6510 = vmatprep.subr.mxu0 0.0
        %6511 = vmatpush1.msra.mxu0 0.0
        %6512 = vmatprep.subr.mxu0 0.0
        %6513 = vmatpush1.msra.mxu0 0.0
        %6514 = vmatprep.subr.mxu0 0.0
        %6515 = vmatpush1.msra.mxu0 0.0
        %6516 = vmatprep.subr.mxu0 0.0
        %v6517 = vand.u32 %v6128, 4294901760
        %v6518 = vsub.f32 %v6128, %v6517
        %v6519 = vand.u32 %v6518, 4294901760
        %6520 = vmatpush1.msra.mxu0 %v6519
        %6521 = vmatprep.subr.mxu0 0.0
        %v6522 = vand.u32 %v6122, 4294901760
        %v6523 = vsub.f32 %v6122, %v6522
        %v6524 = vand.u32 %v6523, 4294901760
        %6525 = vmatpush1.msra.mxu0 %v6524
        %6526 = vmatprep.subr.mxu0 0.0
        %v6527 = vand.u32 %v6121, 4294901760
        %v6528 = vsub.f32 %v6121, %v6527
        %v6529 = vand.u32 %v6528, 4294901760
        %6530 = vmatpush1.msra.mxu0 %v6529
        %6531 = vmatprep.subr.mxu0 0.0
        %v6532 = vand.u32 %v6120, 4294901760
        %v6533 = vsub.f32 %v6120, %v6532
        %v6534 = vand.u32 %v6533, 4294901760
        %6535 = vmatpush1.msra.mxu0 %v6534
        %6536 = vmatprep.subr.mxu0 0.0
        %v6537 = vand.u32 %v6119, 4294901760
        %v6538 = vsub.f32 %v6119, %v6537
        %v6539 = vand.u32 %v6538, 4294901760
        %6540 = vmatpush1.msra.mxu0 %v6539
        %6541 = vmatprep.subr.mxu0 0.0
        %v6542 = vand.u32 %v6118, 4294901760
        %v6543 = vsub.f32 %v6118, %v6542
        %v6544 = vand.u32 %v6543, 4294901760
        %6545 = vmatpush1.msra.mxu0 %v6544
        %6546 = vmatprep.subr.mxu0 0.0
        %v6547 = vand.u32 %v6117, 4294901760
        %v6548 = vsub.f32 %v6117, %v6547
        %v6549 = vand.u32 %v6548, 4294901760
        %6550 = vmatpush1.msra.mxu0 %v6549
        %6551 = vmatprep.subr.mxu0 0.0
        %v6552 = vand.u32 %v6116, 4294901760
        %v6553 = vsub.f32 %v6116, %v6552
        %v6554 = vand.u32 %v6553, 4294901760
        %6555 = vmatpush1.msra.mxu0 %v6554
        %6556 = vmatprep.subr.mxu0 0.0
        %v6557 = vand.u32 %v6115, 4294901760
        %v6558 = vsub.f32 %v6115, %v6557
        %v6559 = vand.u32 %v6558, 4294901760
        %6560 = vmatpush1.msra.mxu0 %v6559
        %6561 = vmatprep.subr.mxu0 0.0
        %6562 = vmatpush2.msra.mxu0 0.0
        %6563 = vmatprep.subr.mxu0 0.0
        %6564 = vmatpush2.msra.mxu0 0.0
        %6565 = vmatprep.subr.mxu0 0.0
        %6566 = vmatpush2.msra.mxu0 0.0
        %6567 = vmatprep.subr.mxu0 0.0
        %6568 = vmatpush2.msra.mxu0 0.0
        %6569 = vmatprep.subr.mxu0 0.0
        %6570 = vmatpush2.msra.mxu0 0.0
        %6571 = vmatprep.subr.mxu0 0.0
        %6572 = vmatpush2.msra.mxu0 0.0
        %6573 = vmatprep.subr.mxu0 0.0
        %6574 = vmatpush2.msra.mxu0 0.0
        %6575 = vmatprep.subr.mxu0 0.0
        %6576 = vmatpush2.msra.mxu0 0.0
        %6577 = vmatprep.subr.mxu0 0.0
        %6578 = vmatpush2.msra.mxu0 0.0
        %6579 = vmatprep.subr.mxu0 0.0
        %6580 = vmatpush2.msra.mxu0 0.0
        %6581 = vmatprep.subr.mxu0 0.0
        %6582 = vmatpush2.msra.mxu0 0.0
        %6583 = vmatprep.subr.mxu0 0.0
        %6584 = vmatpush2.msra.mxu0 0.0
        %6585 = vmatprep.subr.mxu0 0.0
        %6586 = vmatpush2.msra.mxu0 0.0
        %6587 = vmatprep.subr.mxu0 0.0
        %6588 = vmatpush2.msra.mxu0 0.0
        %6589 = vmatprep.subr.mxu0 0.0
        %6590 = vmatpush2.msra.mxu0 0.0
        %6591 = vmatprep.subr.mxu0 0.0
        %6592 = vmatpush2.msra.mxu0 0.0
        %6593 = vmatprep.mubr.f32.mxu0 0.0
        %v6594 = vand.u32 %v6125, 4294901760
        %6595 = vmatmul.mubr.f32.gmra.mxu0 %v6594
        %v6596 = vpop.f32.mrf.mxu0
        %v6597 = vadd.f32 %v6499, %v6596
        %v6598 = vpop.f32.mrf.mxu0
        %6599 = vdwg.mxu0
        %6600 = vmatprep.subr.mxu0 0.0
        %6601 = vmatpush1.msra.mxu0 0.0
        %6602 = vmatprep.subr.mxu0 0.0
        %6603 = vmatpush1.msra.mxu0 0.0
        %6604 = vmatprep.subr.mxu0 0.0
        %6605 = vmatpush1.msra.mxu0 0.0
        %6606 = vmatprep.subr.mxu0 0.0
        %6607 = vmatpush1.msra.mxu0 0.0
        %6608 = vmatprep.subr.mxu0 0.0
        %6609 = vmatpush1.msra.mxu0 0.0
        %6610 = vmatprep.subr.mxu0 0.0
        %6611 = vmatpush1.msra.mxu0 0.0
        %6612 = vmatprep.subr.mxu0 0.0
        %6613 = vmatpush1.msra.mxu0 0.0
        %6614 = vmatprep.subr.mxu0 0.0
        %v6615 = vand.u32 %v6128, 4294901760
        %6616 = vmatpush1.msra.mxu0 %v6615
        %6617 = vmatprep.subr.mxu0 0.0
        %v6618 = vand.u32 %v6122, 4294901760
        %6619 = vmatpush1.msra.mxu0 %v6618
        %6620 = vmatprep.subr.mxu0 0.0
        %v6621 = vand.u32 %v6121, 4294901760
        %6622 = vmatpush1.msra.mxu0 %v6621
        %6623 = vmatprep.subr.mxu0 0.0
        %v6624 = vand.u32 %v6120, 4294901760
        %6625 = vmatpush1.msra.mxu0 %v6624
        %6626 = vmatprep.subr.mxu0 0.0
        %v6627 = vand.u32 %v6119, 4294901760
        %6628 = vmatpush1.msra.mxu0 %v6627
        %6629 = vmatprep.subr.mxu0 0.0
        %v6630 = vand.u32 %v6118, 4294901760
        %6631 = vmatpush1.msra.mxu0 %v6630
        %6632 = vmatprep.subr.mxu0 0.0
        %v6633 = vand.u32 %v6117, 4294901760
        %6634 = vmatpush1.msra.mxu0 %v6633
        %6635 = vmatprep.subr.mxu0 0.0
        %v6636 = vand.u32 %v6116, 4294901760
        %6637 = vmatpush1.msra.mxu0 %v6636
        %6638 = vmatprep.subr.mxu0 0.0
        %v6639 = vand.u32 %v6115, 4294901760
        %6640 = vmatpush1.msra.mxu0 %v6639
        %6641 = vmatprep.subr.mxu0 0.0
        %6642 = vmatpush2.msra.mxu0 0.0
        %6643 = vmatprep.subr.mxu0 0.0
        %6644 = vmatpush2.msra.mxu0 0.0
        %6645 = vmatprep.subr.mxu0 0.0
        %6646 = vmatpush2.msra.mxu0 0.0
        %6647 = vmatprep.subr.mxu0 0.0
        %6648 = vmatpush2.msra.mxu0 0.0
        %6649 = vmatprep.subr.mxu0 0.0
        %6650 = vmatpush2.msra.mxu0 0.0
        %6651 = vmatprep.subr.mxu0 0.0
        %6652 = vmatpush2.msra.mxu0 0.0
        %6653 = vmatprep.subr.mxu0 0.0
        %6654 = vmatpush2.msra.mxu0 0.0
        %6655 = vmatprep.subr.mxu0 0.0
        %6656 = vmatpush2.msra.mxu0 0.0
        %6657 = vmatprep.subr.mxu0 0.0
        %6658 = vmatpush2.msra.mxu0 0.0
        %6659 = vmatprep.subr.mxu0 0.0
        %6660 = vmatpush2.msra.mxu0 0.0
        %6661 = vmatprep.subr.mxu0 0.0
        %6662 = vmatpush2.msra.mxu0 0.0
        %6663 = vmatprep.subr.mxu0 0.0
        %6664 = vmatpush2.msra.mxu0 0.0
        %6665 = vmatprep.subr.mxu0 0.0
        %6666 = vmatpush2.msra.mxu0 0.0
        %6667 = vmatprep.subr.mxu0 0.0
        %6668 = vmatpush2.msra.mxu0 0.0
        %6669 = vmatprep.subr.mxu0 0.0
        %6670 = vmatpush2.msra.mxu0 0.0
        %6671 = vmatprep.subr.mxu0 0.0
        %6672 = vmatpush2.msra.mxu0 0.0
        %6673 = vmatprep.mubr.f32.mxu0 0.0
        %v6674 = vand.u32 %v6125, 4294901760
        %6675 = vmatmul.mubr.f32.gmra.mxu0 %v6674
        %v6676 = vpop.f32.mrf.mxu0
        %v6677 = vadd.f32 %v6597, %v6676
        %v6678 = vpop.f32.mrf.mxu0
        %6679 = vdwg.mxu0
        %v6680 = vadd.f32 %v6110, %v6677
        %v6681 = vld [vmem:[%s7] sm:$0x1]
        %v6683 = vlaneseq
        %v6684 = vshrl.u32 %v6683, 7
        %v6685 = vsub.s32 0, %v6684
        %v6686 = vrot.slane %v6681, %v6685
        %v6688 = vadd.f32 %v6680, %v6686
        %vm6689 = vcmp.gt.f32.partialorder %v6688, 0.0
        %v6690 = vld [vmem:[%s8] sm:$0x1]
        %v6692 = vlaneseq
        %v6693 = vshrl.u32 %v6692, 7
        %v6694 = vsub.s32 0, %v6693
        %v6695 = vrot.slane %v6690, %v6694
        %v6697 = vmul.f32 %v6695, %v6688
        %v6698 = vsel %vm6689, %v6688, %v6697
        %vm6699 = vcmask 651264
        %6700 = vst.msk [vmem:[#allocation4] sm:$0x1f] %vm6699, %v6698
        %v6701 = vld [vmem:[#allocation4] sm:$0x7]
        %v6702 = vld [vmem:[%s9] sm:$0xff]
        %v6703 = vld [vmem:[%s9 + $0x8] sm:$0xff]
        %v6704 = vld [vmem:[%s9 + $0x10] sm:$0xff]
        %v6705 = vld [vmem:[%s9 + $0x18] sm:$0xff]
        %v6706 = vld [vmem:[%s9 + $0x20] sm:$0xff]
        %v6707 = vld [vmem:[%s9 + $0x28] sm:$0xff]
        %v6708 = vld [vmem:[%s9 + $0x30] sm:$0xff]
        %v6709 = vld [vmem:[%s9 + $0x38] sm:$0xff]
        %v6710 = vld [vmem:[%s9 + $0x40] sm:$0xff]
        %v6711 = vld [vmem:[%s9 + $0x48] sm:$0xff]
        %v6712 = vld [vmem:[#allocation4 + $0x1] sm:$0x7]
        %s6713 = scalar_lea.vmem %s9, 80
        %v6714 = vld [vmem:[%s6713] sm:$0xff]
        %v6715 = vld [vmem:[%s6713 + $0x8] sm:$0xff]
        %v6716 = vld [vmem:[%s6713 + $0x10] sm:$0xff]
        %v6717 = vld [vmem:[%s6713 + $0x18] sm:$0xff]
        %v6718 = vld [vmem:[%s6713 + $0x20] sm:$0xff]
        %v6719 = vld [vmem:[%s6713 + $0x28] sm:$0xff]
        %v6720 = vld [vmem:[%s6713 + $0x30] sm:$0xff]
        %v6721 = vld [vmem:[%s6713 + $0x38] sm:$0xff]
        %v6722 = vld [vmem:[%s6713 + $0x40] sm:$0xff]
        %v6723 = vld [vmem:[%s6713 + $0x48] sm:$0xff]
        %vm6724 = vcmask 654336
        %v6726 = vsel %vm6724, %v6712, 0
        %6728 = vmatprep.subr.mxu0 0.0
        %6729 = vmatpush1.msra.mxu0 0.0
        %6730 = vmatprep.subr.mxu0 0.0
        %6731 = vmatpush1.msra.mxu0 0.0
        %6732 = vmatprep.subr.mxu0 0.0
        %6733 = vmatpush1.msra.mxu0 0.0
        %6734 = vmatprep.subr.mxu0 0.0
        %6735 = vmatpush1.msra.mxu0 0.0
        %6736 = vmatprep.subr.mxu0 0.0
        %6737 = vmatpush1.msra.mxu0 0.0
        %6738 = vmatprep.subr.mxu0 0.0
        %6739 = vmatpush1.msra.mxu0 0.0
        %6740 = vmatprep.subr.mxu0 0.0
        %v6741 = vand.u32 %v6723, 4294901760
        %6742 = vmatpush1.msra.mxu0 %v6741
        %6743 = vmatprep.subr.mxu0 0.0
        %v6744 = vand.u32 %v6722, 4294901760
        %6745 = vmatpush1.msra.mxu0 %v6744
        %6746 = vmatprep.subr.mxu0 0.0
        %v6747 = vand.u32 %v6721, 4294901760
        %6748 = vmatpush1.msra.mxu0 %v6747
        %6749 = vmatprep.subr.mxu0 0.0
        %v6750 = vand.u32 %v6720, 4294901760
        %6751 = vmatpush1.msra.mxu0 %v6750
        %6752 = vmatprep.subr.mxu0 0.0
        %v6753 = vand.u32 %v6719, 4294901760
        %6754 = vmatpush1.msra.mxu0 %v6753
        %6755 = vmatprep.subr.mxu0 0.0
        %v6756 = vand.u32 %v6718, 4294901760
        %6757 = vmatpush1.msra.mxu0 %v6756
        %6758 = vmatprep.subr.mxu0 0.0
        %v6759 = vand.u32 %v6717, 4294901760
        %6760 = vmatpush1.msra.mxu0 %v6759
        %6761 = vmatprep.subr.mxu0 0.0
        %v6762 = vand.u32 %v6716, 4294901760
        %6763 = vmatpush1.msra.mxu0 %v6762
        %6764 = vmatprep.subr.mxu0 0.0
        %v6765 = vand.u32 %v6715, 4294901760
        %6766 = vmatpush1.msra.mxu0 %v6765
        %6767 = vmatprep.subr.mxu0 0.0
        %v6768 = vand.u32 %v6714, 4294901760
        %6769 = vmatpush1.msra.mxu0 %v6768
        %6770 = vmatprep.subr.mxu0 0.0
        %6771 = vmatpush2.msra.mxu0 0.0
        %6772 = vmatprep.subr.mxu0 0.0
        %6773 = vmatpush2.msra.mxu0 0.0
        %6774 = vmatprep.subr.mxu0 0.0
        %6775 = vmatpush2.msra.mxu0 0.0
        %6776 = vmatprep.subr.mxu0 0.0
        %6777 = vmatpush2.msra.mxu0 0.0
        %6778 = vmatprep.subr.mxu0 0.0
        %6779 = vmatpush2.msra.mxu0 0.0
        %6780 = vmatprep.subr.mxu0 0.0
        %6781 = vmatpush2.msra.mxu0 0.0
        %6782 = vmatprep.subr.mxu0 0.0
        %6783 = vmatpush2.msra.mxu0 0.0
        %6784 = vmatprep.subr.mxu0 0.0
        %6785 = vmatpush2.msra.mxu0 0.0
        %6786 = vmatprep.subr.mxu0 0.0
        %6787 = vmatpush2.msra.mxu0 0.0
        %6788 = vmatprep.subr.mxu0 0.0
        %6789 = vmatpush2.msra.mxu0 0.0
        %6790 = vmatprep.subr.mxu0 0.0
        %6791 = vmatpush2.msra.mxu0 0.0
        %6792 = vmatprep.subr.mxu0 0.0
        %6793 = vmatpush2.msra.mxu0 0.0
        %6794 = vmatprep.subr.mxu0 0.0
        %6795 = vmatpush2.msra.mxu0 0.0
        %6796 = vmatprep.subr.mxu0 0.0
        %6797 = vmatpush2.msra.mxu0 0.0
        %6798 = vmatprep.subr.mxu0 0.0
        %6799 = vmatpush2.msra.mxu0 0.0
        %6800 = vmatprep.subr.mxu0 0.0
        %6801 = vmatpush2.msra.mxu0 0.0
        %6802 = vmatprep.mubr.f32.mxu0 0.0
        %v6803 = vand.u32 %v6726, 4294901760
        %v6804 = vsub.f32 %v6726, %v6803
        %v6805 = vand.u32 %v6804, 4294901760
        %v6806 = vsub.f32 %v6804, %v6805
        %v6807 = vand.u32 %v6806, 4294901760
        %6808 = vmatmul.mubr.f32.gmra.mxu0 %v6807
        %v6809 = vpop.f32.mrf.mxu0
        %v6810 = vadd.f32 0.0, %v6809
        %v6811 = vpop.f32.mrf.mxu0
        %6812 = vdwg.mxu0
        %6813 = vmatprep.subr.mxu0 0.0
        %6814 = vmatpush1.msra.mxu0 0.0
        %6815 = vmatprep.subr.mxu0 0.0
        %6816 = vmatpush1.msra.mxu0 0.0
        %6817 = vmatprep.subr.mxu0 0.0
        %6818 = vmatpush1.msra.mxu0 0.0
        %6819 = vmatprep.subr.mxu0 0.0
        %6820 = vmatpush1.msra.mxu0 0.0
        %6821 = vmatprep.subr.mxu0 0.0
        %6822 = vmatpush1.msra.mxu0 0.0
        %6823 = vmatprep.subr.mxu0 0.0
        %6824 = vmatpush1.msra.mxu0 0.0
        %6825 = vmatprep.subr.mxu0 0.0
        %v6826 = vand.u32 %v6723, 4294901760
        %v6827 = vsub.f32 %v6723, %v6826
        %v6828 = vand.u32 %v6827, 4294901760
        %v6829 = vsub.f32 %v6827, %v6828
        %v6830 = vand.u32 %v6829, 4294901760
        %6831 = vmatpush1.msra.mxu0 %v6830
        %6832 = vmatprep.subr.mxu0 0.0
        %v6833 = vand.u32 %v6722, 4294901760
        %v6834 = vsub.f32 %v6722, %v6833
        %v6835 = vand.u32 %v6834, 4294901760
        %v6836 = vsub.f32 %v6834, %v6835
        %v6837 = vand.u32 %v6836, 4294901760
        %6838 = vmatpush1.msra.mxu0 %v6837
        %6839 = vmatprep.subr.mxu0 0.0
        %v6840 = vand.u32 %v6721, 4294901760
        %v6841 = vsub.f32 %v6721, %v6840
        %v6842 = vand.u32 %v6841, 4294901760
        %v6843 = vsub.f32 %v6841, %v6842
        %v6844 = vand.u32 %v6843, 4294901760
        %6845 = vmatpush1.msra.mxu0 %v6844
        %6846 = vmatprep.subr.mxu0 0.0
        %v6847 = vand.u32 %v6720, 4294901760
        %v6848 = vsub.f32 %v6720, %v6847
        %v6849 = vand.u32 %v6848, 4294901760
        %v6850 = vsub.f32 %v6848, %v6849
        %v6851 = vand.u32 %v6850, 4294901760
        %6852 = vmatpush1.msra.mxu0 %v6851
        %6853 = vmatprep.subr.mxu0 0.0
        %v6854 = vand.u32 %v6719, 4294901760
        %v6855 = vsub.f32 %v6719, %v6854
        %v6856 = vand.u32 %v6855, 4294901760
        %v6857 = vsub.f32 %v6855, %v6856
        %v6858 = vand.u32 %v6857, 4294901760
        %6859 = vmatpush1.msra.mxu0 %v6858
        %6860 = vmatprep.subr.mxu0 0.0
        %v6861 = vand.u32 %v6718, 4294901760
        %v6862 = vsub.f32 %v6718, %v6861
        %v6863 = vand.u32 %v6862, 4294901760
        %v6864 = vsub.f32 %v6862, %v6863
        %v6865 = vand.u32 %v6864, 4294901760
        %6866 = vmatpush1.msra.mxu0 %v6865
        %6867 = vmatprep.subr.mxu0 0.0
        %v6868 = vand.u32 %v6717, 4294901760
        %v6869 = vsub.f32 %v6717, %v6868
        %v6870 = vand.u32 %v6869, 4294901760
        %v6871 = vsub.f32 %v6869, %v6870
        %v6872 = vand.u32 %v6871, 4294901760
        %6873 = vmatpush1.msra.mxu0 %v6872
        %6874 = vmatprep.subr.mxu0 0.0
        %v6875 = vand.u32 %v6716, 4294901760
        %v6876 = vsub.f32 %v6716, %v6875
        %v6877 = vand.u32 %v6876, 4294901760
        %v6878 = vsub.f32 %v6876, %v6877
        %v6879 = vand.u32 %v6878, 4294901760
        %6880 = vmatpush1.msra.mxu0 %v6879
        %6881 = vmatprep.subr.mxu0 0.0
        %v6882 = vand.u32 %v6715, 4294901760
        %v6883 = vsub.f32 %v6715, %v6882
        %v6884 = vand.u32 %v6883, 4294901760
        %v6885 = vsub.f32 %v6883, %v6884
        %v6886 = vand.u32 %v6885, 4294901760
        %6887 = vmatpush1.msra.mxu0 %v6886
        %6888 = vmatprep.subr.mxu0 0.0
        %v6889 = vand.u32 %v6714, 4294901760
        %v6890 = vsub.f32 %v6714, %v6889
        %v6891 = vand.u32 %v6890, 4294901760
        %v6892 = vsub.f32 %v6890, %v6891
        %v6893 = vand.u32 %v6892, 4294901760
        %6894 = vmatpush1.msra.mxu0 %v6893
        %6895 = vmatprep.subr.mxu0 0.0
        %6896 = vmatpush2.msra.mxu0 0.0
        %6897 = vmatprep.subr.mxu0 0.0
        %6898 = vmatpush2.msra.mxu0 0.0
        %6899 = vmatprep.subr.mxu0 0.0
        %6900 = vmatpush2.msra.mxu0 0.0
        %6901 = vmatprep.subr.mxu0 0.0
        %6902 = vmatpush2.msra.mxu0 0.0
        %6903 = vmatprep.subr.mxu0 0.0
        %6904 = vmatpush2.msra.mxu0 0.0
        %6905 = vmatprep.subr.mxu0 0.0
        %6906 = vmatpush2.msra.mxu0 0.0
        %6907 = vmatprep.subr.mxu0 0.0
        %6908 = vmatpush2.msra.mxu0 0.0
        %6909 = vmatprep.subr.mxu0 0.0
        %6910 = vmatpush2.msra.mxu0 0.0
        %6911 = vmatprep.subr.mxu0 0.0
        %6912 = vmatpush2.msra.mxu0 0.0
        %6913 = vmatprep.subr.mxu0 0.0
        %6914 = vmatpush2.msra.mxu0 0.0
        %6915 = vmatprep.subr.mxu0 0.0
        %6916 = vmatpush2.msra.mxu0 0.0
        %6917 = vmatprep.subr.mxu0 0.0
        %6918 = vmatpush2.msra.mxu0 0.0
        %6919 = vmatprep.subr.mxu0 0.0
        %6920 = vmatpush2.msra.mxu0 0.0
        %6921 = vmatprep.subr.mxu0 0.0
        %6922 = vmatpush2.msra.mxu0 0.0
        %6923 = vmatprep.subr.mxu0 0.0
        %6924 = vmatpush2.msra.mxu0 0.0
        %6925 = vmatprep.subr.mxu0 0.0
        %6926 = vmatpush2.msra.mxu0 0.0
        %6927 = vmatprep.mubr.f32.mxu0 0.0
        %v6928 = vand.u32 %v6726, 4294901760
        %6929 = vmatmul.mubr.f32.gmra.mxu0 %v6928
        %v6930 = vpop.f32.mrf.mxu0
        %v6931 = vadd.f32 %v6810, %v6930
        %v6932 = vpop.f32.mrf.mxu0
        %6933 = vdwg.mxu0
        %6934 = vmatprep.subr.mxu0 0.0
        %6935 = vmatpush1.msra.mxu0 0.0
        %6936 = vmatprep.subr.mxu0 0.0
        %6937 = vmatpush1.msra.mxu0 0.0
        %6938 = vmatprep.subr.mxu0 0.0
        %6939 = vmatpush1.msra.mxu0 0.0
        %6940 = vmatprep.subr.mxu0 0.0
        %6941 = vmatpush1.msra.mxu0 0.0
        %6942 = vmatprep.subr.mxu0 0.0
        %6943 = vmatpush1.msra.mxu0 0.0
        %6944 = vmatprep.subr.mxu0 0.0
        %6945 = vmatpush1.msra.mxu0 0.0
        %6946 = vmatprep.subr.mxu0 0.0
        %v6947 = vand.u32 %v6723, 4294901760
        %v6948 = vsub.f32 %v6723, %v6947
        %6949 = vmatpush1.msra.mxu0 %v6948
        %6950 = vmatprep.subr.mxu0 0.0
        %v6951 = vand.u32 %v6722, 4294901760
        %v6952 = vsub.f32 %v6722, %v6951
        %6953 = vmatpush1.msra.mxu0 %v6952
        %6954 = vmatprep.subr.mxu0 0.0
        %v6955 = vand.u32 %v6721, 4294901760
        %v6956 = vsub.f32 %v6721, %v6955
        %6957 = vmatpush1.msra.mxu0 %v6956
        %6958 = vmatprep.subr.mxu0 0.0
        %v6959 = vand.u32 %v6720, 4294901760
        %v6960 = vsub.f32 %v6720, %v6959
        %6961 = vmatpush1.msra.mxu0 %v6960
        %6962 = vmatprep.subr.mxu0 0.0
        %v6963 = vand.u32 %v6719, 4294901760
        %v6964 = vsub.f32 %v6719, %v6963
        %6965 = vmatpush1.msra.mxu0 %v6964
        %6966 = vmatprep.subr.mxu0 0.0
        %v6967 = vand.u32 %v6718, 4294901760
        %v6968 = vsub.f32 %v6718, %v6967
        %6969 = vmatpush1.msra.mxu0 %v6968
        %6970 = vmatprep.subr.mxu0 0.0
        %v6971 = vand.u32 %v6717, 4294901760
        %v6972 = vsub.f32 %v6717, %v6971
        %6973 = vmatpush1.msra.mxu0 %v6972
        %6974 = vmatprep.subr.mxu0 0.0
        %v6975 = vand.u32 %v6716, 4294901760
        %v6976 = vsub.f32 %v6716, %v6975
        %6977 = vmatpush1.msra.mxu0 %v6976
        %6978 = vmatprep.subr.mxu0 0.0
        %v6979 = vand.u32 %v6715, 4294901760
        %v6980 = vsub.f32 %v6715, %v6979
        %6981 = vmatpush1.msra.mxu0 %v6980
        %6982 = vmatprep.subr.mxu0 0.0
        %v6983 = vand.u32 %v6714, 4294901760
        %v6984 = vsub.f32 %v6714, %v6983
        %6985 = vmatpush1.msra.mxu0 %v6984
        %6986 = vmatprep.subr.mxu0 0.0
        %6987 = vmatpush2.msra.mxu0 0.0
        %6988 = vmatprep.subr.mxu0 0.0
        %6989 = vmatpush2.msra.mxu0 0.0
        %6990 = vmatprep.subr.mxu0 0.0
        %6991 = vmatpush2.msra.mxu0 0.0
        %6992 = vmatprep.subr.mxu0 0.0
        %6993 = vmatpush2.msra.mxu0 0.0
        %6994 = vmatprep.subr.mxu0 0.0
        %6995 = vmatpush2.msra.mxu0 0.0
        %6996 = vmatprep.subr.mxu0 0.0
        %6997 = vmatpush2.msra.mxu0 0.0
        %6998 = vmatprep.subr.mxu0 0.0
        %6999 = vmatpush2.msra.mxu0 0.0
        %7000 = vmatprep.subr.mxu0 0.0
        %7001 = vmatpush2.msra.mxu0 0.0
        %7002 = vmatprep.subr.mxu0 0.0
        %7003 = vmatpush2.msra.mxu0 0.0
        %7004 = vmatprep.subr.mxu0 0.0
        %7005 = vmatpush2.msra.mxu0 0.0
        %7006 = vmatprep.subr.mxu0 0.0
        %7007 = vmatpush2.msra.mxu0 0.0
        %7008 = vmatprep.subr.mxu0 0.0
        %7009 = vmatpush2.msra.mxu0 0.0
        %7010 = vmatprep.subr.mxu0 0.0
        %7011 = vmatpush2.msra.mxu0 0.0
        %7012 = vmatprep.subr.mxu0 0.0
        %7013 = vmatpush2.msra.mxu0 0.0
        %7014 = vmatprep.subr.mxu0 0.0
        %7015 = vmatpush2.msra.mxu0 0.0
        %7016 = vmatprep.subr.mxu0 0.0
        %7017 = vmatpush2.msra.mxu0 0.0
        %7018 = vmatprep.mubr.f32.mxu0 0.0
        %v7019 = vand.u32 %v6726, 4294901760
        %v7020 = vsub.f32 %v6726, %v7019
        %7021 = vmatmul.mubr.f32.gmra.mxu0 %v7020
        %v7022 = vpop.f32.mrf.mxu0
        %v7023 = vadd.f32 %v6931, %v7022
        %v7024 = vpop.f32.mrf.mxu0
        %7025 = vdwg.mxu0
        %7026 = vmatprep.subr.mxu0 0.0
        %7027 = vmatpush1.msra.mxu0 0.0
        %7028 = vmatprep.subr.mxu0 0.0
        %7029 = vmatpush1.msra.mxu0 0.0
        %7030 = vmatprep.subr.mxu0 0.0
        %7031 = vmatpush1.msra.mxu0 0.0
        %7032 = vmatprep.subr.mxu0 0.0
        %7033 = vmatpush1.msra.mxu0 0.0
        %7034 = vmatprep.subr.mxu0 0.0
        %7035 = vmatpush1.msra.mxu0 0.0
        %7036 = vmatprep.subr.mxu0 0.0
        %7037 = vmatpush1.msra.mxu0 0.0
        %7038 = vmatprep.subr.mxu0 0.0
        %v7039 = vand.u32 %v6723, 4294901760
        %7040 = vmatpush1.msra.mxu0 %v7039
        %7041 = vmatprep.subr.mxu0 0.0
        %v7042 = vand.u32 %v6722, 4294901760
        %7043 = vmatpush1.msra.mxu0 %v7042
        %7044 = vmatprep.subr.mxu0 0.0
        %v7045 = vand.u32 %v6721, 4294901760
        %7046 = vmatpush1.msra.mxu0 %v7045
        %7047 = vmatprep.subr.mxu0 0.0
        %v7048 = vand.u32 %v6720, 4294901760
        %7049 = vmatpush1.msra.mxu0 %v7048
        %7050 = vmatprep.subr.mxu0 0.0
        %v7051 = vand.u32 %v6719, 4294901760
        %7052 = vmatpush1.msra.mxu0 %v7051
        %7053 = vmatprep.subr.mxu0 0.0
        %v7054 = vand.u32 %v6718, 4294901760
        %7055 = vmatpush1.msra.mxu0 %v7054
        %7056 = vmatprep.subr.mxu0 0.0
        %v7057 = vand.u32 %v6717, 4294901760
        %7058 = vmatpush1.msra.mxu0 %v7057
        %7059 = vmatprep.subr.mxu0 0.0
        %v7060 = vand.u32 %v6716, 4294901760
        %7061 = vmatpush1.msra.mxu0 %v7060
        %7062 = vmatprep.subr.mxu0 0.0
        %v7063 = vand.u32 %v6715, 4294901760
        %7064 = vmatpush1.msra.mxu0 %v7063
        %7065 = vmatprep.subr.mxu0 0.0
        %v7066 = vand.u32 %v6714, 4294901760
        %7067 = vmatpush1.msra.mxu0 %v7066
        %7068 = vmatprep.subr.mxu0 0.0
        %7069 = vmatpush2.msra.mxu0 0.0
        %7070 = vmatprep.subr.mxu0 0.0
        %7071 = vmatpush2.msra.mxu0 0.0
        %7072 = vmatprep.subr.mxu0 0.0
        %7073 = vmatpush2.msra.mxu0 0.0
        %7074 = vmatprep.subr.mxu0 0.0
        %7075 = vmatpush2.msra.mxu0 0.0
        %7076 = vmatprep.subr.mxu0 0.0
        %7077 = vmatpush2.msra.mxu0 0.0
        %7078 = vmatprep.subr.mxu0 0.0
        %7079 = vmatpush2.msra.mxu0 0.0
        %7080 = vmatprep.subr.mxu0 0.0
        %7081 = vmatpush2.msra.mxu0 0.0
        %7082 = vmatprep.subr.mxu0 0.0
        %7083 = vmatpush2.msra.mxu0 0.0
        %7084 = vmatprep.subr.mxu0 0.0
        %7085 = vmatpush2.msra.mxu0 0.0
        %7086 = vmatprep.subr.mxu0 0.0
        %7087 = vmatpush2.msra.mxu0 0.0
        %7088 = vmatprep.subr.mxu0 0.0
        %7089 = vmatpush2.msra.mxu0 0.0
        %7090 = vmatprep.subr.mxu0 0.0
        %7091 = vmatpush2.msra.mxu0 0.0
        %7092 = vmatprep.subr.mxu0 0.0
        %7093 = vmatpush2.msra.mxu0 0.0
        %7094 = vmatprep.subr.mxu0 0.0
        %7095 = vmatpush2.msra.mxu0 0.0
        %7096 = vmatprep.subr.mxu0 0.0
        %7097 = vmatpush2.msra.mxu0 0.0
        %7098 = vmatprep.subr.mxu0 0.0
        %7099 = vmatpush2.msra.mxu0 0.0
        %7100 = vmatprep.mubr.f32.mxu0 0.0
        %v7101 = vand.u32 %v6726, 4294901760
        %v7102 = vsub.f32 %v6726, %v7101
        %v7103 = vand.u32 %v7102, 4294901760
        %7104 = vmatmul.mubr.f32.gmra.mxu0 %v7103
        %v7105 = vpop.f32.mrf.mxu0
        %v7106 = vadd.f32 %v7023, %v7105
        %v7107 = vpop.f32.mrf.mxu0
        %7108 = vdwg.mxu0
        %7109 = vmatprep.subr.mxu0 0.0
        %7110 = vmatpush1.msra.mxu0 0.0
        %7111 = vmatprep.subr.mxu0 0.0
        %7112 = vmatpush1.msra.mxu0 0.0
        %7113 = vmatprep.subr.mxu0 0.0
        %7114 = vmatpush1.msra.mxu0 0.0
        %7115 = vmatprep.subr.mxu0 0.0
        %7116 = vmatpush1.msra.mxu0 0.0
        %7117 = vmatprep.subr.mxu0 0.0
        %7118 = vmatpush1.msra.mxu0 0.0
        %7119 = vmatprep.subr.mxu0 0.0
        %7120 = vmatpush1.msra.mxu0 0.0
        %7121 = vmatprep.subr.mxu0 0.0
        %v7122 = vand.u32 %v6723, 4294901760
        %v7123 = vsub.f32 %v6723, %v7122
        %v7124 = vand.u32 %v7123, 4294901760
        %7125 = vmatpush1.msra.mxu0 %v7124
        %7126 = vmatprep.subr.mxu0 0.0
        %v7127 = vand.u32 %v6722, 4294901760
        %v7128 = vsub.f32 %v6722, %v7127
        %v7129 = vand.u32 %v7128, 4294901760
        %7130 = vmatpush1.msra.mxu0 %v7129
        %7131 = vmatprep.subr.mxu0 0.0
        %v7132 = vand.u32 %v6721, 4294901760
        %v7133 = vsub.f32 %v6721, %v7132
        %v7134 = vand.u32 %v7133, 4294901760
        %7135 = vmatpush1.msra.mxu0 %v7134
        %7136 = vmatprep.subr.mxu0 0.0
        %v7137 = vand.u32 %v6720, 4294901760
        %v7138 = vsub.f32 %v6720, %v7137
        %v7139 = vand.u32 %v7138, 4294901760
        %7140 = vmatpush1.msra.mxu0 %v7139
        %7141 = vmatprep.subr.mxu0 0.0
        %v7142 = vand.u32 %v6719, 4294901760
        %v7143 = vsub.f32 %v6719, %v7142
        %v7144 = vand.u32 %v7143, 4294901760
        %7145 = vmatpush1.msra.mxu0 %v7144
        %7146 = vmatprep.subr.mxu0 0.0
        %v7147 = vand.u32 %v6718, 4294901760
        %v7148 = vsub.f32 %v6718, %v7147
        %v7149 = vand.u32 %v7148, 4294901760
        %7150 = vmatpush1.msra.mxu0 %v7149
        %7151 = vmatprep.subr.mxu0 0.0
        %v7152 = vand.u32 %v6717, 4294901760
        %v7153 = vsub.f32 %v6717, %v7152
        %v7154 = vand.u32 %v7153, 4294901760
        %7155 = vmatpush1.msra.mxu0 %v7154
        %7156 = vmatprep.subr.mxu0 0.0
        %v7157 = vand.u32 %v6716, 4294901760
        %v7158 = vsub.f32 %v6716, %v7157
        %v7159 = vand.u32 %v7158, 4294901760
        %7160 = vmatpush1.msra.mxu0 %v7159
        %7161 = vmatprep.subr.mxu0 0.0
        %v7162 = vand.u32 %v6715, 4294901760
        %v7163 = vsub.f32 %v6715, %v7162
        %v7164 = vand.u32 %v7163, 4294901760
        %7165 = vmatpush1.msra.mxu0 %v7164
        %7166 = vmatprep.subr.mxu0 0.0
        %v7167 = vand.u32 %v6714, 4294901760
        %v7168 = vsub.f32 %v6714, %v7167
        %v7169 = vand.u32 %v7168, 4294901760
        %7170 = vmatpush1.msra.mxu0 %v7169
        %7171 = vmatprep.subr.mxu0 0.0
        %7172 = vmatpush2.msra.mxu0 0.0
        %7173 = vmatprep.subr.mxu0 0.0
        %7174 = vmatpush2.msra.mxu0 0.0
        %7175 = vmatprep.subr.mxu0 0.0
        %7176 = vmatpush2.msra.mxu0 0.0
        %7177 = vmatprep.subr.mxu0 0.0
        %7178 = vmatpush2.msra.mxu0 0.0
        %7179 = vmatprep.subr.mxu0 0.0
        %7180 = vmatpush2.msra.mxu0 0.0
        %7181 = vmatprep.subr.mxu0 0.0
        %7182 = vmatpush2.msra.mxu0 0.0
        %7183 = vmatprep.subr.mxu0 0.0
        %7184 = vmatpush2.msra.mxu0 0.0
        %7185 = vmatprep.subr.mxu0 0.0
        %7186 = vmatpush2.msra.mxu0 0.0
        %7187 = vmatprep.subr.mxu0 0.0
        %7188 = vmatpush2.msra.mxu0 0.0
        %7189 = vmatprep.subr.mxu0 0.0
        %7190 = vmatpush2.msra.mxu0 0.0
        %7191 = vmatprep.subr.mxu0 0.0
        %7192 = vmatpush2.msra.mxu0 0.0
        %7193 = vmatprep.subr.mxu0 0.0
        %7194 = vmatpush2.msra.mxu0 0.0
        %7195 = vmatprep.subr.mxu0 0.0
        %7196 = vmatpush2.msra.mxu0 0.0
        %7197 = vmatprep.subr.mxu0 0.0
        %7198 = vmatpush2.msra.mxu0 0.0
        %7199 = vmatprep.subr.mxu0 0.0
        %7200 = vmatpush2.msra.mxu0 0.0
        %7201 = vmatprep.subr.mxu0 0.0
        %7202 = vmatpush2.msra.mxu0 0.0
        %7203 = vmatprep.mubr.f32.mxu0 0.0
        %v7204 = vand.u32 %v6726, 4294901760
        %7205 = vmatmul.mubr.f32.gmra.mxu0 %v7204
        %v7206 = vpop.f32.mrf.mxu0
        %v7207 = vadd.f32 %v7106, %v7206
        %v7208 = vpop.f32.mrf.mxu0
        %7209 = vdwg.mxu0
        %7210 = vmatprep.subr.mxu0 0.0
        %7211 = vmatpush1.msra.mxu0 0.0
        %7212 = vmatprep.subr.mxu0 0.0
        %7213 = vmatpush1.msra.mxu0 0.0
        %7214 = vmatprep.subr.mxu0 0.0
        %7215 = vmatpush1.msra.mxu0 0.0
        %7216 = vmatprep.subr.mxu0 0.0
        %7217 = vmatpush1.msra.mxu0 0.0
        %7218 = vmatprep.subr.mxu0 0.0
        %7219 = vmatpush1.msra.mxu0 0.0
        %7220 = vmatprep.subr.mxu0 0.0
        %7221 = vmatpush1.msra.mxu0 0.0
        %7222 = vmatprep.subr.mxu0 0.0
        %v7223 = vand.u32 %v6723, 4294901760
        %7224 = vmatpush1.msra.mxu0 %v7223
        %7225 = vmatprep.subr.mxu0 0.0
        %v7226 = vand.u32 %v6722, 4294901760
        %7227 = vmatpush1.msra.mxu0 %v7226
        %7228 = vmatprep.subr.mxu0 0.0
        %v7229 = vand.u32 %v6721, 4294901760
        %7230 = vmatpush1.msra.mxu0 %v7229
        %7231 = vmatprep.subr.mxu0 0.0
        %v7232 = vand.u32 %v6720, 4294901760
        %7233 = vmatpush1.msra.mxu0 %v7232
        %7234 = vmatprep.subr.mxu0 0.0
        %v7235 = vand.u32 %v6719, 4294901760
        %7236 = vmatpush1.msra.mxu0 %v7235
        %7237 = vmatprep.subr.mxu0 0.0
        %v7238 = vand.u32 %v6718, 4294901760
        %7239 = vmatpush1.msra.mxu0 %v7238
        %7240 = vmatprep.subr.mxu0 0.0
        %v7241 = vand.u32 %v6717, 4294901760
        %7242 = vmatpush1.msra.mxu0 %v7241
        %7243 = vmatprep.subr.mxu0 0.0
        %v7244 = vand.u32 %v6716, 4294901760
        %7245 = vmatpush1.msra.mxu0 %v7244
        %7246 = vmatprep.subr.mxu0 0.0
        %v7247 = vand.u32 %v6715, 4294901760
        %7248 = vmatpush1.msra.mxu0 %v7247
        %7249 = vmatprep.subr.mxu0 0.0
        %v7250 = vand.u32 %v6714, 4294901760
        %7251 = vmatpush1.msra.mxu0 %v7250
        %7252 = vmatprep.subr.mxu0 0.0
        %7253 = vmatpush2.msra.mxu0 0.0
        %7254 = vmatprep.subr.mxu0 0.0
        %7255 = vmatpush2.msra.mxu0 0.0
        %7256 = vmatprep.subr.mxu0 0.0
        %7257 = vmatpush2.msra.mxu0 0.0
        %7258 = vmatprep.subr.mxu0 0.0
        %7259 = vmatpush2.msra.mxu0 0.0
        %7260 = vmatprep.subr.mxu0 0.0
        %7261 = vmatpush2.msra.mxu0 0.0
        %7262 = vmatprep.subr.mxu0 0.0
        %7263 = vmatpush2.msra.mxu0 0.0
        %7264 = vmatprep.subr.mxu0 0.0
        %7265 = vmatpush2.msra.mxu0 0.0
        %7266 = vmatprep.subr.mxu0 0.0
        %7267 = vmatpush2.msra.mxu0 0.0
        %7268 = vmatprep.subr.mxu0 0.0
        %7269 = vmatpush2.msra.mxu0 0.0
        %7270 = vmatprep.subr.mxu0 0.0
        %7271 = vmatpush2.msra.mxu0 0.0
        %7272 = vmatprep.subr.mxu0 0.0
        %7273 = vmatpush2.msra.mxu0 0.0
        %7274 = vmatprep.subr.mxu0 0.0
        %7275 = vmatpush2.msra.mxu0 0.0
        %7276 = vmatprep.subr.mxu0 0.0
        %7277 = vmatpush2.msra.mxu0 0.0
        %7278 = vmatprep.subr.mxu0 0.0
        %7279 = vmatpush2.msra.mxu0 0.0
        %7280 = vmatprep.subr.mxu0 0.0
        %7281 = vmatpush2.msra.mxu0 0.0
        %7282 = vmatprep.subr.mxu0 0.0
        %7283 = vmatpush2.msra.mxu0 0.0
        %7284 = vmatprep.mubr.f32.mxu0 0.0
        %v7285 = vand.u32 %v6726, 4294901760
        %7286 = vmatmul.mubr.f32.gmra.mxu0 %v7285
        %v7287 = vpop.f32.mrf.mxu0
        %v7288 = vadd.f32 %v7207, %v7287
        %v7289 = vpop.f32.mrf.mxu0
        %7290 = vdwg.mxu0
        %v7292 = vsel %vm6724, %v6701, 0
        %7294 = vmatprep.subr.mxu0 0.0
        %7295 = vmatpush1.msra.mxu0 0.0
        %7296 = vmatprep.subr.mxu0 0.0
        %7297 = vmatpush1.msra.mxu0 0.0
        %7298 = vmatprep.subr.mxu0 0.0
        %7299 = vmatpush1.msra.mxu0 0.0
        %7300 = vmatprep.subr.mxu0 0.0
        %7301 = vmatpush1.msra.mxu0 0.0
        %7302 = vmatprep.subr.mxu0 0.0
        %7303 = vmatpush1.msra.mxu0 0.0
        %7304 = vmatprep.subr.mxu0 0.0
        %7305 = vmatpush1.msra.mxu0 0.0
        %7306 = vmatprep.subr.mxu0 0.0
        %v7307 = vand.u32 %v6711, 4294901760
        %7308 = vmatpush1.msra.mxu0 %v7307
        %7309 = vmatprep.subr.mxu0 0.0
        %v7310 = vand.u32 %v6710, 4294901760
        %7311 = vmatpush1.msra.mxu0 %v7310
        %7312 = vmatprep.subr.mxu0 0.0
        %v7313 = vand.u32 %v6709, 4294901760
        %7314 = vmatpush1.msra.mxu0 %v7313
        %7315 = vmatprep.subr.mxu0 0.0
        %v7316 = vand.u32 %v6708, 4294901760
        %7317 = vmatpush1.msra.mxu0 %v7316
        %7318 = vmatprep.subr.mxu0 0.0
        %v7319 = vand.u32 %v6707, 4294901760
        %7320 = vmatpush1.msra.mxu0 %v7319
        %7321 = vmatprep.subr.mxu0 0.0
        %v7322 = vand.u32 %v6706, 4294901760
        %7323 = vmatpush1.msra.mxu0 %v7322
        %7324 = vmatprep.subr.mxu0 0.0
        %v7325 = vand.u32 %v6705, 4294901760
        %7326 = vmatpush1.msra.mxu0 %v7325
        %7327 = vmatprep.subr.mxu0 0.0
        %v7328 = vand.u32 %v6704, 4294901760
        %7329 = vmatpush1.msra.mxu0 %v7328
        %7330 = vmatprep.subr.mxu0 0.0
        %v7331 = vand.u32 %v6703, 4294901760
        %7332 = vmatpush1.msra.mxu0 %v7331
        %7333 = vmatprep.subr.mxu0 0.0
        %v7334 = vand.u32 %v6702, 4294901760
        %7335 = vmatpush1.msra.mxu0 %v7334
        %7336 = vmatprep.subr.mxu0 0.0
        %7337 = vmatpush2.msra.mxu0 0.0
        %7338 = vmatprep.subr.mxu0 0.0
        %7339 = vmatpush2.msra.mxu0 0.0
        %7340 = vmatprep.subr.mxu0 0.0
        %7341 = vmatpush2.msra.mxu0 0.0
        %7342 = vmatprep.subr.mxu0 0.0
        %7343 = vmatpush2.msra.mxu0 0.0
        %7344 = vmatprep.subr.mxu0 0.0
        %7345 = vmatpush2.msra.mxu0 0.0
        %7346 = vmatprep.subr.mxu0 0.0
        %7347 = vmatpush2.msra.mxu0 0.0
        %7348 = vmatprep.subr.mxu0 0.0
        %7349 = vmatpush2.msra.mxu0 0.0
        %7350 = vmatprep.subr.mxu0 0.0
        %7351 = vmatpush2.msra.mxu0 0.0
        %7352 = vmatprep.subr.mxu0 0.0
        %7353 = vmatpush2.msra.mxu0 0.0
        %7354 = vmatprep.subr.mxu0 0.0
        %7355 = vmatpush2.msra.mxu0 0.0
        %7356 = vmatprep.subr.mxu0 0.0
        %7357 = vmatpush2.msra.mxu0 0.0
        %7358 = vmatprep.subr.mxu0 0.0
        %7359 = vmatpush2.msra.mxu0 0.0
        %7360 = vmatprep.subr.mxu0 0.0
        %7361 = vmatpush2.msra.mxu0 0.0
        %7362 = vmatprep.subr.mxu0 0.0
        %7363 = vmatpush2.msra.mxu0 0.0
        %7364 = vmatprep.subr.mxu0 0.0
        %7365 = vmatpush2.msra.mxu0 0.0
        %7366 = vmatprep.subr.mxu0 0.0
        %7367 = vmatpush2.msra.mxu0 0.0
        %7368 = vmatprep.mubr.f32.mxu0 0.0
        %v7369 = vand.u32 %v7292, 4294901760
        %v7370 = vsub.f32 %v7292, %v7369
        %v7371 = vand.u32 %v7370, 4294901760
        %v7372 = vsub.f32 %v7370, %v7371
        %v7373 = vand.u32 %v7372, 4294901760
        %7374 = vmatmul.mubr.f32.gmra.mxu0 %v7373
        %v7375 = vpop.f32.mrf.mxu0
        %v7376 = vadd.f32 %v7288, %v7375
        %v7377 = vpop.f32.mrf.mxu0
        %7378 = vdwg.mxu0
        %7379 = vmatprep.subr.mxu0 0.0
        %7380 = vmatpush1.msra.mxu0 0.0
        %7381 = vmatprep.subr.mxu0 0.0
        %7382 = vmatpush1.msra.mxu0 0.0
        %7383 = vmatprep.subr.mxu0 0.0
        %7384 = vmatpush1.msra.mxu0 0.0
        %7385 = vmatprep.subr.mxu0 0.0
        %7386 = vmatpush1.msra.mxu0 0.0
        %7387 = vmatprep.subr.mxu0 0.0
        %7388 = vmatpush1.msra.mxu0 0.0
        %7389 = vmatprep.subr.mxu0 0.0
        %7390 = vmatpush1.msra.mxu0 0.0
        %7391 = vmatprep.subr.mxu0 0.0
        %v7392 = vand.u32 %v6711, 4294901760
        %v7393 = vsub.f32 %v6711, %v7392
        %v7394 = vand.u32 %v7393, 4294901760
        %v7395 = vsub.f32 %v7393, %v7394
        %v7396 = vand.u32 %v7395, 4294901760
        %7397 = vmatpush1.msra.mxu0 %v7396
        %7398 = vmatprep.subr.mxu0 0.0
        %v7399 = vand.u32 %v6710, 4294901760
        %v7400 = vsub.f32 %v6710, %v7399
        %v7401 = vand.u32 %v7400, 4294901760
        %v7402 = vsub.f32 %v7400, %v7401
        %v7403 = vand.u32 %v7402, 4294901760
        %7404 = vmatpush1.msra.mxu0 %v7403
        %7405 = vmatprep.subr.mxu0 0.0
        %v7406 = vand.u32 %v6709, 4294901760
        %v7407 = vsub.f32 %v6709, %v7406
        %v7408 = vand.u32 %v7407, 4294901760
        %v7409 = vsub.f32 %v7407, %v7408
        %v7410 = vand.u32 %v7409, 4294901760
        %7411 = vmatpush1.msra.mxu0 %v7410
        %7412 = vmatprep.subr.mxu0 0.0
        %v7413 = vand.u32 %v6708, 4294901760
        %v7414 = vsub.f32 %v6708, %v7413
        %v7415 = vand.u32 %v7414, 4294901760
        %v7416 = vsub.f32 %v7414, %v7415
        %v7417 = vand.u32 %v7416, 4294901760
        %7418 = vmatpush1.msra.mxu0 %v7417
        %7419 = vmatprep.subr.mxu0 0.0
        %v7420 = vand.u32 %v6707, 4294901760
        %v7421 = vsub.f32 %v6707, %v7420
        %v7422 = vand.u32 %v7421, 4294901760
        %v7423 = vsub.f32 %v7421, %v7422
        %v7424 = vand.u32 %v7423, 4294901760
        %7425 = vmatpush1.msra.mxu0 %v7424
        %7426 = vmatprep.subr.mxu0 0.0
        %v7427 = vand.u32 %v6706, 4294901760
        %v7428 = vsub.f32 %v6706, %v7427
        %v7429 = vand.u32 %v7428, 4294901760
        %v7430 = vsub.f32 %v7428, %v7429
        %v7431 = vand.u32 %v7430, 4294901760
        %7432 = vmatpush1.msra.mxu0 %v7431
        %7433 = vmatprep.subr.mxu0 0.0
        %v7434 = vand.u32 %v6705, 4294901760
        %v7435 = vsub.f32 %v6705, %v7434
        %v7436 = vand.u32 %v7435, 4294901760
        %v7437 = vsub.f32 %v7435, %v7436
        %v7438 = vand.u32 %v7437, 4294901760
        %7439 = vmatpush1.msra.mxu0 %v7438
        %7440 = vmatprep.subr.mxu0 0.0
        %v7441 = vand.u32 %v6704, 4294901760
        %v7442 = vsub.f32 %v6704, %v7441
        %v7443 = vand.u32 %v7442, 4294901760
        %v7444 = vsub.f32 %v7442, %v7443
        %v7445 = vand.u32 %v7444, 4294901760
        %7446 = vmatpush1.msra.mxu0 %v7445
        %7447 = vmatprep.subr.mxu0 0.0
        %v7448 = vand.u32 %v6703, 4294901760
        %v7449 = vsub.f32 %v6703, %v7448
        %v7450 = vand.u32 %v7449, 4294901760
        %v7451 = vsub.f32 %v7449, %v7450
        %v7452 = vand.u32 %v7451, 4294901760
        %7453 = vmatpush1.msra.mxu0 %v7452
        %7454 = vmatprep.subr.mxu0 0.0
        %v7455 = vand.u32 %v6702, 4294901760
        %v7456 = vsub.f32 %v6702, %v7455
        %v7457 = vand.u32 %v7456, 4294901760
        %v7458 = vsub.f32 %v7456, %v7457
        %v7459 = vand.u32 %v7458, 4294901760
        %7460 = vmatpush1.msra.mxu0 %v7459
        %7461 = vmatprep.subr.mxu0 0.0
        %7462 = vmatpush2.msra.mxu0 0.0
        %7463 = vmatprep.subr.mxu0 0.0
        %7464 = vmatpush2.msra.mxu0 0.0
        %7465 = vmatprep.subr.mxu0 0.0
        %7466 = vmatpush2.msra.mxu0 0.0
        %7467 = vmatprep.subr.mxu0 0.0
        %7468 = vmatpush2.msra.mxu0 0.0
        %7469 = vmatprep.subr.mxu0 0.0
        %7470 = vmatpush2.msra.mxu0 0.0
        %7471 = vmatprep.subr.mxu0 0.0
        %7472 = vmatpush2.msra.mxu0 0.0
        %7473 = vmatprep.subr.mxu0 0.0
        %7474 = vmatpush2.msra.mxu0 0.0
        %7475 = vmatprep.subr.mxu0 0.0
        %7476 = vmatpush2.msra.mxu0 0.0
        %7477 = vmatprep.subr.mxu0 0.0
        %7478 = vmatpush2.msra.mxu0 0.0
        %7479 = vmatprep.subr.mxu0 0.0
        %7480 = vmatpush2.msra.mxu0 0.0
        %7481 = vmatprep.subr.mxu0 0.0
        %7482 = vmatpush2.msra.mxu0 0.0
        %7483 = vmatprep.subr.mxu0 0.0
        %7484 = vmatpush2.msra.mxu0 0.0
        %7485 = vmatprep.subr.mxu0 0.0
        %7486 = vmatpush2.msra.mxu0 0.0
        %7487 = vmatprep.subr.mxu0 0.0
        %7488 = vmatpush2.msra.mxu0 0.0
        %7489 = vmatprep.subr.mxu0 0.0
        %7490 = vmatpush2.msra.mxu0 0.0
        %7491 = vmatprep.subr.mxu0 0.0
        %7492 = vmatpush2.msra.mxu0 0.0
        %7493 = vmatprep.mubr.f32.mxu0 0.0
        %v7494 = vand.u32 %v7292, 4294901760
        %7495 = vmatmul.mubr.f32.gmra.mxu0 %v7494
        %v7496 = vpop.f32.mrf.mxu0
        %v7497 = vadd.f32 %v7376, %v7496
        %v7498 = vpop.f32.mrf.mxu0
        %7499 = vdwg.mxu0
        %7500 = vmatprep.subr.mxu0 0.0
        %7501 = vmatpush1.msra.mxu0 0.0
        %7502 = vmatprep.subr.mxu0 0.0
        %7503 = vmatpush1.msra.mxu0 0.0
        %7504 = vmatprep.subr.mxu0 0.0
        %7505 = vmatpush1.msra.mxu0 0.0
        %7506 = vmatprep.subr.mxu0 0.0
        %7507 = vmatpush1.msra.mxu0 0.0
        %7508 = vmatprep.subr.mxu0 0.0
        %7509 = vmatpush1.msra.mxu0 0.0
        %7510 = vmatprep.subr.mxu0 0.0
        %7511 = vmatpush1.msra.mxu0 0.0
        %7512 = vmatprep.subr.mxu0 0.0
        %v7513 = vand.u32 %v6711, 4294901760
        %v7514 = vsub.f32 %v6711, %v7513
        %7515 = vmatpush1.msra.mxu0 %v7514
        %7516 = vmatprep.subr.mxu0 0.0
        %v7517 = vand.u32 %v6710, 4294901760
        %v7518 = vsub.f32 %v6710, %v7517
        %7519 = vmatpush1.msra.mxu0 %v7518
        %7520 = vmatprep.subr.mxu0 0.0
        %v7521 = vand.u32 %v6709, 4294901760
        %v7522 = vsub.f32 %v6709, %v7521
        %7523 = vmatpush1.msra.mxu0 %v7522
        %7524 = vmatprep.subr.mxu0 0.0
        %v7525 = vand.u32 %v6708, 4294901760
        %v7526 = vsub.f32 %v6708, %v7525
        %7527 = vmatpush1.msra.mxu0 %v7526
        %7528 = vmatprep.subr.mxu0 0.0
        %v7529 = vand.u32 %v6707, 4294901760
        %v7530 = vsub.f32 %v6707, %v7529
        %7531 = vmatpush1.msra.mxu0 %v7530
        %7532 = vmatprep.subr.mxu0 0.0
        %v7533 = vand.u32 %v6706, 4294901760
        %v7534 = vsub.f32 %v6706, %v7533
        %7535 = vmatpush1.msra.mxu0 %v7534
        %7536 = vmatprep.subr.mxu0 0.0
        %v7537 = vand.u32 %v6705, 4294901760
        %v7538 = vsub.f32 %v6705, %v7537
        %7539 = vmatpush1.msra.mxu0 %v7538
        %7540 = vmatprep.subr.mxu0 0.0
        %v7541 = vand.u32 %v6704, 4294901760
        %v7542 = vsub.f32 %v6704, %v7541
        %7543 = vmatpush1.msra.mxu0 %v7542
        %7544 = vmatprep.subr.mxu0 0.0
        %v7545 = vand.u32 %v6703, 4294901760
        %v7546 = vsub.f32 %v6703, %v7545
        %7547 = vmatpush1.msra.mxu0 %v7546
        %7548 = vmatprep.subr.mxu0 0.0
        %v7549 = vand.u32 %v6702, 4294901760
        %v7550 = vsub.f32 %v6702, %v7549
        %7551 = vmatpush1.msra.mxu0 %v7550
        %7552 = vmatprep.subr.mxu0 0.0
        %7553 = vmatpush2.msra.mxu0 0.0
        %7554 = vmatprep.subr.mxu0 0.0
        %7555 = vmatpush2.msra.mxu0 0.0
        %7556 = vmatprep.subr.mxu0 0.0
        %7557 = vmatpush2.msra.mxu0 0.0
        %7558 = vmatprep.subr.mxu0 0.0
        %7559 = vmatpush2.msra.mxu0 0.0
        %7560 = vmatprep.subr.mxu0 0.0
        %7561 = vmatpush2.msra.mxu0 0.0
        %7562 = vmatprep.subr.mxu0 0.0
        %7563 = vmatpush2.msra.mxu0 0.0
        %7564 = vmatprep.subr.mxu0 0.0
        %7565 = vmatpush2.msra.mxu0 0.0
        %7566 = vmatprep.subr.mxu0 0.0
        %7567 = vmatpush2.msra.mxu0 0.0
        %7568 = vmatprep.subr.mxu0 0.0
        %7569 = vmatpush2.msra.mxu0 0.0
        %7570 = vmatprep.subr.mxu0 0.0
        %7571 = vmatpush2.msra.mxu0 0.0
        %7572 = vmatprep.subr.mxu0 0.0
        %7573 = vmatpush2.msra.mxu0 0.0
        %7574 = vmatprep.subr.mxu0 0.0
        %7575 = vmatpush2.msra.mxu0 0.0
        %7576 = vmatprep.subr.mxu0 0.0
        %7577 = vmatpush2.msra.mxu0 0.0
        %7578 = vmatprep.subr.mxu0 0.0
        %7579 = vmatpush2.msra.mxu0 0.0
        %7580 = vmatprep.subr.mxu0 0.0
        %7581 = vmatpush2.msra.mxu0 0.0
        %7582 = vmatprep.subr.mxu0 0.0
        %7583 = vmatpush2.msra.mxu0 0.0
        %7584 = vmatprep.mubr.f32.mxu0 0.0
        %v7585 = vand.u32 %v7292, 4294901760
        %v7586 = vsub.f32 %v7292, %v7585
        %7587 = vmatmul.mubr.f32.gmra.mxu0 %v7586
        %v7588 = vpop.f32.mrf.mxu0
        %v7589 = vadd.f32 %v7497, %v7588
        %v7590 = vpop.f32.mrf.mxu0
        %7591 = vdwg.mxu0
        %7592 = vmatprep.subr.mxu0 0.0
        %7593 = vmatpush1.msra.mxu0 0.0
        %7594 = vmatprep.subr.mxu0 0.0
        %7595 = vmatpush1.msra.mxu0 0.0
        %7596 = vmatprep.subr.mxu0 0.0
        %7597 = vmatpush1.msra.mxu0 0.0
        %7598 = vmatprep.subr.mxu0 0.0
        %7599 = vmatpush1.msra.mxu0 0.0
        %7600 = vmatprep.subr.mxu0 0.0
        %7601 = vmatpush1.msra.mxu0 0.0
        %7602 = vmatprep.subr.mxu0 0.0
        %7603 = vmatpush1.msra.mxu0 0.0
        %7604 = vmatprep.subr.mxu0 0.0
        %v7605 = vand.u32 %v6711, 4294901760
        %7606 = vmatpush1.msra.mxu0 %v7605
        %7607 = vmatprep.subr.mxu0 0.0
        %v7608 = vand.u32 %v6710, 4294901760
        %7609 = vmatpush1.msra.mxu0 %v7608
        %7610 = vmatprep.subr.mxu0 0.0
        %v7611 = vand.u32 %v6709, 4294901760
        %7612 = vmatpush1.msra.mxu0 %v7611
        %7613 = vmatprep.subr.mxu0 0.0
        %v7614 = vand.u32 %v6708, 4294901760
        %7615 = vmatpush1.msra.mxu0 %v7614
        %7616 = vmatprep.subr.mxu0 0.0
        %v7617 = vand.u32 %v6707, 4294901760
        %7618 = vmatpush1.msra.mxu0 %v7617
        %7619 = vmatprep.subr.mxu0 0.0
        %v7620 = vand.u32 %v6706, 4294901760
        %7621 = vmatpush1.msra.mxu0 %v7620
        %7622 = vmatprep.subr.mxu0 0.0
        %v7623 = vand.u32 %v6705, 4294901760
        %7624 = vmatpush1.msra.mxu0 %v7623
        %7625 = vmatprep.subr.mxu0 0.0
        %v7626 = vand.u32 %v6704, 4294901760
        %7627 = vmatpush1.msra.mxu0 %v7626
        %7628 = vmatprep.subr.mxu0 0.0
        %v7629 = vand.u32 %v6703, 4294901760
        %7630 = vmatpush1.msra.mxu0 %v7629
        %7631 = vmatprep.subr.mxu0 0.0
        %v7632 = vand.u32 %v6702, 4294901760
        %7633 = vmatpush1.msra.mxu0 %v7632
        %7634 = vmatprep.subr.mxu0 0.0
        %7635 = vmatpush2.msra.mxu0 0.0
        %7636 = vmatprep.subr.mxu0 0.0
        %7637 = vmatpush2.msra.mxu0 0.0
        %7638 = vmatprep.subr.mxu0 0.0
        %7639 = vmatpush2.msra.mxu0 0.0
        %7640 = vmatprep.subr.mxu0 0.0
        %7641 = vmatpush2.msra.mxu0 0.0
        %7642 = vmatprep.subr.mxu0 0.0
        %7643 = vmatpush2.msra.mxu0 0.0
        %7644 = vmatprep.subr.mxu0 0.0
        %7645 = vmatpush2.msra.mxu0 0.0
        %7646 = vmatprep.subr.mxu0 0.0
        %7647 = vmatpush2.msra.mxu0 0.0
        %7648 = vmatprep.subr.mxu0 0.0
        %7649 = vmatpush2.msra.mxu0 0.0
        %7650 = vmatprep.subr.mxu0 0.0
        %7651 = vmatpush2.msra.mxu0 0.0
        %7652 = vmatprep.subr.mxu0 0.0
        %7653 = vmatpush2.msra.mxu0 0.0
        %7654 = vmatprep.subr.mxu0 0.0
        %7655 = vmatpush2.msra.mxu0 0.0
        %7656 = vmatprep.subr.mxu0 0.0
        %7657 = vmatpush2.msra.mxu0 0.0
        %7658 = vmatprep.subr.mxu0 0.0
        %7659 = vmatpush2.msra.mxu0 0.0
        %7660 = vmatprep.subr.mxu0 0.0
        %7661 = vmatpush2.msra.mxu0 0.0
        %7662 = vmatprep.subr.mxu0 0.0
        %7663 = vmatpush2.msra.mxu0 0.0
        %7664 = vmatprep.subr.mxu0 0.0
        %7665 = vmatpush2.msra.mxu0 0.0
        %7666 = vmatprep.mubr.f32.mxu0 0.0
        %v7667 = vand.u32 %v7292, 4294901760
        %v7668 = vsub.f32 %v7292, %v7667
        %v7669 = vand.u32 %v7668, 4294901760
        %7670 = vmatmul.mubr.f32.gmra.mxu0 %v7669
        %v7671 = vpop.f32.mrf.mxu0
        %v7672 = vadd.f32 %v7589, %v7671
        %v7673 = vpop.f32.mrf.mxu0
        %7674 = vdwg.mxu0
        %7675 = vmatprep.subr.mxu0 0.0
        %7676 = vmatpush1.msra.mxu0 0.0
        %7677 = vmatprep.subr.mxu0 0.0
        %7678 = vmatpush1.msra.mxu0 0.0
        %7679 = vmatprep.subr.mxu0 0.0
        %7680 = vmatpush1.msra.mxu0 0.0
        %7681 = vmatprep.subr.mxu0 0.0
        %7682 = vmatpush1.msra.mxu0 0.0
        %7683 = vmatprep.subr.mxu0 0.0
        %7684 = vmatpush1.msra.mxu0 0.0
        %7685 = vmatprep.subr.mxu0 0.0
        %7686 = vmatpush1.msra.mxu0 0.0
        %7687 = vmatprep.subr.mxu0 0.0
        %v7688 = vand.u32 %v6711, 4294901760
        %v7689 = vsub.f32 %v6711, %v7688
        %v7690 = vand.u32 %v7689, 4294901760
        %7691 = vmatpush1.msra.mxu0 %v7690
        %7692 = vmatprep.subr.mxu0 0.0
        %v7693 = vand.u32 %v6710, 4294901760
        %v7694 = vsub.f32 %v6710, %v7693
        %v7695 = vand.u32 %v7694, 4294901760
        %7696 = vmatpush1.msra.mxu0 %v7695
        %7697 = vmatprep.subr.mxu0 0.0
        %v7698 = vand.u32 %v6709, 4294901760
        %v7699 = vsub.f32 %v6709, %v7698
        %v7700 = vand.u32 %v7699, 4294901760
        %7701 = vmatpush1.msra.mxu0 %v7700
        %7702 = vmatprep.subr.mxu0 0.0
        %v7703 = vand.u32 %v6708, 4294901760
        %v7704 = vsub.f32 %v6708, %v7703
        %v7705 = vand.u32 %v7704, 4294901760
        %7706 = vmatpush1.msra.mxu0 %v7705
        %7707 = vmatprep.subr.mxu0 0.0
        %v7708 = vand.u32 %v6707, 4294901760
        %v7709 = vsub.f32 %v6707, %v7708
        %v7710 = vand.u32 %v7709, 4294901760
        %7711 = vmatpush1.msra.mxu0 %v7710
        %7712 = vmatprep.subr.mxu0 0.0
        %v7713 = vand.u32 %v6706, 4294901760
        %v7714 = vsub.f32 %v6706, %v7713
        %v7715 = vand.u32 %v7714, 4294901760
        %7716 = vmatpush1.msra.mxu0 %v7715
        %7717 = vmatprep.subr.mxu0 0.0
        %v7718 = vand.u32 %v6705, 4294901760
        %v7719 = vsub.f32 %v6705, %v7718
        %v7720 = vand.u32 %v7719, 4294901760
        %7721 = vmatpush1.msra.mxu0 %v7720
        %7722 = vmatprep.subr.mxu0 0.0
        %v7723 = vand.u32 %v6704, 4294901760
        %v7724 = vsub.f32 %v6704, %v7723
        %v7725 = vand.u32 %v7724, 4294901760
        %7726 = vmatpush1.msra.mxu0 %v7725
        %7727 = vmatprep.subr.mxu0 0.0
        %v7728 = vand.u32 %v6703, 4294901760
        %v7729 = vsub.f32 %v6703, %v7728
        %v7730 = vand.u32 %v7729, 4294901760
        %7731 = vmatpush1.msra.mxu0 %v7730
        %7732 = vmatprep.subr.mxu0 0.0
        %v7733 = vand.u32 %v6702, 4294901760
        %v7734 = vsub.f32 %v6702, %v7733
        %v7735 = vand.u32 %v7734, 4294901760
        %7736 = vmatpush1.msra.mxu0 %v7735
        %7737 = vmatprep.subr.mxu0 0.0
        %7738 = vmatpush2.msra.mxu0 0.0
        %7739 = vmatprep.subr.mxu0 0.0
        %7740 = vmatpush2.msra.mxu0 0.0
        %7741 = vmatprep.subr.mxu0 0.0
        %7742 = vmatpush2.msra.mxu0 0.0
        %7743 = vmatprep.subr.mxu0 0.0
        %7744 = vmatpush2.msra.mxu0 0.0
        %7745 = vmatprep.subr.mxu0 0.0
        %7746 = vmatpush2.msra.mxu0 0.0
        %7747 = vmatprep.subr.mxu0 0.0
        %7748 = vmatpush2.msra.mxu0 0.0
        %7749 = vmatprep.subr.mxu0 0.0
        %7750 = vmatpush2.msra.mxu0 0.0
        %7751 = vmatprep.subr.mxu0 0.0
        %7752 = vmatpush2.msra.mxu0 0.0
        %7753 = vmatprep.subr.mxu0 0.0
        %7754 = vmatpush2.msra.mxu0 0.0
        %7755 = vmatprep.subr.mxu0 0.0
        %7756 = vmatpush2.msra.mxu0 0.0
        %7757 = vmatprep.subr.mxu0 0.0
        %7758 = vmatpush2.msra.mxu0 0.0
        %7759 = vmatprep.subr.mxu0 0.0
        %7760 = vmatpush2.msra.mxu0 0.0
        %7761 = vmatprep.subr.mxu0 0.0
        %7762 = vmatpush2.msra.mxu0 0.0
        %7763 = vmatprep.subr.mxu0 0.0
        %7764 = vmatpush2.msra.mxu0 0.0
        %7765 = vmatprep.subr.mxu0 0.0
        %7766 = vmatpush2.msra.mxu0 0.0
        %7767 = vmatprep.subr.mxu0 0.0
        %7768 = vmatpush2.msra.mxu0 0.0
        %7769 = vmatprep.mubr.f32.mxu0 0.0
        %v7770 = vand.u32 %v7292, 4294901760
        %7771 = vmatmul.mubr.f32.gmra.mxu0 %v7770
        %v7772 = vpop.f32.mrf.mxu0
        %v7773 = vadd.f32 %v7672, %v7772
        %v7774 = vpop.f32.mrf.mxu0
        %7775 = vdwg.mxu0
        %7776 = vmatprep.subr.mxu0 0.0
        %7777 = vmatpush1.msra.mxu0 0.0
        %7778 = vmatprep.subr.mxu0 0.0
        %7779 = vmatpush1.msra.mxu0 0.0
        %7780 = vmatprep.subr.mxu0 0.0
        %7781 = vmatpush1.msra.mxu0 0.0
        %7782 = vmatprep.subr.mxu0 0.0
        %7783 = vmatpush1.msra.mxu0 0.0
        %7784 = vmatprep.subr.mxu0 0.0
        %7785 = vmatpush1.msra.mxu0 0.0
        %7786 = vmatprep.subr.mxu0 0.0
        %7787 = vmatpush1.msra.mxu0 0.0
        %7788 = vmatprep.subr.mxu0 0.0
        %v7789 = vand.u32 %v6711, 4294901760
        %7790 = vmatpush1.msra.mxu0 %v7789
        %7791 = vmatprep.subr.mxu0 0.0
        %v7792 = vand.u32 %v6710, 4294901760
        %7793 = vmatpush1.msra.mxu0 %v7792
        %7794 = vmatprep.subr.mxu0 0.0
        %v7795 = vand.u32 %v6709, 4294901760
        %7796 = vmatpush1.msra.mxu0 %v7795
        %7797 = vmatprep.subr.mxu0 0.0
        %v7798 = vand.u32 %v6708, 4294901760
        %7799 = vmatpush1.msra.mxu0 %v7798
        %7800 = vmatprep.subr.mxu0 0.0
        %v7801 = vand.u32 %v6707, 4294901760
        %7802 = vmatpush1.msra.mxu0 %v7801
        %7803 = vmatprep.subr.mxu0 0.0
        %v7804 = vand.u32 %v6706, 4294901760
        %7805 = vmatpush1.msra.mxu0 %v7804
        %7806 = vmatprep.subr.mxu0 0.0
        %v7807 = vand.u32 %v6705, 4294901760
        %7808 = vmatpush1.msra.mxu0 %v7807
        %7809 = vmatprep.subr.mxu0 0.0
        %v7810 = vand.u32 %v6704, 4294901760
        %7811 = vmatpush1.msra.mxu0 %v7810
        %7812 = vmatprep.subr.mxu0 0.0
        %v7813 = vand.u32 %v6703, 4294901760
        %7814 = vmatpush1.msra.mxu0 %v7813
        %7815 = vmatprep.subr.mxu0 0.0
        %v7816 = vand.u32 %v6702, 4294901760
        %7817 = vmatpush1.msra.mxu0 %v7816
        %7818 = vmatprep.subr.mxu0 0.0
        %7819 = vmatpush2.msra.mxu0 0.0
        %7820 = vmatprep.subr.mxu0 0.0
        %7821 = vmatpush2.msra.mxu0 0.0
        %7822 = vmatprep.subr.mxu0 0.0
        %7823 = vmatpush2.msra.mxu0 0.0
        %7824 = vmatprep.subr.mxu0 0.0
        %7825 = vmatpush2.msra.mxu0 0.0
        %7826 = vmatprep.subr.mxu0 0.0
        %7827 = vmatpush2.msra.mxu0 0.0
        %7828 = vmatprep.subr.mxu0 0.0
        %7829 = vmatpush2.msra.mxu0 0.0
        %7830 = vmatprep.subr.mxu0 0.0
        %7831 = vmatpush2.msra.mxu0 0.0
        %7832 = vmatprep.subr.mxu0 0.0
        %7833 = vmatpush2.msra.mxu0 0.0
        %7834 = vmatprep.subr.mxu0 0.0
        %7835 = vmatpush2.msra.mxu0 0.0
        %7836 = vmatprep.subr.mxu0 0.0
        %7837 = vmatpush2.msra.mxu0 0.0
        %7838 = vmatprep.subr.mxu0 0.0
        %7839 = vmatpush2.msra.mxu0 0.0
        %7840 = vmatprep.subr.mxu0 0.0
        %7841 = vmatpush2.msra.mxu0 0.0
        %7842 = vmatprep.subr.mxu0 0.0
        %7843 = vmatpush2.msra.mxu0 0.0
        %7844 = vmatprep.subr.mxu0 0.0
        %7845 = vmatpush2.msra.mxu0 0.0
        %7846 = vmatprep.subr.mxu0 0.0
        %7847 = vmatpush2.msra.mxu0 0.0
        %7848 = vmatprep.subr.mxu0 0.0
        %7849 = vmatpush2.msra.mxu0 0.0
        %7850 = vmatprep.mubr.f32.mxu0 0.0
        %v7851 = vand.u32 %v7292, 4294901760
        %7852 = vmatmul.mubr.f32.gmra.mxu0 %v7851
        %v7853 = vpop.f32.mrf.mxu0
        %v7854 = vadd.f32 %v7773, %v7853
        %v7855 = vpop.f32.mrf.mxu0
        %7856 = vdwg.mxu0
        %v7857 = vld [vmem:[#allocation4 + $0x2] sm:$0x7]
        %s7858 = scalar_lea.vmem %s9, 160
        %v7859 = vld [vmem:[%s7858] sm:$0xff]
        %v7860 = vld [vmem:[%s7858 + $0x8] sm:$0xff]
        %v7861 = vld [vmem:[%s7858 + $0x10] sm:$0xff]
        %v7862 = vld [vmem:[%s7858 + $0x18] sm:$0xff]
        %v7863 = vld [vmem:[%s7858 + $0x20] sm:$0xff]
        %v7864 = vld [vmem:[%s7858 + $0x28] sm:$0xff]
        %v7865 = vld [vmem:[%s7858 + $0x30] sm:$0xff]
        %v7866 = vld [vmem:[%s7858 + $0x38] sm:$0xff]
        %v7867 = vld [vmem:[%s7858 + $0x40] sm:$0xff]
        %v7868 = vld [vmem:[%s7858 + $0x48] sm:$0xff]
        %v7870 = vsel %vm6724, %v7857, 0
        %7872 = vmatprep.subr.mxu0 0.0
        %7873 = vmatpush1.msra.mxu0 0.0
        %7874 = vmatprep.subr.mxu0 0.0
        %7875 = vmatpush1.msra.mxu0 0.0
        %7876 = vmatprep.subr.mxu0 0.0
        %7877 = vmatpush1.msra.mxu0 0.0
        %7878 = vmatprep.subr.mxu0 0.0
        %7879 = vmatpush1.msra.mxu0 0.0
        %7880 = vmatprep.subr.mxu0 0.0
        %7881 = vmatpush1.msra.mxu0 0.0
        %7882 = vmatprep.subr.mxu0 0.0
        %7883 = vmatpush1.msra.mxu0 0.0
        %7884 = vmatprep.subr.mxu0 0.0
        %v7885 = vand.u32 %v7868, 4294901760
        %7886 = vmatpush1.msra.mxu0 %v7885
        %7887 = vmatprep.subr.mxu0 0.0
        %v7888 = vand.u32 %v7867, 4294901760
        %7889 = vmatpush1.msra.mxu0 %v7888
        %7890 = vmatprep.subr.mxu0 0.0
        %v7891 = vand.u32 %v7866, 4294901760
        %7892 = vmatpush1.msra.mxu0 %v7891
        %7893 = vmatprep.subr.mxu0 0.0
        %v7894 = vand.u32 %v7865, 4294901760
        %7895 = vmatpush1.msra.mxu0 %v7894
        %7896 = vmatprep.subr.mxu0 0.0
        %v7897 = vand.u32 %v7864, 4294901760
        %7898 = vmatpush1.msra.mxu0 %v7897
        %7899 = vmatprep.subr.mxu0 0.0
        %v7900 = vand.u32 %v7863, 4294901760
        %7901 = vmatpush1.msra.mxu0 %v7900
        %7902 = vmatprep.subr.mxu0 0.0
        %v7903 = vand.u32 %v7862, 4294901760
        %7904 = vmatpush1.msra.mxu0 %v7903
        %7905 = vmatprep.subr.mxu0 0.0
        %v7906 = vand.u32 %v7861, 4294901760
        %7907 = vmatpush1.msra.mxu0 %v7906
        %7908 = vmatprep.subr.mxu0 0.0
        %v7909 = vand.u32 %v7860, 4294901760
        %7910 = vmatpush1.msra.mxu0 %v7909
        %7911 = vmatprep.subr.mxu0 0.0
        %v7912 = vand.u32 %v7859, 4294901760
        %7913 = vmatpush1.msra.mxu0 %v7912
        %7914 = vmatprep.subr.mxu0 0.0
        %7915 = vmatpush2.msra.mxu0 0.0
        %7916 = vmatprep.subr.mxu0 0.0
        %7917 = vmatpush2.msra.mxu0 0.0
        %7918 = vmatprep.subr.mxu0 0.0
        %7919 = vmatpush2.msra.mxu0 0.0
        %7920 = vmatprep.subr.mxu0 0.0
        %7921 = vmatpush2.msra.mxu0 0.0
        %7922 = vmatprep.subr.mxu0 0.0
        %7923 = vmatpush2.msra.mxu0 0.0
        %7924 = vmatprep.subr.mxu0 0.0
        %7925 = vmatpush2.msra.mxu0 0.0
        %7926 = vmatprep.subr.mxu0 0.0
        %7927 = vmatpush2.msra.mxu0 0.0
        %7928 = vmatprep.subr.mxu0 0.0
        %7929 = vmatpush2.msra.mxu0 0.0
        %7930 = vmatprep.subr.mxu0 0.0
        %7931 = vmatpush2.msra.mxu0 0.0
        %7932 = vmatprep.subr.mxu0 0.0
        %7933 = vmatpush2.msra.mxu0 0.0
        %7934 = vmatprep.subr.mxu0 0.0
        %7935 = vmatpush2.msra.mxu0 0.0
        %7936 = vmatprep.subr.mxu0 0.0
        %7937 = vmatpush2.msra.mxu0 0.0
        %7938 = vmatprep.subr.mxu0 0.0
        %7939 = vmatpush2.msra.mxu0 0.0
        %7940 = vmatprep.subr.mxu0 0.0
        %7941 = vmatpush2.msra.mxu0 0.0
        %7942 = vmatprep.subr.mxu0 0.0
        %7943 = vmatpush2.msra.mxu0 0.0
        %7944 = vmatprep.subr.mxu0 0.0
        %7945 = vmatpush2.msra.mxu0 0.0
        %7946 = vmatprep.mubr.f32.mxu0 0.0
        %v7947 = vand.u32 %v7870, 4294901760
        %v7948 = vsub.f32 %v7870, %v7947
        %v7949 = vand.u32 %v7948, 4294901760
        %v7950 = vsub.f32 %v7948, %v7949
        %v7951 = vand.u32 %v7950, 4294901760
        %7952 = vmatmul.mubr.f32.gmra.mxu0 %v7951
        %v7953 = vpop.f32.mrf.mxu0
        %v7954 = vadd.f32 0.0, %v7953
        %v7955 = vpop.f32.mrf.mxu0
        %7956 = vdwg.mxu0
        %7957 = vmatprep.subr.mxu0 0.0
        %7958 = vmatpush1.msra.mxu0 0.0
        %7959 = vmatprep.subr.mxu0 0.0
        %7960 = vmatpush1.msra.mxu0 0.0
        %7961 = vmatprep.subr.mxu0 0.0
        %7962 = vmatpush1.msra.mxu0 0.0
        %7963 = vmatprep.subr.mxu0 0.0
        %7964 = vmatpush1.msra.mxu0 0.0
        %7965 = vmatprep.subr.mxu0 0.0
        %7966 = vmatpush1.msra.mxu0 0.0
        %7967 = vmatprep.subr.mxu0 0.0
        %7968 = vmatpush1.msra.mxu0 0.0
        %7969 = vmatprep.subr.mxu0 0.0
        %v7970 = vand.u32 %v7868, 4294901760
        %v7971 = vsub.f32 %v7868, %v7970
        %v7972 = vand.u32 %v7971, 4294901760
        %v7973 = vsub.f32 %v7971, %v7972
        %v7974 = vand.u32 %v7973, 4294901760
        %7975 = vmatpush1.msra.mxu0 %v7974
        %7976 = vmatprep.subr.mxu0 0.0
        %v7977 = vand.u32 %v7867, 4294901760
        %v7978 = vsub.f32 %v7867, %v7977
        %v7979 = vand.u32 %v7978, 4294901760
        %v7980 = vsub.f32 %v7978, %v7979
        %v7981 = vand.u32 %v7980, 4294901760
        %7982 = vmatpush1.msra.mxu0 %v7981
        %7983 = vmatprep.subr.mxu0 0.0
        %v7984 = vand.u32 %v7866, 4294901760
        %v7985 = vsub.f32 %v7866, %v7984
        %v7986 = vand.u32 %v7985, 4294901760
        %v7987 = vsub.f32 %v7985, %v7986
        %v7988 = vand.u32 %v7987, 4294901760
        %7989 = vmatpush1.msra.mxu0 %v7988
        %7990 = vmatprep.subr.mxu0 0.0
        %v7991 = vand.u32 %v7865, 4294901760
        %v7992 = vsub.f32 %v7865, %v7991
        %v7993 = vand.u32 %v7992, 4294901760
        %v7994 = vsub.f32 %v7992, %v7993
        %v7995 = vand.u32 %v7994, 4294901760
        %7996 = vmatpush1.msra.mxu0 %v7995
        %7997 = vmatprep.subr.mxu0 0.0
        %v7998 = vand.u32 %v7864, 4294901760
        %v7999 = vsub.f32 %v7864, %v7998
        %v8000 = vand.u32 %v7999, 4294901760
        %v8001 = vsub.f32 %v7999, %v8000
        %v8002 = vand.u32 %v8001, 4294901760
        %8003 = vmatpush1.msra.mxu0 %v8002
        %8004 = vmatprep.subr.mxu0 0.0
        %v8005 = vand.u32 %v7863, 4294901760
        %v8006 = vsub.f32 %v7863, %v8005
        %v8007 = vand.u32 %v8006, 4294901760
        %v8008 = vsub.f32 %v8006, %v8007
        %v8009 = vand.u32 %v8008, 4294901760
        %8010 = vmatpush1.msra.mxu0 %v8009
        %8011 = vmatprep.subr.mxu0 0.0
        %v8012 = vand.u32 %v7862, 4294901760
        %v8013 = vsub.f32 %v7862, %v8012
        %v8014 = vand.u32 %v8013, 4294901760
        %v8015 = vsub.f32 %v8013, %v8014
        %v8016 = vand.u32 %v8015, 4294901760
        %8017 = vmatpush1.msra.mxu0 %v8016
        %8018 = vmatprep.subr.mxu0 0.0
        %v8019 = vand.u32 %v7861, 4294901760
        %v8020 = vsub.f32 %v7861, %v8019
        %v8021 = vand.u32 %v8020, 4294901760
        %v8022 = vsub.f32 %v8020, %v8021
        %v8023 = vand.u32 %v8022, 4294901760
        %8024 = vmatpush1.msra.mxu0 %v8023
        %8025 = vmatprep.subr.mxu0 0.0
        %v8026 = vand.u32 %v7860, 4294901760
        %v8027 = vsub.f32 %v7860, %v8026
        %v8028 = vand.u32 %v8027, 4294901760
        %v8029 = vsub.f32 %v8027, %v8028
        %v8030 = vand.u32 %v8029, 4294901760
        %8031 = vmatpush1.msra.mxu0 %v8030
        %8032 = vmatprep.subr.mxu0 0.0
        %v8033 = vand.u32 %v7859, 4294901760
        %v8034 = vsub.f32 %v7859, %v8033
        %v8035 = vand.u32 %v8034, 4294901760
        %v8036 = vsub.f32 %v8034, %v8035
        %v8037 = vand.u32 %v8036, 4294901760
        %8038 = vmatpush1.msra.mxu0 %v8037
        %8039 = vmatprep.subr.mxu0 0.0
        %8040 = vmatpush2.msra.mxu0 0.0
        %8041 = vmatprep.subr.mxu0 0.0
        %8042 = vmatpush2.msra.mxu0 0.0
        %8043 = vmatprep.subr.mxu0 0.0
        %8044 = vmatpush2.msra.mxu0 0.0
        %8045 = vmatprep.subr.mxu0 0.0
        %8046 = vmatpush2.msra.mxu0 0.0
        %8047 = vmatprep.subr.mxu0 0.0
        %8048 = vmatpush2.msra.mxu0 0.0
        %8049 = vmatprep.subr.mxu0 0.0
        %8050 = vmatpush2.msra.mxu0 0.0
        %8051 = vmatprep.subr.mxu0 0.0
        %8052 = vmatpush2.msra.mxu0 0.0
        %8053 = vmatprep.subr.mxu0 0.0
        %8054 = vmatpush2.msra.mxu0 0.0
        %8055 = vmatprep.subr.mxu0 0.0
        %8056 = vmatpush2.msra.mxu0 0.0
        %8057 = vmatprep.subr.mxu0 0.0
        %8058 = vmatpush2.msra.mxu0 0.0
        %8059 = vmatprep.subr.mxu0 0.0
        %8060 = vmatpush2.msra.mxu0 0.0
        %8061 = vmatprep.subr.mxu0 0.0
        %8062 = vmatpush2.msra.mxu0 0.0
        %8063 = vmatprep.subr.mxu0 0.0
        %8064 = vmatpush2.msra.mxu0 0.0
        %8065 = vmatprep.subr.mxu0 0.0
        %8066 = vmatpush2.msra.mxu0 0.0
        %8067 = vmatprep.subr.mxu0 0.0
        %8068 = vmatpush2.msra.mxu0 0.0
        %8069 = vmatprep.subr.mxu0 0.0
        %8070 = vmatpush2.msra.mxu0 0.0
        %8071 = vmatprep.mubr.f32.mxu0 0.0
        %v8072 = vand.u32 %v7870, 4294901760
        %8073 = vmatmul.mubr.f32.gmra.mxu0 %v8072
        %v8074 = vpop.f32.mrf.mxu0
        %v8075 = vadd.f32 %v7954, %v8074
        %v8076 = vpop.f32.mrf.mxu0
        %8077 = vdwg.mxu0
        %8078 = vmatprep.subr.mxu0 0.0
        %8079 = vmatpush1.msra.mxu0 0.0
        %8080 = vmatprep.subr.mxu0 0.0
        %8081 = vmatpush1.msra.mxu0 0.0
        %8082 = vmatprep.subr.mxu0 0.0
        %8083 = vmatpush1.msra.mxu0 0.0
        %8084 = vmatprep.subr.mxu0 0.0
        %8085 = vmatpush1.msra.mxu0 0.0
        %8086 = vmatprep.subr.mxu0 0.0
        %8087 = vmatpush1.msra.mxu0 0.0
        %8088 = vmatprep.subr.mxu0 0.0
        %8089 = vmatpush1.msra.mxu0 0.0
        %8090 = vmatprep.subr.mxu0 0.0
        %v8091 = vand.u32 %v7868, 4294901760
        %v8092 = vsub.f32 %v7868, %v8091
        %8093 = vmatpush1.msra.mxu0 %v8092
        %8094 = vmatprep.subr.mxu0 0.0
        %v8095 = vand.u32 %v7867, 4294901760
        %v8096 = vsub.f32 %v7867, %v8095
        %8097 = vmatpush1.msra.mxu0 %v8096
        %8098 = vmatprep.subr.mxu0 0.0
        %v8099 = vand.u32 %v7866, 4294901760
        %v8100 = vsub.f32 %v7866, %v8099
        %8101 = vmatpush1.msra.mxu0 %v8100
        %8102 = vmatprep.subr.mxu0 0.0
        %v8103 = vand.u32 %v7865, 4294901760
        %v8104 = vsub.f32 %v7865, %v8103
        %8105 = vmatpush1.msra.mxu0 %v8104
        %8106 = vmatprep.subr.mxu0 0.0
        %v8107 = vand.u32 %v7864, 4294901760
        %v8108 = vsub.f32 %v7864, %v8107
        %8109 = vmatpush1.msra.mxu0 %v8108
        %8110 = vmatprep.subr.mxu0 0.0
        %v8111 = vand.u32 %v7863, 4294901760
        %v8112 = vsub.f32 %v7863, %v8111
        %8113 = vmatpush1.msra.mxu0 %v8112
        %8114 = vmatprep.subr.mxu0 0.0
        %v8115 = vand.u32 %v7862, 4294901760
        %v8116 = vsub.f32 %v7862, %v8115
        %8117 = vmatpush1.msra.mxu0 %v8116
        %8118 = vmatprep.subr.mxu0 0.0
        %v8119 = vand.u32 %v7861, 4294901760
        %v8120 = vsub.f32 %v7861, %v8119
        %8121 = vmatpush1.msra.mxu0 %v8120
        %8122 = vmatprep.subr.mxu0 0.0
        %v8123 = vand.u32 %v7860, 4294901760
        %v8124 = vsub.f32 %v7860, %v8123
        %8125 = vmatpush1.msra.mxu0 %v8124
        %8126 = vmatprep.subr.mxu0 0.0
        %v8127 = vand.u32 %v7859, 4294901760
        %v8128 = vsub.f32 %v7859, %v8127
        %8129 = vmatpush1.msra.mxu0 %v8128
        %8130 = vmatprep.subr.mxu0 0.0
        %8131 = vmatpush2.msra.mxu0 0.0
        %8132 = vmatprep.subr.mxu0 0.0
        %8133 = vmatpush2.msra.mxu0 0.0
        %8134 = vmatprep.subr.mxu0 0.0
        %8135 = vmatpush2.msra.mxu0 0.0
        %8136 = vmatprep.subr.mxu0 0.0
        %8137 = vmatpush2.msra.mxu0 0.0
        %8138 = vmatprep.subr.mxu0 0.0
        %8139 = vmatpush2.msra.mxu0 0.0
        %8140 = vmatprep.subr.mxu0 0.0
        %8141 = vmatpush2.msra.mxu0 0.0
        %8142 = vmatprep.subr.mxu0 0.0
        %8143 = vmatpush2.msra.mxu0 0.0
        %8144 = vmatprep.subr.mxu0 0.0
        %8145 = vmatpush2.msra.mxu0 0.0
        %8146 = vmatprep.subr.mxu0 0.0
        %8147 = vmatpush2.msra.mxu0 0.0
        %8148 = vmatprep.subr.mxu0 0.0
        %8149 = vmatpush2.msra.mxu0 0.0
        %8150 = vmatprep.subr.mxu0 0.0
        %8151 = vmatpush2.msra.mxu0 0.0
        %8152 = vmatprep.subr.mxu0 0.0
        %8153 = vmatpush2.msra.mxu0 0.0
        %8154 = vmatprep.subr.mxu0 0.0
        %8155 = vmatpush2.msra.mxu0 0.0
        %8156 = vmatprep.subr.mxu0 0.0
        %8157 = vmatpush2.msra.mxu0 0.0
        %8158 = vmatprep.subr.mxu0 0.0
        %8159 = vmatpush2.msra.mxu0 0.0
        %8160 = vmatprep.subr.mxu0 0.0
        %8161 = vmatpush2.msra.mxu0 0.0
        %8162 = vmatprep.mubr.f32.mxu0 0.0
        %v8163 = vand.u32 %v7870, 4294901760
        %v8164 = vsub.f32 %v7870, %v8163
        %8165 = vmatmul.mubr.f32.gmra.mxu0 %v8164
        %v8166 = vpop.f32.mrf.mxu0
        %v8167 = vadd.f32 %v8075, %v8166
        %v8168 = vpop.f32.mrf.mxu0
        %8169 = vdwg.mxu0
        %8170 = vmatprep.subr.mxu0 0.0
        %8171 = vmatpush1.msra.mxu0 0.0
        %8172 = vmatprep.subr.mxu0 0.0
        %8173 = vmatpush1.msra.mxu0 0.0
        %8174 = vmatprep.subr.mxu0 0.0
        %8175 = vmatpush1.msra.mxu0 0.0
        %8176 = vmatprep.subr.mxu0 0.0
        %8177 = vmatpush1.msra.mxu0 0.0
        %8178 = vmatprep.subr.mxu0 0.0
        %8179 = vmatpush1.msra.mxu0 0.0
        %8180 = vmatprep.subr.mxu0 0.0
        %8181 = vmatpush1.msra.mxu0 0.0
        %8182 = vmatprep.subr.mxu0 0.0
        %v8183 = vand.u32 %v7868, 4294901760
        %8184 = vmatpush1.msra.mxu0 %v8183
        %8185 = vmatprep.subr.mxu0 0.0
        %v8186 = vand.u32 %v7867, 4294901760
        %8187 = vmatpush1.msra.mxu0 %v8186
        %8188 = vmatprep.subr.mxu0 0.0
        %v8189 = vand.u32 %v7866, 4294901760
        %8190 = vmatpush1.msra.mxu0 %v8189
        %8191 = vmatprep.subr.mxu0 0.0
        %v8192 = vand.u32 %v7865, 4294901760
        %8193 = vmatpush1.msra.mxu0 %v8192
        %8194 = vmatprep.subr.mxu0 0.0
        %v8195 = vand.u32 %v7864, 4294901760
        %8196 = vmatpush1.msra.mxu0 %v8195
        %8197 = vmatprep.subr.mxu0 0.0
        %v8198 = vand.u32 %v7863, 4294901760
        %8199 = vmatpush1.msra.mxu0 %v8198
        %8200 = vmatprep.subr.mxu0 0.0
        %v8201 = vand.u32 %v7862, 4294901760
        %8202 = vmatpush1.msra.mxu0 %v8201
        %8203 = vmatprep.subr.mxu0 0.0
        %v8204 = vand.u32 %v7861, 4294901760
        %8205 = vmatpush1.msra.mxu0 %v8204
        %8206 = vmatprep.subr.mxu0 0.0
        %v8207 = vand.u32 %v7860, 4294901760
        %8208 = vmatpush1.msra.mxu0 %v8207
        %8209 = vmatprep.subr.mxu0 0.0
        %v8210 = vand.u32 %v7859, 4294901760
        %8211 = vmatpush1.msra.mxu0 %v8210
        %8212 = vmatprep.subr.mxu0 0.0
        %8213 = vmatpush2.msra.mxu0 0.0
        %8214 = vmatprep.subr.mxu0 0.0
        %8215 = vmatpush2.msra.mxu0 0.0
        %8216 = vmatprep.subr.mxu0 0.0
        %8217 = vmatpush2.msra.mxu0 0.0
        %8218 = vmatprep.subr.mxu0 0.0
        %8219 = vmatpush2.msra.mxu0 0.0
        %8220 = vmatprep.subr.mxu0 0.0
        %8221 = vmatpush2.msra.mxu0 0.0
        %8222 = vmatprep.subr.mxu0 0.0
        %8223 = vmatpush2.msra.mxu0 0.0
        %8224 = vmatprep.subr.mxu0 0.0
        %8225 = vmatpush2.msra.mxu0 0.0
        %8226 = vmatprep.subr.mxu0 0.0
        %8227 = vmatpush2.msra.mxu0 0.0
        %8228 = vmatprep.subr.mxu0 0.0
        %8229 = vmatpush2.msra.mxu0 0.0
        %8230 = vmatprep.subr.mxu0 0.0
        %8231 = vmatpush2.msra.mxu0 0.0
        %8232 = vmatprep.subr.mxu0 0.0
        %8233 = vmatpush2.msra.mxu0 0.0
        %8234 = vmatprep.subr.mxu0 0.0
        %8235 = vmatpush2.msra.mxu0 0.0
        %8236 = vmatprep.subr.mxu0 0.0
        %8237 = vmatpush2.msra.mxu0 0.0
        %8238 = vmatprep.subr.mxu0 0.0
        %8239 = vmatpush2.msra.mxu0 0.0
        %8240 = vmatprep.subr.mxu0 0.0
        %8241 = vmatpush2.msra.mxu0 0.0
        %8242 = vmatprep.subr.mxu0 0.0
        %8243 = vmatpush2.msra.mxu0 0.0
        %8244 = vmatprep.mubr.f32.mxu0 0.0
        %v8245 = vand.u32 %v7870, 4294901760
        %v8246 = vsub.f32 %v7870, %v8245
        %v8247 = vand.u32 %v8246, 4294901760
        %8248 = vmatmul.mubr.f32.gmra.mxu0 %v8247
        %v8249 = vpop.f32.mrf.mxu0
        %v8250 = vadd.f32 %v8167, %v8249
        %v8251 = vpop.f32.mrf.mxu0
        %8252 = vdwg.mxu0
        %8253 = vmatprep.subr.mxu0 0.0
        %8254 = vmatpush1.msra.mxu0 0.0
        %8255 = vmatprep.subr.mxu0 0.0
        %8256 = vmatpush1.msra.mxu0 0.0
        %8257 = vmatprep.subr.mxu0 0.0
        %8258 = vmatpush1.msra.mxu0 0.0
        %8259 = vmatprep.subr.mxu0 0.0
        %8260 = vmatpush1.msra.mxu0 0.0
        %8261 = vmatprep.subr.mxu0 0.0
        %8262 = vmatpush1.msra.mxu0 0.0
        %8263 = vmatprep.subr.mxu0 0.0
        %8264 = vmatpush1.msra.mxu0 0.0
        %8265 = vmatprep.subr.mxu0 0.0
        %v8266 = vand.u32 %v7868, 4294901760
        %v8267 = vsub.f32 %v7868, %v8266
        %v8268 = vand.u32 %v8267, 4294901760
        %8269 = vmatpush1.msra.mxu0 %v8268
        %8270 = vmatprep.subr.mxu0 0.0
        %v8271 = vand.u32 %v7867, 4294901760
        %v8272 = vsub.f32 %v7867, %v8271
        %v8273 = vand.u32 %v8272, 4294901760
        %8274 = vmatpush1.msra.mxu0 %v8273
        %8275 = vmatprep.subr.mxu0 0.0
        %v8276 = vand.u32 %v7866, 4294901760
        %v8277 = vsub.f32 %v7866, %v8276
        %v8278 = vand.u32 %v8277, 4294901760
        %8279 = vmatpush1.msra.mxu0 %v8278
        %8280 = vmatprep.subr.mxu0 0.0
        %v8281 = vand.u32 %v7865, 4294901760
        %v8282 = vsub.f32 %v7865, %v8281
        %v8283 = vand.u32 %v8282, 4294901760
        %8284 = vmatpush1.msra.mxu0 %v8283
        %8285 = vmatprep.subr.mxu0 0.0
        %v8286 = vand.u32 %v7864, 4294901760
        %v8287 = vsub.f32 %v7864, %v8286
        %v8288 = vand.u32 %v8287, 4294901760
        %8289 = vmatpush1.msra.mxu0 %v8288
        %8290 = vmatprep.subr.mxu0 0.0
        %v8291 = vand.u32 %v7863, 4294901760
        %v8292 = vsub.f32 %v7863, %v8291
        %v8293 = vand.u32 %v8292, 4294901760
        %8294 = vmatpush1.msra.mxu0 %v8293
        %8295 = vmatprep.subr.mxu0 0.0
        %v8296 = vand.u32 %v7862, 4294901760
        %v8297 = vsub.f32 %v7862, %v8296
        %v8298 = vand.u32 %v8297, 4294901760
        %8299 = vmatpush1.msra.mxu0 %v8298
        %8300 = vmatprep.subr.mxu0 0.0
        %v8301 = vand.u32 %v7861, 4294901760
        %v8302 = vsub.f32 %v7861, %v8301
        %v8303 = vand.u32 %v8302, 4294901760
        %8304 = vmatpush1.msra.mxu0 %v8303
        %8305 = vmatprep.subr.mxu0 0.0
        %v8306 = vand.u32 %v7860, 4294901760
        %v8307 = vsub.f32 %v7860, %v8306
        %v8308 = vand.u32 %v8307, 4294901760
        %8309 = vmatpush1.msra.mxu0 %v8308
        %8310 = vmatprep.subr.mxu0 0.0
        %v8311 = vand.u32 %v7859, 4294901760
        %v8312 = vsub.f32 %v7859, %v8311
        %v8313 = vand.u32 %v8312, 4294901760
        %8314 = vmatpush1.msra.mxu0 %v8313
        %8315 = vmatprep.subr.mxu0 0.0
        %8316 = vmatpush2.msra.mxu0 0.0
        %8317 = vmatprep.subr.mxu0 0.0
        %8318 = vmatpush2.msra.mxu0 0.0
        %8319 = vmatprep.subr.mxu0 0.0
        %8320 = vmatpush2.msra.mxu0 0.0
        %8321 = vmatprep.subr.mxu0 0.0
        %8322 = vmatpush2.msra.mxu0 0.0
        %8323 = vmatprep.subr.mxu0 0.0
        %8324 = vmatpush2.msra.mxu0 0.0
        %8325 = vmatprep.subr.mxu0 0.0
        %8326 = vmatpush2.msra.mxu0 0.0
        %8327 = vmatprep.subr.mxu0 0.0
        %8328 = vmatpush2.msra.mxu0 0.0
        %8329 = vmatprep.subr.mxu0 0.0
        %8330 = vmatpush2.msra.mxu0 0.0
        %8331 = vmatprep.subr.mxu0 0.0
        %8332 = vmatpush2.msra.mxu0 0.0
        %8333 = vmatprep.subr.mxu0 0.0
        %8334 = vmatpush2.msra.mxu0 0.0
        %8335 = vmatprep.subr.mxu0 0.0
        %8336 = vmatpush2.msra.mxu0 0.0
        %8337 = vmatprep.subr.mxu0 0.0
        %8338 = vmatpush2.msra.mxu0 0.0
        %8339 = vmatprep.subr.mxu0 0.0
        %8340 = vmatpush2.msra.mxu0 0.0
        %8341 = vmatprep.subr.mxu0 0.0
        %8342 = vmatpush2.msra.mxu0 0.0
        %8343 = vmatprep.subr.mxu0 0.0
        %8344 = vmatpush2.msra.mxu0 0.0
        %8345 = vmatprep.subr.mxu0 0.0
        %8346 = vmatpush2.msra.mxu0 0.0
        %8347 = vmatprep.mubr.f32.mxu0 0.0
        %v8348 = vand.u32 %v7870, 4294901760
        %8349 = vmatmul.mubr.f32.gmra.mxu0 %v8348
        %v8350 = vpop.f32.mrf.mxu0
        %v8351 = vadd.f32 %v8250, %v8350
        %v8352 = vpop.f32.mrf.mxu0
        %8353 = vdwg.mxu0
        %8354 = vmatprep.subr.mxu0 0.0
        %8355 = vmatpush1.msra.mxu0 0.0
        %8356 = vmatprep.subr.mxu0 0.0
        %8357 = vmatpush1.msra.mxu0 0.0
        %8358 = vmatprep.subr.mxu0 0.0
        %8359 = vmatpush1.msra.mxu0 0.0
        %8360 = vmatprep.subr.mxu0 0.0
        %8361 = vmatpush1.msra.mxu0 0.0
        %8362 = vmatprep.subr.mxu0 0.0
        %8363 = vmatpush1.msra.mxu0 0.0
        %8364 = vmatprep.subr.mxu0 0.0
        %8365 = vmatpush1.msra.mxu0 0.0
        %8366 = vmatprep.subr.mxu0 0.0
        %v8367 = vand.u32 %v7868, 4294901760
        %8368 = vmatpush1.msra.mxu0 %v8367
        %8369 = vmatprep.subr.mxu0 0.0
        %v8370 = vand.u32 %v7867, 4294901760
        %8371 = vmatpush1.msra.mxu0 %v8370
        %8372 = vmatprep.subr.mxu0 0.0
        %v8373 = vand.u32 %v7866, 4294901760
        %8374 = vmatpush1.msra.mxu0 %v8373
        %8375 = vmatprep.subr.mxu0 0.0
        %v8376 = vand.u32 %v7865, 4294901760
        %8377 = vmatpush1.msra.mxu0 %v8376
        %8378 = vmatprep.subr.mxu0 0.0
        %v8379 = vand.u32 %v7864, 4294901760
        %8380 = vmatpush1.msra.mxu0 %v8379
        %8381 = vmatprep.subr.mxu0 0.0
        %v8382 = vand.u32 %v7863, 4294901760
        %8383 = vmatpush1.msra.mxu0 %v8382
        %8384 = vmatprep.subr.mxu0 0.0
        %v8385 = vand.u32 %v7862, 4294901760
        %8386 = vmatpush1.msra.mxu0 %v8385
        %8387 = vmatprep.subr.mxu0 0.0
        %v8388 = vand.u32 %v7861, 4294901760
        %8389 = vmatpush1.msra.mxu0 %v8388
        %8390 = vmatprep.subr.mxu0 0.0
        %v8391 = vand.u32 %v7860, 4294901760
        %8392 = vmatpush1.msra.mxu0 %v8391
        %8393 = vmatprep.subr.mxu0 0.0
        %v8394 = vand.u32 %v7859, 4294901760
        %8395 = vmatpush1.msra.mxu0 %v8394
        %8396 = vmatprep.subr.mxu0 0.0
        %8397 = vmatpush2.msra.mxu0 0.0
        %8398 = vmatprep.subr.mxu0 0.0
        %8399 = vmatpush2.msra.mxu0 0.0
        %8400 = vmatprep.subr.mxu0 0.0
        %8401 = vmatpush2.msra.mxu0 0.0
        %8402 = vmatprep.subr.mxu0 0.0
        %8403 = vmatpush2.msra.mxu0 0.0
        %8404 = vmatprep.subr.mxu0 0.0
        %8405 = vmatpush2.msra.mxu0 0.0
        %8406 = vmatprep.subr.mxu0 0.0
        %8407 = vmatpush2.msra.mxu0 0.0
        %8408 = vmatprep.subr.mxu0 0.0
        %8409 = vmatpush2.msra.mxu0 0.0
        %8410 = vmatprep.subr.mxu0 0.0
        %8411 = vmatpush2.msra.mxu0 0.0
        %8412 = vmatprep.subr.mxu0 0.0
        %8413 = vmatpush2.msra.mxu0 0.0
        %8414 = vmatprep.subr.mxu0 0.0
        %8415 = vmatpush2.msra.mxu0 0.0
        %8416 = vmatprep.subr.mxu0 0.0
        %8417 = vmatpush2.msra.mxu0 0.0
        %8418 = vmatprep.subr.mxu0 0.0
        %8419 = vmatpush2.msra.mxu0 0.0
        %8420 = vmatprep.subr.mxu0 0.0
        %8421 = vmatpush2.msra.mxu0 0.0
        %8422 = vmatprep.subr.mxu0 0.0
        %8423 = vmatpush2.msra.mxu0 0.0
        %8424 = vmatprep.subr.mxu0 0.0
        %8425 = vmatpush2.msra.mxu0 0.0
        %8426 = vmatprep.subr.mxu0 0.0
        %8427 = vmatpush2.msra.mxu0 0.0
        %8428 = vmatprep.mubr.f32.mxu0 0.0
        %v8429 = vand.u32 %v7870, 4294901760
        %8430 = vmatmul.mubr.f32.gmra.mxu0 %v8429
        %v8431 = vpop.f32.mrf.mxu0
        %v8432 = vadd.f32 %v8351, %v8431
        %v8433 = vpop.f32.mrf.mxu0
        %8434 = vdwg.mxu0
        %v8435 = vadd.f32 %v7854, %v8432
        %v8436 = vld [vmem:[%s10] sm:$0x1]
        %v8438 = vlaneseq
        %v8439 = vshrl.u32 %v8438, 7
        %v8440 = vsub.s32 0, %v8439
        %v8441 = vrot.slane %v8436, %v8440
        %v8443 = vadd.f32 %v8435, %v8441
        %vm8444 = vcmp.gt.f32.partialorder %v8443, 0.0
        %v8445 = vld [vmem:[%s11] sm:$0x1]
        %v8447 = vlaneseq
        %v8448 = vshrl.u32 %v8447, 7
        %v8449 = vsub.s32 0, %v8448
        %v8450 = vrot.slane %v8445, %v8449
        %v8452 = vmul.f32 %v8450, %v8443
        %v8453 = vsel %vm8444, %v8443, %v8452
        %v8454 = vld [vmem:[%s12] sm:$0xff]
        %v8455 = vld [vmem:[%s12 + $0x8] sm:$0xff]
        %v8456 = vld [vmem:[%s12 + $0x10] sm:$0xff]
        %v8457 = vld [vmem:[%s12 + $0x18] sm:$0xff]
        %v8458 = vld [vmem:[%s12 + $0x20] sm:$0xff]
        %v8459 = vld [vmem:[%s12 + $0x28] sm:$0xff]
        %v8460 = vld [vmem:[%s12 + $0x30] sm:$0xff]
        %v8461 = vld [vmem:[%s12 + $0x38] sm:$0xff]
        %v8462 = vld [vmem:[%s12 + $0x40] sm:$0xff]
        %v8463 = vld [vmem:[%s12 + $0x48] sm:$0xff]
        %v8464 = vld [vmem:[%s12 + $0x50] sm:$0xff]
        %v8465 = vld [vmem:[%s12 + $0x58] sm:$0xff]
        %v8466 = vld [vmem:[%s13] sm:$0x1]
        %v8468 = vlaneseq
        %v8469 = vshrl.u32 %v8468, 7
        %v8470 = vsub.s32 0, %v8469
        %v8471 = vrot.slane %v8466, %v8470
        %vm8473 = vcmask 785408
        %v8475 = vsel %vm8473, %v8453, 0
        %8477 = vmatprep.subr.mxu0 0.0
        %8478 = vmatpush1.msra.mxu0 0.0
        %8479 = vmatprep.subr.mxu0 0.0
        %8480 = vmatpush1.msra.mxu0 0.0
        %8481 = vmatprep.subr.mxu0 0.0
        %8482 = vmatpush1.msra.mxu0 0.0
        %8483 = vmatprep.subr.mxu0 0.0
        %8484 = vmatpush1.msra.mxu0 0.0
        %8485 = vmatprep.subr.mxu0 0.0
        %v8486 = vand.u32 %v8465, 4294901760
        %8487 = vmatpush1.msra.mxu0 %v8486
        %8488 = vmatprep.subr.mxu0 0.0
        %v8489 = vand.u32 %v8464, 4294901760
        %8490 = vmatpush1.msra.mxu0 %v8489
        %8491 = vmatprep.subr.mxu0 0.0
        %v8492 = vand.u32 %v8463, 4294901760
        %8493 = vmatpush1.msra.mxu0 %v8492
        %8494 = vmatprep.subr.mxu0 0.0
        %v8495 = vand.u32 %v8462, 4294901760
        %8496 = vmatpush1.msra.mxu0 %v8495
        %8497 = vmatprep.subr.mxu0 0.0
        %v8498 = vand.u32 %v8461, 4294901760
        %8499 = vmatpush1.msra.mxu0 %v8498
        %8500 = vmatprep.subr.mxu0 0.0
        %v8501 = vand.u32 %v8460, 4294901760
        %8502 = vmatpush1.msra.mxu0 %v8501
        %8503 = vmatprep.subr.mxu0 0.0
        %v8504 = vand.u32 %v8459, 4294901760
        %8505 = vmatpush1.msra.mxu0 %v8504
        %8506 = vmatprep.subr.mxu0 0.0
        %v8507 = vand.u32 %v8458, 4294901760
        %8508 = vmatpush1.msra.mxu0 %v8507
        %8509 = vmatprep.subr.mxu0 0.0
        %v8510 = vand.u32 %v8457, 4294901760
        %8511 = vmatpush1.msra.mxu0 %v8510
        %8512 = vmatprep.subr.mxu0 0.0
        %v8513 = vand.u32 %v8456, 4294901760
        %8514 = vmatpush1.msra.mxu0 %v8513
        %8515 = vmatprep.subr.mxu0 0.0
        %v8516 = vand.u32 %v8455, 4294901760
        %8517 = vmatpush1.msra.mxu0 %v8516
        %8518 = vmatprep.subr.mxu0 0.0
        %v8519 = vand.u32 %v8454, 4294901760
        %8520 = vmatpush1.msra.mxu0 %v8519
        %8521 = vmatprep.subr.mxu0 0.0
        %8522 = vmatpush2.msra.mxu0 0.0
        %8523 = vmatprep.subr.mxu0 0.0
        %8524 = vmatpush2.msra.mxu0 0.0
        %8525 = vmatprep.subr.mxu0 0.0
        %8526 = vmatpush2.msra.mxu0 0.0
        %8527 = vmatprep.subr.mxu0 0.0
        %8528 = vmatpush2.msra.mxu0 0.0
        %8529 = vmatprep.subr.mxu0 0.0
        %8530 = vmatpush2.msra.mxu0 0.0
        %8531 = vmatprep.subr.mxu0 0.0
        %8532 = vmatpush2.msra.mxu0 0.0
        %8533 = vmatprep.subr.mxu0 0.0
        %8534 = vmatpush2.msra.mxu0 0.0
        %8535 = vmatprep.subr.mxu0 0.0
        %8536 = vmatpush2.msra.mxu0 0.0
        %8537 = vmatprep.subr.mxu0 0.0
        %8538 = vmatpush2.msra.mxu0 0.0
        %8539 = vmatprep.subr.mxu0 0.0
        %8540 = vmatpush2.msra.mxu0 0.0
        %8541 = vmatprep.subr.mxu0 0.0
        %8542 = vmatpush2.msra.mxu0 0.0
        %8543 = vmatprep.subr.mxu0 0.0
        %8544 = vmatpush2.msra.mxu0 0.0
        %8545 = vmatprep.subr.mxu0 0.0
        %8546 = vmatpush2.msra.mxu0 0.0
        %8547 = vmatprep.subr.mxu0 0.0
        %8548 = vmatpush2.msra.mxu0 0.0
        %8549 = vmatprep.subr.mxu0 0.0
        %8550 = vmatpush2.msra.mxu0 0.0
        %8551 = vmatprep.subr.mxu0 0.0
        %8552 = vmatpush2.msra.mxu0 0.0
        %8553 = vmatprep.mubr.f32.mxu0 0.0
        %v8554 = vand.u32 %v8475, 4294901760
        %v8555 = vsub.f32 %v8475, %v8554
        %v8556 = vand.u32 %v8555, 4294901760
        %v8557 = vsub.f32 %v8555, %v8556
        %v8558 = vand.u32 %v8557, 4294901760
        %8559 = vmatmul.mubr.f32.gmra.mxu0 %v8558
        %v8560 = vpop.f32.mrf.mxu0
        %v8561 = vadd.f32 %v8471, %v8560
        %v8562 = vpop.f32.mrf.mxu0
        %8563 = vdwg.mxu0
        %8564 = vmatprep.subr.mxu0 0.0
        %8565 = vmatpush1.msra.mxu0 0.0
        %8566 = vmatprep.subr.mxu0 0.0
        %8567 = vmatpush1.msra.mxu0 0.0
        %8568 = vmatprep.subr.mxu0 0.0
        %8569 = vmatpush1.msra.mxu0 0.0
        %8570 = vmatprep.subr.mxu0 0.0
        %8571 = vmatpush1.msra.mxu0 0.0
        %8572 = vmatprep.subr.mxu0 0.0
        %v8573 = vand.u32 %v8465, 4294901760
        %v8574 = vsub.f32 %v8465, %v8573
        %v8575 = vand.u32 %v8574, 4294901760
        %v8576 = vsub.f32 %v8574, %v8575
        %v8577 = vand.u32 %v8576, 4294901760
        %8578 = vmatpush1.msra.mxu0 %v8577
        %8579 = vmatprep.subr.mxu0 0.0
        %v8580 = vand.u32 %v8464, 4294901760
        %v8581 = vsub.f32 %v8464, %v8580
        %v8582 = vand.u32 %v8581, 4294901760
        %v8583 = vsub.f32 %v8581, %v8582
        %v8584 = vand.u32 %v8583, 4294901760
        %8585 = vmatpush1.msra.mxu0 %v8584
        %8586 = vmatprep.subr.mxu0 0.0
        %v8587 = vand.u32 %v8463, 4294901760
        %v8588 = vsub.f32 %v8463, %v8587
        %v8589 = vand.u32 %v8588, 4294901760
        %v8590 = vsub.f32 %v8588, %v8589
        %v8591 = vand.u32 %v8590, 4294901760
        %8592 = vmatpush1.msra.mxu0 %v8591
        %8593 = vmatprep.subr.mxu0 0.0
        %v8594 = vand.u32 %v8462, 4294901760
        %v8595 = vsub.f32 %v8462, %v8594
        %v8596 = vand.u32 %v8595, 4294901760
        %v8597 = vsub.f32 %v8595, %v8596
        %v8598 = vand.u32 %v8597, 4294901760
        %8599 = vmatpush1.msra.mxu0 %v8598
        %8600 = vmatprep.subr.mxu0 0.0
        %v8601 = vand.u32 %v8461, 4294901760
        %v8602 = vsub.f32 %v8461, %v8601
        %v8603 = vand.u32 %v8602, 4294901760
        %v8604 = vsub.f32 %v8602, %v8603
        %v8605 = vand.u32 %v8604, 4294901760
        %8606 = vmatpush1.msra.mxu0 %v8605
        %8607 = vmatprep.subr.mxu0 0.0
        %v8608 = vand.u32 %v8460, 4294901760
        %v8609 = vsub.f32 %v8460, %v8608
        %v8610 = vand.u32 %v8609, 4294901760
        %v8611 = vsub.f32 %v8609, %v8610
        %v8612 = vand.u32 %v8611, 4294901760
        %8613 = vmatpush1.msra.mxu0 %v8612
        %8614 = vmatprep.subr.mxu0 0.0
        %v8615 = vand.u32 %v8459, 4294901760
        %v8616 = vsub.f32 %v8459, %v8615
        %v8617 = vand.u32 %v8616, 4294901760
        %v8618 = vsub.f32 %v8616, %v8617
        %v8619 = vand.u32 %v8618, 4294901760
        %8620 = vmatpush1.msra.mxu0 %v8619
        %8621 = vmatprep.subr.mxu0 0.0
        %v8622 = vand.u32 %v8458, 4294901760
        %v8623 = vsub.f32 %v8458, %v8622
        %v8624 = vand.u32 %v8623, 4294901760
        %v8625 = vsub.f32 %v8623, %v8624
        %v8626 = vand.u32 %v8625, 4294901760
        %8627 = vmatpush1.msra.mxu0 %v8626
        %8628 = vmatprep.subr.mxu0 0.0
        %v8629 = vand.u32 %v8457, 4294901760
        %v8630 = vsub.f32 %v8457, %v8629
        %v8631 = vand.u32 %v8630, 4294901760
        %v8632 = vsub.f32 %v8630, %v8631
        %v8633 = vand.u32 %v8632, 4294901760
        %8634 = vmatpush1.msra.mxu0 %v8633
        %8635 = vmatprep.subr.mxu0 0.0
        %v8636 = vand.u32 %v8456, 4294901760
        %v8637 = vsub.f32 %v8456, %v8636
        %v8638 = vand.u32 %v8637, 4294901760
        %v8639 = vsub.f32 %v8637, %v8638
        %v8640 = vand.u32 %v8639, 4294901760
        %8641 = vmatpush1.msra.mxu0 %v8640
        %8642 = vmatprep.subr.mxu0 0.0
        %v8643 = vand.u32 %v8455, 4294901760
        %v8644 = vsub.f32 %v8455, %v8643
        %v8645 = vand.u32 %v8644, 4294901760
        %v8646 = vsub.f32 %v8644, %v8645
        %v8647 = vand.u32 %v8646, 4294901760
        %8648 = vmatpush1.msra.mxu0 %v8647
        %8649 = vmatprep.subr.mxu0 0.0
        %v8650 = vand.u32 %v8454, 4294901760
        %v8651 = vsub.f32 %v8454, %v8650
        %v8652 = vand.u32 %v8651, 4294901760
        %v8653 = vsub.f32 %v8651, %v8652
        %v8654 = vand.u32 %v8653, 4294901760
        %8655 = vmatpush1.msra.mxu0 %v8654
        %8656 = vmatprep.subr.mxu0 0.0
        %8657 = vmatpush2.msra.mxu0 0.0
        %8658 = vmatprep.subr.mxu0 0.0
        %8659 = vmatpush2.msra.mxu0 0.0
        %8660 = vmatprep.subr.mxu0 0.0
        %8661 = vmatpush2.msra.mxu0 0.0
        %8662 = vmatprep.subr.mxu0 0.0
        %8663 = vmatpush2.msra.mxu0 0.0
        %8664 = vmatprep.subr.mxu0 0.0
        %8665 = vmatpush2.msra.mxu0 0.0
        %8666 = vmatprep.subr.mxu0 0.0
        %8667 = vmatpush2.msra.mxu0 0.0
        %8668 = vmatprep.subr.mxu0 0.0
        %8669 = vmatpush2.msra.mxu0 0.0
        %8670 = vmatprep.subr.mxu0 0.0
        %8671 = vmatpush2.msra.mxu0 0.0
        %8672 = vmatprep.subr.mxu0 0.0
        %8673 = vmatpush2.msra.mxu0 0.0
        %8674 = vmatprep.subr.mxu0 0.0
        %8675 = vmatpush2.msra.mxu0 0.0
        %8676 = vmatprep.subr.mxu0 0.0
        %8677 = vmatpush2.msra.mxu0 0.0
        %8678 = vmatprep.subr.mxu0 0.0
        %8679 = vmatpush2.msra.mxu0 0.0
        %8680 = vmatprep.subr.mxu0 0.0
        %8681 = vmatpush2.msra.mxu0 0.0
        %8682 = vmatprep.subr.mxu0 0.0
        %8683 = vmatpush2.msra.mxu0 0.0
        %8684 = vmatprep.subr.mxu0 0.0
        %8685 = vmatpush2.msra.mxu0 0.0
        %8686 = vmatprep.subr.mxu0 0.0
        %8687 = vmatpush2.msra.mxu0 0.0
        %8688 = vmatprep.mubr.f32.mxu0 0.0
        %v8689 = vand.u32 %v8475, 4294901760
        %8690 = vmatmul.mubr.f32.gmra.mxu0 %v8689
        %v8691 = vpop.f32.mrf.mxu0
        %v8692 = vadd.f32 %v8561, %v8691
        %v8693 = vpop.f32.mrf.mxu0
        %8694 = vdwg.mxu0
        %8695 = vmatprep.subr.mxu0 0.0
        %8696 = vmatpush1.msra.mxu0 0.0
        %8697 = vmatprep.subr.mxu0 0.0
        %8698 = vmatpush1.msra.mxu0 0.0
        %8699 = vmatprep.subr.mxu0 0.0
        %8700 = vmatpush1.msra.mxu0 0.0
        %8701 = vmatprep.subr.mxu0 0.0
        %8702 = vmatpush1.msra.mxu0 0.0
        %8703 = vmatprep.subr.mxu0 0.0
        %v8704 = vand.u32 %v8465, 4294901760
        %v8705 = vsub.f32 %v8465, %v8704
        %8706 = vmatpush1.msra.mxu0 %v8705
        %8707 = vmatprep.subr.mxu0 0.0
        %v8708 = vand.u32 %v8464, 4294901760
        %v8709 = vsub.f32 %v8464, %v8708
        %8710 = vmatpush1.msra.mxu0 %v8709
        %8711 = vmatprep.subr.mxu0 0.0
        %v8712 = vand.u32 %v8463, 4294901760
        %v8713 = vsub.f32 %v8463, %v8712
        %8714 = vmatpush1.msra.mxu0 %v8713
        %8715 = vmatprep.subr.mxu0 0.0
        %v8716 = vand.u32 %v8462, 4294901760
        %v8717 = vsub.f32 %v8462, %v8716
        %8718 = vmatpush1.msra.mxu0 %v8717
        %8719 = vmatprep.subr.mxu0 0.0
        %v8720 = vand.u32 %v8461, 4294901760
        %v8721 = vsub.f32 %v8461, %v8720
        %8722 = vmatpush1.msra.mxu0 %v8721
        %8723 = vmatprep.subr.mxu0 0.0
        %v8724 = vand.u32 %v8460, 4294901760
        %v8725 = vsub.f32 %v8460, %v8724
        %8726 = vmatpush1.msra.mxu0 %v8725
        %8727 = vmatprep.subr.mxu0 0.0
        %v8728 = vand.u32 %v8459, 4294901760
        %v8729 = vsub.f32 %v8459, %v8728
        %8730 = vmatpush1.msra.mxu0 %v8729
        %8731 = vmatprep.subr.mxu0 0.0
        %v8732 = vand.u32 %v8458, 4294901760
        %v8733 = vsub.f32 %v8458, %v8732
        %8734 = vmatpush1.msra.mxu0 %v8733
        %8735 = vmatprep.subr.mxu0 0.0
        %v8736 = vand.u32 %v8457, 4294901760
        %v8737 = vsub.f32 %v8457, %v8736
        %8738 = vmatpush1.msra.mxu0 %v8737
        %8739 = vmatprep.subr.mxu0 0.0
        %v8740 = vand.u32 %v8456, 4294901760
        %v8741 = vsub.f32 %v8456, %v8740
        %8742 = vmatpush1.msra.mxu0 %v8741
        %8743 = vmatprep.subr.mxu0 0.0
        %v8744 = vand.u32 %v8455, 4294901760
        %v8745 = vsub.f32 %v8455, %v8744
        %8746 = vmatpush1.msra.mxu0 %v8745
        %8747 = vmatprep.subr.mxu0 0.0
        %v8748 = vand.u32 %v8454, 4294901760
        %v8749 = vsub.f32 %v8454, %v8748
        %8750 = vmatpush1.msra.mxu0 %v8749
        %8751 = vmatprep.subr.mxu0 0.0
        %8752 = vmatpush2.msra.mxu0 0.0
        %8753 = vmatprep.subr.mxu0 0.0
        %8754 = vmatpush2.msra.mxu0 0.0
        %8755 = vmatprep.subr.mxu0 0.0
        %8756 = vmatpush2.msra.mxu0 0.0
        %8757 = vmatprep.subr.mxu0 0.0
        %8758 = vmatpush2.msra.mxu0 0.0
        %8759 = vmatprep.subr.mxu0 0.0
        %8760 = vmatpush2.msra.mxu0 0.0
        %8761 = vmatprep.subr.mxu0 0.0
        %8762 = vmatpush2.msra.mxu0 0.0
        %8763 = vmatprep.subr.mxu0 0.0
        %8764 = vmatpush2.msra.mxu0 0.0
        %8765 = vmatprep.subr.mxu0 0.0
        %8766 = vmatpush2.msra.mxu0 0.0
        %8767 = vmatprep.subr.mxu0 0.0
        %8768 = vmatpush2.msra.mxu0 0.0
        %8769 = vmatprep.subr.mxu0 0.0
        %8770 = vmatpush2.msra.mxu0 0.0
        %8771 = vmatprep.subr.mxu0 0.0
        %8772 = vmatpush2.msra.mxu0 0.0
        %8773 = vmatprep.subr.mxu0 0.0
        %8774 = vmatpush2.msra.mxu0 0.0
        %8775 = vmatprep.subr.mxu0 0.0
        %8776 = vmatpush2.msra.mxu0 0.0
        %8777 = vmatprep.subr.mxu0 0.0
        %8778 = vmatpush2.msra.mxu0 0.0
        %8779 = vmatprep.subr.mxu0 0.0
        %8780 = vmatpush2.msra.mxu0 0.0
        %8781 = vmatprep.subr.mxu0 0.0
        %8782 = vmatpush2.msra.mxu0 0.0
        %8783 = vmatprep.mubr.f32.mxu0 0.0
        %v8784 = vand.u32 %v8475, 4294901760
        %v8785 = vsub.f32 %v8475, %v8784
        %8786 = vmatmul.mubr.f32.gmra.mxu0 %v8785
        %v8787 = vpop.f32.mrf.mxu0
        %v8788 = vadd.f32 %v8692, %v8787
        %v8789 = vpop.f32.mrf.mxu0
        %8790 = vdwg.mxu0
        %8791 = vmatprep.subr.mxu0 0.0
        %8792 = vmatpush1.msra.mxu0 0.0
        %8793 = vmatprep.subr.mxu0 0.0
        %8794 = vmatpush1.msra.mxu0 0.0
        %8795 = vmatprep.subr.mxu0 0.0
        %8796 = vmatpush1.msra.mxu0 0.0
        %8797 = vmatprep.subr.mxu0 0.0
        %8798 = vmatpush1.msra.mxu0 0.0
        %8799 = vmatprep.subr.mxu0 0.0
        %v8800 = vand.u32 %v8465, 4294901760
        %8801 = vmatpush1.msra.mxu0 %v8800
        %8802 = vmatprep.subr.mxu0 0.0
        %v8803 = vand.u32 %v8464, 4294901760
        %8804 = vmatpush1.msra.mxu0 %v8803
        %8805 = vmatprep.subr.mxu0 0.0
        %v8806 = vand.u32 %v8463, 4294901760
        %8807 = vmatpush1.msra.mxu0 %v8806
        %8808 = vmatprep.subr.mxu0 0.0
        %v8809 = vand.u32 %v8462, 4294901760
        %8810 = vmatpush1.msra.mxu0 %v8809
        %8811 = vmatprep.subr.mxu0 0.0
        %v8812 = vand.u32 %v8461, 4294901760
        %8813 = vmatpush1.msra.mxu0 %v8812
        %8814 = vmatprep.subr.mxu0 0.0
        %v8815 = vand.u32 %v8460, 4294901760
        %8816 = vmatpush1.msra.mxu0 %v8815
        %8817 = vmatprep.subr.mxu0 0.0
        %v8818 = vand.u32 %v8459, 4294901760
        %8819 = vmatpush1.msra.mxu0 %v8818
        %8820 = vmatprep.subr.mxu0 0.0
        %v8821 = vand.u32 %v8458, 4294901760
        %8822 = vmatpush1.msra.mxu0 %v8821
        %8823 = vmatprep.subr.mxu0 0.0
        %v8824 = vand.u32 %v8457, 4294901760
        %8825 = vmatpush1.msra.mxu0 %v8824
        %8826 = vmatprep.subr.mxu0 0.0
        %v8827 = vand.u32 %v8456, 4294901760
        %8828 = vmatpush1.msra.mxu0 %v8827
        %8829 = vmatprep.subr.mxu0 0.0
        %v8830 = vand.u32 %v8455, 4294901760
        %8831 = vmatpush1.msra.mxu0 %v8830
        %8832 = vmatprep.subr.mxu0 0.0
        %v8833 = vand.u32 %v8454, 4294901760
        %8834 = vmatpush1.msra.mxu0 %v8833
        %8835 = vmatprep.subr.mxu0 0.0
        %8836 = vmatpush2.msra.mxu0 0.0
        %8837 = vmatprep.subr.mxu0 0.0
        %8838 = vmatpush2.msra.mxu0 0.0
        %8839 = vmatprep.subr.mxu0 0.0
        %8840 = vmatpush2.msra.mxu0 0.0
        %8841 = vmatprep.subr.mxu0 0.0
        %8842 = vmatpush2.msra.mxu0 0.0
        %8843 = vmatprep.subr.mxu0 0.0
        %8844 = vmatpush2.msra.mxu0 0.0
        %8845 = vmatprep.subr.mxu0 0.0
        %8846 = vmatpush2.msra.mxu0 0.0
        %8847 = vmatprep.subr.mxu0 0.0
        %8848 = vmatpush2.msra.mxu0 0.0
        %8849 = vmatprep.subr.mxu0 0.0
        %8850 = vmatpush2.msra.mxu0 0.0
        %8851 = vmatprep.subr.mxu0 0.0
        %8852 = vmatpush2.msra.mxu0 0.0
        %8853 = vmatprep.subr.mxu0 0.0
        %8854 = vmatpush2.msra.mxu0 0.0
        %8855 = vmatprep.subr.mxu0 0.0
        %8856 = vmatpush2.msra.mxu0 0.0
        %8857 = vmatprep.subr.mxu0 0.0
        %8858 = vmatpush2.msra.mxu0 0.0
        %8859 = vmatprep.subr.mxu0 0.0
        %8860 = vmatpush2.msra.mxu0 0.0
        %8861 = vmatprep.subr.mxu0 0.0
        %8862 = vmatpush2.msra.mxu0 0.0
        %8863 = vmatprep.subr.mxu0 0.0
        %8864 = vmatpush2.msra.mxu0 0.0
        %8865 = vmatprep.subr.mxu0 0.0
        %8866 = vmatpush2.msra.mxu0 0.0
        %8867 = vmatprep.mubr.f32.mxu0 0.0
        %v8868 = vand.u32 %v8475, 4294901760
        %v8869 = vsub.f32 %v8475, %v8868
        %v8870 = vand.u32 %v8869, 4294901760
        %8871 = vmatmul.mubr.f32.gmra.mxu0 %v8870
        %v8872 = vpop.f32.mrf.mxu0
        %v8873 = vadd.f32 %v8788, %v8872
        %v8874 = vpop.f32.mrf.mxu0
        %8875 = vdwg.mxu0
        %8876 = vmatprep.subr.mxu0 0.0
        %8877 = vmatpush1.msra.mxu0 0.0
        %8878 = vmatprep.subr.mxu0 0.0
        %8879 = vmatpush1.msra.mxu0 0.0
        %8880 = vmatprep.subr.mxu0 0.0
        %8881 = vmatpush1.msra.mxu0 0.0
        %8882 = vmatprep.subr.mxu0 0.0
        %8883 = vmatpush1.msra.mxu0 0.0
        %8884 = vmatprep.subr.mxu0 0.0
        %v8885 = vand.u32 %v8465, 4294901760
        %v8886 = vsub.f32 %v8465, %v8885
        %v8887 = vand.u32 %v8886, 4294901760
        %8888 = vmatpush1.msra.mxu0 %v8887
        %8889 = vmatprep.subr.mxu0 0.0
        %v8890 = vand.u32 %v8464, 4294901760
        %v8891 = vsub.f32 %v8464, %v8890
        %v8892 = vand.u32 %v8891, 4294901760
        %8893 = vmatpush1.msra.mxu0 %v8892
        %8894 = vmatprep.subr.mxu0 0.0
        %v8895 = vand.u32 %v8463, 4294901760
        %v8896 = vsub.f32 %v8463, %v8895
        %v8897 = vand.u32 %v8896, 4294901760
        %8898 = vmatpush1.msra.mxu0 %v8897
        %8899 = vmatprep.subr.mxu0 0.0
        %v8900 = vand.u32 %v8462, 4294901760
        %v8901 = vsub.f32 %v8462, %v8900
        %v8902 = vand.u32 %v8901, 4294901760
        %8903 = vmatpush1.msra.mxu0 %v8902
        %8904 = vmatprep.subr.mxu0 0.0
        %v8905 = vand.u32 %v8461, 4294901760
        %v8906 = vsub.f32 %v8461, %v8905
        %v8907 = vand.u32 %v8906, 4294901760
        %8908 = vmatpush1.msra.mxu0 %v8907
        %8909 = vmatprep.subr.mxu0 0.0
        %v8910 = vand.u32 %v8460, 4294901760
        %v8911 = vsub.f32 %v8460, %v8910
        %v8912 = vand.u32 %v8911, 4294901760
        %8913 = vmatpush1.msra.mxu0 %v8912
        %8914 = vmatprep.subr.mxu0 0.0
        %v8915 = vand.u32 %v8459, 4294901760
        %v8916 = vsub.f32 %v8459, %v8915
        %v8917 = vand.u32 %v8916, 4294901760
        %8918 = vmatpush1.msra.mxu0 %v8917
        %8919 = vmatprep.subr.mxu0 0.0
        %v8920 = vand.u32 %v8458, 4294901760
        %v8921 = vsub.f32 %v8458, %v8920
        %v8922 = vand.u32 %v8921, 4294901760
        %8923 = vmatpush1.msra.mxu0 %v8922
        %8924 = vmatprep.subr.mxu0 0.0
        %v8925 = vand.u32 %v8457, 4294901760
        %v8926 = vsub.f32 %v8457, %v8925
        %v8927 = vand.u32 %v8926, 4294901760
        %8928 = vmatpush1.msra.mxu0 %v8927
        %8929 = vmatprep.subr.mxu0 0.0
        %v8930 = vand.u32 %v8456, 4294901760
        %v8931 = vsub.f32 %v8456, %v8930
        %v8932 = vand.u32 %v8931, 4294901760
        %8933 = vmatpush1.msra.mxu0 %v8932
        %8934 = vmatprep.subr.mxu0 0.0
        %v8935 = vand.u32 %v8455, 4294901760
        %v8936 = vsub.f32 %v8455, %v8935
        %v8937 = vand.u32 %v8936, 4294901760
        %8938 = vmatpush1.msra.mxu0 %v8937
        %8939 = vmatprep.subr.mxu0 0.0
        %v8940 = vand.u32 %v8454, 4294901760
        %v8941 = vsub.f32 %v8454, %v8940
        %v8942 = vand.u32 %v8941, 4294901760
        %8943 = vmatpush1.msra.mxu0 %v8942
        %8944 = vmatprep.subr.mxu0 0.0
        %8945 = vmatpush2.msra.mxu0 0.0
        %8946 = vmatprep.subr.mxu0 0.0
        %8947 = vmatpush2.msra.mxu0 0.0
        %8948 = vmatprep.subr.mxu0 0.0
        %8949 = vmatpush2.msra.mxu0 0.0
        %8950 = vmatprep.subr.mxu0 0.0
        %8951 = vmatpush2.msra.mxu0 0.0
        %8952 = vmatprep.subr.mxu0 0.0
        %8953 = vmatpush2.msra.mxu0 0.0
        %8954 = vmatprep.subr.mxu0 0.0
        %8955 = vmatpush2.msra.mxu0 0.0
        %8956 = vmatprep.subr.mxu0 0.0
        %8957 = vmatpush2.msra.mxu0 0.0
        %8958 = vmatprep.subr.mxu0 0.0
        %8959 = vmatpush2.msra.mxu0 0.0
        %8960 = vmatprep.subr.mxu0 0.0
        %8961 = vmatpush2.msra.mxu0 0.0
        %8962 = vmatprep.subr.mxu0 0.0
        %8963 = vmatpush2.msra.mxu0 0.0
        %8964 = vmatprep.subr.mxu0 0.0
        %8965 = vmatpush2.msra.mxu0 0.0
        %8966 = vmatprep.subr.mxu0 0.0
        %8967 = vmatpush2.msra.mxu0 0.0
        %8968 = vmatprep.subr.mxu0 0.0
        %8969 = vmatpush2.msra.mxu0 0.0
        %8970 = vmatprep.subr.mxu0 0.0
        %8971 = vmatpush2.msra.mxu0 0.0
        %8972 = vmatprep.subr.mxu0 0.0
        %8973 = vmatpush2.msra.mxu0 0.0
        %8974 = vmatprep.subr.mxu0 0.0
        %8975 = vmatpush2.msra.mxu0 0.0
        %8976 = vmatprep.mubr.f32.mxu0 0.0
        %v8977 = vand.u32 %v8475, 4294901760
        %8978 = vmatmul.mubr.f32.gmra.mxu0 %v8977
        %v8979 = vpop.f32.mrf.mxu0
        %v8980 = vadd.f32 %v8873, %v8979
        %v8981 = vpop.f32.mrf.mxu0
        %8982 = vdwg.mxu0
        %8983 = vmatprep.subr.mxu0 0.0
        %8984 = vmatpush1.msra.mxu0 0.0
        %8985 = vmatprep.subr.mxu0 0.0
        %8986 = vmatpush1.msra.mxu0 0.0
        %8987 = vmatprep.subr.mxu0 0.0
        %8988 = vmatpush1.msra.mxu0 0.0
        %8989 = vmatprep.subr.mxu0 0.0
        %8990 = vmatpush1.msra.mxu0 0.0
        %8991 = vmatprep.subr.mxu0 0.0
        %v8992 = vand.u32 %v8465, 4294901760
        %8993 = vmatpush1.msra.mxu0 %v8992
        %8994 = vmatprep.subr.mxu0 0.0
        %v8995 = vand.u32 %v8464, 4294901760
        %8996 = vmatpush1.msra.mxu0 %v8995
        %8997 = vmatprep.subr.mxu0 0.0
        %v8998 = vand.u32 %v8463, 4294901760
        %8999 = vmatpush1.msra.mxu0 %v8998
        %9000 = vmatprep.subr.mxu0 0.0
        %v9001 = vand.u32 %v8462, 4294901760
        %9002 = vmatpush1.msra.mxu0 %v9001
        %9003 = vmatprep.subr.mxu0 0.0
        %v9004 = vand.u32 %v8461, 4294901760
        %9005 = vmatpush1.msra.mxu0 %v9004
        %9006 = vmatprep.subr.mxu0 0.0
        %v9007 = vand.u32 %v8460, 4294901760
        %9008 = vmatpush1.msra.mxu0 %v9007
        %9009 = vmatprep.subr.mxu0 0.0
        %v9010 = vand.u32 %v8459, 4294901760
        %9011 = vmatpush1.msra.mxu0 %v9010
        %9012 = vmatprep.subr.mxu0 0.0
        %v9013 = vand.u32 %v8458, 4294901760
        %9014 = vmatpush1.msra.mxu0 %v9013
        %9015 = vmatprep.subr.mxu0 0.0
        %v9016 = vand.u32 %v8457, 4294901760
        %9017 = vmatpush1.msra.mxu0 %v9016
        %9018 = vmatprep.subr.mxu0 0.0
        %v9019 = vand.u32 %v8456, 4294901760
        %9020 = vmatpush1.msra.mxu0 %v9019
        %9021 = vmatprep.subr.mxu0 0.0
        %v9022 = vand.u32 %v8455, 4294901760
        %9023 = vmatpush1.msra.mxu0 %v9022
        %9024 = vmatprep.subr.mxu0 0.0
        %v9025 = vand.u32 %v8454, 4294901760
        %9026 = vmatpush1.msra.mxu0 %v9025
        %9027 = vmatprep.subr.mxu0 0.0
        %9028 = vmatpush2.msra.mxu0 0.0
        %9029 = vmatprep.subr.mxu0 0.0
        %9030 = vmatpush2.msra.mxu0 0.0
        %9031 = vmatprep.subr.mxu0 0.0
        %9032 = vmatpush2.msra.mxu0 0.0
        %9033 = vmatprep.subr.mxu0 0.0
        %9034 = vmatpush2.msra.mxu0 0.0
        %9035 = vmatprep.subr.mxu0 0.0
        %9036 = vmatpush2.msra.mxu0 0.0
        %9037 = vmatprep.subr.mxu0 0.0
        %9038 = vmatpush2.msra.mxu0 0.0
        %9039 = vmatprep.subr.mxu0 0.0
        %9040 = vmatpush2.msra.mxu0 0.0
        %9041 = vmatprep.subr.mxu0 0.0
        %9042 = vmatpush2.msra.mxu0 0.0
        %9043 = vmatprep.subr.mxu0 0.0
        %9044 = vmatpush2.msra.mxu0 0.0
        %9045 = vmatprep.subr.mxu0 0.0
        %9046 = vmatpush2.msra.mxu0 0.0
        %9047 = vmatprep.subr.mxu0 0.0
        %9048 = vmatpush2.msra.mxu0 0.0
        %9049 = vmatprep.subr.mxu0 0.0
        %9050 = vmatpush2.msra.mxu0 0.0
        %9051 = vmatprep.subr.mxu0 0.0
        %9052 = vmatpush2.msra.mxu0 0.0
        %9053 = vmatprep.subr.mxu0 0.0
        %9054 = vmatpush2.msra.mxu0 0.0
        %9055 = vmatprep.subr.mxu0 0.0
        %9056 = vmatpush2.msra.mxu0 0.0
        %9057 = vmatprep.subr.mxu0 0.0
        %9058 = vmatpush2.msra.mxu0 0.0
        %9059 = vmatprep.mubr.f32.mxu0 0.0
        %v9060 = vand.u32 %v8475, 4294901760
        %9061 = vmatmul.mubr.f32.gmra.mxu0 %v9060
        %v9062 = vpop.f32.mrf.mxu0
        %v9063 = vadd.f32 %v8980, %v9062
        %v9064 = vpop.f32.mrf.mxu0
        %9065 = vdwg.mxu0
        %v9066 = vsub.f32 0.0, %v9063
        %v9067 = vmul.f32 %v9066, 1.442695
        %v9068 = vpow.pop %v9067
        %v9069 = vadd.f32 %v9068, 1.0
        %v9070 = vrcp.pop %v9069
        %v9071 = vmul.f32 1.0, %v9070
        %vm9072 = vcmask 43008
        %9073 = vst.msk [vmem:[%s514] sm:$0x7] %vm9072, %v9071
        %9075 = vrot.lane.b32.xlu0 %v9063, 122
        %v9076 = vpop.permute.xlu0 %9075
        %vm9078 = vcmask 92160
        %9079 = vst.msk [vmem:[%s518] sm:$0x7] %vm9078, %v9076
        %p9080 = scmp.lt.s32.totalorder %s28, 1
        %s9081 = scalar_select %p9080, %s28, 1
        %s9082 = smul.addr %s9081, 4
        %s9083 = scalar_lea.vmem %s14, %s9082
        %p9084 = scmp.lt.s32.totalorder %s28, 1
        %s9085 = scalar_select %p9084, %s28, 1
        %s9086 = smul.addr %s9085, 4
        %s9087 = scalar_lea.vmem %s15, %s9086
        // Predicated region
        $region81: #{pnet_forward.1} parent=75 // pred_check
          %p9088 = pneg %p345
        $region82: #{pnet_forward.1} parent=75 // pred_check_branch
          %9090 = sbr.rel (%p9088) target = $region84
        $region83: #{pnet_forward.1} parent=75 // pred_region
          _
        $region84: #{pnet_forward.1} parent=75 // pred_fallthru
          _
        // Predicated region
        $region85: #{pnet_forward.1} parent=75 // pred_check
          %p9091 = pneg %p371
        $region86: #{pnet_forward.1} parent=75 // pred_check_branch
          %9093 = sbr.rel (%p9091) target = $region88
        $region87: #{pnet_forward.1} parent=75 // pred_region
          _
        $region88: #{pnet_forward.1} parent=75 // pred_fallthru
          _
      $region76: #{pnet_forward.1} parent=5 // pred_fallthru
        _
      %p9094 = scmp.le.s32.totalorder 2, %s23
      // Predicated region
      $region89: #{pnet_forward.1} parent=5 // pred_check
        %p9095 = pneg %p9094
      $region90: #{pnet_forward.1} parent=5 // pred_check_branch
        %9097 = sbr.rel (%p9095) target = $region92
      $region91: #{pnet_forward.1} parent=5 // pred_region
        %s9098 = ssub.s32 %s23, 2
        // Predicated region
        $region93: #{pnet_forward.1} parent=91 // pred_check
          %p9099 = pneg %p351
        $region94: #{pnet_forward.1} parent=91 // pred_check_branch
          %9101 = sbr.rel (%p9099) target = $region96
        $region95: #{pnet_forward.1} parent=91 // pred_region
          %p9102 = scmp.lt.s32.totalorder %s29, 1
          %s9103 = scalar_select %p9102, %s29, 1
          %s9104 = smul.addr %s9103, 4
          %s9105 = scalar_lea.vmem %s14, %s9104
        $region96: #{pnet_forward.1} parent=91 // pred_fallthru
          _
        // Predicated region
        $region97: #{pnet_forward.1} parent=91 // pred_check
          %p9106 = pneg %p377
        $region98: #{pnet_forward.1} parent=91 // pred_check_branch
          %9108 = sbr.rel (%p9106) target = $region100
        $region99: #{pnet_forward.1} parent=91 // pred_region
          %p9109 = scmp.lt.s32.totalorder %s29, 1
          %s9110 = scalar_select %p9109, %s29, 1
          %s9111 = smul.addr %s9110, 4
          %s9112 = scalar_lea.vmem %s15, %s9111
        $region100: #{pnet_forward.1} parent=91 // pred_fallthru
          _
      $region92: #{pnet_forward.1} parent=5 // pred_fallthru
        _
    $region6: #{pnet_forward.1} parent=1 // loop_footer
      %s27 = sadd.s32 1, %s23
    $region7: #{pnet_forward.1} parent=1 // loop_footer_branch
      %22 = sbr.rel target = $region3
    $region8: #{pnet_forward.1} parent=1 // loop_exit
      _
    %9113 = vsyncpa [#allocation6], 1
    %s9114 = scalar_lea.sflag [#allocation6], 1
    %9115 = vsyncpa %s9114, 1

</llo_original>
